<compile_context>
chip_gen: v5e
topology: v5e:2x2
jax: 0.10.0
libtpu: 0.0.40
codegen_flags: <defaults>
</compile_context>

<pallas_src>
import numpy as np
import jax
import jax.numpy as jnp
from jax.experimental import pallas as pl
from jax.experimental.pallas import tpu as pltpu

_VMEM = pl.BlockSpec(memory_space=pltpu.MemorySpace.VMEM)
_BN_EPS = 1e-5
_CPARAMS = pltpu.CompilerParams(vmem_limit_bytes=32 * 1024 * 1024)  # v7x-safe


# ------------------------------- fused kernel --------------------------------

def _make_decoder_kernel(layer_meta):
    """Build the whole-decoder kernel.

    layer_meta: tuple of (relu: bool, bn: bool, inv_m: float) per deconv layer.

    Ref order:  z, fc_w, fc_b,
                [w, b (, gamma, beta, masks)] per layer,
                out_ref
    """

    def kernel(*refs):
        out_ref = refs[-1]
        it = iter(refs[:-1])

        z = next(it)[...].astype(jnp.bfloat16)         # (N, latent)
        fc_w = next(it)[...]                           # (latent, C0*H0*W0) bf16, NHWC cols
        fc_b = next(it)[...]                           # (1, C0*H0*W0) f32
        # fc: one MXU push, f32 accumulate.  x is the NHWC-flattened slab.
        x = jnp.dot(z, fc_w, preferred_element_type=jnp.float32) + fc_b

        for relu, bn, inv_m in layer_meta:
            w = next(it)[...]                          # (HiWiCin, HoWoCout) bf16 dense deconv
            b = next(it)[...]                          # (1, HoWoCout) f32 pre-tiled bias
            # Entire ConvTranspose2d = one lane-dense matmul (no slices/relayouts).
            y = jnp.dot(x.astype(jnp.bfloat16), w,
                        preferred_element_type=jnp.float32) + b
            if relu:
                y = jnp.maximum(y, 0.0)
            if bn:
                gamma = next(it)[...]                  # (Cout, 1) f32
                beta = next(it)[...]                   # (Cout, 1) f32
                masks = next(it)[...]                  # (Cout, HoWoCout) 0/1 f32
                # Single-pass training-mode BN over the register-resident slab.
                ysum = jnp.sum(y, axis=0, keepdims=True)          # (1, HWC)
                ysq = jnp.sum(y * y, axis=0, keepdims=True)       # (1, HWC)
                ch_sum = jnp.sum(masks * ysum, axis=1, keepdims=True)   # (C, 1)
                ch_sq = jnp.sum(masks * ysq, axis=1, keepdims=True)     # (C, 1)
                mean = ch_sum * inv_m
                var = jnp.maximum(ch_sq * inv_m - mean * mean, 0.0)     # clamp >= 0
                scale = gamma * jax.lax.rsqrt(var + _BN_EPS)            # (C, 1)
                shift = beta - mean * scale
                # Scatter per-channel scale/shift back to the NHWC-flattened layout.
                scale_full = jnp.sum(masks * scale, axis=0, keepdims=True)  # (1, HWC)
                shift_full = jnp.sum(masks * shift, axis=0, keepdims=True)
                y = y * scale_full + shift_full
            x = y

        # Last layer's dense-matrix columns were pre-permuted to NCHW flatten
        # order, so this single lane-dense store already has the final layout.
        out_ref[...] = x

    return kernel


# --------------------------------- wrapper -----------------------------------

def conv_decoder_forward(z, params):
    n = z.shape[0]
    args = [z, params["fc_w"], params["fc_b"]]
    layer_meta = []
    for layer in params["deconv"]:
        args += [layer["w"], layer["b"]]
        if layer["bn"]:
            args += [layer["gamma"], layer["beta"], layer["masks"]]
        layer_meta.append(
            (layer["relu"], layer["bn"], 1.0 / float(n * layer["ho"] * layer["wo"])))

    out_c, ho, wo = params["out_c"], params["out_h"], params["out_w"]
    y = pl.pallas_call(
        _make_decoder_kernel(tuple(layer_meta)),
        out_shape=jax.ShapeDtypeStruct((n, out_c * ho * wo), jnp.float32),
        in_specs=[_VMEM] * len(args),
        out_specs=_VMEM,
        compiler_params=_CPARAMS,
    )(*args)
    # Columns are already NCHW flatten order -> free contiguous reshape.
    return y.reshape(n, out_c, ho, wo)


# --------------------------------- params ------------------------------------

def _dense_deconv_matrix(w, hi, wi, ho, wo, k, s, p):
    """Fold ConvTranspose2d (weight (Cin,Cout,k,k), stride s, padding p,
    output_padding=0) into a dense matrix of shape (Hi*Wi*Cin, Ho*Wo*Cout),
    rows/cols in NHWC flatten order.  One-time init cost (numpy)."""
    cin, cout = w.shape[0], w.shape[1]
    m = np.zeros((hi * wi * cin, ho * wo * cout), np.float32)
    for iy in range(hi):
        for kh in range(k):
            oy = iy * s - p + kh
            if not (0 <= oy < ho):
                continue
            for ix in range(wi):
                for kw in range(k):
                    ox = ix * s - p + kw
                    if not (0 <= ox < wo):
                        continue
                    r0 = (iy * wi + ix) * cin
                    c0 = (oy * wo + ox) * cout
                    m[r0:r0 + cin, c0:c0 + cout] += w[:, :, kh, kw]
    return m


def init_params(key, output_channels, output_size, hidden_channels,
                kernel_sizes, strides, paddings, latent_dim, batch_norm=True):
    assert len(hidden_channels) == len(kernel_sizes) == len(strides) == len(paddings)

    # Mirror the PyTorch ctor: infer the deconv-stack input spatial size by
    # running the encoder conv formula over the reversed configs.
    h, w = output_size
    for k, s, p in zip(reversed(kernel_sizes), reversed(strides), reversed(paddings)):
        h = (h + 2 * p - k) // s + 1
        w = (w + 2 * p - k) // s + 1
    init_c = hidden_channels[0]
    flat = init_c * h * w
    params = {}

    # fc = Linear(latent_dim, flat); stored transposed (latent, flat) with the
    # columns pre-permuted from NCHW-flatten to NHWC-flatten order (one-time
    # layout plumbing so the runtime view(N, C, h, w) needs no transpose).
    key, k1, k2 = jax.random.split(key, 3)
    bound = 1.0 / (latent_dim ** 0.5)
    w_fc = np.asarray(jax.random.uniform(k1, (flat, latent_dim), jnp.float32, -bound, bound))
    b_fc = np.asarray(jax.random.uniform(k2, (flat,), jnp.float32, -bound, bound))
    perm = np.arange(flat).reshape(init_c, h, w).transpose(1, 2, 0).reshape(-1)
    params["fc_w"] = jnp.asarray(w_fc.T[:, perm], jnp.bfloat16)          # (latent, flat)
    params["fc_b"] = jnp.asarray(b_fc[perm].reshape(1, flat), jnp.float32)

    # Deconv stack: [ConvTranspose2d + ReLU (+ BN)] * (L-1), then a bare ConvTranspose2d.
    configs = [(oc, kk, ss, pp, True) for oc, kk, ss, pp in
               zip(hidden_channels[:-1], kernel_sizes[:-1], strides[:-1], paddings[:-1])]
    configs.append((output_channels, kernel_sizes[-1], strides[-1], paddings[-1], False))

    params["deconv"] = []
    hi, wi, in_c = h, w, init_c
    for li, (out_c, kk, ss, pp, is_inter) in enumerate(configs):
        ho = (hi - 1) * ss - 2 * pp + kk          # output_padding = 0
        wo = (wi - 1) * ss - 2 * pp + kk
        key, kw_, kb_ = jax.random.split(key, 3)
        bound = 1.0 / ((in_c * kk * kk) ** 0.5)
        w_t = np.asarray(jax.random.uniform(kw_, (in_c, out_c, kk, kk),
                                            jnp.float32, -bound, bound))
        b_t = np.asarray(jax.random.uniform(kb_, (out_c,), jnp.float32, -bound, bound))

        w_dense = _dense_deconv_matrix(w_t, hi, wi, ho, wo, kk, ss, pp)   # NHWC cols
        b_full = np.tile(b_t, ho * wo)                                     # NHWC order
        if li == len(configs) - 1:
            # Fold the final NHWC->NCHW transpose into the weight columns / bias.
            perm_out = (np.arange(ho * wo * out_c)
                        .reshape(ho, wo, out_c).transpose(2, 0, 1).reshape(-1))
            w_dense = w_dense[:, perm_out]
            b_full = b_full[perm_out]

        layer = {
            "w": jnp.asarray(w_dense, jnp.bfloat16),
            "b": jnp.asarray(b_full.reshape(1, -1), jnp.float32),
            "relu": is_inter,
            "bn": is_inter and batch_norm,
            "ho": ho, "wo": wo,
        }
        if layer["bn"]:
            layer["gamma"] = jnp.ones((out_c, 1), jnp.float32)    # BatchNorm2d weight init
            layer["beta"] = jnp.zeros((out_c, 1), jnp.float32)    # BatchNorm2d bias init
            layer["masks"] = jnp.asarray(
                np.tile(np.eye(out_c, dtype=np.float32), (1, ho * wo)))  # (C, HWC) 0/1
        params["deconv"].append(layer)
        hi, wi, in_c = ho, wo, out_c

    params["out_c"] = output_channels
    params["out_h"] = hi
    params["out_w"] = wi
    return params


# ----------------------------------- main -------------------------------------

if __name__ == "__main__":
    key = jax.random.PRNGKey(0)
    key, zkey, pkey = jax.random.split(key, 3)

    output_channels = 4
    output_size = (16, 16)
    hidden_channels = [32, 16]
    kernel_sizes = [4, 4]
    strides = [2, 2]
    paddings = [1, 1]
    latent_dim = 8
    batch = 2

    params = init_params(pkey, output_channels, output_size, hidden_channels,
                         kernel_sizes, strides, paddings, latent_dim)
    z = jax.random.normal(zkey, (batch, latent_dim), jnp.float32)

    x_recon = conv_decoder_forward(z, params)
    jax.block_until_ready(x_recon)
    assert x_recon.shape == (batch, output_channels, *output_size), x_recon.shape
    assert bool(jnp.isfinite(x_recon).all()), "non-finite values in output"
    print("KERNEL_OK")
</pallas_src>

<mosaic_0001>
module attributes {stable_mosaic.version = 11 : i64} {
  func.func @kernel(%arg0: memref<2x8xf32, #tpu.memory_space<vmem>>, %arg1: memref<8x512xbf16, #tpu.memory_space<vmem>>, %arg2: memref<1x512xf32, #tpu.memory_space<vmem>>, %arg3: memref<512x2048xbf16, #tpu.memory_space<vmem>>, %arg4: memref<1x2048xf32, #tpu.memory_space<vmem>>, %arg5: memref<32x1xf32, #tpu.memory_space<vmem>>, %arg6: memref<32x1xf32, #tpu.memory_space<vmem>>, %arg7: memref<32x2048xf32, #tpu.memory_space<vmem>>, %arg8: memref<2048x1024xbf16, #tpu.memory_space<vmem>>, %arg9: memref<1x1024xf32, #tpu.memory_space<vmem>>, %arg10: memref<2x1024xf32, #tpu.memory_space<vmem>>) attributes {dimension_semantics = [], scalar_prefetch = 0 : i64, scratch_operands = 0 : i64, tpu.core_type = #tpu.core_type<tc>} {
    %c0 = arith.constant 0 : index
    %c0_0 = arith.constant 0 : index
    %0 = vector.load %arg0[%c0, %c0_0] : memref<2x8xf32, #tpu.memory_space<vmem>>, vector<2x8xf32>
    %1 = arith.truncf %0 : vector<2x8xf32> to vector<2x8xbf16>
    %c0_1 = arith.constant 0 : index
    %c0_2 = arith.constant 0 : index
    %2 = vector.load %arg1[%c0_1, %c0_2] : memref<8x512xbf16, #tpu.memory_space<vmem>>, vector<8x512xbf16>
    %c0_3 = arith.constant 0 : index
    %c0_4 = arith.constant 0 : index
    %3 = vector.load %arg2[%c0_3, %c0_4] : memref<1x512xf32, #tpu.memory_space<vmem>>, vector<1x512xf32>
    %cst = arith.constant dense<0.000000e+00> : vector<2x512xf32>
    %4 = tpu.matmul %1, %2, %cst {dimension_numbers = #tpu.dot_dimension_numbers<[1], [0], [0], [1], [0, 0, 1, 1], [], []>} : vector<2x8xbf16>, vector<8x512xbf16>, vector<2x512xf32> -> vector<2x512xf32>
    %5 = vector.broadcast %3 : vector<1x512xf32> to vector<2x512xf32>
    %6 = arith.addf %4, %5 : vector<2x512xf32>
    %c0_5 = arith.constant 0 : index
    %c0_6 = arith.constant 0 : index
    %7 = vector.load %arg3[%c0_5, %c0_6] : memref<512x2048xbf16, #tpu.memory_space<vmem>>, vector<512x2048xbf16>
    %c0_7 = arith.constant 0 : index
    %c0_8 = arith.constant 0 : index
    %8 = vector.load %arg4[%c0_7, %c0_8] : memref<1x2048xf32, #tpu.memory_space<vmem>>, vector<1x2048xf32>
    %9 = arith.truncf %6 : vector<2x512xf32> to vector<2x512xbf16>
    %cst_9 = arith.constant dense<0.000000e+00> : vector<2x2048xf32>
    %10 = tpu.matmul %9, %7, %cst_9 {dimension_numbers = #tpu.dot_dimension_numbers<[1], [0], [0], [1], [0, 0, 1, 1], [], []>} : vector<2x512xbf16>, vector<512x2048xbf16>, vector<2x2048xf32> -> vector<2x2048xf32>
    %11 = vector.broadcast %8 : vector<1x2048xf32> to vector<2x2048xf32>
    %12 = arith.addf %10, %11 : vector<2x2048xf32>
    %cst_10 = arith.constant 0.000000e+00 : f32
    %13 = vector.broadcast %cst_10 : f32 to vector<2x2048xf32>
    %14 = arith.maximumf %12, %13 : vector<2x2048xf32>
    %c0_11 = arith.constant 0 : index
    %c0_12 = arith.constant 0 : index
    %15 = vector.load %arg5[%c0_11, %c0_12] : memref<32x1xf32, #tpu.memory_space<vmem>>, vector<32x1xf32>
    %c0_13 = arith.constant 0 : index
    %c0_14 = arith.constant 0 : index
    %16 = vector.load %arg6[%c0_13, %c0_14] : memref<32x1xf32, #tpu.memory_space<vmem>>, vector<32x1xf32>
    %c0_15 = arith.constant 0 : index
    %c0_16 = arith.constant 0 : index
    %17 = vector.load %arg7[%c0_15, %c0_16] : memref<32x2048xf32, #tpu.memory_space<vmem>>, vector<32x2048xf32>
    %cst_17 = arith.constant dense<0.000000e+00> : vector<2048xf32>
    %18 = vector.multi_reduction <add>, %14, %cst_17 [0] : vector<2x2048xf32> to vector<2048xf32>
    %19 = vector.shape_cast %18 : vector<2048xf32> to vector<1x2048xf32>
    %20 = arith.mulf %14, %14 : vector<2x2048xf32>
    %cst_18 = arith.constant dense<0.000000e+00> : vector<2048xf32>
    %21 = vector.multi_reduction <add>, %20, %cst_18 [0] : vector<2x2048xf32> to vector<2048xf32>
    %22 = vector.shape_cast %21 : vector<2048xf32> to vector<1x2048xf32>
    %23 = vector.broadcast %19 : vector<1x2048xf32> to vector<32x2048xf32>
    %24 = arith.mulf %17, %23 : vector<32x2048xf32>
    %cst_19 = arith.constant dense<0.000000e+00> : vector<32xf32>
    %25 = vector.multi_reduction <add>, %24, %cst_19 [1] : vector<32x2048xf32> to vector<32xf32>
    %26 = vector.shape_cast %25 : vector<32xf32> to vector<32x1xf32>
    %27 = vector.broadcast %22 : vector<1x2048xf32> to vector<32x2048xf32>
    %28 = arith.mulf %17, %27 : vector<32x2048xf32>
    %cst_20 = arith.constant dense<0.000000e+00> : vector<32xf32>
    %29 = vector.multi_reduction <add>, %28, %cst_20 [1] : vector<32x2048xf32> to vector<32xf32>
    %30 = vector.shape_cast %29 : vector<32xf32> to vector<32x1xf32>
    %cst_21 = arith.constant 7.812500e-03 : f32
    %31 = vector.broadcast %cst_21 : f32 to vector<32x1xf32>
    %32 = arith.mulf %26, %31 : vector<32x1xf32>
    %cst_22 = arith.constant 7.812500e-03 : f32
    %33 = vector.broadcast %cst_22 : f32 to vector<32x1xf32>
    %34 = arith.mulf %30, %33 : vector<32x1xf32>
    %35 = arith.mulf %32, %32 : vector<32x1xf32>
    %36 = arith.subf %34, %35 : vector<32x1xf32>
    %cst_23 = arith.constant 0.000000e+00 : f32
    %37 = vector.broadcast %cst_23 : f32 to vector<32x1xf32>
    %38 = arith.maximumf %36, %37 : vector<32x1xf32>
    %cst_24 = arith.constant 9.99999974E-6 : f32
    %39 = vector.broadcast %cst_24 : f32 to vector<32x1xf32>
    %40 = arith.addf %38, %39 : vector<32x1xf32>
    %41 = math.rsqrt %40 : vector<32x1xf32>
    %42 = arith.mulf %15, %41 : vector<32x1xf32>
    %43 = arith.mulf %32, %42 : vector<32x1xf32>
    %44 = arith.subf %16, %43 : vector<32x1xf32>
    %45 = vector.broadcast %42 : vector<32x1xf32> to vector<32x2048xf32>
    %46 = arith.mulf %17, %45 : vector<32x2048xf32>
    %cst_25 = arith.constant dense<0.000000e+00> : vector<2048xf32>
    %47 = vector.multi_reduction <add>, %46, %cst_25 [0] : vector<32x2048xf32> to vector<2048xf32>
    %48 = vector.shape_cast %47 : vector<2048xf32> to vector<1x2048xf32>
    %49 = vector.broadcast %44 : vector<32x1xf32> to vector<32x2048xf32>
    %50 = arith.mulf %17, %49 : vector<32x2048xf32>
    %cst_26 = arith.constant dense<0.000000e+00> : vector<2048xf32>
    %51 = vector.multi_reduction <add>, %50, %cst_26 [0] : vector<32x2048xf32> to vector<2048xf32>
    %52 = vector.shape_cast %51 : vector<2048xf32> to vector<1x2048xf32>
    %53 = vector.broadcast %48 : vector<1x2048xf32> to vector<2x2048xf32>
    %54 = arith.mulf %14, %53 : vector<2x2048xf32>
    %55 = vector.broadcast %52 : vector<1x2048xf32> to vector<2x2048xf32>
    %56 = arith.addf %54, %55 : vector<2x2048xf32>
    %c0_27 = arith.constant 0 : index
    %c0_28 = arith.constant 0 : index
    %57 = vector.load %arg8[%c0_27, %c0_28] : memref<2048x1024xbf16, #tpu.memory_space<vmem>>, vector<2048x1024xbf16>
    %c0_29 = arith.constant 0 : index
    %c0_30 = arith.constant 0 : index
    %58 = vector.load %arg9[%c0_29, %c0_30] : memref<1x1024xf32, #tpu.memory_space<vmem>>, vector<1x1024xf32>
    %59 = arith.truncf %56 : vector<2x2048xf32> to vector<2x2048xbf16>
    %cst_31 = arith.constant dense<0.000000e+00> : vector<2x1024xf32>
    %60 = tpu.matmul %59, %57, %cst_31 {dimension_numbers = #tpu.dot_dimension_numbers<[1], [0], [0], [1], [0, 0, 1, 1], [], []>} : vector<2x2048xbf16>, vector<2048x1024xbf16>, vector<2x1024xf32> -> vector<2x1024xf32>
    %61 = vector.broadcast %58 : vector<1x1024xf32> to vector<2x1024xf32>
    %62 = arith.addf %60, %61 : vector<2x1024xf32>
    %c0_32 = arith.constant 0 : index
    %c0_33 = arith.constant 0 : index
    %63 = vector.load %arg10[%c0_32, %c0_33] : memref<2x1024xf32, #tpu.memory_space<vmem>>, vector<2x1024xf32>
    tpu.vector_store %arg10[%c0_32, %c0_33], %62 {strides = array<i32>} : memref<2x1024xf32, #tpu.memory_space<vmem>>, vector<2x1024xf32>,
    return
  }
}

</mosaic_0001>

<llo_original>
// kernel: tpu_custom_call.1
$region0: #{tpu_custom_call.1}
  #allocation0 [shape = 'u32[]', space=smem, size = 0x4, offset = 0x4, fixed_abs, tag = 'smem constant byte address 0x4 - core index']
  #allocation1 [shape = 'u32[72,128]{1,0:T(1,128)}', space=vmem, size = 0x9000, scoped, tag = 'internal scratch']
  %s0 = inlined_call_operand.hbm [shape: f32[2,8], index: 0, kind: input, shape index: {}]
  %s1 = inlined_call_operand.hbm [shape: bf16[8,512], index: 1, kind: input, shape index: {}]
  %s2 = inlined_call_operand.hbm [shape: f32[1,512], index: 2, kind: input, shape index: {}]
  %s3 = inlined_call_operand.hbm [shape: bf16[512,2048], index: 3, kind: input, shape index: {}]
  %s4 = inlined_call_operand.hbm [shape: f32[1,2048], index: 4, kind: input, shape index: {}]
  %s5 = inlined_call_operand.vmem [shape: f32[32,1], index: 5, kind: input, shape index: {}]
  %s6 = inlined_call_operand.vmem [shape: f32[32,1], index: 6, kind: input, shape index: {}]
  %s7 = inlined_call_operand.hbm [shape: f32[32,2048], index: 7, kind: input, shape index: {}]
  %s8 = inlined_call_operand.hbm [shape: bf16[2048,1024], index: 8, kind: input, shape index: {}]
  %s9 = inlined_call_operand.hbm [shape: f32[1,1024], index: 9, kind: input, shape index: {}]
  %s10 = inlined_call_operand.hbm [shape: f32[2,1024], index: 10, kind: output, shape index: {}]
  %s11 = sld [smem:[#allocation0]]
  $region82: #{tpu_custom_call.1} parent=0
    _
  %s13 = ssub.s32 1, %s11
  %s14 = scalar_select 0, %s13, %s11
  $region1: #{tpu_custom_call.1} parent=0
    #allocation2 [shape = 'u8[1024]{0}', space=vmem, size = 0x400, scoped, tag = 'input window, operand 0, single buffered']
    #allocation3 [shape = 's32[1]{0}', space=sflag, size = 0x4, scoped, tag = 'scoped memory for tpu_custom_call.1']
    #allocation4 [shape = 's32[1]{0}', space=sflag, size = 0x4, scoped, tag = 'scoped memory for tpu_custom_call.1']
    #allocation5 [shape = 'u8[8192]{0}', space=vmem, size = 0x2000, scoped, tag = 'input window, operand 1, single buffered']
    #allocation6 [shape = 's32[1]{0}', space=sflag, size = 0x4, scoped, tag = 'scoped memory for tpu_custom_call.1']
    #allocation7 [shape = 'u8[2048]{0}', space=vmem, size = 0x800, scoped, tag = 'input window, operand 2, single buffered']
    #allocation8 [shape = 'u8[2097152]{0}', space=vmem, size = 0x200000, scoped, tag = 'input window, operand 3, single buffered']
    #allocation9 [shape = 's32[1]{0}', space=sflag, size = 0x4, scoped, tag = 'scoped memory for tpu_custom_call.1']
    #allocation10 [shape = 'u8[8192]{0}', space=vmem, size = 0x2000, scoped, tag = 'input window, operand 4, single buffered']
    #allocation11 [shape = 'u8[262144]{0}', space=vmem, size = 0x40000, scoped, tag = 'input window, operand 7, single buffered']
    #allocation12 [shape = 's32[1]{0}', space=sflag, size = 0x4, scoped, tag = 'scoped memory for tpu_custom_call.1']
    #allocation13 [shape = 'u8[4194304]{0}', space=vmem, size = 0x400000, scoped, tag = 'input window, operand 8, single buffered']
    #allocation14 [shape = 'u8[4096]{0}', space=vmem, size = 0x1000, scoped, tag = 'input window, operand 9, single buffered']
    #allocation15 [shape = 's32[1]{0}', space=sflag, size = 0x4, scoped, tag = 'scoped memory for tpu_custom_call.1']
    #allocation16 [shape = 'u8[8192]{0}', space=vmem, size = 0x2000, scoped, tag = 'output window, operand 0, single buffered']
    %15 = vsyncpa [#allocation3], 0
    %16 = vsyncpa [#allocation6], 0
    %17 = vsyncpa [#allocation9], 0
    %18 = vsyncpa [#allocation12], 0
    %19 = vsyncpa [#allocation15], 0
    %20 = vsyncpa [#allocation4], 0
    // Predicated region
    $region2: #{tpu_custom_call.1} parent=1 // pred_check
      _
    $region3: #{tpu_custom_call.1} parent=1 // pred_check_branch
      %22 = sbr.rel (0) target = $region5
    $region4: #{tpu_custom_call.1} parent=1 // pred_region
      %24 = vsyncadd [#allocation3], 0
      %s26 = sshll.u32 %s0, 4
      %s27 = int_to_ptr.hbm [resolvable:$true] %s26
      %s28 = sshll.u32 [#allocation2], 4
      %s29 = int_to_ptr.vmem [resolvable:$true] %s28
      %31 = dma.hbm_to_vmem [thread:$0]  %s27, 32, %s29, [#allocation3]
    $region5: #{tpu_custom_call.1} parent=1 // pred_fallthru
      _
    // Predicated region
    $region6: #{tpu_custom_call.1} parent=1 // pred_check
      _
    $region7: #{tpu_custom_call.1} parent=1 // pred_check_branch
      %33 = sbr.rel (0) target = $region9
    $region8: #{tpu_custom_call.1} parent=1 // pred_region
      %35 = vsyncadd [#allocation6], 0
      %s37 = sshll.u32 %s1, 4
      %s38 = int_to_ptr.hbm [resolvable:$true] %s37
      %s39 = sshll.u32 [#allocation5], 4
      %s40 = int_to_ptr.vmem [resolvable:$true] %s39
      %42 = dma.hbm_to_vmem [thread:$0]  %s38, 256, %s40, [#allocation6]
    $region9: #{tpu_custom_call.1} parent=1 // pred_fallthru
      _
    // Predicated region
    $region10: #{tpu_custom_call.1} parent=1 // pred_check
      _
    $region11: #{tpu_custom_call.1} parent=1 // pred_check_branch
      %44 = sbr.rel (0) target = $region13
    $region12: #{tpu_custom_call.1} parent=1 // pred_region
      %46 = vsyncadd [#allocation6], 0
      %s48 = sshll.u32 %s2, 4
      %s49 = int_to_ptr.hbm [resolvable:$true] %s48
      %s50 = sshll.u32 [#allocation7], 4
      %s51 = int_to_ptr.vmem [resolvable:$true] %s50
      %53 = dma.hbm_to_vmem [thread:$0]  %s49, 64, %s51, [#allocation6]
    $region13: #{tpu_custom_call.1} parent=1 // pred_fallthru
      _
    // Predicated region
    $region14: #{tpu_custom_call.1} parent=1 // pred_check
      _
    $region15: #{tpu_custom_call.1} parent=1 // pred_check_branch
      %55 = sbr.rel (0) target = $region17
    $region16: #{tpu_custom_call.1} parent=1 // pred_region
      %57 = vsyncadd [#allocation9], 0
      %s58 = sshll.u32 %s3, 4
      %s59 = int_to_ptr.hbm [resolvable:$true] %s58
      %s60 = sshll.u32 [#allocation8], 4
      %s61 = int_to_ptr.vmem [resolvable:$true] %s60
      %66 = dma.hbm_to_vmem [thread:$0]  %s59, 65536, %s61, [#allocation9], 1024, 1024, 64
    $region17: #{tpu_custom_call.1} parent=1 // pred_fallthru
      _
    // Predicated region
    $region18: #{tpu_custom_call.1} parent=1 // pred_check
      _
    $region19: #{tpu_custom_call.1} parent=1 // pred_check_branch
      %68 = sbr.rel (0) target = $region21
    $region20: #{tpu_custom_call.1} parent=1 // pred_region
      %70 = vsyncadd [#allocation9], 0
      %s72 = sshll.u32 %s4, 4
      %s73 = int_to_ptr.hbm [resolvable:$true] %s72
      %s74 = sshll.u32 [#allocation10], 4
      %s75 = int_to_ptr.vmem [resolvable:$true] %s74
      %77 = dma.hbm_to_vmem [thread:$0]  %s73, 256, %s75, [#allocation9]
    $region21: #{tpu_custom_call.1} parent=1 // pred_fallthru
      _
    // Predicated region
    $region22: #{tpu_custom_call.1} parent=1 // pred_check
      _
    $region23: #{tpu_custom_call.1} parent=1 // pred_check_branch
      %79 = sbr.rel (0) target = $region25
    $region24: #{tpu_custom_call.1} parent=1 // pred_region
      _
    $region25: #{tpu_custom_call.1} parent=1 // pred_fallthru
      _
    // Predicated region
    $region26: #{tpu_custom_call.1} parent=1 // pred_check
      _
    $region27: #{tpu_custom_call.1} parent=1 // pred_check_branch
      %81 = sbr.rel (0) target = $region29
    $region28: #{tpu_custom_call.1} parent=1 // pred_region
      _
    $region29: #{tpu_custom_call.1} parent=1 // pred_fallthru
      _
    // Predicated region
    $region30: #{tpu_custom_call.1} parent=1 // pred_check
      _
    $region31: #{tpu_custom_call.1} parent=1 // pred_check_branch
      %83 = sbr.rel (0) target = $region33
    $region32: #{tpu_custom_call.1} parent=1 // pred_region
      %85 = vsyncadd [#allocation12], 0
      %s86 = sshll.u32 %s7, 4
      %s87 = int_to_ptr.hbm [resolvable:$true] %s86
      %s88 = sshll.u32 [#allocation11], 4
      %s89 = int_to_ptr.vmem [resolvable:$true] %s88
      %94 = dma.hbm_to_vmem [thread:$0]  %s87, 8192, %s89, [#allocation12], 2048, 2048, 128
    $region33: #{tpu_custom_call.1} parent=1 // pred_fallthru
      _
    // Predicated region
    $region34: #{tpu_custom_call.1} parent=1 // pred_check
      _
    $region35: #{tpu_custom_call.1} parent=1 // pred_check_branch
      %96 = sbr.rel (0) target = $region37
    $region36: #{tpu_custom_call.1} parent=1 // pred_region
      %98 = vsyncadd [#allocation12], 0
      %s99 = sshll.u32 %s8, 4
      %s100 = int_to_ptr.hbm [resolvable:$true] %s99
      %s101 = sshll.u32 [#allocation13], 4
      %s102 = int_to_ptr.vmem [resolvable:$true] %s101
      %107 = dma.hbm_to_vmem [thread:$0]  %s100, 131072, %s102, [#allocation12], 512, 512, 32
    $region37: #{tpu_custom_call.1} parent=1 // pred_fallthru
      _
    // Predicated region
    $region38: #{tpu_custom_call.1} parent=1 // pred_check
      _
    $region39: #{tpu_custom_call.1} parent=1 // pred_check_branch
      %109 = sbr.rel (0) target = $region41
    $region40: #{tpu_custom_call.1} parent=1 // pred_region
      %111 = vsyncadd [#allocation15], 0
      %s113 = sshll.u32 %s9, 4
      %s114 = int_to_ptr.hbm [resolvable:$true] %s113
      %s115 = sshll.u32 [#allocation14], 4
      %s116 = int_to_ptr.vmem [resolvable:$true] %s115
      %118 = dma.hbm_to_vmem [thread:$0]  %s114, 128, %s116, [#allocation15]
    $region41: #{tpu_custom_call.1} parent=1 // pred_fallthru
      _
    // Predicated region
    $region42: #{tpu_custom_call.1} parent=1 // pred_check
      _
    $region43: #{tpu_custom_call.1} parent=1 // pred_check_branch
      %120 = sbr.rel (0) target = $region45
    $region44: #{tpu_custom_call.1} parent=1 // pred_region
      %122 = dma.done [#allocation3], 32
    $region45: #{tpu_custom_call.1} parent=1 // pred_fallthru
      _
    // Predicated region
    $region46: #{tpu_custom_call.1} parent=1 // pred_check
      _
    $region47: #{tpu_custom_call.1} parent=1 // pred_check_branch
      %124 = sbr.rel (0) target = $region49
    $region48: #{tpu_custom_call.1} parent=1 // pred_region
      %126 = dma.done [#allocation6], 256
    $region49: #{tpu_custom_call.1} parent=1 // pred_fallthru
      _
    // Predicated region
    $region50: #{tpu_custom_call.1} parent=1 // pred_check
      _
    $region51: #{tpu_custom_call.1} parent=1 // pred_check_branch
      %128 = sbr.rel (0) target = $region53
    $region52: #{tpu_custom_call.1} parent=1 // pred_region
      %130 = dma.done [#allocation6], 64
    $region53: #{tpu_custom_call.1} parent=1 // pred_fallthru
      _
    // Predicated region
    $region54: #{tpu_custom_call.1} parent=1 // pred_check
      _
    $region55: #{tpu_custom_call.1} parent=1 // pred_check_branch
      %132 = sbr.rel (0) target = $region57
    $region56: #{tpu_custom_call.1} parent=1 // pred_region
      %134 = dma.done [#allocation9], 65536
    $region57: #{tpu_custom_call.1} parent=1 // pred_fallthru
      _
    // Predicated region
    $region58: #{tpu_custom_call.1} parent=1 // pred_check
      _
    $region59: #{tpu_custom_call.1} parent=1 // pred_check_branch
      %136 = sbr.rel (0) target = $region61
    $region60: #{tpu_custom_call.1} parent=1 // pred_region
      %138 = dma.done [#allocation9], 256
    $region61: #{tpu_custom_call.1} parent=1 // pred_fallthru
      _
    // Predicated region
    $region62: #{tpu_custom_call.1} parent=1 // pred_check
      _
    $region63: #{tpu_custom_call.1} parent=1 // pred_check_branch
      %140 = sbr.rel (0) target = $region65
    $region64: #{tpu_custom_call.1} parent=1 // pred_region
      %142 = dma.done [#allocation12], 8192
    $region65: #{tpu_custom_call.1} parent=1 // pred_fallthru
      _
    // Predicated region
    $region66: #{tpu_custom_call.1} parent=1 // pred_check
      _
    $region67: #{tpu_custom_call.1} parent=1 // pred_check_branch
      %144 = sbr.rel (0) target = $region69
    $region68: #{tpu_custom_call.1} parent=1 // pred_region
      %146 = dma.done [#allocation12], 131072
    $region69: #{tpu_custom_call.1} parent=1 // pred_fallthru
      _
    // Predicated region
    $region70: #{tpu_custom_call.1} parent=1 // pred_check
      _
    $region71: #{tpu_custom_call.1} parent=1 // pred_check_branch
      %148 = sbr.rel (0) target = $region73
    $region72: #{tpu_custom_call.1} parent=1 // pred_region
      %150 = dma.done [#allocation15], 128
    $region73: #{tpu_custom_call.1} parent=1 // pred_fallthru
      _
    %v152 = vld [vmem:[#allocation2] sm:$0x3]
    %v153 = vpack.c.bf16 %v152, %v152
    %v154 = vld [vmem:[#allocation5] sm:$0xff]
    %v155 = vld [vmem:[#allocation5 + $0x8] sm:$0xff]
    %v156 = vld [vmem:[#allocation7] sm:$0xf]
    %v158 = vperm.slane %v156, 0
    %v159 = vperm.slane %v156, 1
    %v160 = vperm.slane %v156, 2
    %v161 = vperm.slane %v156, 3
    %v168 = vunpack.c.l.b16 %v154
    %v169 = vunpack.c.h.b16 %v154
    %v170 = vunpack.c.l.b16 %v155
    %v171 = vunpack.c.h.b16 %v155
    %v172 = vpack.c.b16 %v168, %v168
    %v173 = vpack.c.b16 %v169, %v169
    %v174 = vpack.c.b16 %v170, %v170
    %v175 = vpack.c.b16 %v171, %v171
    %vm176 = vcmask 64512
    %v178 = vsel %vm176, %v153, 0
    %vm180 = vcmask 1043456
    %v182 = vsel %vm180, %v172, 0
    %v185 = vsel %vm180, %v173, 0
    %v188 = vsel %vm180, %v174, 0
    %v191 = vsel %vm180, %v175, 0
    %193 = vmatpush.bf16.msra.mxu0 0
    %194 = vmatpush.bf16.msra.mxu0 0
    %195 = vmatpush.bf16.msra.mxu0 0
    %196 = vmatpush.bf16.msra.mxu0 0
    %197 = vmatpush.bf16.msra.mxu0 0
    %198 = vmatpush.bf16.msra.mxu0 0
    %199 = vmatpush.bf16.msra.mxu0 0
    %200 = vmatpush.bf16.msra.mxu0 %v182
    %201 = vmatmul.bf16.gmra.mxu0 %v178
    %v202 = vpop.f32.mrf.mxu0
    %v203 = vadd.f32 %v158, %v202
    %v204 = vpop.f32.mrf.mxu0
    %205 = vdwg.mxu0
    %206 = vmatpush.bf16.msra.mxu0 0
    %207 = vmatpush.bf16.msra.mxu0 0
    %208 = vmatpush.bf16.msra.mxu0 0
    %209 = vmatpush.bf16.msra.mxu0 0
    %210 = vmatpush.bf16.msra.mxu0 0
    %211 = vmatpush.bf16.msra.mxu0 0
    %212 = vmatpush.bf16.msra.mxu0 0
    %213 = vmatpush.bf16.msra.mxu0 %v185
    %214 = vmatmul.bf16.gmra.mxu0 %v178
    %v215 = vpop.f32.mrf.mxu0
    %v216 = vadd.f32 %v159, %v215
    %v217 = vpop.f32.mrf.mxu0
    %218 = vdwg.mxu0
    %219 = vmatpush.bf16.msra.mxu0 0
    %220 = vmatpush.bf16.msra.mxu0 0
    %221 = vmatpush.bf16.msra.mxu0 0
    %222 = vmatpush.bf16.msra.mxu0 0
    %223 = vmatpush.bf16.msra.mxu0 0
    %224 = vmatpush.bf16.msra.mxu0 0
    %225 = vmatpush.bf16.msra.mxu0 0
    %226 = vmatpush.bf16.msra.mxu0 %v188
    %227 = vmatmul.bf16.gmra.mxu0 %v178
    %v228 = vpop.f32.mrf.mxu0
    %v229 = vadd.f32 %v160, %v228
    %v230 = vpop.f32.mrf.mxu0
    %231 = vdwg.mxu0
    %232 = vmatpush.bf16.msra.mxu0 0
    %233 = vmatpush.bf16.msra.mxu0 0
    %234 = vmatpush.bf16.msra.mxu0 0
    %235 = vmatpush.bf16.msra.mxu0 0
    %236 = vmatpush.bf16.msra.mxu0 0
    %237 = vmatpush.bf16.msra.mxu0 0
    %238 = vmatpush.bf16.msra.mxu0 0
    %239 = vmatpush.bf16.msra.mxu0 %v191
    %240 = vmatmul.bf16.gmra.mxu0 %v178
    %v241 = vpop.f32.mrf.mxu0
    %v242 = vadd.f32 %v161, %v241
    %v243 = vpop.f32.mrf.mxu0
    %244 = vdwg.mxu0
    %v245 = vld [vmem:[#allocation8] sm:$0xff]
    %v246 = vld [vmem:[#allocation8 + $0x8] sm:$0xff]
    %v247 = vld [vmem:[#allocation8 + $0x10] sm:$0xff]
    %v248 = vld [vmem:[#allocation8 + $0x18] sm:$0xff]
    %v249 = vld [vmem:[#allocation8 + $0x20] sm:$0xff]
    %v250 = vld [vmem:[#allocation8 + $0x28] sm:$0xff]
    %v251 = vld [vmem:[#allocation8 + $0x30] sm:$0xff]
    %v252 = vld [vmem:[#allocation8 + $0x38] sm:$0xff]
    %v253 = vld [vmem:[#allocation8 + $0x40] sm:$0xff]
    %v254 = vld [vmem:[#allocation8 + $0x48] sm:$0xff]
    %v255 = vld [vmem:[#allocation8 + $0x50] sm:$0xff]
    %v256 = vld [vmem:[#allocation8 + $0x58] sm:$0xff]
    %v257 = vld [vmem:[#allocation8 + $0x60] sm:$0xff]
    %v258 = vld [vmem:[#allocation8 + $0x68] sm:$0xff]
    %v259 = vld [vmem:[#allocation8 + $0x70] sm:$0xff]
    %v260 = vld [vmem:[#allocation8 + $0x78] sm:$0xff]
    %v261 = vld [vmem:[#allocation8 + $0x80] sm:$0xff]
    %v262 = vld [vmem:[#allocation8 + $0x88] sm:$0xff]
    %v263 = vld [vmem:[#allocation8 + $0x90] sm:$0xff]
    %v264 = vld [vmem:[#allocation8 + $0x98] sm:$0xff]
    %v265 = vld [vmem:[#allocation8 + $0xa0] sm:$0xff]
    %v266 = vld [vmem:[#allocation8 + $0xa8] sm:$0xff]
    %v267 = vld [vmem:[#allocation8 + $0xb0] sm:$0xff]
    %v268 = vld [vmem:[#allocation8 + $0xb8] sm:$0xff]
    %v269 = vld [vmem:[#allocation8 + $0xc0] sm:$0xff]
    %v270 = vld [vmem:[#allocation8 + $0xc8] sm:$0xff]
    %v271 = vld [vmem:[#allocation8 + $0xd0] sm:$0xff]
    %v272 = vld [vmem:[#allocation8 + $0xd8] sm:$0xff]
    %v273 = vld [vmem:[#allocation8 + $0xe0] sm:$0xff]
    %v274 = vld [vmem:[#allocation8 + $0xe8] sm:$0xff]
    %v275 = vld [vmem:[#allocation8 + $0xf0] sm:$0xff]
    %v276 = vld [vmem:[#allocation8 + $0xf8] sm:$0xff]
    %v277 = vld [vmem:[#allocation8 + $0x100] sm:$0xff]
    %v278 = vld [vmem:[#allocation8 + $0x108] sm:$0xff]
    %v279 = vld [vmem:[#allocation8 + $0x110] sm:$0xff]
    %v280 = vld [vmem:[#allocation8 + $0x118] sm:$0xff]
    %v281 = vld [vmem:[#allocation8 + $0x120] sm:$0xff]
    %v282 = vld [vmem:[#allocation8 + $0x128] sm:$0xff]
    %v283 = vld [vmem:[#allocation8 + $0x130] sm:$0xff]
    %v284 = vld [vmem:[#allocation8 + $0x138] sm:$0xff]
    %v285 = vld [vmem:[#allocation8 + $0x140] sm:$0xff]
    %v286 = vld [vmem:[#allocation8 + $0x148] sm:$0xff]
    %v287 = vld [vmem:[#allocation8 + $0x150] sm:$0xff]
    %v288 = vld [vmem:[#allocation8 + $0x158] sm:$0xff]
    %v289 = vld [vmem:[#allocation8 + $0x160] sm:$0xff]
    %v290 = vld [vmem:[#allocation8 + $0x168] sm:$0xff]
    %v291 = vld [vmem:[#allocation8 + $0x170] sm:$0xff]
    %v292 = vld [vmem:[#allocation8 + $0x178] sm:$0xff]
    %v293 = vld [vmem:[#allocation8 + $0x180] sm:$0xff]
    %v294 = vld [vmem:[#allocation8 + $0x188] sm:$0xff]
    %v295 = vld [vmem:[#allocation8 + $0x190] sm:$0xff]
    %v296 = vld [vmem:[#allocation8 + $0x198] sm:$0xff]
    %v297 = vld [vmem:[#allocation8 + $0x1a0] sm:$0xff]
    %v298 = vld [vmem:[#allocation8 + $0x1a8] sm:$0xff]
    %v299 = vld [vmem:[#allocation8 + $0x1b0] sm:$0xff]
    %v300 = vld [vmem:[#allocation8 + $0x1b8] sm:$0xff]
    %v301 = vld [vmem:[#allocation8 + $0x1c0] sm:$0xff]
    %v302 = vld [vmem:[#allocation8 + $0x1c8] sm:$0xff]
    %v303 = vld [vmem:[#allocation8 + $0x1d0] sm:$0xff]
    %v304 = vld [vmem:[#allocation8 + $0x1d8] sm:$0xff]
    %v305 = vld [vmem:[#allocation8 + $0x1e0] sm:$0xff]
    %v306 = vld [vmem:[#allocation8 + $0x1e8] sm:$0xff]
    %v307 = vld [vmem:[#allocation8 + $0x1f0] sm:$0xff]
    %v308 = vld [vmem:[#allocation8 + $0x1f8] sm:$0xff]
    %v309 = vld [vmem:[#allocation8 + $0x200] sm:$0xff]
    %v310 = vld [vmem:[#allocation8 + $0x208] sm:$0xff]
    %v311 = vld [vmem:[#allocation8 + $0x210] sm:$0xff]
    %v312 = vld [vmem:[#allocation8 + $0x218] sm:$0xff]
    %v313 = vld [vmem:[#allocation8 + $0x220] sm:$0xff]
    %v314 = vld [vmem:[#allocation8 + $0x228] sm:$0xff]
    %v315 = vld [vmem:[#allocation8 + $0x230] sm:$0xff]
    %v316 = vld [vmem:[#allocation8 + $0x238] sm:$0xff]
    %v317 = vld [vmem:[#allocation8 + $0x240] sm:$0xff]
    %v318 = vld [vmem:[#allocation8 + $0x248] sm:$0xff]
    %v319 = vld [vmem:[#allocation8 + $0x250] sm:$0xff]
    %v320 = vld [vmem:[#allocation8 + $0x258] sm:$0xff]
    %v321 = vld [vmem:[#allocation8 + $0x260] sm:$0xff]
    %v322 = vld [vmem:[#allocation8 + $0x268] sm:$0xff]
    %v323 = vld [vmem:[#allocation8 + $0x270] sm:$0xff]
    %v324 = vld [vmem:[#allocation8 + $0x278] sm:$0xff]
    %v325 = vld [vmem:[#allocation8 + $0x280] sm:$0xff]
    %v326 = vld [vmem:[#allocation8 + $0x288] sm:$0xff]
    %v327 = vld [vmem:[#allocation8 + $0x290] sm:$0xff]
    %v328 = vld [vmem:[#allocation8 + $0x298] sm:$0xff]
    %v329 = vld [vmem:[#allocation8 + $0x2a0] sm:$0xff]
    %v330 = vld [vmem:[#allocation8 + $0x2a8] sm:$0xff]
    %v331 = vld [vmem:[#allocation8 + $0x2b0] sm:$0xff]
    %v332 = vld [vmem:[#allocation8 + $0x2b8] sm:$0xff]
    %v333 = vld [vmem:[#allocation8 + $0x2c0] sm:$0xff]
    %v334 = vld [vmem:[#allocation8 + $0x2c8] sm:$0xff]
    %v335 = vld [vmem:[#allocation8 + $0x2d0] sm:$0xff]
    %v336 = vld [vmem:[#allocation8 + $0x2d8] sm:$0xff]
    %v337 = vld [vmem:[#allocation8 + $0x2e0] sm:$0xff]
    %v338 = vld [vmem:[#allocation8 + $0x2e8] sm:$0xff]
    %v339 = vld [vmem:[#allocation8 + $0x2f0] sm:$0xff]
    %v340 = vld [vmem:[#allocation8 + $0x2f8] sm:$0xff]
    %v341 = vld [vmem:[#allocation8 + $0x300] sm:$0xff]
    %v342 = vld [vmem:[#allocation8 + $0x308] sm:$0xff]
    %v343 = vld [vmem:[#allocation8 + $0x310] sm:$0xff]
    %v344 = vld [vmem:[#allocation8 + $0x318] sm:$0xff]
    %v345 = vld [vmem:[#allocation8 + $0x320] sm:$0xff]
    %v346 = vld [vmem:[#allocation8 + $0x328] sm:$0xff]
    %v347 = vld [vmem:[#allocation8 + $0x330] sm:$0xff]
    %v348 = vld [vmem:[#allocation8 + $0x338] sm:$0xff]
    %v349 = vld [vmem:[#allocation8 + $0x340] sm:$0xff]
    %v350 = vld [vmem:[#allocation8 + $0x348] sm:$0xff]
    %v351 = vld [vmem:[#allocation8 + $0x350] sm:$0xff]
    %v352 = vld [vmem:[#allocation8 + $0x358] sm:$0xff]
    %v353 = vld [vmem:[#allocation8 + $0x360] sm:$0xff]
    %v354 = vld [vmem:[#allocation8 + $0x368] sm:$0xff]
    %v355 = vld [vmem:[#allocation8 + $0x370] sm:$0xff]
    %v356 = vld [vmem:[#allocation8 + $0x378] sm:$0xff]
    %v357 = vld [vmem:[#allocation8 + $0x380] sm:$0xff]
    %v358 = vld [vmem:[#allocation8 + $0x388] sm:$0xff]
    %v359 = vld [vmem:[#allocation8 + $0x390] sm:$0xff]
    %v360 = vld [vmem:[#allocation8 + $0x398] sm:$0xff]
    %v361 = vld [vmem:[#allocation8 + $0x3a0] sm:$0xff]
    %v362 = vld [vmem:[#allocation8 + $0x3a8] sm:$0xff]
    %v363 = vld [vmem:[#allocation8 + $0x3b0] sm:$0xff]
    %v364 = vld [vmem:[#allocation8 + $0x3b8] sm:$0xff]
    %v365 = vld [vmem:[#allocation8 + $0x3c0] sm:$0xff]
    %v366 = vld [vmem:[#allocation8 + $0x3c8] sm:$0xff]
    %v367 = vld [vmem:[#allocation8 + $0x3d0] sm:$0xff]
    %v368 = vld [vmem:[#allocation8 + $0x3d8] sm:$0xff]
    %v369 = vld [vmem:[#allocation8 + $0x3e0] sm:$0xff]
    %v370 = vld [vmem:[#allocation8 + $0x3e8] sm:$0xff]
    %v371 = vld [vmem:[#allocation8 + $0x3f0] sm:$0xff]
    %v372 = vld [vmem:[#allocation8 + $0x3f8] sm:$0xff]
    %v373 = vld [vmem:[#allocation8 + $0x400] sm:$0xff]
    %v374 = vld [vmem:[#allocation8 + $0x408] sm:$0xff]
    %v375 = vld [vmem:[#allocation8 + $0x410] sm:$0xff]
    %v376 = vld [vmem:[#allocation8 + $0x418] sm:$0xff]
    %v377 = vld [vmem:[#allocation8 + $0x420] sm:$0xff]
    %v378 = vld [vmem:[#allocation8 + $0x428] sm:$0xff]
    %v379 = vld [vmem:[#allocation8 + $0x430] sm:$0xff]
    %v380 = vld [vmem:[#allocation8 + $0x438] sm:$0xff]
    %v381 = vld [vmem:[#allocation8 + $0x440] sm:$0xff]
    %v382 = vld [vmem:[#allocation8 + $0x448] sm:$0xff]
    %v383 = vld [vmem:[#allocation8 + $0x450] sm:$0xff]
    %v384 = vld [vmem:[#allocation8 + $0x458] sm:$0xff]
    %v385 = vld [vmem:[#allocation8 + $0x460] sm:$0xff]
    %v386 = vld [vmem:[#allocation8 + $0x468] sm:$0xff]
    %v387 = vld [vmem:[#allocation8 + $0x470] sm:$0xff]
    %v388 = vld [vmem:[#allocation8 + $0x478] sm:$0xff]
    %v389 = vld [vmem:[#allocation8 + $0x480] sm:$0xff]
    %v390 = vld [vmem:[#allocation8 + $0x488] sm:$0xff]
    %v391 = vld [vmem:[#allocation8 + $0x490] sm:$0xff]
    %v392 = vld [vmem:[#allocation8 + $0x498] sm:$0xff]
    %v393 = vld [vmem:[#allocation8 + $0x4a0] sm:$0xff]
    %v394 = vld [vmem:[#allocation8 + $0x4a8] sm:$0xff]
    %v395 = vld [vmem:[#allocation8 + $0x4b0] sm:$0xff]
    %v396 = vld [vmem:[#allocation8 + $0x4b8] sm:$0xff]
    %v397 = vld [vmem:[#allocation8 + $0x4c0] sm:$0xff]
    %v398 = vld [vmem:[#allocation8 + $0x4c8] sm:$0xff]
    %v399 = vld [vmem:[#allocation8 + $0x4d0] sm:$0xff]
    %v400 = vld [vmem:[#allocation8 + $0x4d8] sm:$0xff]
    %v401 = vld [vmem:[#allocation8 + $0x4e0] sm:$0xff]
    %v402 = vld [vmem:[#allocation8 + $0x4e8] sm:$0xff]
    %v403 = vld [vmem:[#allocation8 + $0x4f0] sm:$0xff]
    %v404 = vld [vmem:[#allocation8 + $0x4f8] sm:$0xff]
    %v405 = vld [vmem:[#allocation8 + $0x500] sm:$0xff]
    %v406 = vld [vmem:[#allocation8 + $0x508] sm:$0xff]
    %v407 = vld [vmem:[#allocation8 + $0x510] sm:$0xff]
    %v408 = vld [vmem:[#allocation8 + $0x518] sm:$0xff]
    %v409 = vld [vmem:[#allocation8 + $0x520] sm:$0xff]
    %v410 = vld [vmem:[#allocation8 + $0x528] sm:$0xff]
    %v411 = vld [vmem:[#allocation8 + $0x530] sm:$0xff]
    %v412 = vld [vmem:[#allocation8 + $0x538] sm:$0xff]
    %v413 = vld [vmem:[#allocation8 + $0x540] sm:$0xff]
    %v414 = vld [vmem:[#allocation8 + $0x548] sm:$0xff]
    %v415 = vld [vmem:[#allocation8 + $0x550] sm:$0xff]
    %v416 = vld [vmem:[#allocation8 + $0x558] sm:$0xff]
    %v417 = vld [vmem:[#allocation8 + $0x560] sm:$0xff]
    %v418 = vld [vmem:[#allocation8 + $0x568] sm:$0xff]
    %v419 = vld [vmem:[#allocation8 + $0x570] sm:$0xff]
    %v420 = vld [vmem:[#allocation8 + $0x578] sm:$0xff]
    %v421 = vld [vmem:[#allocation8 + $0x580] sm:$0xff]
    %v422 = vld [vmem:[#allocation8 + $0x588] sm:$0xff]
    %v423 = vld [vmem:[#allocation8 + $0x590] sm:$0xff]
    %v424 = vld [vmem:[#allocation8 + $0x598] sm:$0xff]
    %v425 = vld [vmem:[#allocation8 + $0x5a0] sm:$0xff]
    %v426 = vld [vmem:[#allocation8 + $0x5a8] sm:$0xff]
    %v427 = vld [vmem:[#allocation8 + $0x5b0] sm:$0xff]
    %v428 = vld [vmem:[#allocation8 + $0x5b8] sm:$0xff]
    %v429 = vld [vmem:[#allocation8 + $0x5c0] sm:$0xff]
    %v430 = vld [vmem:[#allocation8 + $0x5c8] sm:$0xff]
    %v431 = vld [vmem:[#allocation8 + $0x5d0] sm:$0xff]
    %v432 = vld [vmem:[#allocation8 + $0x5d8] sm:$0xff]
    %v433 = vld [vmem:[#allocation8 + $0x5e0] sm:$0xff]
    %v434 = vld [vmem:[#allocation8 + $0x5e8] sm:$0xff]
    %v435 = vld [vmem:[#allocation8 + $0x5f0] sm:$0xff]
    %v436 = vld [vmem:[#allocation8 + $0x5f8] sm:$0xff]
    %v437 = vld [vmem:[#allocation8 + $0x600] sm:$0xff]
    %v438 = vld [vmem:[#allocation8 + $0x608] sm:$0xff]
    %v439 = vld [vmem:[#allocation8 + $0x610] sm:$0xff]
    %v440 = vld [vmem:[#allocation8 + $0x618] sm:$0xff]
    %v441 = vld [vmem:[#allocation8 + $0x620] sm:$0xff]
    %v442 = vld [vmem:[#allocation8 + $0x628] sm:$0xff]
    %v443 = vld [vmem:[#allocation8 + $0x630] sm:$0xff]
    %v444 = vld [vmem:[#allocation8 + $0x638] sm:$0xff]
    %v445 = vld [vmem:[#allocation8 + $0x640] sm:$0xff]
    %v446 = vld [vmem:[#allocation8 + $0x648] sm:$0xff]
    %v447 = vld [vmem:[#allocation8 + $0x650] sm:$0xff]
    %v448 = vld [vmem:[#allocation8 + $0x658] sm:$0xff]
    %v449 = vld [vmem:[#allocation8 + $0x660] sm:$0xff]
    %v450 = vld [vmem:[#allocation8 + $0x668] sm:$0xff]
    %v451 = vld [vmem:[#allocation8 + $0x670] sm:$0xff]
    %v452 = vld [vmem:[#allocation8 + $0x678] sm:$0xff]
    %v453 = vld [vmem:[#allocation8 + $0x680] sm:$0xff]
    %v454 = vld [vmem:[#allocation8 + $0x688] sm:$0xff]
    %v455 = vld [vmem:[#allocation8 + $0x690] sm:$0xff]
    %v456 = vld [vmem:[#allocation8 + $0x698] sm:$0xff]
    %v457 = vld [vmem:[#allocation8 + $0x6a0] sm:$0xff]
    %v458 = vld [vmem:[#allocation8 + $0x6a8] sm:$0xff]
    %v459 = vld [vmem:[#allocation8 + $0x6b0] sm:$0xff]
    %v460 = vld [vmem:[#allocation8 + $0x6b8] sm:$0xff]
    %v461 = vld [vmem:[#allocation8 + $0x6c0] sm:$0xff]
    %v462 = vld [vmem:[#allocation8 + $0x6c8] sm:$0xff]
    %v463 = vld [vmem:[#allocation8 + $0x6d0] sm:$0xff]
    %v464 = vld [vmem:[#allocation8 + $0x6d8] sm:$0xff]
    %v465 = vld [vmem:[#allocation8 + $0x6e0] sm:$0xff]
    %v466 = vld [vmem:[#allocation8 + $0x6e8] sm:$0xff]
    %v467 = vld [vmem:[#allocation8 + $0x6f0] sm:$0xff]
    %v468 = vld [vmem:[#allocation8 + $0x6f8] sm:$0xff]
    %v469 = vld [vmem:[#allocation8 + $0x700] sm:$0xff]
    %v470 = vld [vmem:[#allocation8 + $0x708] sm:$0xff]
    %v471 = vld [vmem:[#allocation8 + $0x710] sm:$0xff]
    %v472 = vld [vmem:[#allocation8 + $0x718] sm:$0xff]
    %v473 = vld [vmem:[#allocation8 + $0x720] sm:$0xff]
    %v474 = vld [vmem:[#allocation8 + $0x728] sm:$0xff]
    %v475 = vld [vmem:[#allocation8 + $0x730] sm:$0xff]
    %v476 = vld [vmem:[#allocation8 + $0x738] sm:$0xff]
    %v477 = vld [vmem:[#allocation8 + $0x740] sm:$0xff]
    %v478 = vld [vmem:[#allocation8 + $0x748] sm:$0xff]
    %v479 = vld [vmem:[#allocation8 + $0x750] sm:$0xff]
    %v480 = vld [vmem:[#allocation8 + $0x758] sm:$0xff]
    %v481 = vld [vmem:[#allocation8 + $0x760] sm:$0xff]
    %v482 = vld [vmem:[#allocation8 + $0x768] sm:$0xff]
    %v483 = vld [vmem:[#allocation8 + $0x770] sm:$0xff]
    %v484 = vld [vmem:[#allocation8 + $0x778] sm:$0xff]
    %v485 = vld [vmem:[#allocation8 + $0x780] sm:$0xff]
    %v486 = vld [vmem:[#allocation8 + $0x788] sm:$0xff]
    %v487 = vld [vmem:[#allocation8 + $0x790] sm:$0xff]
    %v488 = vld [vmem:[#allocation8 + $0x798] sm:$0xff]
    %v489 = vld [vmem:[#allocation8 + $0x7a0] sm:$0xff]
    %v490 = vld [vmem:[#allocation8 + $0x7a8] sm:$0xff]
    %v491 = vld [vmem:[#allocation8 + $0x7b0] sm:$0xff]
    %v492 = vld [vmem:[#allocation8 + $0x7b8] sm:$0xff]
    %v493 = vld [vmem:[#allocation8 + $0x7c0] sm:$0xff]
    %v494 = vld [vmem:[#allocation8 + $0x7c8] sm:$0xff]
    %v495 = vld [vmem:[#allocation8 + $0x7d0] sm:$0xff]
    %v496 = vld [vmem:[#allocation8 + $0x7d8] sm:$0xff]
    %v497 = vld [vmem:[#allocation8 + $0x7e0] sm:$0xff]
    %v498 = vld [vmem:[#allocation8 + $0x7e8] sm:$0xff]
    %v499 = vld [vmem:[#allocation8 + $0x7f0] sm:$0xff]
    %v500 = vld [vmem:[#allocation8 + $0x7f8] sm:$0xff]
    %v501 = vld [vmem:[#allocation8 + $0x800] sm:$0xff]
    %v502 = vld [vmem:[#allocation8 + $0x808] sm:$0xff]
    %v503 = vld [vmem:[#allocation8 + $0x810] sm:$0xff]
    %v504 = vld [vmem:[#allocation8 + $0x818] sm:$0xff]
    %v505 = vld [vmem:[#allocation8 + $0x820] sm:$0xff]
    %v506 = vld [vmem:[#allocation8 + $0x828] sm:$0xff]
    %v507 = vld [vmem:[#allocation8 + $0x830] sm:$0xff]
    %v508 = vld [vmem:[#allocation8 + $0x838] sm:$0xff]
    %v509 = vld [vmem:[#allocation8 + $0x840] sm:$0xff]
    %v510 = vld [vmem:[#allocation8 + $0x848] sm:$0xff]
    %v511 = vld [vmem:[#allocation8 + $0x850] sm:$0xff]
    %v512 = vld [vmem:[#allocation8 + $0x858] sm:$0xff]
    %v513 = vld [vmem:[#allocation8 + $0x860] sm:$0xff]
    %v514 = vld [vmem:[#allocation8 + $0x868] sm:$0xff]
    %v515 = vld [vmem:[#allocation8 + $0x870] sm:$0xff]
    %v516 = vld [vmem:[#allocation8 + $0x878] sm:$0xff]
    %v517 = vld [vmem:[#allocation8 + $0x880] sm:$0xff]
    %v518 = vld [vmem:[#allocation8 + $0x888] sm:$0xff]
    %v519 = vld [vmem:[#allocation8 + $0x890] sm:$0xff]
    %v520 = vld [vmem:[#allocation8 + $0x898] sm:$0xff]
    %v521 = vld [vmem:[#allocation8 + $0x8a0] sm:$0xff]
    %v522 = vld [vmem:[#allocation8 + $0x8a8] sm:$0xff]
    %v523 = vld [vmem:[#allocation8 + $0x8b0] sm:$0xff]
    %v524 = vld [vmem:[#allocation8 + $0x8b8] sm:$0xff]
    %v525 = vld [vmem:[#allocation8 + $0x8c0] sm:$0xff]
    %v526 = vld [vmem:[#allocation8 + $0x8c8] sm:$0xff]
    %v527 = vld [vmem:[#allocation8 + $0x8d0] sm:$0xff]
    %v528 = vld [vmem:[#allocation8 + $0x8d8] sm:$0xff]
    %v529 = vld [vmem:[#allocation8 + $0x8e0] sm:$0xff]
    %v530 = vld [vmem:[#allocation8 + $0x8e8] sm:$0xff]
    %v531 = vld [vmem:[#allocation8 + $0x8f0] sm:$0xff]
    %v532 = vld [vmem:[#allocation8 + $0x8f8] sm:$0xff]
    %v533 = vld [vmem:[#allocation8 + $0x900] sm:$0xff]
    %v534 = vld [vmem:[#allocation8 + $0x908] sm:$0xff]
    %v535 = vld [vmem:[#allocation8 + $0x910] sm:$0xff]
    %v536 = vld [vmem:[#allocation8 + $0x918] sm:$0xff]
    %v537 = vld [vmem:[#allocation8 + $0x920] sm:$0xff]
    %v538 = vld [vmem:[#allocation8 + $0x928] sm:$0xff]
    %v539 = vld [vmem:[#allocation8 + $0x930] sm:$0xff]
    %v540 = vld [vmem:[#allocation8 + $0x938] sm:$0xff]
    %v541 = vld [vmem:[#allocation8 + $0x940] sm:$0xff]
    %v542 = vld [vmem:[#allocation8 + $0x948] sm:$0xff]
    %v543 = vld [vmem:[#allocation8 + $0x950] sm:$0xff]
    %v544 = vld [vmem:[#allocation8 + $0x958] sm:$0xff]
    %v545 = vld [vmem:[#allocation8 + $0x960] sm:$0xff]
    %v546 = vld [vmem:[#allocation8 + $0x968] sm:$0xff]
    %v547 = vld [vmem:[#allocation8 + $0x970] sm:$0xff]
    %v548 = vld [vmem:[#allocation8 + $0x978] sm:$0xff]
    %v549 = vld [vmem:[#allocation8 + $0x980] sm:$0xff]
    %v550 = vld [vmem:[#allocation8 + $0x988] sm:$0xff]
    %v551 = vld [vmem:[#allocation8 + $0x990] sm:$0xff]
    %v552 = vld [vmem:[#allocation8 + $0x998] sm:$0xff]
    %v553 = vld [vmem:[#allocation8 + $0x9a0] sm:$0xff]
    %v554 = vld [vmem:[#allocation8 + $0x9a8] sm:$0xff]
    %v555 = vld [vmem:[#allocation8 + $0x9b0] sm:$0xff]
    %v556 = vld [vmem:[#allocation8 + $0x9b8] sm:$0xff]
    %v557 = vld [vmem:[#allocation8 + $0x9c0] sm:$0xff]
    %v558 = vld [vmem:[#allocation8 + $0x9c8] sm:$0xff]
    %v559 = vld [vmem:[#allocation8 + $0x9d0] sm:$0xff]
    %v560 = vld [vmem:[#allocation8 + $0x9d8] sm:$0xff]
    %v561 = vld [vmem:[#allocation8 + $0x9e0] sm:$0xff]
    %v562 = vld [vmem:[#allocation8 + $0x9e8] sm:$0xff]
    %v563 = vld [vmem:[#allocation8 + $0x9f0] sm:$0xff]
    %v564 = vld [vmem:[#allocation8 + $0x9f8] sm:$0xff]
    %v565 = vld [vmem:[#allocation8 + $0xa00] sm:$0xff]
    %v566 = vld [vmem:[#allocation8 + $0xa08] sm:$0xff]
    %v567 = vld [vmem:[#allocation8 + $0xa10] sm:$0xff]
    %v568 = vld [vmem:[#allocation8 + $0xa18] sm:$0xff]
    %v569 = vld [vmem:[#allocation8 + $0xa20] sm:$0xff]
    %v570 = vld [vmem:[#allocation8 + $0xa28] sm:$0xff]
    %v571 = vld [vmem:[#allocation8 + $0xa30] sm:$0xff]
    %v572 = vld [vmem:[#allocation8 + $0xa38] sm:$0xff]
    %v573 = vld [vmem:[#allocation8 + $0xa40] sm:$0xff]
    %v574 = vld [vmem:[#allocation8 + $0xa48] sm:$0xff]
    %v575 = vld [vmem:[#allocation8 + $0xa50] sm:$0xff]
    %v576 = vld [vmem:[#allocation8 + $0xa58] sm:$0xff]
    %v577 = vld [vmem:[#allocation8 + $0xa60] sm:$0xff]
    %v578 = vld [vmem:[#allocation8 + $0xa68] sm:$0xff]
    %v579 = vld [vmem:[#allocation8 + $0xa70] sm:$0xff]
    %v580 = vld [vmem:[#allocation8 + $0xa78] sm:$0xff]
    %v581 = vld [vmem:[#allocation8 + $0xa80] sm:$0xff]
    %v582 = vld [vmem:[#allocation8 + $0xa88] sm:$0xff]
    %v583 = vld [vmem:[#allocation8 + $0xa90] sm:$0xff]
    %v584 = vld [vmem:[#allocation8 + $0xa98] sm:$0xff]
    %v585 = vld [vmem:[#allocation8 + $0xaa0] sm:$0xff]
    %v586 = vld [vmem:[#allocation8 + $0xaa8] sm:$0xff]
    %v587 = vld [vmem:[#allocation8 + $0xab0] sm:$0xff]
    %v588 = vld [vmem:[#allocation8 + $0xab8] sm:$0xff]
    %v589 = vld [vmem:[#allocation8 + $0xac0] sm:$0xff]
    %v590 = vld [vmem:[#allocation8 + $0xac8] sm:$0xff]
    %v591 = vld [vmem:[#allocation8 + $0xad0] sm:$0xff]
    %v592 = vld [vmem:[#allocation8 + $0xad8] sm:$0xff]
    %v593 = vld [vmem:[#allocation8 + $0xae0] sm:$0xff]
    %v594 = vld [vmem:[#allocation8 + $0xae8] sm:$0xff]
    %v595 = vld [vmem:[#allocation8 + $0xaf0] sm:$0xff]
    %v596 = vld [vmem:[#allocation8 + $0xaf8] sm:$0xff]
    %v597 = vld [vmem:[#allocation8 + $0xb00] sm:$0xff]
    %v598 = vld [vmem:[#allocation8 + $0xb08] sm:$0xff]
    %v599 = vld [vmem:[#allocation8 + $0xb10] sm:$0xff]
    %v600 = vld [vmem:[#allocation8 + $0xb18] sm:$0xff]
    %v601 = vld [vmem:[#allocation8 + $0xb20] sm:$0xff]
    %v602 = vld [vmem:[#allocation8 + $0xb28] sm:$0xff]
    %v603 = vld [vmem:[#allocation8 + $0xb30] sm:$0xff]
    %v604 = vld [vmem:[#allocation8 + $0xb38] sm:$0xff]
    %v605 = vld [vmem:[#allocation8 + $0xb40] sm:$0xff]
    %v606 = vld [vmem:[#allocation8 + $0xb48] sm:$0xff]
    %v607 = vld [vmem:[#allocation8 + $0xb50] sm:$0xff]
    %v608 = vld [vmem:[#allocation8 + $0xb58] sm:$0xff]
    %v609 = vld [vmem:[#allocation8 + $0xb60] sm:$0xff]
    %v610 = vld [vmem:[#allocation8 + $0xb68] sm:$0xff]
    %v611 = vld [vmem:[#allocation8 + $0xb70] sm:$0xff]
    %v612 = vld [vmem:[#allocation8 + $0xb78] sm:$0xff]
    %v613 = vld [vmem:[#allocation8 + $0xb80] sm:$0xff]
    %v614 = vld [vmem:[#allocation8 + $0xb88] sm:$0xff]
    %v615 = vld [vmem:[#allocation8 + $0xb90] sm:$0xff]
    %v616 = vld [vmem:[#allocation8 + $0xb98] sm:$0xff]
    %v617 = vld [vmem:[#allocation8 + $0xba0] sm:$0xff]
    %v618 = vld [vmem:[#allocation8 + $0xba8] sm:$0xff]
    %v619 = vld [vmem:[#allocation8 + $0xbb0] sm:$0xff]
    %v620 = vld [vmem:[#allocation8 + $0xbb8] sm:$0xff]
    %v621 = vld [vmem:[#allocation8 + $0xbc0] sm:$0xff]
    %v622 = vld [vmem:[#allocation8 + $0xbc8] sm:$0xff]
    %v623 = vld [vmem:[#allocation8 + $0xbd0] sm:$0xff]
    %v624 = vld [vmem:[#allocation8 + $0xbd8] sm:$0xff]
    %v625 = vld [vmem:[#allocation8 + $0xbe0] sm:$0xff]
    %v626 = vld [vmem:[#allocation8 + $0xbe8] sm:$0xff]
    %v627 = vld [vmem:[#allocation8 + $0xbf0] sm:$0xff]
    %v628 = vld [vmem:[#allocation8 + $0xbf8] sm:$0xff]
    %v629 = vld [vmem:[#allocation8 + $0xc00] sm:$0xff]
    %v630 = vld [vmem:[#allocation8 + $0xc08] sm:$0xff]
    %v631 = vld [vmem:[#allocation8 + $0xc10] sm:$0xff]
    %v632 = vld [vmem:[#allocation8 + $0xc18] sm:$0xff]
    %v633 = vld [vmem:[#allocation8 + $0xc20] sm:$0xff]
    %v634 = vld [vmem:[#allocation8 + $0xc28] sm:$0xff]
    %v635 = vld [vmem:[#allocation8 + $0xc30] sm:$0xff]
    %v636 = vld [vmem:[#allocation8 + $0xc38] sm:$0xff]
    %v637 = vld [vmem:[#allocation8 + $0xc40] sm:$0xff]
    %v638 = vld [vmem:[#allocation8 + $0xc48] sm:$0xff]
    %v639 = vld [vmem:[#allocation8 + $0xc50] sm:$0xff]
    %v640 = vld [vmem:[#allocation8 + $0xc58] sm:$0xff]
    %v641 = vld [vmem:[#allocation8 + $0xc60] sm:$0xff]
    %v642 = vld [vmem:[#allocation8 + $0xc68] sm:$0xff]
    %v643 = vld [vmem:[#allocation8 + $0xc70] sm:$0xff]
    %v644 = vld [vmem:[#allocation8 + $0xc78] sm:$0xff]
    %v645 = vld [vmem:[#allocation8 + $0xc80] sm:$0xff]
    %v646 = vld [vmem:[#allocation8 + $0xc88] sm:$0xff]
    %v647 = vld [vmem:[#allocation8 + $0xc90] sm:$0xff]
    %v648 = vld [vmem:[#allocation8 + $0xc98] sm:$0xff]
    %v649 = vld [vmem:[#allocation8 + $0xca0] sm:$0xff]
    %v650 = vld [vmem:[#allocation8 + $0xca8] sm:$0xff]
    %v651 = vld [vmem:[#allocation8 + $0xcb0] sm:$0xff]
    %v652 = vld [vmem:[#allocation8 + $0xcb8] sm:$0xff]
    %v653 = vld [vmem:[#allocation8 + $0xcc0] sm:$0xff]
    %v654 = vld [vmem:[#allocation8 + $0xcc8] sm:$0xff]
    %v655 = vld [vmem:[#allocation8 + $0xcd0] sm:$0xff]
    %v656 = vld [vmem:[#allocation8 + $0xcd8] sm:$0xff]
    %v657 = vld [vmem:[#allocation8 + $0xce0] sm:$0xff]
    %v658 = vld [vmem:[#allocation8 + $0xce8] sm:$0xff]
    %v659 = vld [vmem:[#allocation8 + $0xcf0] sm:$0xff]
    %v660 = vld [vmem:[#allocation8 + $0xcf8] sm:$0xff]
    %v661 = vld [vmem:[#allocation8 + $0xd00] sm:$0xff]
    %v662 = vld [vmem:[#allocation8 + $0xd08] sm:$0xff]
    %v663 = vld [vmem:[#allocation8 + $0xd10] sm:$0xff]
    %v664 = vld [vmem:[#allocation8 + $0xd18] sm:$0xff]
    %v665 = vld [vmem:[#allocation8 + $0xd20] sm:$0xff]
    %v666 = vld [vmem:[#allocation8 + $0xd28] sm:$0xff]
    %v667 = vld [vmem:[#allocation8 + $0xd30] sm:$0xff]
    %v668 = vld [vmem:[#allocation8 + $0xd38] sm:$0xff]
    %v669 = vld [vmem:[#allocation8 + $0xd40] sm:$0xff]
    %v670 = vld [vmem:[#allocation8 + $0xd48] sm:$0xff]
    %v671 = vld [vmem:[#allocation8 + $0xd50] sm:$0xff]
    %v672 = vld [vmem:[#allocation8 + $0xd58] sm:$0xff]
    %v673 = vld [vmem:[#allocation8 + $0xd60] sm:$0xff]
    %v674 = vld [vmem:[#allocation8 + $0xd68] sm:$0xff]
    %v675 = vld [vmem:[#allocation8 + $0xd70] sm:$0xff]
    %v676 = vld [vmem:[#allocation8 + $0xd78] sm:$0xff]
    %v677 = vld [vmem:[#allocation8 + $0xd80] sm:$0xff]
    %v678 = vld [vmem:[#allocation8 + $0xd88] sm:$0xff]
    %v679 = vld [vmem:[#allocation8 + $0xd90] sm:$0xff]
    %v680 = vld [vmem:[#allocation8 + $0xd98] sm:$0xff]
    %v681 = vld [vmem:[#allocation8 + $0xda0] sm:$0xff]
    %v682 = vld [vmem:[#allocation8 + $0xda8] sm:$0xff]
    %v683 = vld [vmem:[#allocation8 + $0xdb0] sm:$0xff]
    %v684 = vld [vmem:[#allocation8 + $0xdb8] sm:$0xff]
    %v685 = vld [vmem:[#allocation8 + $0xdc0] sm:$0xff]
    %v686 = vld [vmem:[#allocation8 + $0xdc8] sm:$0xff]
    %v687 = vld [vmem:[#allocation8 + $0xdd0] sm:$0xff]
    %v688 = vld [vmem:[#allocation8 + $0xdd8] sm:$0xff]
    %v689 = vld [vmem:[#allocation8 + $0xde0] sm:$0xff]
    %v690 = vld [vmem:[#allocation8 + $0xde8] sm:$0xff]
    %v691 = vld [vmem:[#allocation8 + $0xdf0] sm:$0xff]
    %v692 = vld [vmem:[#allocation8 + $0xdf8] sm:$0xff]
    %v693 = vld [vmem:[#allocation8 + $0xe00] sm:$0xff]
    %v694 = vld [vmem:[#allocation8 + $0xe08] sm:$0xff]
    %v695 = vld [vmem:[#allocation8 + $0xe10] sm:$0xff]
    %v696 = vld [vmem:[#allocation8 + $0xe18] sm:$0xff]
    %v697 = vld [vmem:[#allocation8 + $0xe20] sm:$0xff]
    %v698 = vld [vmem:[#allocation8 + $0xe28] sm:$0xff]
    %v699 = vld [vmem:[#allocation8 + $0xe30] sm:$0xff]
    %v700 = vld [vmem:[#allocation8 + $0xe38] sm:$0xff]
    %v701 = vld [vmem:[#allocation8 + $0xe40] sm:$0xff]
    %v702 = vld [vmem:[#allocation8 + $0xe48] sm:$0xff]
    %v703 = vld [vmem:[#allocation8 + $0xe50] sm:$0xff]
    %v704 = vld [vmem:[#allocation8 + $0xe58] sm:$0xff]
    %v705 = vld [vmem:[#allocation8 + $0xe60] sm:$0xff]
    %v706 = vld [vmem:[#allocation8 + $0xe68] sm:$0xff]
    %v707 = vld [vmem:[#allocation8 + $0xe70] sm:$0xff]
    %v708 = vld [vmem:[#allocation8 + $0xe78] sm:$0xff]
    %v709 = vld [vmem:[#allocation8 + $0xe80] sm:$0xff]
    %v710 = vld [vmem:[#allocation8 + $0xe88] sm:$0xff]
    %v711 = vld [vmem:[#allocation8 + $0xe90] sm:$0xff]
    %v712 = vld [vmem:[#allocation8 + $0xe98] sm:$0xff]
    %v713 = vld [vmem:[#allocation8 + $0xea0] sm:$0xff]
    %v714 = vld [vmem:[#allocation8 + $0xea8] sm:$0xff]
    %v715 = vld [vmem:[#allocation8 + $0xeb0] sm:$0xff]
    %v716 = vld [vmem:[#allocation8 + $0xeb8] sm:$0xff]
    %v717 = vld [vmem:[#allocation8 + $0xec0] sm:$0xff]
    %v718 = vld [vmem:[#allocation8 + $0xec8] sm:$0xff]
    %v719 = vld [vmem:[#allocation8 + $0xed0] sm:$0xff]
    %v720 = vld [vmem:[#allocation8 + $0xed8] sm:$0xff]
    %v721 = vld [vmem:[#allocation8 + $0xee0] sm:$0xff]
    %v722 = vld [vmem:[#allocation8 + $0xee8] sm:$0xff]
    %v723 = vld [vmem:[#allocation8 + $0xef0] sm:$0xff]
    %v724 = vld [vmem:[#allocation8 + $0xef8] sm:$0xff]
    %v725 = vld [vmem:[#allocation8 + $0xf00] sm:$0xff]
    %v726 = vld [vmem:[#allocation8 + $0xf08] sm:$0xff]
    %v727 = vld [vmem:[#allocation8 + $0xf10] sm:$0xff]
    %v728 = vld [vmem:[#allocation8 + $0xf18] sm:$0xff]
    %v729 = vld [vmem:[#allocation8 + $0xf20] sm:$0xff]
    %v730 = vld [vmem:[#allocation8 + $0xf28] sm:$0xff]
    %v731 = vld [vmem:[#allocation8 + $0xf30] sm:$0xff]
    %v732 = vld [vmem:[#allocation8 + $0xf38] sm:$0xff]
    %v733 = vld [vmem:[#allocation8 + $0xf40] sm:$0xff]
    %v734 = vld [vmem:[#allocation8 + $0xf48] sm:$0xff]
    %v735 = vld [vmem:[#allocation8 + $0xf50] sm:$0xff]
    %v736 = vld [vmem:[#allocation8 + $0xf58] sm:$0xff]
    %v737 = vld [vmem:[#allocation8 + $0xf60] sm:$0xff]
    %v738 = vld [vmem:[#allocation8 + $0xf68] sm:$0xff]
    %v739 = vld [vmem:[#allocation8 + $0xf70] sm:$0xff]
    %v740 = vld [vmem:[#allocation8 + $0xf78] sm:$0xff]
    %v741 = vld [vmem:[#allocation8 + $0xf80] sm:$0xff]
    %v742 = vld [vmem:[#allocation8 + $0xf88] sm:$0xff]
    %v743 = vld [vmem:[#allocation8 + $0xf90] sm:$0xff]
    %v744 = vld [vmem:[#allocation8 + $0xf98] sm:$0xff]
    %v745 = vld [vmem:[#allocation8 + $0xfa0] sm:$0xff]
    %v746 = vld [vmem:[#allocation8 + $0xfa8] sm:$0xff]
    %v747 = vld [vmem:[#allocation8 + $0xfb0] sm:$0xff]
    %v748 = vld [vmem:[#allocation8 + $0xfb8] sm:$0xff]
    %v749 = vld [vmem:[#allocation8 + $0xfc0] sm:$0xff]
    %v750 = vld [vmem:[#allocation8 + $0xfc8] sm:$0xff]
    %v751 = vld [vmem:[#allocation8 + $0xfd0] sm:$0xff]
    %v752 = vld [vmem:[#allocation8 + $0xfd8] sm:$0xff]
    %v753 = vld [vmem:[#allocation8 + $0xfe0] sm:$0xff]
    %v754 = vld [vmem:[#allocation8 + $0xfe8] sm:$0xff]
    %v755 = vld [vmem:[#allocation8 + $0xff0] sm:$0xff]
    %v756 = vld [vmem:[#allocation8 + $0xff8] sm:$0xff]
    %v757 = vld [vmem:[#allocation10] sm:$0xff]
    %v758 = vld [vmem:[#allocation10 + $0x8] sm:$0xff]
    %v759 = vpack.c.bf16 %v203, %v203
    %v760 = vpack.c.bf16 %v216, %v216
    %v761 = vpack.c.bf16 %v229, %v229
    %v762 = vpack.c.bf16 %v242, %v242
    %v765 = vperm.slane %v757, 0
    %v766 = vperm.slane %v757, 1
    %v767 = vperm.slane %v757, 2
    %v768 = vperm.slane %v757, 3
    %v769 = vperm.slane %v757, 4
    %v770 = vperm.slane %v757, 5
    %v771 = vperm.slane %v757, 6
    %v772 = vperm.slane %v757, 7
    %v773 = vperm.slane %v758, 0
    %v774 = vperm.slane %v758, 1
    %v775 = vperm.slane %v758, 2
    %v776 = vperm.slane %v758, 3
    %v777 = vperm.slane %v758, 4
    %v778 = vperm.slane %v758, 5
    %v779 = vperm.slane %v758, 6
    %v780 = vperm.slane %v758, 7
    %v1309 = vunpack.c.l.b16 %v245
    %v1310 = vunpack.c.h.b16 %v245
    %v1311 = vunpack.c.l.b16 %v246
    %v1312 = vunpack.c.h.b16 %v246
    %v1313 = vunpack.c.l.b16 %v247
    %v1314 = vunpack.c.h.b16 %v247
    %v1315 = vunpack.c.l.b16 %v248
    %v1316 = vunpack.c.h.b16 %v248
    %v1317 = vunpack.c.l.b16 %v249
    %v1318 = vunpack.c.h.b16 %v249
    %v1319 = vunpack.c.l.b16 %v250
    %v1320 = vunpack.c.h.b16 %v250
    %v1321 = vunpack.c.l.b16 %v251
    %v1322 = vunpack.c.h.b16 %v251
    %v1323 = vunpack.c.l.b16 %v252
    %v1324 = vunpack.c.h.b16 %v252
    %v1325 = vunpack.c.l.b16 %v253
    %v1326 = vunpack.c.h.b16 %v253
    %v1327 = vunpack.c.l.b16 %v254
    %v1328 = vunpack.c.h.b16 %v254
    %v1329 = vunpack.c.l.b16 %v255
    %v1330 = vunpack.c.h.b16 %v255
    %v1331 = vunpack.c.l.b16 %v256
    %v1332 = vunpack.c.h.b16 %v256
    %v1333 = vunpack.c.l.b16 %v257
    %v1334 = vunpack.c.h.b16 %v257
    %v1335 = vunpack.c.l.b16 %v258
    %v1336 = vunpack.c.h.b16 %v258
    %v1337 = vunpack.c.l.b16 %v259
    %v1338 = vunpack.c.h.b16 %v259
    %v1339 = vunpack.c.l.b16 %v260
    %v1340 = vunpack.c.h.b16 %v260
    %v1341 = vunpack.c.l.b16 %v261
    %v1342 = vunpack.c.h.b16 %v261
    %v1343 = vunpack.c.l.b16 %v262
    %v1344 = vunpack.c.h.b16 %v262
    %v1345 = vunpack.c.l.b16 %v263
    %v1346 = vunpack.c.h.b16 %v263
    %v1347 = vunpack.c.l.b16 %v264
    %v1348 = vunpack.c.h.b16 %v264
    %v1349 = vunpack.c.l.b16 %v265
    %v1350 = vunpack.c.h.b16 %v265
    %v1351 = vunpack.c.l.b16 %v266
    %v1352 = vunpack.c.h.b16 %v266
    %v1353 = vunpack.c.l.b16 %v267
    %v1354 = vunpack.c.h.b16 %v267
    %v1355 = vunpack.c.l.b16 %v268
    %v1356 = vunpack.c.h.b16 %v268
    %v1357 = vunpack.c.l.b16 %v269
    %v1358 = vunpack.c.h.b16 %v269
    %v1359 = vunpack.c.l.b16 %v270
    %v1360 = vunpack.c.h.b16 %v270
    %v1361 = vunpack.c.l.b16 %v271
    %v1362 = vunpack.c.h.b16 %v271
    %v1363 = vunpack.c.l.b16 %v272
    %v1364 = vunpack.c.h.b16 %v272
    %v1365 = vunpack.c.l.b16 %v273
    %v1366 = vunpack.c.h.b16 %v273
    %v1367 = vunpack.c.l.b16 %v274
    %v1368 = vunpack.c.h.b16 %v274
    %v1369 = vunpack.c.l.b16 %v275
    %v1370 = vunpack.c.h.b16 %v275
    %v1371 = vunpack.c.l.b16 %v276
    %v1372 = vunpack.c.h.b16 %v276
    %v1373 = vunpack.c.l.b16 %v277
    %v1374 = vunpack.c.h.b16 %v277
    %v1375 = vunpack.c.l.b16 %v278
    %v1376 = vunpack.c.h.b16 %v278
    %v1377 = vunpack.c.l.b16 %v279
    %v1378 = vunpack.c.h.b16 %v279
    %v1379 = vunpack.c.l.b16 %v280
    %v1380 = vunpack.c.h.b16 %v280
    %v1381 = vunpack.c.l.b16 %v281
    %v1382 = vunpack.c.h.b16 %v281
    %v1383 = vunpack.c.l.b16 %v282
    %v1384 = vunpack.c.h.b16 %v282
    %v1385 = vunpack.c.l.b16 %v283
    %v1386 = vunpack.c.h.b16 %v283
    %v1387 = vunpack.c.l.b16 %v284
    %v1388 = vunpack.c.h.b16 %v284
    %v1389 = vunpack.c.l.b16 %v285
    %v1390 = vunpack.c.h.b16 %v285
    %v1391 = vunpack.c.l.b16 %v286
    %v1392 = vunpack.c.h.b16 %v286
    %v1393 = vunpack.c.l.b16 %v287
    %v1394 = vunpack.c.h.b16 %v287
    %v1395 = vunpack.c.l.b16 %v288
    %v1396 = vunpack.c.h.b16 %v288
    %v1397 = vunpack.c.l.b16 %v289
    %v1398 = vunpack.c.h.b16 %v289
    %v1399 = vunpack.c.l.b16 %v290
    %v1400 = vunpack.c.h.b16 %v290
    %v1401 = vunpack.c.l.b16 %v291
    %v1402 = vunpack.c.h.b16 %v291
    %v1403 = vunpack.c.l.b16 %v292
    %v1404 = vunpack.c.h.b16 %v292
    %v1405 = vunpack.c.l.b16 %v293
    %v1406 = vunpack.c.h.b16 %v293
    %v1407 = vunpack.c.l.b16 %v294
    %v1408 = vunpack.c.h.b16 %v294
    %v1409 = vunpack.c.l.b16 %v295
    %v1410 = vunpack.c.h.b16 %v295
    %v1411 = vunpack.c.l.b16 %v296
    %v1412 = vunpack.c.h.b16 %v296
    %v1413 = vunpack.c.l.b16 %v297
    %v1414 = vunpack.c.h.b16 %v297
    %v1415 = vunpack.c.l.b16 %v298
    %v1416 = vunpack.c.h.b16 %v298
    %v1417 = vunpack.c.l.b16 %v299
    %v1418 = vunpack.c.h.b16 %v299
    %v1419 = vunpack.c.l.b16 %v300
    %v1420 = vunpack.c.h.b16 %v300
    %v1421 = vunpack.c.l.b16 %v301
    %v1422 = vunpack.c.h.b16 %v301
    %v1423 = vunpack.c.l.b16 %v302
    %v1424 = vunpack.c.h.b16 %v302
    %v1425 = vunpack.c.l.b16 %v303
    %v1426 = vunpack.c.h.b16 %v303
    %v1427 = vunpack.c.l.b16 %v304
    %v1428 = vunpack.c.h.b16 %v304
    %v1429 = vunpack.c.l.b16 %v305
    %v1430 = vunpack.c.h.b16 %v305
    %v1431 = vunpack.c.l.b16 %v306
    %v1432 = vunpack.c.h.b16 %v306
    %v1433 = vunpack.c.l.b16 %v307
    %v1434 = vunpack.c.h.b16 %v307
    %v1435 = vunpack.c.l.b16 %v308
    %v1436 = vunpack.c.h.b16 %v308
    %v1437 = vunpack.c.l.b16 %v309
    %v1438 = vunpack.c.h.b16 %v309
    %v1439 = vunpack.c.l.b16 %v310
    %v1440 = vunpack.c.h.b16 %v310
    %v1441 = vunpack.c.l.b16 %v311
    %v1442 = vunpack.c.h.b16 %v311
    %v1443 = vunpack.c.l.b16 %v312
    %v1444 = vunpack.c.h.b16 %v312
    %v1445 = vunpack.c.l.b16 %v313
    %v1446 = vunpack.c.h.b16 %v313
    %v1447 = vunpack.c.l.b16 %v314
    %v1448 = vunpack.c.h.b16 %v314
    %v1449 = vunpack.c.l.b16 %v315
    %v1450 = vunpack.c.h.b16 %v315
    %v1451 = vunpack.c.l.b16 %v316
    %v1452 = vunpack.c.h.b16 %v316
    %v1453 = vunpack.c.l.b16 %v317
    %v1454 = vunpack.c.h.b16 %v317
    %v1455 = vunpack.c.l.b16 %v318
    %v1456 = vunpack.c.h.b16 %v318
    %v1457 = vunpack.c.l.b16 %v319
    %v1458 = vunpack.c.h.b16 %v319
    %v1459 = vunpack.c.l.b16 %v320
    %v1460 = vunpack.c.h.b16 %v320
    %v1461 = vunpack.c.l.b16 %v321
    %v1462 = vunpack.c.h.b16 %v321
    %v1463 = vunpack.c.l.b16 %v322
    %v1464 = vunpack.c.h.b16 %v322
    %v1465 = vunpack.c.l.b16 %v323
    %v1466 = vunpack.c.h.b16 %v323
    %v1467 = vunpack.c.l.b16 %v324
    %v1468 = vunpack.c.h.b16 %v324
    %v1469 = vunpack.c.l.b16 %v325
    %v1470 = vunpack.c.h.b16 %v325
    %v1471 = vunpack.c.l.b16 %v326
    %v1472 = vunpack.c.h.b16 %v326
    %v1473 = vunpack.c.l.b16 %v327
    %v1474 = vunpack.c.h.b16 %v327
    %v1475 = vunpack.c.l.b16 %v328
    %v1476 = vunpack.c.h.b16 %v328
    %v1477 = vunpack.c.l.b16 %v329
    %v1478 = vunpack.c.h.b16 %v329
    %v1479 = vunpack.c.l.b16 %v330
    %v1480 = vunpack.c.h.b16 %v330
    %v1481 = vunpack.c.l.b16 %v331
    %v1482 = vunpack.c.h.b16 %v331
    %v1483 = vunpack.c.l.b16 %v332
    %v1484 = vunpack.c.h.b16 %v332
    %v1485 = vunpack.c.l.b16 %v333
    %v1486 = vunpack.c.h.b16 %v333
    %v1487 = vunpack.c.l.b16 %v334
    %v1488 = vunpack.c.h.b16 %v334
    %v1489 = vunpack.c.l.b16 %v335
    %v1490 = vunpack.c.h.b16 %v335
    %v1491 = vunpack.c.l.b16 %v336
    %v1492 = vunpack.c.h.b16 %v336
    %v1493 = vunpack.c.l.b16 %v337
    %v1494 = vunpack.c.h.b16 %v337
    %v1495 = vunpack.c.l.b16 %v338
    %v1496 = vunpack.c.h.b16 %v338
    %v1497 = vunpack.c.l.b16 %v339
    %v1498 = vunpack.c.h.b16 %v339
    %v1499 = vunpack.c.l.b16 %v340
    %v1500 = vunpack.c.h.b16 %v340
    %v1501 = vunpack.c.l.b16 %v341
    %v1502 = vunpack.c.h.b16 %v341
    %v1503 = vunpack.c.l.b16 %v342
    %v1504 = vunpack.c.h.b16 %v342
    %v1505 = vunpack.c.l.b16 %v343
    %v1506 = vunpack.c.h.b16 %v343
    %v1507 = vunpack.c.l.b16 %v344
    %v1508 = vunpack.c.h.b16 %v344
    %v1509 = vunpack.c.l.b16 %v345
    %v1510 = vunpack.c.h.b16 %v345
    %v1511 = vunpack.c.l.b16 %v346
    %v1512 = vunpack.c.h.b16 %v346
    %v1513 = vunpack.c.l.b16 %v347
    %v1514 = vunpack.c.h.b16 %v347
    %v1515 = vunpack.c.l.b16 %v348
    %v1516 = vunpack.c.h.b16 %v348
    %v1517 = vunpack.c.l.b16 %v349
    %v1518 = vunpack.c.h.b16 %v349
    %v1519 = vunpack.c.l.b16 %v350
    %v1520 = vunpack.c.h.b16 %v350
    %v1521 = vunpack.c.l.b16 %v351
    %v1522 = vunpack.c.h.b16 %v351
    %v1523 = vunpack.c.l.b16 %v352
    %v1524 = vunpack.c.h.b16 %v352
    %v1525 = vunpack.c.l.b16 %v353
    %v1526 = vunpack.c.h.b16 %v353
    %v1527 = vunpack.c.l.b16 %v354
    %v1528 = vunpack.c.h.b16 %v354
    %v1529 = vunpack.c.l.b16 %v355
    %v1530 = vunpack.c.h.b16 %v355
    %v1531 = vunpack.c.l.b16 %v356
    %v1532 = vunpack.c.h.b16 %v356
    %v1533 = vunpack.c.l.b16 %v357
    %v1534 = vunpack.c.h.b16 %v357
    %v1535 = vunpack.c.l.b16 %v358
    %v1536 = vunpack.c.h.b16 %v358
    %v1537 = vunpack.c.l.b16 %v359
    %v1538 = vunpack.c.h.b16 %v359
    %v1539 = vunpack.c.l.b16 %v360
    %v1540 = vunpack.c.h.b16 %v360
    %v1541 = vunpack.c.l.b16 %v361
    %v1542 = vunpack.c.h.b16 %v361
    %v1543 = vunpack.c.l.b16 %v362
    %v1544 = vunpack.c.h.b16 %v362
    %v1545 = vunpack.c.l.b16 %v363
    %v1546 = vunpack.c.h.b16 %v363
    %v1547 = vunpack.c.l.b16 %v364
    %v1548 = vunpack.c.h.b16 %v364
    %v1549 = vunpack.c.l.b16 %v365
    %v1550 = vunpack.c.h.b16 %v365
    %v1551 = vunpack.c.l.b16 %v366
    %v1552 = vunpack.c.h.b16 %v366
    %v1553 = vunpack.c.l.b16 %v367
    %v1554 = vunpack.c.h.b16 %v367
    %v1555 = vunpack.c.l.b16 %v368
    %v1556 = vunpack.c.h.b16 %v368
    %v1557 = vunpack.c.l.b16 %v369
    %v1558 = vunpack.c.h.b16 %v369
    %v1559 = vunpack.c.l.b16 %v370
    %v1560 = vunpack.c.h.b16 %v370
    %v1561 = vunpack.c.l.b16 %v371
    %v1562 = vunpack.c.h.b16 %v371
    %v1563 = vunpack.c.l.b16 %v372
    %v1564 = vunpack.c.h.b16 %v372
    %v1565 = vunpack.c.l.b16 %v373
    %v1566 = vunpack.c.h.b16 %v373
    %v1567 = vunpack.c.l.b16 %v374
    %v1568 = vunpack.c.h.b16 %v374
    %v1569 = vunpack.c.l.b16 %v375
    %v1570 = vunpack.c.h.b16 %v375
    %v1571 = vunpack.c.l.b16 %v376
    %v1572 = vunpack.c.h.b16 %v376
    %v1573 = vunpack.c.l.b16 %v377
    %v1574 = vunpack.c.h.b16 %v377
    %v1575 = vunpack.c.l.b16 %v378
    %v1576 = vunpack.c.h.b16 %v378
    %v1577 = vunpack.c.l.b16 %v379
    %v1578 = vunpack.c.h.b16 %v379
    %v1579 = vunpack.c.l.b16 %v380
    %v1580 = vunpack.c.h.b16 %v380
    %v1581 = vunpack.c.l.b16 %v381
    %v1582 = vunpack.c.h.b16 %v381
    %v1583 = vunpack.c.l.b16 %v382
    %v1584 = vunpack.c.h.b16 %v382
    %v1585 = vunpack.c.l.b16 %v383
    %v1586 = vunpack.c.h.b16 %v383
    %v1587 = vunpack.c.l.b16 %v384
    %v1588 = vunpack.c.h.b16 %v384
    %v1589 = vunpack.c.l.b16 %v385
    %v1590 = vunpack.c.h.b16 %v385
    %v1591 = vunpack.c.l.b16 %v386
    %v1592 = vunpack.c.h.b16 %v386
    %v1593 = vunpack.c.l.b16 %v387
    %v1594 = vunpack.c.h.b16 %v387
    %v1595 = vunpack.c.l.b16 %v388
    %v1596 = vunpack.c.h.b16 %v388
    %v1597 = vunpack.c.l.b16 %v389
    %v1598 = vunpack.c.h.b16 %v389
    %v1599 = vunpack.c.l.b16 %v390
    %v1600 = vunpack.c.h.b16 %v390
    %v1601 = vunpack.c.l.b16 %v391
    %v1602 = vunpack.c.h.b16 %v391
    %v1603 = vunpack.c.l.b16 %v392
    %v1604 = vunpack.c.h.b16 %v392
    %v1605 = vunpack.c.l.b16 %v393
    %v1606 = vunpack.c.h.b16 %v393
    %v1607 = vunpack.c.l.b16 %v394
    %v1608 = vunpack.c.h.b16 %v394
    %v1609 = vunpack.c.l.b16 %v395
    %v1610 = vunpack.c.h.b16 %v395
    %v1611 = vunpack.c.l.b16 %v396
    %v1612 = vunpack.c.h.b16 %v396
    %v1613 = vunpack.c.l.b16 %v397
    %v1614 = vunpack.c.h.b16 %v397
    %v1615 = vunpack.c.l.b16 %v398
    %v1616 = vunpack.c.h.b16 %v398
    %v1617 = vunpack.c.l.b16 %v399
    %v1618 = vunpack.c.h.b16 %v399
    %v1619 = vunpack.c.l.b16 %v400
    %v1620 = vunpack.c.h.b16 %v400
    %v1621 = vunpack.c.l.b16 %v401
    %v1622 = vunpack.c.h.b16 %v401
    %v1623 = vunpack.c.l.b16 %v402
    %v1624 = vunpack.c.h.b16 %v402
    %v1625 = vunpack.c.l.b16 %v403
    %v1626 = vunpack.c.h.b16 %v403
    %v1627 = vunpack.c.l.b16 %v404
    %v1628 = vunpack.c.h.b16 %v404
    %v1629 = vunpack.c.l.b16 %v405
    %v1630 = vunpack.c.h.b16 %v405
    %v1631 = vunpack.c.l.b16 %v406
    %v1632 = vunpack.c.h.b16 %v406
    %v1633 = vunpack.c.l.b16 %v407
    %v1634 = vunpack.c.h.b16 %v407
    %v1635 = vunpack.c.l.b16 %v408
    %v1636 = vunpack.c.h.b16 %v408
    %v1637 = vunpack.c.l.b16 %v409
    %v1638 = vunpack.c.h.b16 %v409
    %v1639 = vunpack.c.l.b16 %v410
    %v1640 = vunpack.c.h.b16 %v410
    %v1641 = vunpack.c.l.b16 %v411
    %v1642 = vunpack.c.h.b16 %v411
    %v1643 = vunpack.c.l.b16 %v412
    %v1644 = vunpack.c.h.b16 %v412
    %v1645 = vunpack.c.l.b16 %v413
    %v1646 = vunpack.c.h.b16 %v413
    %v1647 = vunpack.c.l.b16 %v414
    %v1648 = vunpack.c.h.b16 %v414
    %v1649 = vunpack.c.l.b16 %v415
    %v1650 = vunpack.c.h.b16 %v415
    %v1651 = vunpack.c.l.b16 %v416
    %v1652 = vunpack.c.h.b16 %v416
    %v1653 = vunpack.c.l.b16 %v417
    %v1654 = vunpack.c.h.b16 %v417
    %v1655 = vunpack.c.l.b16 %v418
    %v1656 = vunpack.c.h.b16 %v418
    %v1657 = vunpack.c.l.b16 %v419
    %v1658 = vunpack.c.h.b16 %v419
    %v1659 = vunpack.c.l.b16 %v420
    %v1660 = vunpack.c.h.b16 %v420
    %v1661 = vunpack.c.l.b16 %v421
    %v1662 = vunpack.c.h.b16 %v421
    %v1663 = vunpack.c.l.b16 %v422
    %v1664 = vunpack.c.h.b16 %v422
    %v1665 = vunpack.c.l.b16 %v423
    %v1666 = vunpack.c.h.b16 %v423
    %v1667 = vunpack.c.l.b16 %v424
    %v1668 = vunpack.c.h.b16 %v424
    %v1669 = vunpack.c.l.b16 %v425
    %v1670 = vunpack.c.h.b16 %v425
    %v1671 = vunpack.c.l.b16 %v426
    %v1672 = vunpack.c.h.b16 %v426
    %v1673 = vunpack.c.l.b16 %v427
    %v1674 = vunpack.c.h.b16 %v427
    %v1675 = vunpack.c.l.b16 %v428
    %v1676 = vunpack.c.h.b16 %v428
    %v1677 = vunpack.c.l.b16 %v429
    %v1678 = vunpack.c.h.b16 %v429
    %v1679 = vunpack.c.l.b16 %v430
    %v1680 = vunpack.c.h.b16 %v430
    %v1681 = vunpack.c.l.b16 %v431
    %v1682 = vunpack.c.h.b16 %v431
    %v1683 = vunpack.c.l.b16 %v432
    %v1684 = vunpack.c.h.b16 %v432
    %v1685 = vunpack.c.l.b16 %v433
    %v1686 = vunpack.c.h.b16 %v433
    %v1687 = vunpack.c.l.b16 %v434
    %v1688 = vunpack.c.h.b16 %v434
    %v1689 = vunpack.c.l.b16 %v435
    %v1690 = vunpack.c.h.b16 %v435
    %v1691 = vunpack.c.l.b16 %v436
    %v1692 = vunpack.c.h.b16 %v436
    %v1693 = vunpack.c.l.b16 %v437
    %v1694 = vunpack.c.h.b16 %v437
    %v1695 = vunpack.c.l.b16 %v438
    %v1696 = vunpack.c.h.b16 %v438
    %v1697 = vunpack.c.l.b16 %v439
    %v1698 = vunpack.c.h.b16 %v439
    %v1699 = vunpack.c.l.b16 %v440
    %v1700 = vunpack.c.h.b16 %v440
    %v1701 = vunpack.c.l.b16 %v441
    %v1702 = vunpack.c.h.b16 %v441
    %v1703 = vunpack.c.l.b16 %v442
    %v1704 = vunpack.c.h.b16 %v442
    %v1705 = vunpack.c.l.b16 %v443
    %v1706 = vunpack.c.h.b16 %v443
    %v1707 = vunpack.c.l.b16 %v444
    %v1708 = vunpack.c.h.b16 %v444
    %v1709 = vunpack.c.l.b16 %v445
    %v1710 = vunpack.c.h.b16 %v445
    %v1711 = vunpack.c.l.b16 %v446
    %v1712 = vunpack.c.h.b16 %v446
    %v1713 = vunpack.c.l.b16 %v447
    %v1714 = vunpack.c.h.b16 %v447
    %v1715 = vunpack.c.l.b16 %v448
    %v1716 = vunpack.c.h.b16 %v448
    %v1717 = vunpack.c.l.b16 %v449
    %v1718 = vunpack.c.h.b16 %v449
    %v1719 = vunpack.c.l.b16 %v450
    %v1720 = vunpack.c.h.b16 %v450
    %v1721 = vunpack.c.l.b16 %v451
    %v1722 = vunpack.c.h.b16 %v451
    %v1723 = vunpack.c.l.b16 %v452
    %v1724 = vunpack.c.h.b16 %v452
    %v1725 = vunpack.c.l.b16 %v453
    %v1726 = vunpack.c.h.b16 %v453
    %v1727 = vunpack.c.l.b16 %v454
    %v1728 = vunpack.c.h.b16 %v454
    %v1729 = vunpack.c.l.b16 %v455
    %v1730 = vunpack.c.h.b16 %v455
    %v1731 = vunpack.c.l.b16 %v456
    %v1732 = vunpack.c.h.b16 %v456
    %v1733 = vunpack.c.l.b16 %v457
    %v1734 = vunpack.c.h.b16 %v457
    %v1735 = vunpack.c.l.b16 %v458
    %v1736 = vunpack.c.h.b16 %v458
    %v1737 = vunpack.c.l.b16 %v459
    %v1738 = vunpack.c.h.b16 %v459
    %v1739 = vunpack.c.l.b16 %v460
    %v1740 = vunpack.c.h.b16 %v460
    %v1741 = vunpack.c.l.b16 %v461
    %v1742 = vunpack.c.h.b16 %v461
    %v1743 = vunpack.c.l.b16 %v462
    %v1744 = vunpack.c.h.b16 %v462
    %v1745 = vunpack.c.l.b16 %v463
    %v1746 = vunpack.c.h.b16 %v463
    %v1747 = vunpack.c.l.b16 %v464
    %v1748 = vunpack.c.h.b16 %v464
    %v1749 = vunpack.c.l.b16 %v465
    %v1750 = vunpack.c.h.b16 %v465
    %v1751 = vunpack.c.l.b16 %v466
    %v1752 = vunpack.c.h.b16 %v466
    %v1753 = vunpack.c.l.b16 %v467
    %v1754 = vunpack.c.h.b16 %v467
    %v1755 = vunpack.c.l.b16 %v468
    %v1756 = vunpack.c.h.b16 %v468
    %v1757 = vunpack.c.l.b16 %v469
    %v1758 = vunpack.c.h.b16 %v469
    %v1759 = vunpack.c.l.b16 %v470
    %v1760 = vunpack.c.h.b16 %v470
    %v1761 = vunpack.c.l.b16 %v471
    %v1762 = vunpack.c.h.b16 %v471
    %v1763 = vunpack.c.l.b16 %v472
    %v1764 = vunpack.c.h.b16 %v472
    %v1765 = vunpack.c.l.b16 %v473
    %v1766 = vunpack.c.h.b16 %v473
    %v1767 = vunpack.c.l.b16 %v474
    %v1768 = vunpack.c.h.b16 %v474
    %v1769 = vunpack.c.l.b16 %v475
    %v1770 = vunpack.c.h.b16 %v475
    %v1771 = vunpack.c.l.b16 %v476
    %v1772 = vunpack.c.h.b16 %v476
    %v1773 = vunpack.c.l.b16 %v477
    %v1774 = vunpack.c.h.b16 %v477
    %v1775 = vunpack.c.l.b16 %v478
    %v1776 = vunpack.c.h.b16 %v478
    %v1777 = vunpack.c.l.b16 %v479
    %v1778 = vunpack.c.h.b16 %v479
    %v1779 = vunpack.c.l.b16 %v480
    %v1780 = vunpack.c.h.b16 %v480
    %v1781 = vunpack.c.l.b16 %v481
    %v1782 = vunpack.c.h.b16 %v481
    %v1783 = vunpack.c.l.b16 %v482
    %v1784 = vunpack.c.h.b16 %v482
    %v1785 = vunpack.c.l.b16 %v483
    %v1786 = vunpack.c.h.b16 %v483
    %v1787 = vunpack.c.l.b16 %v484
    %v1788 = vunpack.c.h.b16 %v484
    %v1789 = vunpack.c.l.b16 %v485
    %v1790 = vunpack.c.h.b16 %v485
    %v1791 = vunpack.c.l.b16 %v486
    %v1792 = vunpack.c.h.b16 %v486
    %v1793 = vunpack.c.l.b16 %v487
    %v1794 = vunpack.c.h.b16 %v487
    %v1795 = vunpack.c.l.b16 %v488
    %v1796 = vunpack.c.h.b16 %v488
    %v1797 = vunpack.c.l.b16 %v489
    %v1798 = vunpack.c.h.b16 %v489
    %v1799 = vunpack.c.l.b16 %v490
    %v1800 = vunpack.c.h.b16 %v490
    %v1801 = vunpack.c.l.b16 %v491
    %v1802 = vunpack.c.h.b16 %v491
    %v1803 = vunpack.c.l.b16 %v492
    %v1804 = vunpack.c.h.b16 %v492
    %v1805 = vunpack.c.l.b16 %v493
    %v1806 = vunpack.c.h.b16 %v493
    %v1807 = vunpack.c.l.b16 %v494
    %v1808 = vunpack.c.h.b16 %v494
    %v1809 = vunpack.c.l.b16 %v495
    %v1810 = vunpack.c.h.b16 %v495
    %v1811 = vunpack.c.l.b16 %v496
    %v1812 = vunpack.c.h.b16 %v496
    %v1813 = vunpack.c.l.b16 %v497
    %v1814 = vunpack.c.h.b16 %v497
    %v1815 = vunpack.c.l.b16 %v498
    %v1816 = vunpack.c.h.b16 %v498
    %v1817 = vunpack.c.l.b16 %v499
    %v1818 = vunpack.c.h.b16 %v499
    %v1819 = vunpack.c.l.b16 %v500
    %v1820 = vunpack.c.h.b16 %v500
    %v1821 = vunpack.c.l.b16 %v501
    %v1822 = vunpack.c.h.b16 %v501
    %v1823 = vunpack.c.l.b16 %v502
    %v1824 = vunpack.c.h.b16 %v502
    %v1825 = vunpack.c.l.b16 %v503
    %v1826 = vunpack.c.h.b16 %v503
    %v1827 = vunpack.c.l.b16 %v504
    %v1828 = vunpack.c.h.b16 %v504
    %v1829 = vunpack.c.l.b16 %v505
    %v1830 = vunpack.c.h.b16 %v505
    %v1831 = vunpack.c.l.b16 %v506
    %v1832 = vunpack.c.h.b16 %v506
    %v1833 = vunpack.c.l.b16 %v507
    %v1834 = vunpack.c.h.b16 %v507
    %v1835 = vunpack.c.l.b16 %v508
    %v1836 = vunpack.c.h.b16 %v508
    %v1837 = vunpack.c.l.b16 %v509
    %v1838 = vunpack.c.h.b16 %v509
    %v1839 = vunpack.c.l.b16 %v510
    %v1840 = vunpack.c.h.b16 %v510
    %v1841 = vunpack.c.l.b16 %v511
    %v1842 = vunpack.c.h.b16 %v511
    %v1843 = vunpack.c.l.b16 %v512
    %v1844 = vunpack.c.h.b16 %v512
    %v1845 = vunpack.c.l.b16 %v513
    %v1846 = vunpack.c.h.b16 %v513
    %v1847 = vunpack.c.l.b16 %v514
    %v1848 = vunpack.c.h.b16 %v514
    %v1849 = vunpack.c.l.b16 %v515
    %v1850 = vunpack.c.h.b16 %v515
    %v1851 = vunpack.c.l.b16 %v516
    %v1852 = vunpack.c.h.b16 %v516
    %v1853 = vunpack.c.l.b16 %v517
    %v1854 = vunpack.c.h.b16 %v517
    %v1855 = vunpack.c.l.b16 %v518
    %v1856 = vunpack.c.h.b16 %v518
    %v1857 = vunpack.c.l.b16 %v519
    %v1858 = vunpack.c.h.b16 %v519
    %v1859 = vunpack.c.l.b16 %v520
    %v1860 = vunpack.c.h.b16 %v520
    %v1861 = vunpack.c.l.b16 %v521
    %v1862 = vunpack.c.h.b16 %v521
    %v1863 = vunpack.c.l.b16 %v522
    %v1864 = vunpack.c.h.b16 %v522
    %v1865 = vunpack.c.l.b16 %v523
    %v1866 = vunpack.c.h.b16 %v523
    %v1867 = vunpack.c.l.b16 %v524
    %v1868 = vunpack.c.h.b16 %v524
    %v1869 = vunpack.c.l.b16 %v525
    %v1870 = vunpack.c.h.b16 %v525
    %v1871 = vunpack.c.l.b16 %v526
    %v1872 = vunpack.c.h.b16 %v526
    %v1873 = vunpack.c.l.b16 %v527
    %v1874 = vunpack.c.h.b16 %v527
    %v1875 = vunpack.c.l.b16 %v528
    %v1876 = vunpack.c.h.b16 %v528
    %v1877 = vunpack.c.l.b16 %v529
    %v1878 = vunpack.c.h.b16 %v529
    %v1879 = vunpack.c.l.b16 %v530
    %v1880 = vunpack.c.h.b16 %v530
    %v1881 = vunpack.c.l.b16 %v531
    %v1882 = vunpack.c.h.b16 %v531
    %v1883 = vunpack.c.l.b16 %v532
    %v1884 = vunpack.c.h.b16 %v532
    %v1885 = vunpack.c.l.b16 %v533
    %v1886 = vunpack.c.h.b16 %v533
    %v1887 = vunpack.c.l.b16 %v534
    %v1888 = vunpack.c.h.b16 %v534
    %v1889 = vunpack.c.l.b16 %v535
    %v1890 = vunpack.c.h.b16 %v535
    %v1891 = vunpack.c.l.b16 %v536
    %v1892 = vunpack.c.h.b16 %v536
    %v1893 = vunpack.c.l.b16 %v537
    %v1894 = vunpack.c.h.b16 %v537
    %v1895 = vunpack.c.l.b16 %v538
    %v1896 = vunpack.c.h.b16 %v538
    %v1897 = vunpack.c.l.b16 %v539
    %v1898 = vunpack.c.h.b16 %v539
    %v1899 = vunpack.c.l.b16 %v540
    %v1900 = vunpack.c.h.b16 %v540
    %v1901 = vunpack.c.l.b16 %v541
    %v1902 = vunpack.c.h.b16 %v541
    %v1903 = vunpack.c.l.b16 %v542
    %v1904 = vunpack.c.h.b16 %v542
    %v1905 = vunpack.c.l.b16 %v543
    %v1906 = vunpack.c.h.b16 %v543
    %v1907 = vunpack.c.l.b16 %v544
    %v1908 = vunpack.c.h.b16 %v544
    %v1909 = vunpack.c.l.b16 %v545
    %v1910 = vunpack.c.h.b16 %v545
    %v1911 = vunpack.c.l.b16 %v546
    %v1912 = vunpack.c.h.b16 %v546
    %v1913 = vunpack.c.l.b16 %v547
    %v1914 = vunpack.c.h.b16 %v547
    %v1915 = vunpack.c.l.b16 %v548
    %v1916 = vunpack.c.h.b16 %v548
    %v1917 = vunpack.c.l.b16 %v549
    %v1918 = vunpack.c.h.b16 %v549
    %v1919 = vunpack.c.l.b16 %v550
    %v1920 = vunpack.c.h.b16 %v550
    %v1921 = vunpack.c.l.b16 %v551
    %v1922 = vunpack.c.h.b16 %v551
    %v1923 = vunpack.c.l.b16 %v552
    %v1924 = vunpack.c.h.b16 %v552
    %v1925 = vunpack.c.l.b16 %v553
    %v1926 = vunpack.c.h.b16 %v553
    %v1927 = vunpack.c.l.b16 %v554
    %v1928 = vunpack.c.h.b16 %v554
    %v1929 = vunpack.c.l.b16 %v555
    %v1930 = vunpack.c.h.b16 %v555
    %v1931 = vunpack.c.l.b16 %v556
    %v1932 = vunpack.c.h.b16 %v556
    %v1933 = vunpack.c.l.b16 %v557
    %v1934 = vunpack.c.h.b16 %v557
    %v1935 = vunpack.c.l.b16 %v558
    %v1936 = vunpack.c.h.b16 %v558
    %v1937 = vunpack.c.l.b16 %v559
    %v1938 = vunpack.c.h.b16 %v559
    %v1939 = vunpack.c.l.b16 %v560
    %v1940 = vunpack.c.h.b16 %v560
    %v1941 = vunpack.c.l.b16 %v561
    %v1942 = vunpack.c.h.b16 %v561
    %v1943 = vunpack.c.l.b16 %v562
    %v1944 = vunpack.c.h.b16 %v562
    %v1945 = vunpack.c.l.b16 %v563
    %v1946 = vunpack.c.h.b16 %v563
    %v1947 = vunpack.c.l.b16 %v564
    %v1948 = vunpack.c.h.b16 %v564
    %v1949 = vunpack.c.l.b16 %v565
    %v1950 = vunpack.c.h.b16 %v565
    %v1951 = vunpack.c.l.b16 %v566
    %v1952 = vunpack.c.h.b16 %v566
    %v1953 = vunpack.c.l.b16 %v567
    %v1954 = vunpack.c.h.b16 %v567
    %v1955 = vunpack.c.l.b16 %v568
    %v1956 = vunpack.c.h.b16 %v568
    %v1957 = vunpack.c.l.b16 %v569
    %v1958 = vunpack.c.h.b16 %v569
    %v1959 = vunpack.c.l.b16 %v570
    %v1960 = vunpack.c.h.b16 %v570
    %v1961 = vunpack.c.l.b16 %v571
    %v1962 = vunpack.c.h.b16 %v571
    %v1963 = vunpack.c.l.b16 %v572
    %v1964 = vunpack.c.h.b16 %v572
    %v1965 = vunpack.c.l.b16 %v573
    %v1966 = vunpack.c.h.b16 %v573
    %v1967 = vunpack.c.l.b16 %v574
    %v1968 = vunpack.c.h.b16 %v574
    %v1969 = vunpack.c.l.b16 %v575
    %v1970 = vunpack.c.h.b16 %v575
    %v1971 = vunpack.c.l.b16 %v576
    %v1972 = vunpack.c.h.b16 %v576
    %v1973 = vunpack.c.l.b16 %v577
    %v1974 = vunpack.c.h.b16 %v577
    %v1975 = vunpack.c.l.b16 %v578
    %v1976 = vunpack.c.h.b16 %v578
    %v1977 = vunpack.c.l.b16 %v579
    %v1978 = vunpack.c.h.b16 %v579
    %v1979 = vunpack.c.l.b16 %v580
    %v1980 = vunpack.c.h.b16 %v580
    %v1981 = vunpack.c.l.b16 %v581
    %v1982 = vunpack.c.h.b16 %v581
    %v1983 = vunpack.c.l.b16 %v582
    %v1984 = vunpack.c.h.b16 %v582
    %v1985 = vunpack.c.l.b16 %v583
    %v1986 = vunpack.c.h.b16 %v583
    %v1987 = vunpack.c.l.b16 %v584
    %v1988 = vunpack.c.h.b16 %v584
    %v1989 = vunpack.c.l.b16 %v585
    %v1990 = vunpack.c.h.b16 %v585
    %v1991 = vunpack.c.l.b16 %v586
    %v1992 = vunpack.c.h.b16 %v586
    %v1993 = vunpack.c.l.b16 %v587
    %v1994 = vunpack.c.h.b16 %v587
    %v1995 = vunpack.c.l.b16 %v588
    %v1996 = vunpack.c.h.b16 %v588
    %v1997 = vunpack.c.l.b16 %v589
    %v1998 = vunpack.c.h.b16 %v589
    %v1999 = vunpack.c.l.b16 %v590
    %v2000 = vunpack.c.h.b16 %v590
    %v2001 = vunpack.c.l.b16 %v591
    %v2002 = vunpack.c.h.b16 %v591
    %v2003 = vunpack.c.l.b16 %v592
    %v2004 = vunpack.c.h.b16 %v592
    %v2005 = vunpack.c.l.b16 %v593
    %v2006 = vunpack.c.h.b16 %v593
    %v2007 = vunpack.c.l.b16 %v594
    %v2008 = vunpack.c.h.b16 %v594
    %v2009 = vunpack.c.l.b16 %v595
    %v2010 = vunpack.c.h.b16 %v595
    %v2011 = vunpack.c.l.b16 %v596
    %v2012 = vunpack.c.h.b16 %v596
    %v2013 = vunpack.c.l.b16 %v597
    %v2014 = vunpack.c.h.b16 %v597
    %v2015 = vunpack.c.l.b16 %v598
    %v2016 = vunpack.c.h.b16 %v598
    %v2017 = vunpack.c.l.b16 %v599
    %v2018 = vunpack.c.h.b16 %v599
    %v2019 = vunpack.c.l.b16 %v600
    %v2020 = vunpack.c.h.b16 %v600
    %v2021 = vunpack.c.l.b16 %v601
    %v2022 = vunpack.c.h.b16 %v601
    %v2023 = vunpack.c.l.b16 %v602
    %v2024 = vunpack.c.h.b16 %v602
    %v2025 = vunpack.c.l.b16 %v603
    %v2026 = vunpack.c.h.b16 %v603
    %v2027 = vunpack.c.l.b16 %v604
    %v2028 = vunpack.c.h.b16 %v604
    %v2029 = vunpack.c.l.b16 %v605
    %v2030 = vunpack.c.h.b16 %v605
    %v2031 = vunpack.c.l.b16 %v606
    %v2032 = vunpack.c.h.b16 %v606
    %v2033 = vunpack.c.l.b16 %v607
    %v2034 = vunpack.c.h.b16 %v607
    %v2035 = vunpack.c.l.b16 %v608
    %v2036 = vunpack.c.h.b16 %v608
    %v2037 = vunpack.c.l.b16 %v609
    %v2038 = vunpack.c.h.b16 %v609
    %v2039 = vunpack.c.l.b16 %v610
    %v2040 = vunpack.c.h.b16 %v610
    %v2041 = vunpack.c.l.b16 %v611
    %v2042 = vunpack.c.h.b16 %v611
    %v2043 = vunpack.c.l.b16 %v612
    %v2044 = vunpack.c.h.b16 %v612
    %v2045 = vunpack.c.l.b16 %v613
    %v2046 = vunpack.c.h.b16 %v613
    %v2047 = vunpack.c.l.b16 %v614
    %v2048 = vunpack.c.h.b16 %v614
    %v2049 = vunpack.c.l.b16 %v615
    %v2050 = vunpack.c.h.b16 %v615
    %v2051 = vunpack.c.l.b16 %v616
    %v2052 = vunpack.c.h.b16 %v616
    %v2053 = vunpack.c.l.b16 %v617
    %v2054 = vunpack.c.h.b16 %v617
    %v2055 = vunpack.c.l.b16 %v618
    %v2056 = vunpack.c.h.b16 %v618
    %v2057 = vunpack.c.l.b16 %v619
    %v2058 = vunpack.c.h.b16 %v619
    %v2059 = vunpack.c.l.b16 %v620
    %v2060 = vunpack.c.h.b16 %v620
    %v2061 = vunpack.c.l.b16 %v621
    %v2062 = vunpack.c.h.b16 %v621
    %v2063 = vunpack.c.l.b16 %v622
    %v2064 = vunpack.c.h.b16 %v622
    %v2065 = vunpack.c.l.b16 %v623
    %v2066 = vunpack.c.h.b16 %v623
    %v2067 = vunpack.c.l.b16 %v624
    %v2068 = vunpack.c.h.b16 %v624
    %v2069 = vunpack.c.l.b16 %v625
    %v2070 = vunpack.c.h.b16 %v625
    %v2071 = vunpack.c.l.b16 %v626
    %v2072 = vunpack.c.h.b16 %v626
    %v2073 = vunpack.c.l.b16 %v627
    %v2074 = vunpack.c.h.b16 %v627
    %v2075 = vunpack.c.l.b16 %v628
    %v2076 = vunpack.c.h.b16 %v628
    %v2077 = vunpack.c.l.b16 %v629
    %v2078 = vunpack.c.h.b16 %v629
    %v2079 = vunpack.c.l.b16 %v630
    %v2080 = vunpack.c.h.b16 %v630
    %v2081 = vunpack.c.l.b16 %v631
    %v2082 = vunpack.c.h.b16 %v631
    %v2083 = vunpack.c.l.b16 %v632
    %v2084 = vunpack.c.h.b16 %v632
    %v2085 = vunpack.c.l.b16 %v633
    %v2086 = vunpack.c.h.b16 %v633
    %v2087 = vunpack.c.l.b16 %v634
    %v2088 = vunpack.c.h.b16 %v634
    %v2089 = vunpack.c.l.b16 %v635
    %v2090 = vunpack.c.h.b16 %v635
    %v2091 = vunpack.c.l.b16 %v636
    %v2092 = vunpack.c.h.b16 %v636
    %v2093 = vunpack.c.l.b16 %v637
    %v2094 = vunpack.c.h.b16 %v637
    %v2095 = vunpack.c.l.b16 %v638
    %v2096 = vunpack.c.h.b16 %v638
    %v2097 = vunpack.c.l.b16 %v639
    %v2098 = vunpack.c.h.b16 %v639
    %v2099 = vunpack.c.l.b16 %v640
    %v2100 = vunpack.c.h.b16 %v640
    %v2101 = vunpack.c.l.b16 %v641
    %v2102 = vunpack.c.h.b16 %v641
    %v2103 = vunpack.c.l.b16 %v642
    %v2104 = vunpack.c.h.b16 %v642
    %v2105 = vunpack.c.l.b16 %v643
    %v2106 = vunpack.c.h.b16 %v643
    %v2107 = vunpack.c.l.b16 %v644
    %v2108 = vunpack.c.h.b16 %v644
    %v2109 = vunpack.c.l.b16 %v645
    %v2110 = vunpack.c.h.b16 %v645
    %v2111 = vunpack.c.l.b16 %v646
    %v2112 = vunpack.c.h.b16 %v646
    %v2113 = vunpack.c.l.b16 %v647
    %v2114 = vunpack.c.h.b16 %v647
    %v2115 = vunpack.c.l.b16 %v648
    %v2116 = vunpack.c.h.b16 %v648
    %v2117 = vunpack.c.l.b16 %v649
    %v2118 = vunpack.c.h.b16 %v649
    %v2119 = vunpack.c.l.b16 %v650
    %v2120 = vunpack.c.h.b16 %v650
    %v2121 = vunpack.c.l.b16 %v651
    %v2122 = vunpack.c.h.b16 %v651
    %v2123 = vunpack.c.l.b16 %v652
    %v2124 = vunpack.c.h.b16 %v652
    %v2125 = vunpack.c.l.b16 %v653
    %v2126 = vunpack.c.h.b16 %v653
    %v2127 = vunpack.c.l.b16 %v654
    %v2128 = vunpack.c.h.b16 %v654
    %v2129 = vunpack.c.l.b16 %v655
    %v2130 = vunpack.c.h.b16 %v655
    %v2131 = vunpack.c.l.b16 %v656
    %v2132 = vunpack.c.h.b16 %v656
    %v2133 = vunpack.c.l.b16 %v657
    %v2134 = vunpack.c.h.b16 %v657
    %v2135 = vunpack.c.l.b16 %v658
    %v2136 = vunpack.c.h.b16 %v658
    %v2137 = vunpack.c.l.b16 %v659
    %v2138 = vunpack.c.h.b16 %v659
    %v2139 = vunpack.c.l.b16 %v660
    %v2140 = vunpack.c.h.b16 %v660
    %v2141 = vunpack.c.l.b16 %v661
    %v2142 = vunpack.c.h.b16 %v661
    %v2143 = vunpack.c.l.b16 %v662
    %v2144 = vunpack.c.h.b16 %v662
    %v2145 = vunpack.c.l.b16 %v663
    %v2146 = vunpack.c.h.b16 %v663
    %v2147 = vunpack.c.l.b16 %v664
    %v2148 = vunpack.c.h.b16 %v664
    %v2149 = vunpack.c.l.b16 %v665
    %v2150 = vunpack.c.h.b16 %v665
    %v2151 = vunpack.c.l.b16 %v666
    %v2152 = vunpack.c.h.b16 %v666
    %v2153 = vunpack.c.l.b16 %v667
    %v2154 = vunpack.c.h.b16 %v667
    %v2155 = vunpack.c.l.b16 %v668
    %v2156 = vunpack.c.h.b16 %v668
    %v2157 = vunpack.c.l.b16 %v669
    %v2158 = vunpack.c.h.b16 %v669
    %v2159 = vunpack.c.l.b16 %v670
    %v2160 = vunpack.c.h.b16 %v670
    %v2161 = vunpack.c.l.b16 %v671
    %v2162 = vunpack.c.h.b16 %v671
    %v2163 = vunpack.c.l.b16 %v672
    %v2164 = vunpack.c.h.b16 %v672
    %v2165 = vunpack.c.l.b16 %v673
    %v2166 = vunpack.c.h.b16 %v673
    %v2167 = vunpack.c.l.b16 %v674
    %v2168 = vunpack.c.h.b16 %v674
    %v2169 = vunpack.c.l.b16 %v675
    %v2170 = vunpack.c.h.b16 %v675
    %v2171 = vunpack.c.l.b16 %v676
    %v2172 = vunpack.c.h.b16 %v676
    %v2173 = vunpack.c.l.b16 %v677
    %v2174 = vunpack.c.h.b16 %v677
    %v2175 = vunpack.c.l.b16 %v678
    %v2176 = vunpack.c.h.b16 %v678
    %v2177 = vunpack.c.l.b16 %v679
    %v2178 = vunpack.c.h.b16 %v679
    %v2179 = vunpack.c.l.b16 %v680
    %v2180 = vunpack.c.h.b16 %v680
    %v2181 = vunpack.c.l.b16 %v681
    %v2182 = vunpack.c.h.b16 %v681
    %v2183 = vunpack.c.l.b16 %v682
    %v2184 = vunpack.c.h.b16 %v682
    %v2185 = vunpack.c.l.b16 %v683
    %v2186 = vunpack.c.h.b16 %v683
    %v2187 = vunpack.c.l.b16 %v684
    %v2188 = vunpack.c.h.b16 %v684
    %v2189 = vunpack.c.l.b16 %v685
    %v2190 = vunpack.c.h.b16 %v685
    %v2191 = vunpack.c.l.b16 %v686
    %v2192 = vunpack.c.h.b16 %v686
    %v2193 = vunpack.c.l.b16 %v687
    %v2194 = vunpack.c.h.b16 %v687
    %v2195 = vunpack.c.l.b16 %v688
    %v2196 = vunpack.c.h.b16 %v688
    %v2197 = vunpack.c.l.b16 %v689
    %v2198 = vunpack.c.h.b16 %v689
    %v2199 = vunpack.c.l.b16 %v690
    %v2200 = vunpack.c.h.b16 %v690
    %v2201 = vunpack.c.l.b16 %v691
    %v2202 = vunpack.c.h.b16 %v691
    %v2203 = vunpack.c.l.b16 %v692
    %v2204 = vunpack.c.h.b16 %v692
    %v2205 = vunpack.c.l.b16 %v693
    %v2206 = vunpack.c.h.b16 %v693
    %v2207 = vunpack.c.l.b16 %v694
    %v2208 = vunpack.c.h.b16 %v694
    %v2209 = vunpack.c.l.b16 %v695
    %v2210 = vunpack.c.h.b16 %v695
    %v2211 = vunpack.c.l.b16 %v696
    %v2212 = vunpack.c.h.b16 %v696
    %v2213 = vunpack.c.l.b16 %v697
    %v2214 = vunpack.c.h.b16 %v697
    %v2215 = vunpack.c.l.b16 %v698
    %v2216 = vunpack.c.h.b16 %v698
    %v2217 = vunpack.c.l.b16 %v699
    %v2218 = vunpack.c.h.b16 %v699
    %v2219 = vunpack.c.l.b16 %v700
    %v2220 = vunpack.c.h.b16 %v700
    %v2221 = vunpack.c.l.b16 %v701
    %v2222 = vunpack.c.h.b16 %v701
    %v2223 = vunpack.c.l.b16 %v702
    %v2224 = vunpack.c.h.b16 %v702
    %v2225 = vunpack.c.l.b16 %v703
    %v2226 = vunpack.c.h.b16 %v703
    %v2227 = vunpack.c.l.b16 %v704
    %v2228 = vunpack.c.h.b16 %v704
    %v2229 = vunpack.c.l.b16 %v705
    %v2230 = vunpack.c.h.b16 %v705
    %v2231 = vunpack.c.l.b16 %v706
    %v2232 = vunpack.c.h.b16 %v706
    %v2233 = vunpack.c.l.b16 %v707
    %v2234 = vunpack.c.h.b16 %v707
    %v2235 = vunpack.c.l.b16 %v708
    %v2236 = vunpack.c.h.b16 %v708
    %v2237 = vunpack.c.l.b16 %v709
    %v2238 = vunpack.c.h.b16 %v709
    %v2239 = vunpack.c.l.b16 %v710
    %v2240 = vunpack.c.h.b16 %v710
    %v2241 = vunpack.c.l.b16 %v711
    %v2242 = vunpack.c.h.b16 %v711
    %v2243 = vunpack.c.l.b16 %v712
    %v2244 = vunpack.c.h.b16 %v712
    %v2245 = vunpack.c.l.b16 %v713
    %v2246 = vunpack.c.h.b16 %v713
    %v2247 = vunpack.c.l.b16 %v714
    %v2248 = vunpack.c.h.b16 %v714
    %v2249 = vunpack.c.l.b16 %v715
    %v2250 = vunpack.c.h.b16 %v715
    %v2251 = vunpack.c.l.b16 %v716
    %v2252 = vunpack.c.h.b16 %v716
    %v2253 = vunpack.c.l.b16 %v717
    %v2254 = vunpack.c.h.b16 %v717
    %v2255 = vunpack.c.l.b16 %v718
    %v2256 = vunpack.c.h.b16 %v718
    %v2257 = vunpack.c.l.b16 %v719
    %v2258 = vunpack.c.h.b16 %v719
    %v2259 = vunpack.c.l.b16 %v720
    %v2260 = vunpack.c.h.b16 %v720
    %v2261 = vunpack.c.l.b16 %v721
    %v2262 = vunpack.c.h.b16 %v721
    %v2263 = vunpack.c.l.b16 %v722
    %v2264 = vunpack.c.h.b16 %v722
    %v2265 = vunpack.c.l.b16 %v723
    %v2266 = vunpack.c.h.b16 %v723
    %v2267 = vunpack.c.l.b16 %v724
    %v2268 = vunpack.c.h.b16 %v724
    %v2269 = vunpack.c.l.b16 %v725
    %v2270 = vunpack.c.h.b16 %v725
    %v2271 = vunpack.c.l.b16 %v726
    %v2272 = vunpack.c.h.b16 %v726
    %v2273 = vunpack.c.l.b16 %v727
    %v2274 = vunpack.c.h.b16 %v727
    %v2275 = vunpack.c.l.b16 %v728
    %v2276 = vunpack.c.h.b16 %v728
    %v2277 = vunpack.c.l.b16 %v729
    %v2278 = vunpack.c.h.b16 %v729
    %v2279 = vunpack.c.l.b16 %v730
    %v2280 = vunpack.c.h.b16 %v730
    %v2281 = vunpack.c.l.b16 %v731
    %v2282 = vunpack.c.h.b16 %v731
    %v2283 = vunpack.c.l.b16 %v732
    %v2284 = vunpack.c.h.b16 %v732
    %v2285 = vunpack.c.l.b16 %v733
    %v2286 = vunpack.c.h.b16 %v733
    %v2287 = vunpack.c.l.b16 %v734
    %v2288 = vunpack.c.h.b16 %v734
    %v2289 = vunpack.c.l.b16 %v735
    %v2290 = vunpack.c.h.b16 %v735
    %v2291 = vunpack.c.l.b16 %v736
    %v2292 = vunpack.c.h.b16 %v736
    %v2293 = vunpack.c.l.b16 %v737
    %v2294 = vunpack.c.h.b16 %v737
    %v2295 = vunpack.c.l.b16 %v738
    %v2296 = vunpack.c.h.b16 %v738
    %v2297 = vunpack.c.l.b16 %v739
    %v2298 = vunpack.c.h.b16 %v739
    %v2299 = vunpack.c.l.b16 %v740
    %v2300 = vunpack.c.h.b16 %v740
    %v2301 = vunpack.c.l.b16 %v741
    %v2302 = vunpack.c.h.b16 %v741
    %v2303 = vunpack.c.l.b16 %v742
    %v2304 = vunpack.c.h.b16 %v742
    %v2305 = vunpack.c.l.b16 %v743
    %v2306 = vunpack.c.h.b16 %v743
    %v2307 = vunpack.c.l.b16 %v744
    %v2308 = vunpack.c.h.b16 %v744
    %v2309 = vunpack.c.l.b16 %v745
    %v2310 = vunpack.c.h.b16 %v745
    %v2311 = vunpack.c.l.b16 %v746
    %v2312 = vunpack.c.h.b16 %v746
    %v2313 = vunpack.c.l.b16 %v747
    %v2314 = vunpack.c.h.b16 %v747
    %v2315 = vunpack.c.l.b16 %v748
    %v2316 = vunpack.c.h.b16 %v748
    %v2317 = vunpack.c.l.b16 %v749
    %v2318 = vunpack.c.h.b16 %v749
    %v2319 = vunpack.c.l.b16 %v750
    %v2320 = vunpack.c.h.b16 %v750
    %v2321 = vunpack.c.l.b16 %v751
    %v2322 = vunpack.c.h.b16 %v751
    %v2323 = vunpack.c.l.b16 %v752
    %v2324 = vunpack.c.h.b16 %v752
    %v2325 = vunpack.c.l.b16 %v753
    %v2326 = vunpack.c.h.b16 %v753
    %v2327 = vunpack.c.l.b16 %v754
    %v2328 = vunpack.c.h.b16 %v754
    %v2329 = vunpack.c.l.b16 %v755
    %v2330 = vunpack.c.h.b16 %v755
    %v2331 = vunpack.c.l.b16 %v756
    %v2332 = vunpack.c.h.b16 %v756
    %v2333 = vpack.c.b16 %v1325, %v1309
    %v2334 = vpack.c.b16 %v1326, %v1310
    %v2335 = vpack.c.b16 %v1327, %v1311
    %v2336 = vpack.c.b16 %v1328, %v1312
    %v2337 = vpack.c.b16 %v1329, %v1313
    %v2338 = vpack.c.b16 %v1330, %v1314
    %v2339 = vpack.c.b16 %v1331, %v1315
    %v2340 = vpack.c.b16 %v1332, %v1316
    %v2341 = vpack.c.b16 %v1333, %v1317
    %v2342 = vpack.c.b16 %v1334, %v1318
    %v2343 = vpack.c.b16 %v1335, %v1319
    %v2344 = vpack.c.b16 %v1336, %v1320
    %v2345 = vpack.c.b16 %v1337, %v1321
    %v2346 = vpack.c.b16 %v1338, %v1322
    %v2347 = vpack.c.b16 %v1339, %v1323
    %v2348 = vpack.c.b16 %v1340, %v1324
    %v2349 = vpack.c.b16 %v1357, %v1341
    %v2350 = vpack.c.b16 %v1358, %v1342
    %v2351 = vpack.c.b16 %v1359, %v1343
    %v2352 = vpack.c.b16 %v1360, %v1344
    %v2353 = vpack.c.b16 %v1361, %v1345
    %v2354 = vpack.c.b16 %v1362, %v1346
    %v2355 = vpack.c.b16 %v1363, %v1347
    %v2356 = vpack.c.b16 %v1364, %v1348
    %v2357 = vpack.c.b16 %v1365, %v1349
    %v2358 = vpack.c.b16 %v1366, %v1350
    %v2359 = vpack.c.b16 %v1367, %v1351
    %v2360 = vpack.c.b16 %v1368, %v1352
    %v2361 = vpack.c.b16 %v1369, %v1353
    %v2362 = vpack.c.b16 %v1370, %v1354
    %v2363 = vpack.c.b16 %v1371, %v1355
    %v2364 = vpack.c.b16 %v1372, %v1356
    %v2365 = vpack.c.b16 %v1389, %v1373
    %v2366 = vpack.c.b16 %v1390, %v1374
    %v2367 = vpack.c.b16 %v1391, %v1375
    %v2368 = vpack.c.b16 %v1392, %v1376
    %v2369 = vpack.c.b16 %v1393, %v1377
    %v2370 = vpack.c.b16 %v1394, %v1378
    %v2371 = vpack.c.b16 %v1395, %v1379
    %v2372 = vpack.c.b16 %v1396, %v1380
    %v2373 = vpack.c.b16 %v1397, %v1381
    %v2374 = vpack.c.b16 %v1398, %v1382
    %v2375 = vpack.c.b16 %v1399, %v1383
    %v2376 = vpack.c.b16 %v1400, %v1384
    %v2377 = vpack.c.b16 %v1401, %v1385
    %v2378 = vpack.c.b16 %v1402, %v1386
    %v2379 = vpack.c.b16 %v1403, %v1387
    %v2380 = vpack.c.b16 %v1404, %v1388
    %v2381 = vpack.c.b16 %v1421, %v1405
    %v2382 = vpack.c.b16 %v1422, %v1406
    %v2383 = vpack.c.b16 %v1423, %v1407
    %v2384 = vpack.c.b16 %v1424, %v1408
    %v2385 = vpack.c.b16 %v1425, %v1409
    %v2386 = vpack.c.b16 %v1426, %v1410
    %v2387 = vpack.c.b16 %v1427, %v1411
    %v2388 = vpack.c.b16 %v1428, %v1412
    %v2389 = vpack.c.b16 %v1429, %v1413
    %v2390 = vpack.c.b16 %v1430, %v1414
    %v2391 = vpack.c.b16 %v1431, %v1415
    %v2392 = vpack.c.b16 %v1432, %v1416
    %v2393 = vpack.c.b16 %v1433, %v1417
    %v2394 = vpack.c.b16 %v1434, %v1418
    %v2395 = vpack.c.b16 %v1435, %v1419
    %v2396 = vpack.c.b16 %v1436, %v1420
    %v2397 = vpack.c.b16 %v1453, %v1437
    %v2398 = vpack.c.b16 %v1454, %v1438
    %v2399 = vpack.c.b16 %v1455, %v1439
    %v2400 = vpack.c.b16 %v1456, %v1440
    %v2401 = vpack.c.b16 %v1457, %v1441
    %v2402 = vpack.c.b16 %v1458, %v1442
    %v2403 = vpack.c.b16 %v1459, %v1443
    %v2404 = vpack.c.b16 %v1460, %v1444
    %v2405 = vpack.c.b16 %v1461, %v1445
    %v2406 = vpack.c.b16 %v1462, %v1446
    %v2407 = vpack.c.b16 %v1463, %v1447
    %v2408 = vpack.c.b16 %v1464, %v1448
    %v2409 = vpack.c.b16 %v1465, %v1449
    %v2410 = vpack.c.b16 %v1466, %v1450
    %v2411 = vpack.c.b16 %v1467, %v1451
    %v2412 = vpack.c.b16 %v1468, %v1452
    %v2413 = vpack.c.b16 %v1485, %v1469
    %v2414 = vpack.c.b16 %v1486, %v1470
    %v2415 = vpack.c.b16 %v1487, %v1471
    %v2416 = vpack.c.b16 %v1488, %v1472
    %v2417 = vpack.c.b16 %v1489, %v1473
    %v2418 = vpack.c.b16 %v1490, %v1474
    %v2419 = vpack.c.b16 %v1491, %v1475
    %v2420 = vpack.c.b16 %v1492, %v1476
    %v2421 = vpack.c.b16 %v1493, %v1477
    %v2422 = vpack.c.b16 %v1494, %v1478
    %v2423 = vpack.c.b16 %v1495, %v1479
    %v2424 = vpack.c.b16 %v1496, %v1480
    %v2425 = vpack.c.b16 %v1497, %v1481
    %v2426 = vpack.c.b16 %v1498, %v1482
    %v2427 = vpack.c.b16 %v1499, %v1483
    %v2428 = vpack.c.b16 %v1500, %v1484
    %v2429 = vpack.c.b16 %v1517, %v1501
    %v2430 = vpack.c.b16 %v1518, %v1502
    %v2431 = vpack.c.b16 %v1519, %v1503
    %v2432 = vpack.c.b16 %v1520, %v1504
    %v2433 = vpack.c.b16 %v1521, %v1505
    %v2434 = vpack.c.b16 %v1522, %v1506
    %v2435 = vpack.c.b16 %v1523, %v1507
    %v2436 = vpack.c.b16 %v1524, %v1508
    %v2437 = vpack.c.b16 %v1525, %v1509
    %v2438 = vpack.c.b16 %v1526, %v1510
    %v2439 = vpack.c.b16 %v1527, %v1511
    %v2440 = vpack.c.b16 %v1528, %v1512
    %v2441 = vpack.c.b16 %v1529, %v1513
    %v2442 = vpack.c.b16 %v1530, %v1514
    %v2443 = vpack.c.b16 %v1531, %v1515
    %v2444 = vpack.c.b16 %v1532, %v1516
    %v2445 = vpack.c.b16 %v1549, %v1533
    %v2446 = vpack.c.b16 %v1550, %v1534
    %v2447 = vpack.c.b16 %v1551, %v1535
    %v2448 = vpack.c.b16 %v1552, %v1536
    %v2449 = vpack.c.b16 %v1553, %v1537
    %v2450 = vpack.c.b16 %v1554, %v1538
    %v2451 = vpack.c.b16 %v1555, %v1539
    %v2452 = vpack.c.b16 %v1556, %v1540
    %v2453 = vpack.c.b16 %v1557, %v1541
    %v2454 = vpack.c.b16 %v1558, %v1542
    %v2455 = vpack.c.b16 %v1559, %v1543
    %v2456 = vpack.c.b16 %v1560, %v1544
    %v2457 = vpack.c.b16 %v1561, %v1545
    %v2458 = vpack.c.b16 %v1562, %v1546
    %v2459 = vpack.c.b16 %v1563, %v1547
    %v2460 = vpack.c.b16 %v1564, %v1548
    %v2461 = vpack.c.b16 %v1581, %v1565
    %v2462 = vpack.c.b16 %v1582, %v1566
    %v2463 = vpack.c.b16 %v1583, %v1567
    %v2464 = vpack.c.b16 %v1584, %v1568
    %v2465 = vpack.c.b16 %v1585, %v1569
    %v2466 = vpack.c.b16 %v1586, %v1570
    %v2467 = vpack.c.b16 %v1587, %v1571
    %v2468 = vpack.c.b16 %v1588, %v1572
    %v2469 = vpack.c.b16 %v1589, %v1573
    %v2470 = vpack.c.b16 %v1590, %v1574
    %v2471 = vpack.c.b16 %v1591, %v1575
    %v2472 = vpack.c.b16 %v1592, %v1576
    %v2473 = vpack.c.b16 %v1593, %v1577
    %v2474 = vpack.c.b16 %v1594, %v1578
    %v2475 = vpack.c.b16 %v1595, %v1579
    %v2476 = vpack.c.b16 %v1596, %v1580
    %v2477 = vpack.c.b16 %v1613, %v1597
    %v2478 = vpack.c.b16 %v1614, %v1598
    %v2479 = vpack.c.b16 %v1615, %v1599
    %v2480 = vpack.c.b16 %v1616, %v1600
    %v2481 = vpack.c.b16 %v1617, %v1601
    %v2482 = vpack.c.b16 %v1618, %v1602
    %v2483 = vpack.c.b16 %v1619, %v1603
    %v2484 = vpack.c.b16 %v1620, %v1604
    %v2485 = vpack.c.b16 %v1621, %v1605
    %v2486 = vpack.c.b16 %v1622, %v1606
    %v2487 = vpack.c.b16 %v1623, %v1607
    %v2488 = vpack.c.b16 %v1624, %v1608
    %v2489 = vpack.c.b16 %v1625, %v1609
    %v2490 = vpack.c.b16 %v1626, %v1610
    %v2491 = vpack.c.b16 %v1627, %v1611
    %v2492 = vpack.c.b16 %v1628, %v1612
    %v2493 = vpack.c.b16 %v1645, %v1629
    %v2494 = vpack.c.b16 %v1646, %v1630
    %v2495 = vpack.c.b16 %v1647, %v1631
    %v2496 = vpack.c.b16 %v1648, %v1632
    %v2497 = vpack.c.b16 %v1649, %v1633
    %v2498 = vpack.c.b16 %v1650, %v1634
    %v2499 = vpack.c.b16 %v1651, %v1635
    %v2500 = vpack.c.b16 %v1652, %v1636
    %v2501 = vpack.c.b16 %v1653, %v1637
    %v2502 = vpack.c.b16 %v1654, %v1638
    %v2503 = vpack.c.b16 %v1655, %v1639
    %v2504 = vpack.c.b16 %v1656, %v1640
    %v2505 = vpack.c.b16 %v1657, %v1641
    %v2506 = vpack.c.b16 %v1658, %v1642
    %v2507 = vpack.c.b16 %v1659, %v1643
    %v2508 = vpack.c.b16 %v1660, %v1644
    %v2509 = vpack.c.b16 %v1677, %v1661
    %v2510 = vpack.c.b16 %v1678, %v1662
    %v2511 = vpack.c.b16 %v1679, %v1663
    %v2512 = vpack.c.b16 %v1680, %v1664
    %v2513 = vpack.c.b16 %v1681, %v1665
    %v2514 = vpack.c.b16 %v1682, %v1666
    %v2515 = vpack.c.b16 %v1683, %v1667
    %v2516 = vpack.c.b16 %v1684, %v1668
    %v2517 = vpack.c.b16 %v1685, %v1669
    %v2518 = vpack.c.b16 %v1686, %v1670
    %v2519 = vpack.c.b16 %v1687, %v1671
    %v2520 = vpack.c.b16 %v1688, %v1672
    %v2521 = vpack.c.b16 %v1689, %v1673
    %v2522 = vpack.c.b16 %v1690, %v1674
    %v2523 = vpack.c.b16 %v1691, %v1675
    %v2524 = vpack.c.b16 %v1692, %v1676
    %v2525 = vpack.c.b16 %v1709, %v1693
    %v2526 = vpack.c.b16 %v1710, %v1694
    %v2527 = vpack.c.b16 %v1711, %v1695
    %v2528 = vpack.c.b16 %v1712, %v1696
    %v2529 = vpack.c.b16 %v1713, %v1697
    %v2530 = vpack.c.b16 %v1714, %v1698
    %v2531 = vpack.c.b16 %v1715, %v1699
    %v2532 = vpack.c.b16 %v1716, %v1700
    %v2533 = vpack.c.b16 %v1717, %v1701
    %v2534 = vpack.c.b16 %v1718, %v1702
    %v2535 = vpack.c.b16 %v1719, %v1703
    %v2536 = vpack.c.b16 %v1720, %v1704
    %v2537 = vpack.c.b16 %v1721, %v1705
    %v2538 = vpack.c.b16 %v1722, %v1706
    %v2539 = vpack.c.b16 %v1723, %v1707
    %v2540 = vpack.c.b16 %v1724, %v1708
    %v2541 = vpack.c.b16 %v1741, %v1725
    %v2542 = vpack.c.b16 %v1742, %v1726
    %v2543 = vpack.c.b16 %v1743, %v1727
    %v2544 = vpack.c.b16 %v1744, %v1728
    %v2545 = vpack.c.b16 %v1745, %v1729
    %v2546 = vpack.c.b16 %v1746, %v1730
    %v2547 = vpack.c.b16 %v1747, %v1731
    %v2548 = vpack.c.b16 %v1748, %v1732
    %v2549 = vpack.c.b16 %v1749, %v1733
    %v2550 = vpack.c.b16 %v1750, %v1734
    %v2551 = vpack.c.b16 %v1751, %v1735
    %v2552 = vpack.c.b16 %v1752, %v1736
    %v2553 = vpack.c.b16 %v1753, %v1737
    %v2554 = vpack.c.b16 %v1754, %v1738
    %v2555 = vpack.c.b16 %v1755, %v1739
    %v2556 = vpack.c.b16 %v1756, %v1740
    %v2557 = vpack.c.b16 %v1773, %v1757
    %v2558 = vpack.c.b16 %v1774, %v1758
    %v2559 = vpack.c.b16 %v1775, %v1759
    %v2560 = vpack.c.b16 %v1776, %v1760
    %v2561 = vpack.c.b16 %v1777, %v1761
    %v2562 = vpack.c.b16 %v1778, %v1762
    %v2563 = vpack.c.b16 %v1779, %v1763
    %v2564 = vpack.c.b16 %v1780, %v1764
    %v2565 = vpack.c.b16 %v1781, %v1765
    %v2566 = vpack.c.b16 %v1782, %v1766
    %v2567 = vpack.c.b16 %v1783, %v1767
    %v2568 = vpack.c.b16 %v1784, %v1768
    %v2569 = vpack.c.b16 %v1785, %v1769
    %v2570 = vpack.c.b16 %v1786, %v1770
    %v2571 = vpack.c.b16 %v1787, %v1771
    %v2572 = vpack.c.b16 %v1788, %v1772
    %v2573 = vpack.c.b16 %v1805, %v1789
    %v2574 = vpack.c.b16 %v1806, %v1790
    %v2575 = vpack.c.b16 %v1807, %v1791
    %v2576 = vpack.c.b16 %v1808, %v1792
    %v2577 = vpack.c.b16 %v1809, %v1793
    %v2578 = vpack.c.b16 %v1810, %v1794
    %v2579 = vpack.c.b16 %v1811, %v1795
    %v2580 = vpack.c.b16 %v1812, %v1796
    %v2581 = vpack.c.b16 %v1813, %v1797
    %v2582 = vpack.c.b16 %v1814, %v1798
    %v2583 = vpack.c.b16 %v1815, %v1799
    %v2584 = vpack.c.b16 %v1816, %v1800
    %v2585 = vpack.c.b16 %v1817, %v1801
    %v2586 = vpack.c.b16 %v1818, %v1802
    %v2587 = vpack.c.b16 %v1819, %v1803
    %v2588 = vpack.c.b16 %v1820, %v1804
    %v2589 = vpack.c.b16 %v1837, %v1821
    %v2590 = vpack.c.b16 %v1838, %v1822
    %v2591 = vpack.c.b16 %v1839, %v1823
    %v2592 = vpack.c.b16 %v1840, %v1824
    %v2593 = vpack.c.b16 %v1841, %v1825
    %v2594 = vpack.c.b16 %v1842, %v1826
    %v2595 = vpack.c.b16 %v1843, %v1827
    %v2596 = vpack.c.b16 %v1844, %v1828
    %v2597 = vpack.c.b16 %v1845, %v1829
    %v2598 = vpack.c.b16 %v1846, %v1830
    %v2599 = vpack.c.b16 %v1847, %v1831
    %v2600 = vpack.c.b16 %v1848, %v1832
    %v2601 = vpack.c.b16 %v1849, %v1833
    %v2602 = vpack.c.b16 %v1850, %v1834
    %v2603 = vpack.c.b16 %v1851, %v1835
    %v2604 = vpack.c.b16 %v1852, %v1836
    %v2605 = vpack.c.b16 %v1869, %v1853
    %v2606 = vpack.c.b16 %v1870, %v1854
    %v2607 = vpack.c.b16 %v1871, %v1855
    %v2608 = vpack.c.b16 %v1872, %v1856
    %v2609 = vpack.c.b16 %v1873, %v1857
    %v2610 = vpack.c.b16 %v1874, %v1858
    %v2611 = vpack.c.b16 %v1875, %v1859
    %v2612 = vpack.c.b16 %v1876, %v1860
    %v2613 = vpack.c.b16 %v1877, %v1861
    %v2614 = vpack.c.b16 %v1878, %v1862
    %v2615 = vpack.c.b16 %v1879, %v1863
    %v2616 = vpack.c.b16 %v1880, %v1864
    %v2617 = vpack.c.b16 %v1881, %v1865
    %v2618 = vpack.c.b16 %v1882, %v1866
    %v2619 = vpack.c.b16 %v1883, %v1867
    %v2620 = vpack.c.b16 %v1884, %v1868
    %v2621 = vpack.c.b16 %v1901, %v1885
    %v2622 = vpack.c.b16 %v1902, %v1886
    %v2623 = vpack.c.b16 %v1903, %v1887
    %v2624 = vpack.c.b16 %v1904, %v1888
    %v2625 = vpack.c.b16 %v1905, %v1889
    %v2626 = vpack.c.b16 %v1906, %v1890
    %v2627 = vpack.c.b16 %v1907, %v1891
    %v2628 = vpack.c.b16 %v1908, %v1892
    %v2629 = vpack.c.b16 %v1909, %v1893
    %v2630 = vpack.c.b16 %v1910, %v1894
    %v2631 = vpack.c.b16 %v1911, %v1895
    %v2632 = vpack.c.b16 %v1912, %v1896
    %v2633 = vpack.c.b16 %v1913, %v1897
    %v2634 = vpack.c.b16 %v1914, %v1898
    %v2635 = vpack.c.b16 %v1915, %v1899
    %v2636 = vpack.c.b16 %v1916, %v1900
    %v2637 = vpack.c.b16 %v1933, %v1917
    %v2638 = vpack.c.b16 %v1934, %v1918
    %v2639 = vpack.c.b16 %v1935, %v1919
    %v2640 = vpack.c.b16 %v1936, %v1920
    %v2641 = vpack.c.b16 %v1937, %v1921
    %v2642 = vpack.c.b16 %v1938, %v1922
    %v2643 = vpack.c.b16 %v1939, %v1923
    %v2644 = vpack.c.b16 %v1940, %v1924
    %v2645 = vpack.c.b16 %v1941, %v1925
    %v2646 = vpack.c.b16 %v1942, %v1926
    %v2647 = vpack.c.b16 %v1943, %v1927
    %v2648 = vpack.c.b16 %v1944, %v1928
    %v2649 = vpack.c.b16 %v1945, %v1929
    %v2650 = vpack.c.b16 %v1946, %v1930
    %v2651 = vpack.c.b16 %v1947, %v1931
    %v2652 = vpack.c.b16 %v1948, %v1932
    %v2653 = vpack.c.b16 %v1965, %v1949
    %v2654 = vpack.c.b16 %v1966, %v1950
    %v2655 = vpack.c.b16 %v1967, %v1951
    %v2656 = vpack.c.b16 %v1968, %v1952
    %v2657 = vpack.c.b16 %v1969, %v1953
    %v2658 = vpack.c.b16 %v1970, %v1954
    %v2659 = vpack.c.b16 %v1971, %v1955
    %v2660 = vpack.c.b16 %v1972, %v1956
    %v2661 = vpack.c.b16 %v1973, %v1957
    %v2662 = vpack.c.b16 %v1974, %v1958
    %v2663 = vpack.c.b16 %v1975, %v1959
    %v2664 = vpack.c.b16 %v1976, %v1960
    %v2665 = vpack.c.b16 %v1977, %v1961
    %v2666 = vpack.c.b16 %v1978, %v1962
    %v2667 = vpack.c.b16 %v1979, %v1963
    %v2668 = vpack.c.b16 %v1980, %v1964
    %v2669 = vpack.c.b16 %v1997, %v1981
    %v2670 = vpack.c.b16 %v1998, %v1982
    %v2671 = vpack.c.b16 %v1999, %v1983
    %v2672 = vpack.c.b16 %v2000, %v1984
    %v2673 = vpack.c.b16 %v2001, %v1985
    %v2674 = vpack.c.b16 %v2002, %v1986
    %v2675 = vpack.c.b16 %v2003, %v1987
    %v2676 = vpack.c.b16 %v2004, %v1988
    %v2677 = vpack.c.b16 %v2005, %v1989
    %v2678 = vpack.c.b16 %v2006, %v1990
    %v2679 = vpack.c.b16 %v2007, %v1991
    %v2680 = vpack.c.b16 %v2008, %v1992
    %v2681 = vpack.c.b16 %v2009, %v1993
    %v2682 = vpack.c.b16 %v2010, %v1994
    %v2683 = vpack.c.b16 %v2011, %v1995
    %v2684 = vpack.c.b16 %v2012, %v1996
    %v2685 = vpack.c.b16 %v2029, %v2013
    %v2686 = vpack.c.b16 %v2030, %v2014
    %v2687 = vpack.c.b16 %v2031, %v2015
    %v2688 = vpack.c.b16 %v2032, %v2016
    %v2689 = vpack.c.b16 %v2033, %v2017
    %v2690 = vpack.c.b16 %v2034, %v2018
    %v2691 = vpack.c.b16 %v2035, %v2019
    %v2692 = vpack.c.b16 %v2036, %v2020
    %v2693 = vpack.c.b16 %v2037, %v2021
    %v2694 = vpack.c.b16 %v2038, %v2022
    %v2695 = vpack.c.b16 %v2039, %v2023
    %v2696 = vpack.c.b16 %v2040, %v2024
    %v2697 = vpack.c.b16 %v2041, %v2025
    %v2698 = vpack.c.b16 %v2042, %v2026
    %v2699 = vpack.c.b16 %v2043, %v2027
    %v2700 = vpack.c.b16 %v2044, %v2028
    %v2701 = vpack.c.b16 %v2061, %v2045
    %v2702 = vpack.c.b16 %v2062, %v2046
    %v2703 = vpack.c.b16 %v2063, %v2047
    %v2704 = vpack.c.b16 %v2064, %v2048
    %v2705 = vpack.c.b16 %v2065, %v2049
    %v2706 = vpack.c.b16 %v2066, %v2050
    %v2707 = vpack.c.b16 %v2067, %v2051
    %v2708 = vpack.c.b16 %v2068, %v2052
    %v2709 = vpack.c.b16 %v2069, %v2053
    %v2710 = vpack.c.b16 %v2070, %v2054
    %v2711 = vpack.c.b16 %v2071, %v2055
    %v2712 = vpack.c.b16 %v2072, %v2056
    %v2713 = vpack.c.b16 %v2073, %v2057
    %v2714 = vpack.c.b16 %v2074, %v2058
    %v2715 = vpack.c.b16 %v2075, %v2059
    %v2716 = vpack.c.b16 %v2076, %v2060
    %v2717 = vpack.c.b16 %v2093, %v2077
    %v2718 = vpack.c.b16 %v2094, %v2078
    %v2719 = vpack.c.b16 %v2095, %v2079
    %v2720 = vpack.c.b16 %v2096, %v2080
    %v2721 = vpack.c.b16 %v2097, %v2081
    %v2722 = vpack.c.b16 %v2098, %v2082
    %v2723 = vpack.c.b16 %v2099, %v2083
    %v2724 = vpack.c.b16 %v2100, %v2084
    %v2725 = vpack.c.b16 %v2101, %v2085
    %v2726 = vpack.c.b16 %v2102, %v2086
    %v2727 = vpack.c.b16 %v2103, %v2087
    %v2728 = vpack.c.b16 %v2104, %v2088
    %v2729 = vpack.c.b16 %v2105, %v2089
    %v2730 = vpack.c.b16 %v2106, %v2090
    %v2731 = vpack.c.b16 %v2107, %v2091
    %v2732 = vpack.c.b16 %v2108, %v2092
    %v2733 = vpack.c.b16 %v2125, %v2109
    %v2734 = vpack.c.b16 %v2126, %v2110
    %v2735 = vpack.c.b16 %v2127, %v2111
    %v2736 = vpack.c.b16 %v2128, %v2112
    %v2737 = vpack.c.b16 %v2129, %v2113
    %v2738 = vpack.c.b16 %v2130, %v2114
    %v2739 = vpack.c.b16 %v2131, %v2115
    %v2740 = vpack.c.b16 %v2132, %v2116
    %v2741 = vpack.c.b16 %v2133, %v2117
    %v2742 = vpack.c.b16 %v2134, %v2118
    %v2743 = vpack.c.b16 %v2135, %v2119
    %v2744 = vpack.c.b16 %v2136, %v2120
    %v2745 = vpack.c.b16 %v2137, %v2121
    %v2746 = vpack.c.b16 %v2138, %v2122
    %v2747 = vpack.c.b16 %v2139, %v2123
    %v2748 = vpack.c.b16 %v2140, %v2124
    %v2749 = vpack.c.b16 %v2157, %v2141
    %v2750 = vpack.c.b16 %v2158, %v2142
    %v2751 = vpack.c.b16 %v2159, %v2143
    %v2752 = vpack.c.b16 %v2160, %v2144
    %v2753 = vpack.c.b16 %v2161, %v2145
    %v2754 = vpack.c.b16 %v2162, %v2146
    %v2755 = vpack.c.b16 %v2163, %v2147
    %v2756 = vpack.c.b16 %v2164, %v2148
    %v2757 = vpack.c.b16 %v2165, %v2149
    %v2758 = vpack.c.b16 %v2166, %v2150
    %v2759 = vpack.c.b16 %v2167, %v2151
    %v2760 = vpack.c.b16 %v2168, %v2152
    %v2761 = vpack.c.b16 %v2169, %v2153
    %v2762 = vpack.c.b16 %v2170, %v2154
    %v2763 = vpack.c.b16 %v2171, %v2155
    %v2764 = vpack.c.b16 %v2172, %v2156
    %v2765 = vpack.c.b16 %v2189, %v2173
    %v2766 = vpack.c.b16 %v2190, %v2174
    %v2767 = vpack.c.b16 %v2191, %v2175
    %v2768 = vpack.c.b16 %v2192, %v2176
    %v2769 = vpack.c.b16 %v2193, %v2177
    %v2770 = vpack.c.b16 %v2194, %v2178
    %v2771 = vpack.c.b16 %v2195, %v2179
    %v2772 = vpack.c.b16 %v2196, %v2180
    %v2773 = vpack.c.b16 %v2197, %v2181
    %v2774 = vpack.c.b16 %v2198, %v2182
    %v2775 = vpack.c.b16 %v2199, %v2183
    %v2776 = vpack.c.b16 %v2200, %v2184
    %v2777 = vpack.c.b16 %v2201, %v2185
    %v2778 = vpack.c.b16 %v2202, %v2186
    %v2779 = vpack.c.b16 %v2203, %v2187
    %v2780 = vpack.c.b16 %v2204, %v2188
    %v2781 = vpack.c.b16 %v2221, %v2205
    %v2782 = vpack.c.b16 %v2222, %v2206
    %v2783 = vpack.c.b16 %v2223, %v2207
    %v2784 = vpack.c.b16 %v2224, %v2208
    %v2785 = vpack.c.b16 %v2225, %v2209
    %v2786 = vpack.c.b16 %v2226, %v2210
    %v2787 = vpack.c.b16 %v2227, %v2211
    %v2788 = vpack.c.b16 %v2228, %v2212
    %v2789 = vpack.c.b16 %v2229, %v2213
    %v2790 = vpack.c.b16 %v2230, %v2214
    %v2791 = vpack.c.b16 %v2231, %v2215
    %v2792 = vpack.c.b16 %v2232, %v2216
    %v2793 = vpack.c.b16 %v2233, %v2217
    %v2794 = vpack.c.b16 %v2234, %v2218
    %v2795 = vpack.c.b16 %v2235, %v2219
    %v2796 = vpack.c.b16 %v2236, %v2220
    %v2797 = vpack.c.b16 %v2253, %v2237
    %v2798 = vpack.c.b16 %v2254, %v2238
    %v2799 = vpack.c.b16 %v2255, %v2239
    %v2800 = vpack.c.b16 %v2256, %v2240
    %v2801 = vpack.c.b16 %v2257, %v2241
    %v2802 = vpack.c.b16 %v2258, %v2242
    %v2803 = vpack.c.b16 %v2259, %v2243
    %v2804 = vpack.c.b16 %v2260, %v2244
    %v2805 = vpack.c.b16 %v2261, %v2245
    %v2806 = vpack.c.b16 %v2262, %v2246
    %v2807 = vpack.c.b16 %v2263, %v2247
    %v2808 = vpack.c.b16 %v2264, %v2248
    %v2809 = vpack.c.b16 %v2265, %v2249
    %v2810 = vpack.c.b16 %v2266, %v2250
    %v2811 = vpack.c.b16 %v2267, %v2251
    %v2812 = vpack.c.b16 %v2268, %v2252
    %v2813 = vpack.c.b16 %v2285, %v2269
    %v2814 = vpack.c.b16 %v2286, %v2270
    %v2815 = vpack.c.b16 %v2287, %v2271
    %v2816 = vpack.c.b16 %v2288, %v2272
    %v2817 = vpack.c.b16 %v2289, %v2273
    %v2818 = vpack.c.b16 %v2290, %v2274
    %v2819 = vpack.c.b16 %v2291, %v2275
    %v2820 = vpack.c.b16 %v2292, %v2276
    %v2821 = vpack.c.b16 %v2293, %v2277
    %v2822 = vpack.c.b16 %v2294, %v2278
    %v2823 = vpack.c.b16 %v2295, %v2279
    %v2824 = vpack.c.b16 %v2296, %v2280
    %v2825 = vpack.c.b16 %v2297, %v2281
    %v2826 = vpack.c.b16 %v2298, %v2282
    %v2827 = vpack.c.b16 %v2299, %v2283
    %v2828 = vpack.c.b16 %v2300, %v2284
    %v2829 = vpack.c.b16 %v2317, %v2301
    %v2830 = vpack.c.b16 %v2318, %v2302
    %v2831 = vpack.c.b16 %v2319, %v2303
    %v2832 = vpack.c.b16 %v2320, %v2304
    %v2833 = vpack.c.b16 %v2321, %v2305
    %v2834 = vpack.c.b16 %v2322, %v2306
    %v2835 = vpack.c.b16 %v2323, %v2307
    %v2836 = vpack.c.b16 %v2324, %v2308
    %v2837 = vpack.c.b16 %v2325, %v2309
    %v2838 = vpack.c.b16 %v2326, %v2310
    %v2839 = vpack.c.b16 %v2327, %v2311
    %v2840 = vpack.c.b16 %v2328, %v2312
    %v2841 = vpack.c.b16 %v2329, %v2313
    %v2842 = vpack.c.b16 %v2330, %v2314
    %v2843 = vpack.c.b16 %v2331, %v2315
    %v2844 = vpack.c.b16 %v2332, %v2316
    %3357 = vmatpush.bf16.msra.mxu0 %v2445
    %3358 = vmatpush.bf16.msra.mxu0 %v2429
    %3359 = vmatpush.bf16.msra.mxu0 %v2413
    %3360 = vmatpush.bf16.msra.mxu0 %v2397
    %3361 = vmatpush.bf16.msra.mxu0 %v2381
    %3362 = vmatpush.bf16.msra.mxu0 %v2365
    %3363 = vmatpush.bf16.msra.mxu0 %v2349
    %3364 = vmatpush.bf16.msra.mxu0 %v2333
    %3365 = vmatmul.bf16.gmra.mxu0 %v759
    %v3366 = vpop.f32.mrf.mxu0
    %v3367 = vadd.f32 %v765, %v3366
    %v3368 = vpop.f32.mrf.mxu0
    %3369 = vdwg.mxu0
    %3370 = vmatpush.bf16.msra.mxu0 %v2573
    %3371 = vmatpush.bf16.msra.mxu0 %v2557
    %3372 = vmatpush.bf16.msra.mxu0 %v2541
    %3373 = vmatpush.bf16.msra.mxu0 %v2525
    %3374 = vmatpush.bf16.msra.mxu0 %v2509
    %3375 = vmatpush.bf16.msra.mxu0 %v2493
    %3376 = vmatpush.bf16.msra.mxu0 %v2477
    %3377 = vmatpush.bf16.msra.mxu0 %v2461
    %3378 = vmatmul.bf16.gmra.mxu0 %v760
    %v3379 = vpop.f32.mrf.mxu0
    %v3380 = vadd.f32 %v3367, %v3379
    %v3381 = vpop.f32.mrf.mxu0
    %3382 = vdwg.mxu0
    %3383 = vmatpush.bf16.msra.mxu0 %v2701
    %3384 = vmatpush.bf16.msra.mxu0 %v2685
    %3385 = vmatpush.bf16.msra.mxu0 %v2669
    %3386 = vmatpush.bf16.msra.mxu0 %v2653
    %3387 = vmatpush.bf16.msra.mxu0 %v2637
    %3388 = vmatpush.bf16.msra.mxu0 %v2621
    %3389 = vmatpush.bf16.msra.mxu0 %v2605
    %3390 = vmatpush.bf16.msra.mxu0 %v2589
    %3391 = vmatmul.bf16.gmra.mxu0 %v761
    %v3392 = vpop.f32.mrf.mxu0
    %v3393 = vadd.f32 %v3380, %v3392
    %v3394 = vpop.f32.mrf.mxu0
    %3395 = vdwg.mxu0
    %3396 = vmatpush.bf16.msra.mxu0 %v2829
    %3397 = vmatpush.bf16.msra.mxu0 %v2813
    %3398 = vmatpush.bf16.msra.mxu0 %v2797
    %3399 = vmatpush.bf16.msra.mxu0 %v2781
    %3400 = vmatpush.bf16.msra.mxu0 %v2765
    %3401 = vmatpush.bf16.msra.mxu0 %v2749
    %3402 = vmatpush.bf16.msra.mxu0 %v2733
    %3403 = vmatpush.bf16.msra.mxu0 %v2717
    %3404 = vmatmul.bf16.gmra.mxu0 %v762
    %v3405 = vpop.f32.mrf.mxu0
    %v3406 = vadd.f32 %v3393, %v3405
    %v3407 = vpop.f32.mrf.mxu0
    %3408 = vdwg.mxu0
    %3409 = vmatpush.bf16.msra.mxu0 %v2446
    %3410 = vmatpush.bf16.msra.mxu0 %v2430
    %3411 = vmatpush.bf16.msra.mxu0 %v2414
    %3412 = vmatpush.bf16.msra.mxu0 %v2398
    %3413 = vmatpush.bf16.msra.mxu0 %v2382
    %3414 = vmatpush.bf16.msra.mxu0 %v2366
    %3415 = vmatpush.bf16.msra.mxu0 %v2350
    %3416 = vmatpush.bf16.msra.mxu0 %v2334
    %3417 = vmatmul.bf16.gmra.mxu0 %v759
    %v3418 = vpop.f32.mrf.mxu0
    %v3419 = vadd.f32 %v766, %v3418
    %v3420 = vpop.f32.mrf.mxu0
    %3421 = vdwg.mxu0
    %3422 = vmatpush.bf16.msra.mxu0 %v2574
    %3423 = vmatpush.bf16.msra.mxu0 %v2558
    %3424 = vmatpush.bf16.msra.mxu0 %v2542
    %3425 = vmatpush.bf16.msra.mxu0 %v2526
    %3426 = vmatpush.bf16.msra.mxu0 %v2510
    %3427 = vmatpush.bf16.msra.mxu0 %v2494
    %3428 = vmatpush.bf16.msra.mxu0 %v2478
    %3429 = vmatpush.bf16.msra.mxu0 %v2462
    %3430 = vmatmul.bf16.gmra.mxu0 %v760
    %v3431 = vpop.f32.mrf.mxu0
    %v3432 = vadd.f32 %v3419, %v3431
    %v3433 = vpop.f32.mrf.mxu0
    %3434 = vdwg.mxu0
    %3435 = vmatpush.bf16.msra.mxu0 %v2702
    %3436 = vmatpush.bf16.msra.mxu0 %v2686
    %3437 = vmatpush.bf16.msra.mxu0 %v2670
    %3438 = vmatpush.bf16.msra.mxu0 %v2654
    %3439 = vmatpush.bf16.msra.mxu0 %v2638
    %3440 = vmatpush.bf16.msra.mxu0 %v2622
    %3441 = vmatpush.bf16.msra.mxu0 %v2606
    %3442 = vmatpush.bf16.msra.mxu0 %v2590
    %3443 = vmatmul.bf16.gmra.mxu0 %v761
    %v3444 = vpop.f32.mrf.mxu0
    %v3445 = vadd.f32 %v3432, %v3444
    %v3446 = vpop.f32.mrf.mxu0
    %3447 = vdwg.mxu0
    %3448 = vmatpush.bf16.msra.mxu0 %v2830
    %3449 = vmatpush.bf16.msra.mxu0 %v2814
    %3450 = vmatpush.bf16.msra.mxu0 %v2798
    %3451 = vmatpush.bf16.msra.mxu0 %v2782
    %3452 = vmatpush.bf16.msra.mxu0 %v2766
    %3453 = vmatpush.bf16.msra.mxu0 %v2750
    %3454 = vmatpush.bf16.msra.mxu0 %v2734
    %3455 = vmatpush.bf16.msra.mxu0 %v2718
    %3456 = vmatmul.bf16.gmra.mxu0 %v762
    %v3457 = vpop.f32.mrf.mxu0
    %v3458 = vadd.f32 %v3445, %v3457
    %v3459 = vpop.f32.mrf.mxu0
    %3460 = vdwg.mxu0
    %3461 = vmatpush.bf16.msra.mxu0 %v2447
    %3462 = vmatpush.bf16.msra.mxu0 %v2431
    %3463 = vmatpush.bf16.msra.mxu0 %v2415
    %3464 = vmatpush.bf16.msra.mxu0 %v2399
    %3465 = vmatpush.bf16.msra.mxu0 %v2383
    %3466 = vmatpush.bf16.msra.mxu0 %v2367
    %3467 = vmatpush.bf16.msra.mxu0 %v2351
    %3468 = vmatpush.bf16.msra.mxu0 %v2335
    %3469 = vmatmul.bf16.gmra.mxu0 %v759
    %v3470 = vpop.f32.mrf.mxu0
    %v3471 = vadd.f32 %v767, %v3470
    %v3472 = vpop.f32.mrf.mxu0
    %3473 = vdwg.mxu0
    %3474 = vmatpush.bf16.msra.mxu0 %v2575
    %3475 = vmatpush.bf16.msra.mxu0 %v2559
    %3476 = vmatpush.bf16.msra.mxu0 %v2543
    %3477 = vmatpush.bf16.msra.mxu0 %v2527
    %3478 = vmatpush.bf16.msra.mxu0 %v2511
    %3479 = vmatpush.bf16.msra.mxu0 %v2495
    %3480 = vmatpush.bf16.msra.mxu0 %v2479
    %3481 = vmatpush.bf16.msra.mxu0 %v2463
    %3482 = vmatmul.bf16.gmra.mxu0 %v760
    %v3483 = vpop.f32.mrf.mxu0
    %v3484 = vadd.f32 %v3471, %v3483
    %v3485 = vpop.f32.mrf.mxu0
    %3486 = vdwg.mxu0
    %3487 = vmatpush.bf16.msra.mxu0 %v2703
    %3488 = vmatpush.bf16.msra.mxu0 %v2687
    %3489 = vmatpush.bf16.msra.mxu0 %v2671
    %3490 = vmatpush.bf16.msra.mxu0 %v2655
    %3491 = vmatpush.bf16.msra.mxu0 %v2639
    %3492 = vmatpush.bf16.msra.mxu0 %v2623
    %3493 = vmatpush.bf16.msra.mxu0 %v2607
    %3494 = vmatpush.bf16.msra.mxu0 %v2591
    %3495 = vmatmul.bf16.gmra.mxu0 %v761
    %v3496 = vpop.f32.mrf.mxu0
    %v3497 = vadd.f32 %v3484, %v3496
    %v3498 = vpop.f32.mrf.mxu0
    %3499 = vdwg.mxu0
    %3500 = vmatpush.bf16.msra.mxu0 %v2831
    %3501 = vmatpush.bf16.msra.mxu0 %v2815
    %3502 = vmatpush.bf16.msra.mxu0 %v2799
    %3503 = vmatpush.bf16.msra.mxu0 %v2783
    %3504 = vmatpush.bf16.msra.mxu0 %v2767
    %3505 = vmatpush.bf16.msra.mxu0 %v2751
    %3506 = vmatpush.bf16.msra.mxu0 %v2735
    %3507 = vmatpush.bf16.msra.mxu0 %v2719
    %3508 = vmatmul.bf16.gmra.mxu0 %v762
    %v3509 = vpop.f32.mrf.mxu0
    %v3510 = vadd.f32 %v3497, %v3509
    %v3511 = vpop.f32.mrf.mxu0
    %3512 = vdwg.mxu0
    %3513 = vmatpush.bf16.msra.mxu0 %v2448
    %3514 = vmatpush.bf16.msra.mxu0 %v2432
    %3515 = vmatpush.bf16.msra.mxu0 %v2416
    %3516 = vmatpush.bf16.msra.mxu0 %v2400
    %3517 = vmatpush.bf16.msra.mxu0 %v2384
    %3518 = vmatpush.bf16.msra.mxu0 %v2368
    %3519 = vmatpush.bf16.msra.mxu0 %v2352
    %3520 = vmatpush.bf16.msra.mxu0 %v2336
    %3521 = vmatmul.bf16.gmra.mxu0 %v759
    %v3522 = vpop.f32.mrf.mxu0
    %v3523 = vadd.f32 %v768, %v3522
    %v3524 = vpop.f32.mrf.mxu0
    %3525 = vdwg.mxu0
    %3526 = vmatpush.bf16.msra.mxu0 %v2576
    %3527 = vmatpush.bf16.msra.mxu0 %v2560
    %3528 = vmatpush.bf16.msra.mxu0 %v2544
    %3529 = vmatpush.bf16.msra.mxu0 %v2528
    %3530 = vmatpush.bf16.msra.mxu0 %v2512
    %3531 = vmatpush.bf16.msra.mxu0 %v2496
    %3532 = vmatpush.bf16.msra.mxu0 %v2480
    %3533 = vmatpush.bf16.msra.mxu0 %v2464
    %3534 = vmatmul.bf16.gmra.mxu0 %v760
    %v3535 = vpop.f32.mrf.mxu0
    %v3536 = vadd.f32 %v3523, %v3535
    %v3537 = vpop.f32.mrf.mxu0
    %3538 = vdwg.mxu0
    %3539 = vmatpush.bf16.msra.mxu0 %v2704
    %3540 = vmatpush.bf16.msra.mxu0 %v2688
    %3541 = vmatpush.bf16.msra.mxu0 %v2672
    %3542 = vmatpush.bf16.msra.mxu0 %v2656
    %3543 = vmatpush.bf16.msra.mxu0 %v2640
    %3544 = vmatpush.bf16.msra.mxu0 %v2624
    %3545 = vmatpush.bf16.msra.mxu0 %v2608
    %3546 = vmatpush.bf16.msra.mxu0 %v2592
    %3547 = vmatmul.bf16.gmra.mxu0 %v761
    %v3548 = vpop.f32.mrf.mxu0
    %v3549 = vadd.f32 %v3536, %v3548
    %v3550 = vpop.f32.mrf.mxu0
    %3551 = vdwg.mxu0
    %3552 = vmatpush.bf16.msra.mxu0 %v2832
    %3553 = vmatpush.bf16.msra.mxu0 %v2816
    %3554 = vmatpush.bf16.msra.mxu0 %v2800
    %3555 = vmatpush.bf16.msra.mxu0 %v2784
    %3556 = vmatpush.bf16.msra.mxu0 %v2768
    %3557 = vmatpush.bf16.msra.mxu0 %v2752
    %3558 = vmatpush.bf16.msra.mxu0 %v2736
    %3559 = vmatpush.bf16.msra.mxu0 %v2720
    %3560 = vmatmul.bf16.gmra.mxu0 %v762
    %v3561 = vpop.f32.mrf.mxu0
    %v3562 = vadd.f32 %v3549, %v3561
    %v3563 = vpop.f32.mrf.mxu0
    %3564 = vdwg.mxu0
    %3565 = vmatpush.bf16.msra.mxu0 %v2449
    %3566 = vmatpush.bf16.msra.mxu0 %v2433
    %3567 = vmatpush.bf16.msra.mxu0 %v2417
    %3568 = vmatpush.bf16.msra.mxu0 %v2401
    %3569 = vmatpush.bf16.msra.mxu0 %v2385
    %3570 = vmatpush.bf16.msra.mxu0 %v2369
    %3571 = vmatpush.bf16.msra.mxu0 %v2353
    %3572 = vmatpush.bf16.msra.mxu0 %v2337
    %3573 = vmatmul.bf16.gmra.mxu0 %v759
    %v3574 = vpop.f32.mrf.mxu0
    %v3575 = vadd.f32 %v769, %v3574
    %v3576 = vpop.f32.mrf.mxu0
    %3577 = vdwg.mxu0
    %3578 = vmatpush.bf16.msra.mxu0 %v2577
    %3579 = vmatpush.bf16.msra.mxu0 %v2561
    %3580 = vmatpush.bf16.msra.mxu0 %v2545
    %3581 = vmatpush.bf16.msra.mxu0 %v2529
    %3582 = vmatpush.bf16.msra.mxu0 %v2513
    %3583 = vmatpush.bf16.msra.mxu0 %v2497
    %3584 = vmatpush.bf16.msra.mxu0 %v2481
    %3585 = vmatpush.bf16.msra.mxu0 %v2465
    %3586 = vmatmul.bf16.gmra.mxu0 %v760
    %v3587 = vpop.f32.mrf.mxu0
    %v3588 = vadd.f32 %v3575, %v3587
    %v3589 = vpop.f32.mrf.mxu0
    %3590 = vdwg.mxu0
    %3591 = vmatpush.bf16.msra.mxu0 %v2705
    %3592 = vmatpush.bf16.msra.mxu0 %v2689
    %3593 = vmatpush.bf16.msra.mxu0 %v2673
    %3594 = vmatpush.bf16.msra.mxu0 %v2657
    %3595 = vmatpush.bf16.msra.mxu0 %v2641
    %3596 = vmatpush.bf16.msra.mxu0 %v2625
    %3597 = vmatpush.bf16.msra.mxu0 %v2609
    %3598 = vmatpush.bf16.msra.mxu0 %v2593
    %3599 = vmatmul.bf16.gmra.mxu0 %v761
    %v3600 = vpop.f32.mrf.mxu0
    %v3601 = vadd.f32 %v3588, %v3600
    %v3602 = vpop.f32.mrf.mxu0
    %3603 = vdwg.mxu0
    %3604 = vmatpush.bf16.msra.mxu0 %v2833
    %3605 = vmatpush.bf16.msra.mxu0 %v2817
    %3606 = vmatpush.bf16.msra.mxu0 %v2801
    %3607 = vmatpush.bf16.msra.mxu0 %v2785
    %3608 = vmatpush.bf16.msra.mxu0 %v2769
    %3609 = vmatpush.bf16.msra.mxu0 %v2753
    %3610 = vmatpush.bf16.msra.mxu0 %v2737
    %3611 = vmatpush.bf16.msra.mxu0 %v2721
    %3612 = vmatmul.bf16.gmra.mxu0 %v762
    %v3613 = vpop.f32.mrf.mxu0
    %v3614 = vadd.f32 %v3601, %v3613
    %v3615 = vpop.f32.mrf.mxu0
    %3616 = vdwg.mxu0
    %3617 = vmatpush.bf16.msra.mxu0 %v2450
    %3618 = vmatpush.bf16.msra.mxu0 %v2434
    %3619 = vmatpush.bf16.msra.mxu0 %v2418
    %3620 = vmatpush.bf16.msra.mxu0 %v2402
    %3621 = vmatpush.bf16.msra.mxu0 %v2386
    %3622 = vmatpush.bf16.msra.mxu0 %v2370
    %3623 = vmatpush.bf16.msra.mxu0 %v2354
    %3624 = vmatpush.bf16.msra.mxu0 %v2338
    %3625 = vmatmul.bf16.gmra.mxu0 %v759
    %v3626 = vpop.f32.mrf.mxu0
    %v3627 = vadd.f32 %v770, %v3626
    %v3628 = vpop.f32.mrf.mxu0
    %3629 = vdwg.mxu0
    %3630 = vmatpush.bf16.msra.mxu0 %v2578
    %3631 = vmatpush.bf16.msra.mxu0 %v2562
    %3632 = vmatpush.bf16.msra.mxu0 %v2546
    %3633 = vmatpush.bf16.msra.mxu0 %v2530
    %3634 = vmatpush.bf16.msra.mxu0 %v2514
    %3635 = vmatpush.bf16.msra.mxu0 %v2498
    %3636 = vmatpush.bf16.msra.mxu0 %v2482
    %3637 = vmatpush.bf16.msra.mxu0 %v2466
    %3638 = vmatmul.bf16.gmra.mxu0 %v760
    %v3639 = vpop.f32.mrf.mxu0
    %v3640 = vadd.f32 %v3627, %v3639
    %v3641 = vpop.f32.mrf.mxu0
    %3642 = vdwg.mxu0
    %3643 = vmatpush.bf16.msra.mxu0 %v2706
    %3644 = vmatpush.bf16.msra.mxu0 %v2690
    %3645 = vmatpush.bf16.msra.mxu0 %v2674
    %3646 = vmatpush.bf16.msra.mxu0 %v2658
    %3647 = vmatpush.bf16.msra.mxu0 %v2642
    %3648 = vmatpush.bf16.msra.mxu0 %v2626
    %3649 = vmatpush.bf16.msra.mxu0 %v2610
    %3650 = vmatpush.bf16.msra.mxu0 %v2594
    %3651 = vmatmul.bf16.gmra.mxu0 %v761
    %v3652 = vpop.f32.mrf.mxu0
    %v3653 = vadd.f32 %v3640, %v3652
    %v3654 = vpop.f32.mrf.mxu0
    %3655 = vdwg.mxu0
    %3656 = vmatpush.bf16.msra.mxu0 %v2834
    %3657 = vmatpush.bf16.msra.mxu0 %v2818
    %3658 = vmatpush.bf16.msra.mxu0 %v2802
    %3659 = vmatpush.bf16.msra.mxu0 %v2786
    %3660 = vmatpush.bf16.msra.mxu0 %v2770
    %3661 = vmatpush.bf16.msra.mxu0 %v2754
    %3662 = vmatpush.bf16.msra.mxu0 %v2738
    %3663 = vmatpush.bf16.msra.mxu0 %v2722
    %3664 = vmatmul.bf16.gmra.mxu0 %v762
    %v3665 = vpop.f32.mrf.mxu0
    %v3666 = vadd.f32 %v3653, %v3665
    %v3667 = vpop.f32.mrf.mxu0
    %3668 = vdwg.mxu0
    %3669 = vmatpush.bf16.msra.mxu0 %v2451
    %3670 = vmatpush.bf16.msra.mxu0 %v2435
    %3671 = vmatpush.bf16.msra.mxu0 %v2419
    %3672 = vmatpush.bf16.msra.mxu0 %v2403
    %3673 = vmatpush.bf16.msra.mxu0 %v2387
    %3674 = vmatpush.bf16.msra.mxu0 %v2371
    %3675 = vmatpush.bf16.msra.mxu0 %v2355
    %3676 = vmatpush.bf16.msra.mxu0 %v2339
    %3677 = vmatmul.bf16.gmra.mxu0 %v759
    %v3678 = vpop.f32.mrf.mxu0
    %v3679 = vadd.f32 %v771, %v3678
    %v3680 = vpop.f32.mrf.mxu0
    %3681 = vdwg.mxu0
    %3682 = vmatpush.bf16.msra.mxu0 %v2579
    %3683 = vmatpush.bf16.msra.mxu0 %v2563
    %3684 = vmatpush.bf16.msra.mxu0 %v2547
    %3685 = vmatpush.bf16.msra.mxu0 %v2531
    %3686 = vmatpush.bf16.msra.mxu0 %v2515
    %3687 = vmatpush.bf16.msra.mxu0 %v2499
    %3688 = vmatpush.bf16.msra.mxu0 %v2483
    %3689 = vmatpush.bf16.msra.mxu0 %v2467
    %3690 = vmatmul.bf16.gmra.mxu0 %v760
    %v3691 = vpop.f32.mrf.mxu0
    %v3692 = vadd.f32 %v3679, %v3691
    %v3693 = vpop.f32.mrf.mxu0
    %3694 = vdwg.mxu0
    %3695 = vmatpush.bf16.msra.mxu0 %v2707
    %3696 = vmatpush.bf16.msra.mxu0 %v2691
    %3697 = vmatpush.bf16.msra.mxu0 %v2675
    %3698 = vmatpush.bf16.msra.mxu0 %v2659
    %3699 = vmatpush.bf16.msra.mxu0 %v2643
    %3700 = vmatpush.bf16.msra.mxu0 %v2627
    %3701 = vmatpush.bf16.msra.mxu0 %v2611
    %3702 = vmatpush.bf16.msra.mxu0 %v2595
    %3703 = vmatmul.bf16.gmra.mxu0 %v761
    %v3704 = vpop.f32.mrf.mxu0
    %v3705 = vadd.f32 %v3692, %v3704
    %v3706 = vpop.f32.mrf.mxu0
    %3707 = vdwg.mxu0
    %3708 = vmatpush.bf16.msra.mxu0 %v2835
    %3709 = vmatpush.bf16.msra.mxu0 %v2819
    %3710 = vmatpush.bf16.msra.mxu0 %v2803
    %3711 = vmatpush.bf16.msra.mxu0 %v2787
    %3712 = vmatpush.bf16.msra.mxu0 %v2771
    %3713 = vmatpush.bf16.msra.mxu0 %v2755
    %3714 = vmatpush.bf16.msra.mxu0 %v2739
    %3715 = vmatpush.bf16.msra.mxu0 %v2723
    %3716 = vmatmul.bf16.gmra.mxu0 %v762
    %v3717 = vpop.f32.mrf.mxu0
    %v3718 = vadd.f32 %v3705, %v3717
    %v3719 = vpop.f32.mrf.mxu0
    %3720 = vdwg.mxu0
    %3721 = vmatpush.bf16.msra.mxu0 %v2452
    %3722 = vmatpush.bf16.msra.mxu0 %v2436
    %3723 = vmatpush.bf16.msra.mxu0 %v2420
    %3724 = vmatpush.bf16.msra.mxu0 %v2404
    %3725 = vmatpush.bf16.msra.mxu0 %v2388
    %3726 = vmatpush.bf16.msra.mxu0 %v2372
    %3727 = vmatpush.bf16.msra.mxu0 %v2356
    %3728 = vmatpush.bf16.msra.mxu0 %v2340
    %3729 = vmatmul.bf16.gmra.mxu0 %v759
    %v3730 = vpop.f32.mrf.mxu0
    %v3731 = vadd.f32 %v772, %v3730
    %v3732 = vpop.f32.mrf.mxu0
    %3733 = vdwg.mxu0
    %3734 = vmatpush.bf16.msra.mxu0 %v2580
    %3735 = vmatpush.bf16.msra.mxu0 %v2564
    %3736 = vmatpush.bf16.msra.mxu0 %v2548
    %3737 = vmatpush.bf16.msra.mxu0 %v2532
    %3738 = vmatpush.bf16.msra.mxu0 %v2516
    %3739 = vmatpush.bf16.msra.mxu0 %v2500
    %3740 = vmatpush.bf16.msra.mxu0 %v2484
    %3741 = vmatpush.bf16.msra.mxu0 %v2468
    %3742 = vmatmul.bf16.gmra.mxu0 %v760
    %v3743 = vpop.f32.mrf.mxu0
    %v3744 = vadd.f32 %v3731, %v3743
    %v3745 = vpop.f32.mrf.mxu0
    %3746 = vdwg.mxu0
    %3747 = vmatpush.bf16.msra.mxu0 %v2708
    %3748 = vmatpush.bf16.msra.mxu0 %v2692
    %3749 = vmatpush.bf16.msra.mxu0 %v2676
    %3750 = vmatpush.bf16.msra.mxu0 %v2660
    %3751 = vmatpush.bf16.msra.mxu0 %v2644
    %3752 = vmatpush.bf16.msra.mxu0 %v2628
    %3753 = vmatpush.bf16.msra.mxu0 %v2612
    %3754 = vmatpush.bf16.msra.mxu0 %v2596
    %3755 = vmatmul.bf16.gmra.mxu0 %v761
    %v3756 = vpop.f32.mrf.mxu0
    %v3757 = vadd.f32 %v3744, %v3756
    %v3758 = vpop.f32.mrf.mxu0
    %3759 = vdwg.mxu0
    %3760 = vmatpush.bf16.msra.mxu0 %v2836
    %3761 = vmatpush.bf16.msra.mxu0 %v2820
    %3762 = vmatpush.bf16.msra.mxu0 %v2804
    %3763 = vmatpush.bf16.msra.mxu0 %v2788
    %3764 = vmatpush.bf16.msra.mxu0 %v2772
    %3765 = vmatpush.bf16.msra.mxu0 %v2756
    %3766 = vmatpush.bf16.msra.mxu0 %v2740
    %3767 = vmatpush.bf16.msra.mxu0 %v2724
    %3768 = vmatmul.bf16.gmra.mxu0 %v762
    %v3769 = vpop.f32.mrf.mxu0
    %v3770 = vadd.f32 %v3757, %v3769
    %v3771 = vpop.f32.mrf.mxu0
    %3772 = vdwg.mxu0
    %3773 = vmatpush.bf16.msra.mxu0 %v2453
    %3774 = vmatpush.bf16.msra.mxu0 %v2437
    %3775 = vmatpush.bf16.msra.mxu0 %v2421
    %3776 = vmatpush.bf16.msra.mxu0 %v2405
    %3777 = vmatpush.bf16.msra.mxu0 %v2389
    %3778 = vmatpush.bf16.msra.mxu0 %v2373
    %3779 = vmatpush.bf16.msra.mxu0 %v2357
    %3780 = vmatpush.bf16.msra.mxu0 %v2341
    %3781 = vmatmul.bf16.gmra.mxu0 %v759
    %v3782 = vpop.f32.mrf.mxu0
    %v3783 = vadd.f32 %v773, %v3782
    %v3784 = vpop.f32.mrf.mxu0
    %3785 = vdwg.mxu0
    %3786 = vmatpush.bf16.msra.mxu0 %v2581
    %3787 = vmatpush.bf16.msra.mxu0 %v2565
    %3788 = vmatpush.bf16.msra.mxu0 %v2549
    %3789 = vmatpush.bf16.msra.mxu0 %v2533
    %3790 = vmatpush.bf16.msra.mxu0 %v2517
    %3791 = vmatpush.bf16.msra.mxu0 %v2501
    %3792 = vmatpush.bf16.msra.mxu0 %v2485
    %3793 = vmatpush.bf16.msra.mxu0 %v2469
    %3794 = vmatmul.bf16.gmra.mxu0 %v760
    %v3795 = vpop.f32.mrf.mxu0
    %v3796 = vadd.f32 %v3783, %v3795
    %v3797 = vpop.f32.mrf.mxu0
    %3798 = vdwg.mxu0
    %3799 = vmatpush.bf16.msra.mxu0 %v2709
    %3800 = vmatpush.bf16.msra.mxu0 %v2693
    %3801 = vmatpush.bf16.msra.mxu0 %v2677
    %3802 = vmatpush.bf16.msra.mxu0 %v2661
    %3803 = vmatpush.bf16.msra.mxu0 %v2645
    %3804 = vmatpush.bf16.msra.mxu0 %v2629
    %3805 = vmatpush.bf16.msra.mxu0 %v2613
    %3806 = vmatpush.bf16.msra.mxu0 %v2597
    %3807 = vmatmul.bf16.gmra.mxu0 %v761
    %v3808 = vpop.f32.mrf.mxu0
    %v3809 = vadd.f32 %v3796, %v3808
    %v3810 = vpop.f32.mrf.mxu0
    %3811 = vdwg.mxu0
    %3812 = vmatpush.bf16.msra.mxu0 %v2837
    %3813 = vmatpush.bf16.msra.mxu0 %v2821
    %3814 = vmatpush.bf16.msra.mxu0 %v2805
    %3815 = vmatpush.bf16.msra.mxu0 %v2789
    %3816 = vmatpush.bf16.msra.mxu0 %v2773
    %3817 = vmatpush.bf16.msra.mxu0 %v2757
    %3818 = vmatpush.bf16.msra.mxu0 %v2741
    %3819 = vmatpush.bf16.msra.mxu0 %v2725
    %3820 = vmatmul.bf16.gmra.mxu0 %v762
    %v3821 = vpop.f32.mrf.mxu0
    %v3822 = vadd.f32 %v3809, %v3821
    %v3823 = vpop.f32.mrf.mxu0
    %3824 = vdwg.mxu0
    %3825 = vmatpush.bf16.msra.mxu0 %v2454
    %3826 = vmatpush.bf16.msra.mxu0 %v2438
    %3827 = vmatpush.bf16.msra.mxu0 %v2422
    %3828 = vmatpush.bf16.msra.mxu0 %v2406
    %3829 = vmatpush.bf16.msra.mxu0 %v2390
    %3830 = vmatpush.bf16.msra.mxu0 %v2374
    %3831 = vmatpush.bf16.msra.mxu0 %v2358
    %3832 = vmatpush.bf16.msra.mxu0 %v2342
    %3833 = vmatmul.bf16.gmra.mxu0 %v759
    %v3834 = vpop.f32.mrf.mxu0
    %v3835 = vadd.f32 %v774, %v3834
    %v3836 = vpop.f32.mrf.mxu0
    %3837 = vdwg.mxu0
    %3838 = vmatpush.bf16.msra.mxu0 %v2582
    %3839 = vmatpush.bf16.msra.mxu0 %v2566
    %3840 = vmatpush.bf16.msra.mxu0 %v2550
    %3841 = vmatpush.bf16.msra.mxu0 %v2534
    %3842 = vmatpush.bf16.msra.mxu0 %v2518
    %3843 = vmatpush.bf16.msra.mxu0 %v2502
    %3844 = vmatpush.bf16.msra.mxu0 %v2486
    %3845 = vmatpush.bf16.msra.mxu0 %v2470
    %3846 = vmatmul.bf16.gmra.mxu0 %v760
    %v3847 = vpop.f32.mrf.mxu0
    %v3848 = vadd.f32 %v3835, %v3847
    %v3849 = vpop.f32.mrf.mxu0
    %3850 = vdwg.mxu0
    %3851 = vmatpush.bf16.msra.mxu0 %v2710
    %3852 = vmatpush.bf16.msra.mxu0 %v2694
    %3853 = vmatpush.bf16.msra.mxu0 %v2678
    %3854 = vmatpush.bf16.msra.mxu0 %v2662
    %3855 = vmatpush.bf16.msra.mxu0 %v2646
    %3856 = vmatpush.bf16.msra.mxu0 %v2630
    %3857 = vmatpush.bf16.msra.mxu0 %v2614
    %3858 = vmatpush.bf16.msra.mxu0 %v2598
    %3859 = vmatmul.bf16.gmra.mxu0 %v761
    %v3860 = vpop.f32.mrf.mxu0
    %v3861 = vadd.f32 %v3848, %v3860
    %v3862 = vpop.f32.mrf.mxu0
    %3863 = vdwg.mxu0
    %3864 = vmatpush.bf16.msra.mxu0 %v2838
    %3865 = vmatpush.bf16.msra.mxu0 %v2822
    %3866 = vmatpush.bf16.msra.mxu0 %v2806
    %3867 = vmatpush.bf16.msra.mxu0 %v2790
    %3868 = vmatpush.bf16.msra.mxu0 %v2774
    %3869 = vmatpush.bf16.msra.mxu0 %v2758
    %3870 = vmatpush.bf16.msra.mxu0 %v2742
    %3871 = vmatpush.bf16.msra.mxu0 %v2726
    %3872 = vmatmul.bf16.gmra.mxu0 %v762
    %v3873 = vpop.f32.mrf.mxu0
    %v3874 = vadd.f32 %v3861, %v3873
    %v3875 = vpop.f32.mrf.mxu0
    %3876 = vdwg.mxu0
    %3877 = vmatpush.bf16.msra.mxu0 %v2455
    %3878 = vmatpush.bf16.msra.mxu0 %v2439
    %3879 = vmatpush.bf16.msra.mxu0 %v2423
    %3880 = vmatpush.bf16.msra.mxu0 %v2407
    %3881 = vmatpush.bf16.msra.mxu0 %v2391
    %3882 = vmatpush.bf16.msra.mxu0 %v2375
    %3883 = vmatpush.bf16.msra.mxu0 %v2359
    %3884 = vmatpush.bf16.msra.mxu0 %v2343
    %3885 = vmatmul.bf16.gmra.mxu0 %v759
    %v3886 = vpop.f32.mrf.mxu0
    %v3887 = vadd.f32 %v775, %v3886
    %v3888 = vpop.f32.mrf.mxu0
    %3889 = vdwg.mxu0
    %3890 = vmatpush.bf16.msra.mxu0 %v2583
    %3891 = vmatpush.bf16.msra.mxu0 %v2567
    %3892 = vmatpush.bf16.msra.mxu0 %v2551
    %3893 = vmatpush.bf16.msra.mxu0 %v2535
    %3894 = vmatpush.bf16.msra.mxu0 %v2519
    %3895 = vmatpush.bf16.msra.mxu0 %v2503
    %3896 = vmatpush.bf16.msra.mxu0 %v2487
    %3897 = vmatpush.bf16.msra.mxu0 %v2471
    %3898 = vmatmul.bf16.gmra.mxu0 %v760
    %v3899 = vpop.f32.mrf.mxu0
    %v3900 = vadd.f32 %v3887, %v3899
    %v3901 = vpop.f32.mrf.mxu0
    %3902 = vdwg.mxu0
    %3903 = vmatpush.bf16.msra.mxu0 %v2711
    %3904 = vmatpush.bf16.msra.mxu0 %v2695
    %3905 = vmatpush.bf16.msra.mxu0 %v2679
    %3906 = vmatpush.bf16.msra.mxu0 %v2663
    %3907 = vmatpush.bf16.msra.mxu0 %v2647
    %3908 = vmatpush.bf16.msra.mxu0 %v2631
    %3909 = vmatpush.bf16.msra.mxu0 %v2615
    %3910 = vmatpush.bf16.msra.mxu0 %v2599
    %3911 = vmatmul.bf16.gmra.mxu0 %v761
    %v3912 = vpop.f32.mrf.mxu0
    %v3913 = vadd.f32 %v3900, %v3912
    %v3914 = vpop.f32.mrf.mxu0
    %3915 = vdwg.mxu0
    %3916 = vmatpush.bf16.msra.mxu0 %v2839
    %3917 = vmatpush.bf16.msra.mxu0 %v2823
    %3918 = vmatpush.bf16.msra.mxu0 %v2807
    %3919 = vmatpush.bf16.msra.mxu0 %v2791
    %3920 = vmatpush.bf16.msra.mxu0 %v2775
    %3921 = vmatpush.bf16.msra.mxu0 %v2759
    %3922 = vmatpush.bf16.msra.mxu0 %v2743
    %3923 = vmatpush.bf16.msra.mxu0 %v2727
    %3924 = vmatmul.bf16.gmra.mxu0 %v762
    %v3925 = vpop.f32.mrf.mxu0
    %v3926 = vadd.f32 %v3913, %v3925
    %v3927 = vpop.f32.mrf.mxu0
    %3928 = vdwg.mxu0
    %3929 = vmatpush.bf16.msra.mxu0 %v2456
    %3930 = vmatpush.bf16.msra.mxu0 %v2440
    %3931 = vmatpush.bf16.msra.mxu0 %v2424
    %3932 = vmatpush.bf16.msra.mxu0 %v2408
    %3933 = vmatpush.bf16.msra.mxu0 %v2392
    %3934 = vmatpush.bf16.msra.mxu0 %v2376
    %3935 = vmatpush.bf16.msra.mxu0 %v2360
    %3936 = vmatpush.bf16.msra.mxu0 %v2344
    %3937 = vmatmul.bf16.gmra.mxu0 %v759
    %v3938 = vpop.f32.mrf.mxu0
    %v3939 = vadd.f32 %v776, %v3938
    %v3940 = vpop.f32.mrf.mxu0
    %3941 = vdwg.mxu0
    %3942 = vmatpush.bf16.msra.mxu0 %v2584
    %3943 = vmatpush.bf16.msra.mxu0 %v2568
    %3944 = vmatpush.bf16.msra.mxu0 %v2552
    %3945 = vmatpush.bf16.msra.mxu0 %v2536
    %3946 = vmatpush.bf16.msra.mxu0 %v2520
    %3947 = vmatpush.bf16.msra.mxu0 %v2504
    %3948 = vmatpush.bf16.msra.mxu0 %v2488
    %3949 = vmatpush.bf16.msra.mxu0 %v2472
    %3950 = vmatmul.bf16.gmra.mxu0 %v760
    %v3951 = vpop.f32.mrf.mxu0
    %v3952 = vadd.f32 %v3939, %v3951
    %v3953 = vpop.f32.mrf.mxu0
    %3954 = vdwg.mxu0
    %3955 = vmatpush.bf16.msra.mxu0 %v2712
    %3956 = vmatpush.bf16.msra.mxu0 %v2696
    %3957 = vmatpush.bf16.msra.mxu0 %v2680
    %3958 = vmatpush.bf16.msra.mxu0 %v2664
    %3959 = vmatpush.bf16.msra.mxu0 %v2648
    %3960 = vmatpush.bf16.msra.mxu0 %v2632
    %3961 = vmatpush.bf16.msra.mxu0 %v2616
    %3962 = vmatpush.bf16.msra.mxu0 %v2600
    %3963 = vmatmul.bf16.gmra.mxu0 %v761
    %v3964 = vpop.f32.mrf.mxu0
    %v3965 = vadd.f32 %v3952, %v3964
    %v3966 = vpop.f32.mrf.mxu0
    %3967 = vdwg.mxu0
    %3968 = vmatpush.bf16.msra.mxu0 %v2840
    %3969 = vmatpush.bf16.msra.mxu0 %v2824
    %3970 = vmatpush.bf16.msra.mxu0 %v2808
    %3971 = vmatpush.bf16.msra.mxu0 %v2792
    %3972 = vmatpush.bf16.msra.mxu0 %v2776
    %3973 = vmatpush.bf16.msra.mxu0 %v2760
    %3974 = vmatpush.bf16.msra.mxu0 %v2744
    %3975 = vmatpush.bf16.msra.mxu0 %v2728
    %3976 = vmatmul.bf16.gmra.mxu0 %v762
    %v3977 = vpop.f32.mrf.mxu0
    %v3978 = vadd.f32 %v3965, %v3977
    %v3979 = vpop.f32.mrf.mxu0
    %3980 = vdwg.mxu0
    %3981 = vmatpush.bf16.msra.mxu0 %v2457
    %3982 = vmatpush.bf16.msra.mxu0 %v2441
    %3983 = vmatpush.bf16.msra.mxu0 %v2425
    %3984 = vmatpush.bf16.msra.mxu0 %v2409
    %3985 = vmatpush.bf16.msra.mxu0 %v2393
    %3986 = vmatpush.bf16.msra.mxu0 %v2377
    %3987 = vmatpush.bf16.msra.mxu0 %v2361
    %3988 = vmatpush.bf16.msra.mxu0 %v2345
    %3989 = vmatmul.bf16.gmra.mxu0 %v759
    %v3990 = vpop.f32.mrf.mxu0
    %v3991 = vadd.f32 %v777, %v3990
    %v3992 = vpop.f32.mrf.mxu0
    %3993 = vdwg.mxu0
    %3994 = vmatpush.bf16.msra.mxu0 %v2585
    %3995 = vmatpush.bf16.msra.mxu0 %v2569
    %3996 = vmatpush.bf16.msra.mxu0 %v2553
    %3997 = vmatpush.bf16.msra.mxu0 %v2537
    %3998 = vmatpush.bf16.msra.mxu0 %v2521
    %3999 = vmatpush.bf16.msra.mxu0 %v2505
    %4000 = vmatpush.bf16.msra.mxu0 %v2489
    %4001 = vmatpush.bf16.msra.mxu0 %v2473
    %4002 = vmatmul.bf16.gmra.mxu0 %v760
    %v4003 = vpop.f32.mrf.mxu0
    %v4004 = vadd.f32 %v3991, %v4003
    %v4005 = vpop.f32.mrf.mxu0
    %4006 = vdwg.mxu0
    %4007 = vmatpush.bf16.msra.mxu0 %v2713
    %4008 = vmatpush.bf16.msra.mxu0 %v2697
    %4009 = vmatpush.bf16.msra.mxu0 %v2681
    %4010 = vmatpush.bf16.msra.mxu0 %v2665
    %4011 = vmatpush.bf16.msra.mxu0 %v2649
    %4012 = vmatpush.bf16.msra.mxu0 %v2633
    %4013 = vmatpush.bf16.msra.mxu0 %v2617
    %4014 = vmatpush.bf16.msra.mxu0 %v2601
    %4015 = vmatmul.bf16.gmra.mxu0 %v761
    %v4016 = vpop.f32.mrf.mxu0
    %v4017 = vadd.f32 %v4004, %v4016
    %v4018 = vpop.f32.mrf.mxu0
    %4019 = vdwg.mxu0
    %4020 = vmatpush.bf16.msra.mxu0 %v2841
    %4021 = vmatpush.bf16.msra.mxu0 %v2825
    %4022 = vmatpush.bf16.msra.mxu0 %v2809
    %4023 = vmatpush.bf16.msra.mxu0 %v2793
    %4024 = vmatpush.bf16.msra.mxu0 %v2777
    %4025 = vmatpush.bf16.msra.mxu0 %v2761
    %4026 = vmatpush.bf16.msra.mxu0 %v2745
    %4027 = vmatpush.bf16.msra.mxu0 %v2729
    %4028 = vmatmul.bf16.gmra.mxu0 %v762
    %v4029 = vpop.f32.mrf.mxu0
    %v4030 = vadd.f32 %v4017, %v4029
    %v4031 = vpop.f32.mrf.mxu0
    %4032 = vdwg.mxu0
    %4033 = vmatpush.bf16.msra.mxu0 %v2458
    %4034 = vmatpush.bf16.msra.mxu0 %v2442
    %4035 = vmatpush.bf16.msra.mxu0 %v2426
    %4036 = vmatpush.bf16.msra.mxu0 %v2410
    %4037 = vmatpush.bf16.msra.mxu0 %v2394
    %4038 = vmatpush.bf16.msra.mxu0 %v2378
    %4039 = vmatpush.bf16.msra.mxu0 %v2362
    %4040 = vmatpush.bf16.msra.mxu0 %v2346
    %4041 = vmatmul.bf16.gmra.mxu0 %v759
    %v4042 = vpop.f32.mrf.mxu0
    %v4043 = vadd.f32 %v778, %v4042
    %v4044 = vpop.f32.mrf.mxu0
    %4045 = vdwg.mxu0
    %4046 = vmatpush.bf16.msra.mxu0 %v2586
    %4047 = vmatpush.bf16.msra.mxu0 %v2570
    %4048 = vmatpush.bf16.msra.mxu0 %v2554
    %4049 = vmatpush.bf16.msra.mxu0 %v2538
    %4050 = vmatpush.bf16.msra.mxu0 %v2522
    %4051 = vmatpush.bf16.msra.mxu0 %v2506
    %4052 = vmatpush.bf16.msra.mxu0 %v2490
    %4053 = vmatpush.bf16.msra.mxu0 %v2474
    %4054 = vmatmul.bf16.gmra.mxu0 %v760
    %v4055 = vpop.f32.mrf.mxu0
    %v4056 = vadd.f32 %v4043, %v4055
    %v4057 = vpop.f32.mrf.mxu0
    %4058 = vdwg.mxu0
    %4059 = vmatpush.bf16.msra.mxu0 %v2714
    %4060 = vmatpush.bf16.msra.mxu0 %v2698
    %4061 = vmatpush.bf16.msra.mxu0 %v2682
    %4062 = vmatpush.bf16.msra.mxu0 %v2666
    %4063 = vmatpush.bf16.msra.mxu0 %v2650
    %4064 = vmatpush.bf16.msra.mxu0 %v2634
    %4065 = vmatpush.bf16.msra.mxu0 %v2618
    %4066 = vmatpush.bf16.msra.mxu0 %v2602
    %4067 = vmatmul.bf16.gmra.mxu0 %v761
    %v4068 = vpop.f32.mrf.mxu0
    %v4069 = vadd.f32 %v4056, %v4068
    %v4070 = vpop.f32.mrf.mxu0
    %4071 = vdwg.mxu0
    %4072 = vmatpush.bf16.msra.mxu0 %v2842
    %4073 = vmatpush.bf16.msra.mxu0 %v2826
    %4074 = vmatpush.bf16.msra.mxu0 %v2810
    %4075 = vmatpush.bf16.msra.mxu0 %v2794
    %4076 = vmatpush.bf16.msra.mxu0 %v2778
    %4077 = vmatpush.bf16.msra.mxu0 %v2762
    %4078 = vmatpush.bf16.msra.mxu0 %v2746
    %4079 = vmatpush.bf16.msra.mxu0 %v2730
    %4080 = vmatmul.bf16.gmra.mxu0 %v762
    %v4081 = vpop.f32.mrf.mxu0
    %v4082 = vadd.f32 %v4069, %v4081
    %v4083 = vpop.f32.mrf.mxu0
    %4084 = vdwg.mxu0
    %4085 = vmatpush.bf16.msra.mxu0 %v2459
    %4086 = vmatpush.bf16.msra.mxu0 %v2443
    %4087 = vmatpush.bf16.msra.mxu0 %v2427
    %4088 = vmatpush.bf16.msra.mxu0 %v2411
    %4089 = vmatpush.bf16.msra.mxu0 %v2395
    %4090 = vmatpush.bf16.msra.mxu0 %v2379
    %4091 = vmatpush.bf16.msra.mxu0 %v2363
    %4092 = vmatpush.bf16.msra.mxu0 %v2347
    %4093 = vmatmul.bf16.gmra.mxu0 %v759
    %v4094 = vpop.f32.mrf.mxu0
    %v4095 = vadd.f32 %v779, %v4094
    %v4096 = vpop.f32.mrf.mxu0
    %4097 = vdwg.mxu0
    %4098 = vmatpush.bf16.msra.mxu0 %v2587
    %4099 = vmatpush.bf16.msra.mxu0 %v2571
    %4100 = vmatpush.bf16.msra.mxu0 %v2555
    %4101 = vmatpush.bf16.msra.mxu0 %v2539
    %4102 = vmatpush.bf16.msra.mxu0 %v2523
    %4103 = vmatpush.bf16.msra.mxu0 %v2507
    %4104 = vmatpush.bf16.msra.mxu0 %v2491
    %4105 = vmatpush.bf16.msra.mxu0 %v2475
    %4106 = vmatmul.bf16.gmra.mxu0 %v760
    %v4107 = vpop.f32.mrf.mxu0
    %v4108 = vadd.f32 %v4095, %v4107
    %v4109 = vpop.f32.mrf.mxu0
    %4110 = vdwg.mxu0
    %4111 = vmatpush.bf16.msra.mxu0 %v2715
    %4112 = vmatpush.bf16.msra.mxu0 %v2699
    %4113 = vmatpush.bf16.msra.mxu0 %v2683
    %4114 = vmatpush.bf16.msra.mxu0 %v2667
    %4115 = vmatpush.bf16.msra.mxu0 %v2651
    %4116 = vmatpush.bf16.msra.mxu0 %v2635
    %4117 = vmatpush.bf16.msra.mxu0 %v2619
    %4118 = vmatpush.bf16.msra.mxu0 %v2603
    %4119 = vmatmul.bf16.gmra.mxu0 %v761
    %v4120 = vpop.f32.mrf.mxu0
    %v4121 = vadd.f32 %v4108, %v4120
    %v4122 = vpop.f32.mrf.mxu0
    %4123 = vdwg.mxu0
    %4124 = vmatpush.bf16.msra.mxu0 %v2843
    %4125 = vmatpush.bf16.msra.mxu0 %v2827
    %4126 = vmatpush.bf16.msra.mxu0 %v2811
    %4127 = vmatpush.bf16.msra.mxu0 %v2795
    %4128 = vmatpush.bf16.msra.mxu0 %v2779
    %4129 = vmatpush.bf16.msra.mxu0 %v2763
    %4130 = vmatpush.bf16.msra.mxu0 %v2747
    %4131 = vmatpush.bf16.msra.mxu0 %v2731
    %4132 = vmatmul.bf16.gmra.mxu0 %v762
    %v4133 = vpop.f32.mrf.mxu0
    %v4134 = vadd.f32 %v4121, %v4133
    %v4135 = vpop.f32.mrf.mxu0
    %4136 = vdwg.mxu0
    %4137 = vmatpush.bf16.msra.mxu0 %v2460
    %4138 = vmatpush.bf16.msra.mxu0 %v2444
    %4139 = vmatpush.bf16.msra.mxu0 %v2428
    %4140 = vmatpush.bf16.msra.mxu0 %v2412
    %4141 = vmatpush.bf16.msra.mxu0 %v2396
    %4142 = vmatpush.bf16.msra.mxu0 %v2380
    %4143 = vmatpush.bf16.msra.mxu0 %v2364
    %4144 = vmatpush.bf16.msra.mxu0 %v2348
    %4145 = vmatmul.bf16.gmra.mxu0 %v759
    %v4146 = vpop.f32.mrf.mxu0
    %v4147 = vadd.f32 %v780, %v4146
    %v4148 = vpop.f32.mrf.mxu0
    %4149 = vdwg.mxu0
    %4150 = vmatpush.bf16.msra.mxu0 %v2588
    %4151 = vmatpush.bf16.msra.mxu0 %v2572
    %4152 = vmatpush.bf16.msra.mxu0 %v2556
    %4153 = vmatpush.bf16.msra.mxu0 %v2540
    %4154 = vmatpush.bf16.msra.mxu0 %v2524
    %4155 = vmatpush.bf16.msra.mxu0 %v2508
    %4156 = vmatpush.bf16.msra.mxu0 %v2492
    %4157 = vmatpush.bf16.msra.mxu0 %v2476
    %4158 = vmatmul.bf16.gmra.mxu0 %v760
    %v4159 = vpop.f32.mrf.mxu0
    %v4160 = vadd.f32 %v4147, %v4159
    %v4161 = vpop.f32.mrf.mxu0
    %4162 = vdwg.mxu0
    %4163 = vmatpush.bf16.msra.mxu0 %v2716
    %4164 = vmatpush.bf16.msra.mxu0 %v2700
    %4165 = vmatpush.bf16.msra.mxu0 %v2684
    %4166 = vmatpush.bf16.msra.mxu0 %v2668
    %4167 = vmatpush.bf16.msra.mxu0 %v2652
    %4168 = vmatpush.bf16.msra.mxu0 %v2636
    %4169 = vmatpush.bf16.msra.mxu0 %v2620
    %4170 = vmatpush.bf16.msra.mxu0 %v2604
    %4171 = vmatmul.bf16.gmra.mxu0 %v761
    %v4172 = vpop.f32.mrf.mxu0
    %v4173 = vadd.f32 %v4160, %v4172
    %v4174 = vpop.f32.mrf.mxu0
    %4175 = vdwg.mxu0
    %4176 = vmatpush.bf16.msra.mxu0 %v2844
    %4177 = vmatpush.bf16.msra.mxu0 %v2828
    %4178 = vmatpush.bf16.msra.mxu0 %v2812
    %4179 = vmatpush.bf16.msra.mxu0 %v2796
    %4180 = vmatpush.bf16.msra.mxu0 %v2780
    %4181 = vmatpush.bf16.msra.mxu0 %v2764
    %4182 = vmatpush.bf16.msra.mxu0 %v2748
    %4183 = vmatpush.bf16.msra.mxu0 %v2732
    %4184 = vmatmul.bf16.gmra.mxu0 %v762
    %v4185 = vpop.f32.mrf.mxu0
    %v4186 = vadd.f32 %v4173, %v4185
    %v4187 = vpop.f32.mrf.mxu0
    %4188 = vdwg.mxu0
    %v4189 = vmax.f32 %v3406, 0.0
    %v4190 = vmax.f32 %v3458, 0.0
    %v4191 = vmax.f32 %v3510, 0.0
    %v4192 = vmax.f32 %v3562, 0.0
    %v4193 = vmax.f32 %v3614, 0.0
    %v4194 = vmax.f32 %v3666, 0.0
    %v4195 = vmax.f32 %v3718, 0.0
    %v4196 = vmax.f32 %v3770, 0.0
    %v4197 = vmax.f32 %v3822, 0.0
    %v4198 = vmax.f32 %v3874, 0.0
    %v4199 = vmax.f32 %v3926, 0.0
    %v4200 = vmax.f32 %v3978, 0.0
    %v4201 = vmax.f32 %v4030, 0.0
    %v4202 = vmax.f32 %v4082, 0.0
    %v4203 = vmax.f32 %v4134, 0.0
    %v4204 = vmax.f32 %v4186, 0.0
    %v4205 = vld [vmem:[%s5] sm:$0xff]
    %v4206 = vld [vmem:[%s5 + $0x8] sm:$0xff]
    %v4207 = vld [vmem:[%s5 + $0x10] sm:$0xff]
    %v4208 = vld [vmem:[%s5 + $0x18] sm:$0xff]
    %v4209 = vld [vmem:[%s6] sm:$0xff]
    %v4210 = vld [vmem:[%s6 + $0x8] sm:$0xff]
    %v4211 = vld [vmem:[%s6 + $0x10] sm:$0xff]
    %v4212 = vld [vmem:[%s6 + $0x18] sm:$0xff]
    %v4213 = vld [vmem:[#allocation11] sm:$0xff]
    %v4214 = vld [vmem:[#allocation11 + $0x8] sm:$0xff]
    %v4215 = vld [vmem:[#allocation11 + $0x10] sm:$0xff]
    %v4216 = vld [vmem:[#allocation11 + $0x18] sm:$0xff]
    %v4217 = vld [vmem:[#allocation11 + $0x20] sm:$0xff]
    %v4218 = vld [vmem:[#allocation11 + $0x28] sm:$0xff]
    %v4219 = vld [vmem:[#allocation11 + $0x30] sm:$0xff]
    %v4220 = vld [vmem:[#allocation11 + $0x38] sm:$0xff]
    %v4221 = vld [vmem:[#allocation11 + $0x40] sm:$0xff]
    %v4222 = vld [vmem:[#allocation11 + $0x48] sm:$0xff]
    %v4223 = vld [vmem:[#allocation11 + $0x50] sm:$0xff]
    %v4224 = vld [vmem:[#allocation11 + $0x58] sm:$0xff]
    %v4225 = vld [vmem:[#allocation11 + $0x60] sm:$0xff]
    %v4226 = vld [vmem:[#allocation11 + $0x68] sm:$0xff]
    %v4227 = vld [vmem:[#allocation11 + $0x70] sm:$0xff]
    %v4228 = vld [vmem:[#allocation11 + $0x78] sm:$0xff]
    %v4229 = vld [vmem:[#allocation11 + $0x80] sm:$0xff]
    %v4230 = vld [vmem:[#allocation11 + $0x88] sm:$0xff]
    %v4231 = vld [vmem:[#allocation11 + $0x90] sm:$0xff]
    %v4232 = vld [vmem:[#allocation11 + $0x98] sm:$0xff]
    %v4233 = vld [vmem:[#allocation11 + $0xa0] sm:$0xff]
    %v4234 = vld [vmem:[#allocation11 + $0xa8] sm:$0xff]
    %v4235 = vld [vmem:[#allocation11 + $0xb0] sm:$0xff]
    %v4236 = vld [vmem:[#allocation11 + $0xb8] sm:$0xff]
    %v4237 = vld [vmem:[#allocation11 + $0xc0] sm:$0xff]
    %v4238 = vld [vmem:[#allocation11 + $0xc8] sm:$0xff]
    %v4239 = vld [vmem:[#allocation11 + $0xd0] sm:$0xff]
    %v4240 = vld [vmem:[#allocation11 + $0xd8] sm:$0xff]
    %v4241 = vld [vmem:[#allocation11 + $0xe0] sm:$0xff]
    %v4242 = vld [vmem:[#allocation11 + $0xe8] sm:$0xff]
    %v4243 = vld [vmem:[#allocation11 + $0xf0] sm:$0xff]
    %v4244 = vld [vmem:[#allocation11 + $0xf8] sm:$0xff]
    %v4245 = vld [vmem:[#allocation11 + $0x100] sm:$0xff]
    %v4246 = vld [vmem:[#allocation11 + $0x108] sm:$0xff]
    %v4247 = vld [vmem:[#allocation11 + $0x110] sm:$0xff]
    %v4248 = vld [vmem:[#allocation11 + $0x118] sm:$0xff]
    %v4249 = vld [vmem:[#allocation11 + $0x120] sm:$0xff]
    %v4250 = vld [vmem:[#allocation11 + $0x128] sm:$0xff]
    %v4251 = vld [vmem:[#allocation11 + $0x130] sm:$0xff]
    %v4252 = vld [vmem:[#allocation11 + $0x138] sm:$0xff]
    %v4253 = vld [vmem:[#allocation11 + $0x140] sm:$0xff]
    %v4254 = vld [vmem:[#allocation11 + $0x148] sm:$0xff]
    %v4255 = vld [vmem:[#allocation11 + $0x150] sm:$0xff]
    %v4256 = vld [vmem:[#allocation11 + $0x158] sm:$0xff]
    %v4257 = vld [vmem:[#allocation11 + $0x160] sm:$0xff]
    %v4258 = vld [vmem:[#allocation11 + $0x168] sm:$0xff]
    %v4259 = vld [vmem:[#allocation11 + $0x170] sm:$0xff]
    %v4260 = vld [vmem:[#allocation11 + $0x178] sm:$0xff]
    %v4261 = vld [vmem:[#allocation11 + $0x180] sm:$0xff]
    %v4262 = vld [vmem:[#allocation11 + $0x188] sm:$0xff]
    %v4263 = vld [vmem:[#allocation11 + $0x190] sm:$0xff]
    %v4264 = vld [vmem:[#allocation11 + $0x198] sm:$0xff]
    %v4265 = vld [vmem:[#allocation11 + $0x1a0] sm:$0xff]
    %v4266 = vld [vmem:[#allocation11 + $0x1a8] sm:$0xff]
    %v4267 = vld [vmem:[#allocation11 + $0x1b0] sm:$0xff]
    %v4268 = vld [vmem:[#allocation11 + $0x1b8] sm:$0xff]
    %v4269 = vld [vmem:[#allocation11 + $0x1c0] sm:$0xff]
    %v4270 = vld [vmem:[#allocation11 + $0x1c8] sm:$0xff]
    %v4271 = vld [vmem:[#allocation11 + $0x1d0] sm:$0xff]
    %v4272 = vld [vmem:[#allocation11 + $0x1d8] sm:$0xff]
    %v4273 = vld [vmem:[#allocation11 + $0x1e0] sm:$0xff]
    %v4274 = vld [vmem:[#allocation11 + $0x1e8] sm:$0xff]
    %v4275 = vld [vmem:[#allocation11 + $0x1f0] sm:$0xff]
    %v4276 = vld [vmem:[#allocation11 + $0x1f8] sm:$0xff]
    %vm4277 = vcmask 1041408
    %v4278 = vsel %vm4277, %v4189, 0.0
    %v4279 = vrot.slane %v4278, 4
    %v4280 = vadd.f32 %v4278, %v4279
    %v4281 = vrot.slane %v4280, 2
    %v4282 = vadd.f32 %v4280, %v4281
    %v4283 = vrot.slane %v4282, 1
    %v4284 = vadd.f32 %v4282, %v4283
    %v4285 = vsel %vm4277, %v4190, 0.0
    %v4286 = vrot.slane %v4285, 4
    %v4287 = vadd.f32 %v4285, %v4286
    %v4288 = vrot.slane %v4287, 2
    %v4289 = vadd.f32 %v4287, %v4288
    %v4290 = vrot.slane %v4289, 1
    %v4291 = vadd.f32 %v4289, %v4290
    %v4292 = vsel %vm4277, %v4191, 0.0
    %v4293 = vrot.slane %v4292, 4
    %v4294 = vadd.f32 %v4292, %v4293
    %v4295 = vrot.slane %v4294, 2
    %v4296 = vadd.f32 %v4294, %v4295
    %v4297 = vrot.slane %v4296, 1
    %v4298 = vadd.f32 %v4296, %v4297
    %v4299 = vsel %vm4277, %v4192, 0.0
    %v4300 = vrot.slane %v4299, 4
    %v4301 = vadd.f32 %v4299, %v4300
    %v4302 = vrot.slane %v4301, 2
    %v4303 = vadd.f32 %v4301, %v4302
    %v4304 = vrot.slane %v4303, 1
    %v4305 = vadd.f32 %v4303, %v4304
    %v4306 = vsel %vm4277, %v4193, 0.0
    %v4307 = vrot.slane %v4306, 4
    %v4308 = vadd.f32 %v4306, %v4307
    %v4309 = vrot.slane %v4308, 2
    %v4310 = vadd.f32 %v4308, %v4309
    %v4311 = vrot.slane %v4310, 1
    %v4312 = vadd.f32 %v4310, %v4311
    %v4313 = vsel %vm4277, %v4194, 0.0
    %v4314 = vrot.slane %v4313, 4
    %v4315 = vadd.f32 %v4313, %v4314
    %v4316 = vrot.slane %v4315, 2
    %v4317 = vadd.f32 %v4315, %v4316
    %v4318 = vrot.slane %v4317, 1
    %v4319 = vadd.f32 %v4317, %v4318
    %v4320 = vsel %vm4277, %v4195, 0.0
    %v4321 = vrot.slane %v4320, 4
    %v4322 = vadd.f32 %v4320, %v4321
    %v4323 = vrot.slane %v4322, 2
    %v4324 = vadd.f32 %v4322, %v4323
    %v4325 = vrot.slane %v4324, 1
    %v4326 = vadd.f32 %v4324, %v4325
    %v4327 = vsel %vm4277, %v4196, 0.0
    %v4328 = vrot.slane %v4327, 4
    %v4329 = vadd.f32 %v4327, %v4328
    %v4330 = vrot.slane %v4329, 2
    %v4331 = vadd.f32 %v4329, %v4330
    %v4332 = vrot.slane %v4331, 1
    %v4333 = vadd.f32 %v4331, %v4332
    %v4334 = vsel %vm4277, %v4197, 0.0
    %v4335 = vrot.slane %v4334, 4
    %v4336 = vadd.f32 %v4334, %v4335
    %v4337 = vrot.slane %v4336, 2
    %v4338 = vadd.f32 %v4336, %v4337
    %v4339 = vrot.slane %v4338, 1
    %v4340 = vadd.f32 %v4338, %v4339
    %v4341 = vsel %vm4277, %v4198, 0.0
    %v4342 = vrot.slane %v4341, 4
    %v4343 = vadd.f32 %v4341, %v4342
    %v4344 = vrot.slane %v4343, 2
    %v4345 = vadd.f32 %v4343, %v4344
    %v4346 = vrot.slane %v4345, 1
    %v4347 = vadd.f32 %v4345, %v4346
    %v4348 = vsel %vm4277, %v4199, 0.0
    %v4349 = vrot.slane %v4348, 4
    %v4350 = vadd.f32 %v4348, %v4349
    %v4351 = vrot.slane %v4350, 2
    %v4352 = vadd.f32 %v4350, %v4351
    %v4353 = vrot.slane %v4352, 1
    %v4354 = vadd.f32 %v4352, %v4353
    %v4355 = vsel %vm4277, %v4200, 0.0
    %v4356 = vrot.slane %v4355, 4
    %v4357 = vadd.f32 %v4355, %v4356
    %v4358 = vrot.slane %v4357, 2
    %v4359 = vadd.f32 %v4357, %v4358
    %v4360 = vrot.slane %v4359, 1
    %v4361 = vadd.f32 %v4359, %v4360
    %v4362 = vsel %vm4277, %v4201, 0.0
    %v4363 = vrot.slane %v4362, 4
    %v4364 = vadd.f32 %v4362, %v4363
    %v4365 = vrot.slane %v4364, 2
    %v4366 = vadd.f32 %v4364, %v4365
    %v4367 = vrot.slane %v4366, 1
    %v4368 = vadd.f32 %v4366, %v4367
    %v4369 = vsel %vm4277, %v4202, 0.0
    %v4370 = vrot.slane %v4369, 4
    %v4371 = vadd.f32 %v4369, %v4370
    %v4372 = vrot.slane %v4371, 2
    %v4373 = vadd.f32 %v4371, %v4372
    %v4374 = vrot.slane %v4373, 1
    %v4375 = vadd.f32 %v4373, %v4374
    %v4376 = vsel %vm4277, %v4203, 0.0
    %v4377 = vrot.slane %v4376, 4
    %v4378 = vadd.f32 %v4376, %v4377
    %v4379 = vrot.slane %v4378, 2
    %v4380 = vadd.f32 %v4378, %v4379
    %v4381 = vrot.slane %v4380, 1
    %v4382 = vadd.f32 %v4380, %v4381
    %v4383 = vsel %vm4277, %v4204, 0.0
    %v4384 = vrot.slane %v4383, 4
    %v4385 = vadd.f32 %v4383, %v4384
    %v4386 = vrot.slane %v4385, 2
    %v4387 = vadd.f32 %v4385, %v4386
    %v4388 = vrot.slane %v4387, 1
    %v4389 = vadd.f32 %v4387, %v4388
    %v4390 = vmul.f32 %v4189, %v4189
    %v4391 = vmul.f32 %v4190, %v4190
    %v4392 = vmul.f32 %v4191, %v4191
    %v4393 = vmul.f32 %v4192, %v4192
    %v4394 = vmul.f32 %v4193, %v4193
    %v4395 = vmul.f32 %v4194, %v4194
    %v4396 = vmul.f32 %v4195, %v4195
    %v4397 = vmul.f32 %v4196, %v4196
    %v4398 = vmul.f32 %v4197, %v4197
    %v4399 = vmul.f32 %v4198, %v4198
    %v4400 = vmul.f32 %v4199, %v4199
    %v4401 = vmul.f32 %v4200, %v4200
    %v4402 = vmul.f32 %v4201, %v4201
    %v4403 = vmul.f32 %v4202, %v4202
    %v4404 = vmul.f32 %v4203, %v4203
    %v4405 = vmul.f32 %v4204, %v4204
    %v4406 = vsel %vm4277, %v4390, 0.0
    %v4407 = vrot.slane %v4406, 4
    %v4408 = vadd.f32 %v4406, %v4407
    %v4409 = vrot.slane %v4408, 2
    %v4410 = vadd.f32 %v4408, %v4409
    %v4411 = vrot.slane %v4410, 1
    %v4412 = vadd.f32 %v4410, %v4411
    %v4413 = vsel %vm4277, %v4391, 0.0
    %v4414 = vrot.slane %v4413, 4
    %v4415 = vadd.f32 %v4413, %v4414
    %v4416 = vrot.slane %v4415, 2
    %v4417 = vadd.f32 %v4415, %v4416
    %v4418 = vrot.slane %v4417, 1
    %v4419 = vadd.f32 %v4417, %v4418
    %v4420 = vsel %vm4277, %v4392, 0.0
    %v4421 = vrot.slane %v4420, 4
    %v4422 = vadd.f32 %v4420, %v4421
    %v4423 = vrot.slane %v4422, 2
    %v4424 = vadd.f32 %v4422, %v4423
    %v4425 = vrot.slane %v4424, 1
    %v4426 = vadd.f32 %v4424, %v4425
    %v4427 = vsel %vm4277, %v4393, 0.0
    %v4428 = vrot.slane %v4427, 4
    %v4429 = vadd.f32 %v4427, %v4428
    %v4430 = vrot.slane %v4429, 2
    %v4431 = vadd.f32 %v4429, %v4430
    %v4432 = vrot.slane %v4431, 1
    %v4433 = vadd.f32 %v4431, %v4432
    %v4434 = vsel %vm4277, %v4394, 0.0
    %v4435 = vrot.slane %v4434, 4
    %v4436 = vadd.f32 %v4434, %v4435
    %v4437 = vrot.slane %v4436, 2
    %v4438 = vadd.f32 %v4436, %v4437
    %v4439 = vrot.slane %v4438, 1
    %v4440 = vadd.f32 %v4438, %v4439
    %v4441 = vsel %vm4277, %v4395, 0.0
    %v4442 = vrot.slane %v4441, 4
    %v4443 = vadd.f32 %v4441, %v4442
    %v4444 = vrot.slane %v4443, 2
    %v4445 = vadd.f32 %v4443, %v4444
    %v4446 = vrot.slane %v4445, 1
    %v4447 = vadd.f32 %v4445, %v4446
    %v4448 = vsel %vm4277, %v4396, 0.0
    %v4449 = vrot.slane %v4448, 4
    %v4450 = vadd.f32 %v4448, %v4449
    %v4451 = vrot.slane %v4450, 2
    %v4452 = vadd.f32 %v4450, %v4451
    %v4453 = vrot.slane %v4452, 1
    %v4454 = vadd.f32 %v4452, %v4453
    %v4455 = vsel %vm4277, %v4397, 0.0
    %v4456 = vrot.slane %v4455, 4
    %v4457 = vadd.f32 %v4455, %v4456
    %v4458 = vrot.slane %v4457, 2
    %v4459 = vadd.f32 %v4457, %v4458
    %v4460 = vrot.slane %v4459, 1
    %v4461 = vadd.f32 %v4459, %v4460
    %v4462 = vsel %vm4277, %v4398, 0.0
    %v4463 = vrot.slane %v4462, 4
    %v4464 = vadd.f32 %v4462, %v4463
    %v4465 = vrot.slane %v4464, 2
    %v4466 = vadd.f32 %v4464, %v4465
    %v4467 = vrot.slane %v4466, 1
    %v4468 = vadd.f32 %v4466, %v4467
    %v4469 = vsel %vm4277, %v4399, 0.0
    %v4470 = vrot.slane %v4469, 4
    %v4471 = vadd.f32 %v4469, %v4470
    %v4472 = vrot.slane %v4471, 2
    %v4473 = vadd.f32 %v4471, %v4472
    %v4474 = vrot.slane %v4473, 1
    %v4475 = vadd.f32 %v4473, %v4474
    %v4476 = vsel %vm4277, %v4400, 0.0
    %v4477 = vrot.slane %v4476, 4
    %v4478 = vadd.f32 %v4476, %v4477
    %v4479 = vrot.slane %v4478, 2
    %v4480 = vadd.f32 %v4478, %v4479
    %v4481 = vrot.slane %v4480, 1
    %v4482 = vadd.f32 %v4480, %v4481
    %v4483 = vsel %vm4277, %v4401, 0.0
    %v4484 = vrot.slane %v4483, 4
    %v4485 = vadd.f32 %v4483, %v4484
    %v4486 = vrot.slane %v4485, 2
    %v4487 = vadd.f32 %v4485, %v4486
    %v4488 = vrot.slane %v4487, 1
    %v4489 = vadd.f32 %v4487, %v4488
    %v4490 = vsel %vm4277, %v4402, 0.0
    %v4491 = vrot.slane %v4490, 4
    %v4492 = vadd.f32 %v4490, %v4491
    %v4493 = vrot.slane %v4492, 2
    %v4494 = vadd.f32 %v4492, %v4493
    %v4495 = vrot.slane %v4494, 1
    %v4496 = vadd.f32 %v4494, %v4495
    %v4497 = vsel %vm4277, %v4403, 0.0
    %v4498 = vrot.slane %v4497, 4
    %v4499 = vadd.f32 %v4497, %v4498
    %v4500 = vrot.slane %v4499, 2
    %v4501 = vadd.f32 %v4499, %v4500
    %v4502 = vrot.slane %v4501, 1
    %v4503 = vadd.f32 %v4501, %v4502
    %v4504 = vsel %vm4277, %v4404, 0.0
    %v4505 = vrot.slane %v4504, 4
    %v4506 = vadd.f32 %v4504, %v4505
    %v4507 = vrot.slane %v4506, 2
    %v4508 = vadd.f32 %v4506, %v4507
    %v4509 = vrot.slane %v4508, 1
    %v4510 = vadd.f32 %v4508, %v4509
    %v4511 = vsel %vm4277, %v4405, 0.0
    %v4512 = vrot.slane %v4511, 4
    %v4513 = vadd.f32 %v4511, %v4512
    %v4514 = vrot.slane %v4513, 2
    %v4515 = vadd.f32 %v4513, %v4514
    %v4516 = vrot.slane %v4515, 1
    %v4517 = vadd.f32 %v4515, %v4516
    %v4518 = vmul.f32 %v4213, %v4284
    %v4519 = vmul.f32 %v4214, %v4291
    %v4520 = vmul.f32 %v4215, %v4298
    %v4521 = vmul.f32 %v4216, %v4305
    %v4522 = vmul.f32 %v4217, %v4312
    %v4523 = vmul.f32 %v4218, %v4319
    %v4524 = vmul.f32 %v4219, %v4326
    %v4525 = vmul.f32 %v4220, %v4333
    %v4526 = vmul.f32 %v4221, %v4340
    %v4527 = vmul.f32 %v4222, %v4347
    %v4528 = vmul.f32 %v4223, %v4354
    %v4529 = vmul.f32 %v4224, %v4361
    %v4530 = vmul.f32 %v4225, %v4368
    %v4531 = vmul.f32 %v4226, %v4375
    %v4532 = vmul.f32 %v4227, %v4382
    %v4533 = vmul.f32 %v4228, %v4389
    %v4534 = vmul.f32 %v4229, %v4284
    %v4535 = vmul.f32 %v4230, %v4291
    %v4536 = vmul.f32 %v4231, %v4298
    %v4537 = vmul.f32 %v4232, %v4305
    %v4538 = vmul.f32 %v4233, %v4312
    %v4539 = vmul.f32 %v4234, %v4319
    %v4540 = vmul.f32 %v4235, %v4326
    %v4541 = vmul.f32 %v4236, %v4333
    %v4542 = vmul.f32 %v4237, %v4340
    %v4543 = vmul.f32 %v4238, %v4347
    %v4544 = vmul.f32 %v4239, %v4354
    %v4545 = vmul.f32 %v4240, %v4361
    %v4546 = vmul.f32 %v4241, %v4368
    %v4547 = vmul.f32 %v4242, %v4375
    %v4548 = vmul.f32 %v4243, %v4382
    %v4549 = vmul.f32 %v4244, %v4389
    %v4550 = vmul.f32 %v4245, %v4284
    %v4551 = vmul.f32 %v4246, %v4291
    %v4552 = vmul.f32 %v4247, %v4298
    %v4553 = vmul.f32 %v4248, %v4305
    %v4554 = vmul.f32 %v4249, %v4312
    %v4555 = vmul.f32 %v4250, %v4319
    %v4556 = vmul.f32 %v4251, %v4326
    %v4557 = vmul.f32 %v4252, %v4333
    %v4558 = vmul.f32 %v4253, %v4340
    %v4559 = vmul.f32 %v4254, %v4347
    %v4560 = vmul.f32 %v4255, %v4354
    %v4561 = vmul.f32 %v4256, %v4361
    %v4562 = vmul.f32 %v4257, %v4368
    %v4563 = vmul.f32 %v4258, %v4375
    %v4564 = vmul.f32 %v4259, %v4382
    %v4565 = vmul.f32 %v4260, %v4389
    %v4566 = vmul.f32 %v4261, %v4284
    %v4567 = vmul.f32 %v4262, %v4291
    %v4568 = vmul.f32 %v4263, %v4298
    %v4569 = vmul.f32 %v4264, %v4305
    %v4570 = vmul.f32 %v4265, %v4312
    %v4571 = vmul.f32 %v4266, %v4319
    %v4572 = vmul.f32 %v4267, %v4326
    %v4573 = vmul.f32 %v4268, %v4333
    %v4574 = vmul.f32 %v4269, %v4340
    %v4575 = vmul.f32 %v4270, %v4347
    %v4576 = vmul.f32 %v4271, %v4354
    %v4577 = vmul.f32 %v4272, %v4361
    %v4578 = vmul.f32 %v4273, %v4368
    %v4579 = vmul.f32 %v4274, %v4375
    %v4580 = vmul.f32 %v4275, %v4382
    %v4581 = vmul.f32 %v4276, %v4389
    %v4582 = vadd.f32 %v4518, %v4519
    %v4583 = vadd.f32 %v4582, %v4520
    %v4584 = vadd.f32 %v4583, %v4521
    %v4585 = vadd.f32 %v4584, %v4522
    %v4586 = vadd.f32 %v4585, %v4523
    %v4587 = vadd.f32 %v4586, %v4524
    %v4588 = vadd.f32 %v4587, %v4525
    %v4589 = vadd.f32 %v4588, %v4526
    %v4590 = vadd.f32 %v4589, %v4527
    %v4591 = vadd.f32 %v4590, %v4528
    %v4592 = vadd.f32 %v4591, %v4529
    %v4593 = vadd.f32 %v4592, %v4530
    %v4594 = vadd.f32 %v4593, %v4531
    %v4595 = vadd.f32 %v4594, %v4532
    %v4596 = vadd.f32 %v4595, %v4533
    %4597 = vadd.xlane.f32.xlu0 %v4596
    %v4598 = vpop.xlane.xlu0 %4597
    %v4599 = vadd.f32 %v4534, %v4535
    %v4600 = vadd.f32 %v4599, %v4536
    %v4601 = vadd.f32 %v4600, %v4537
    %v4602 = vadd.f32 %v4601, %v4538
    %v4603 = vadd.f32 %v4602, %v4539
    %v4604 = vadd.f32 %v4603, %v4540
    %v4605 = vadd.f32 %v4604, %v4541
    %v4606 = vadd.f32 %v4605, %v4542
    %v4607 = vadd.f32 %v4606, %v4543
    %v4608 = vadd.f32 %v4607, %v4544
    %v4609 = vadd.f32 %v4608, %v4545
    %v4610 = vadd.f32 %v4609, %v4546
    %v4611 = vadd.f32 %v4610, %v4547
    %v4612 = vadd.f32 %v4611, %v4548
    %v4613 = vadd.f32 %v4612, %v4549
    %4614 = vadd.xlane.f32.xlu0 %v4613
    %v4615 = vpop.xlane.xlu0 %4614
    %v4616 = vadd.f32 %v4550, %v4551
    %v4617 = vadd.f32 %v4616, %v4552
    %v4618 = vadd.f32 %v4617, %v4553
    %v4619 = vadd.f32 %v4618, %v4554
    %v4620 = vadd.f32 %v4619, %v4555
    %v4621 = vadd.f32 %v4620, %v4556
    %v4622 = vadd.f32 %v4621, %v4557
    %v4623 = vadd.f32 %v4622, %v4558
    %v4624 = vadd.f32 %v4623, %v4559
    %v4625 = vadd.f32 %v4624, %v4560
    %v4626 = vadd.f32 %v4625, %v4561
    %v4627 = vadd.f32 %v4626, %v4562
    %v4628 = vadd.f32 %v4627, %v4563
    %v4629 = vadd.f32 %v4628, %v4564
    %v4630 = vadd.f32 %v4629, %v4565
    %4631 = vadd.xlane.f32.xlu0 %v4630
    %v4632 = vpop.xlane.xlu0 %4631
    %v4633 = vadd.f32 %v4566, %v4567
    %v4634 = vadd.f32 %v4633, %v4568
    %v4635 = vadd.f32 %v4634, %v4569
    %v4636 = vadd.f32 %v4635, %v4570
    %v4637 = vadd.f32 %v4636, %v4571
    %v4638 = vadd.f32 %v4637, %v4572
    %v4639 = vadd.f32 %v4638, %v4573
    %v4640 = vadd.f32 %v4639, %v4574
    %v4641 = vadd.f32 %v4640, %v4575
    %v4642 = vadd.f32 %v4641, %v4576
    %v4643 = vadd.f32 %v4642, %v4577
    %v4644 = vadd.f32 %v4643, %v4578
    %v4645 = vadd.f32 %v4644, %v4579
    %v4646 = vadd.f32 %v4645, %v4580
    %v4647 = vadd.f32 %v4646, %v4581
    %4648 = vadd.xlane.f32.xlu0 %v4647
    %v4649 = vpop.xlane.xlu0 %4648
    %v4650 = vmul.f32 %v4213, %v4412
    %v4651 = vmul.f32 %v4214, %v4419
    %v4652 = vmul.f32 %v4215, %v4426
    %v4653 = vmul.f32 %v4216, %v4433
    %v4654 = vmul.f32 %v4217, %v4440
    %v4655 = vmul.f32 %v4218, %v4447
    %v4656 = vmul.f32 %v4219, %v4454
    %v4657 = vmul.f32 %v4220, %v4461
    %v4658 = vmul.f32 %v4221, %v4468
    %v4659 = vmul.f32 %v4222, %v4475
    %v4660 = vmul.f32 %v4223, %v4482
    %v4661 = vmul.f32 %v4224, %v4489
    %v4662 = vmul.f32 %v4225, %v4496
    %v4663 = vmul.f32 %v4226, %v4503
    %v4664 = vmul.f32 %v4227, %v4510
    %v4665 = vmul.f32 %v4228, %v4517
    %v4666 = vmul.f32 %v4229, %v4412
    %v4667 = vmul.f32 %v4230, %v4419
    %v4668 = vmul.f32 %v4231, %v4426
    %v4669 = vmul.f32 %v4232, %v4433
    %v4670 = vmul.f32 %v4233, %v4440
    %v4671 = vmul.f32 %v4234, %v4447
    %v4672 = vmul.f32 %v4235, %v4454
    %v4673 = vmul.f32 %v4236, %v4461
    %v4674 = vmul.f32 %v4237, %v4468
    %v4675 = vmul.f32 %v4238, %v4475
    %v4676 = vmul.f32 %v4239, %v4482
    %v4677 = vmul.f32 %v4240, %v4489
    %v4678 = vmul.f32 %v4241, %v4496
    %v4679 = vmul.f32 %v4242, %v4503
    %v4680 = vmul.f32 %v4243, %v4510
    %v4681 = vmul.f32 %v4244, %v4517
    %v4682 = vmul.f32 %v4245, %v4412
    %v4683 = vmul.f32 %v4246, %v4419
    %v4684 = vmul.f32 %v4247, %v4426
    %v4685 = vmul.f32 %v4248, %v4433
    %v4686 = vmul.f32 %v4249, %v4440
    %v4687 = vmul.f32 %v4250, %v4447
    %v4688 = vmul.f32 %v4251, %v4454
    %v4689 = vmul.f32 %v4252, %v4461
    %v4690 = vmul.f32 %v4253, %v4468
    %v4691 = vmul.f32 %v4254, %v4475
    %v4692 = vmul.f32 %v4255, %v4482
    %v4693 = vmul.f32 %v4256, %v4489
    %v4694 = vmul.f32 %v4257, %v4496
    %v4695 = vmul.f32 %v4258, %v4503
    %v4696 = vmul.f32 %v4259, %v4510
    %v4697 = vmul.f32 %v4260, %v4517
    %v4698 = vmul.f32 %v4261, %v4412
    %v4699 = vmul.f32 %v4262, %v4419
    %v4700 = vmul.f32 %v4263, %v4426
    %v4701 = vmul.f32 %v4264, %v4433
    %v4702 = vmul.f32 %v4265, %v4440
    %v4703 = vmul.f32 %v4266, %v4447
    %v4704 = vmul.f32 %v4267, %v4454
    %v4705 = vmul.f32 %v4268, %v4461
    %v4706 = vmul.f32 %v4269, %v4468
    %v4707 = vmul.f32 %v4270, %v4475
    %v4708 = vmul.f32 %v4271, %v4482
    %v4709 = vmul.f32 %v4272, %v4489
    %v4710 = vmul.f32 %v4273, %v4496
    %v4711 = vmul.f32 %v4274, %v4503
    %v4712 = vmul.f32 %v4275, %v4510
    %v4713 = vmul.f32 %v4276, %v4517
    %v4714 = vadd.f32 %v4650, %v4651
    %v4715 = vadd.f32 %v4714, %v4652
    %v4716 = vadd.f32 %v4715, %v4653
    %v4717 = vadd.f32 %v4716, %v4654
    %v4718 = vadd.f32 %v4717, %v4655
    %v4719 = vadd.f32 %v4718, %v4656
    %v4720 = vadd.f32 %v4719, %v4657
    %v4721 = vadd.f32 %v4720, %v4658
    %v4722 = vadd.f32 %v4721, %v4659
    %v4723 = vadd.f32 %v4722, %v4660
    %v4724 = vadd.f32 %v4723, %v4661
    %v4725 = vadd.f32 %v4724, %v4662
    %v4726 = vadd.f32 %v4725, %v4663
    %v4727 = vadd.f32 %v4726, %v4664
    %v4728 = vadd.f32 %v4727, %v4665
    %4729 = vadd.xlane.f32.xlu0 %v4728
    %v4730 = vpop.xlane.xlu0 %4729
    %v4731 = vadd.f32 %v4666, %v4667
    %v4732 = vadd.f32 %v4731, %v4668
    %v4733 = vadd.f32 %v4732, %v4669
    %v4734 = vadd.f32 %v4733, %v4670
    %v4735 = vadd.f32 %v4734, %v4671
    %v4736 = vadd.f32 %v4735, %v4672
    %v4737 = vadd.f32 %v4736, %v4673
    %v4738 = vadd.f32 %v4737, %v4674
    %v4739 = vadd.f32 %v4738, %v4675
    %v4740 = vadd.f32 %v4739, %v4676
    %v4741 = vadd.f32 %v4740, %v4677
    %v4742 = vadd.f32 %v4741, %v4678
    %v4743 = vadd.f32 %v4742, %v4679
    %v4744 = vadd.f32 %v4743, %v4680
    %v4745 = vadd.f32 %v4744, %v4681
    %4746 = vadd.xlane.f32.xlu0 %v4745
    %v4747 = vpop.xlane.xlu0 %4746
    %v4748 = vadd.f32 %v4682, %v4683
    %v4749 = vadd.f32 %v4748, %v4684
    %v4750 = vadd.f32 %v4749, %v4685
    %v4751 = vadd.f32 %v4750, %v4686
    %v4752 = vadd.f32 %v4751, %v4687
    %v4753 = vadd.f32 %v4752, %v4688
    %v4754 = vadd.f32 %v4753, %v4689
    %v4755 = vadd.f32 %v4754, %v4690
    %v4756 = vadd.f32 %v4755, %v4691
    %v4757 = vadd.f32 %v4756, %v4692
    %v4758 = vadd.f32 %v4757, %v4693
    %v4759 = vadd.f32 %v4758, %v4694
    %v4760 = vadd.f32 %v4759, %v4695
    %v4761 = vadd.f32 %v4760, %v4696
    %v4762 = vadd.f32 %v4761, %v4697
    %4763 = vadd.xlane.f32.xlu0 %v4762
    %v4764 = vpop.xlane.xlu0 %4763
    %v4765 = vadd.f32 %v4698, %v4699
    %v4766 = vadd.f32 %v4765, %v4700
    %v4767 = vadd.f32 %v4766, %v4701
    %v4768 = vadd.f32 %v4767, %v4702
    %v4769 = vadd.f32 %v4768, %v4703
    %v4770 = vadd.f32 %v4769, %v4704
    %v4771 = vadd.f32 %v4770, %v4705
    %v4772 = vadd.f32 %v4771, %v4706
    %v4773 = vadd.f32 %v4772, %v4707
    %v4774 = vadd.f32 %v4773, %v4708
    %v4775 = vadd.f32 %v4774, %v4709
    %v4776 = vadd.f32 %v4775, %v4710
    %v4777 = vadd.f32 %v4776, %v4711
    %v4778 = vadd.f32 %v4777, %v4712
    %v4779 = vadd.f32 %v4778, %v4713
    %4780 = vadd.xlane.f32.xlu0 %v4779
    %v4781 = vpop.xlane.xlu0 %4780
    %v4782 = vmul.f32 %v4598, 0.0078125
    %v4783 = vmul.f32 %v4615, 0.0078125
    %v4784 = vmul.f32 %v4632, 0.0078125
    %v4785 = vmul.f32 %v4649, 0.0078125
    %v4786 = vmul.f32 %v4730, 0.0078125
    %v4787 = vmul.f32 %v4747, 0.0078125
    %v4788 = vmul.f32 %v4764, 0.0078125
    %v4789 = vmul.f32 %v4781, 0.0078125
    %v4790 = vmul.f32 %v4782, %v4782
    %v4791 = vmul.f32 %v4783, %v4783
    %v4792 = vmul.f32 %v4784, %v4784
    %v4793 = vmul.f32 %v4785, %v4785
    %v4794 = vsub.f32 %v4786, %v4790
    %v4795 = vsub.f32 %v4787, %v4791
    %v4796 = vsub.f32 %v4788, %v4792
    %v4797 = vsub.f32 %v4789, %v4793
    %v4798 = vmax.f32 %v4794, 0.0
    %v4799 = vmax.f32 %v4795, 0.0
    %v4800 = vmax.f32 %v4796, 0.0
    %v4801 = vmax.f32 %v4797, 0.0
    %v4802 = vadd.f32 %v4798, 1e-05
    %v4803 = vadd.f32 %v4799, 1e-05
    %v4804 = vadd.f32 %v4800, 1e-05
    %v4805 = vadd.f32 %v4801, 1e-05
    %v4806 = vrsqrt.pop %v4802
    %v4807 = vmul.f32 %v4806, %v4802
    %v4808 = vmul.f32 %v4807, %v4806
    %v4809 = vmul.f32 0.5, %v4808
    %v4810 = vsub.f32 1.5, %v4809
    %v4811 = vmul.f32 %v4806, %v4810
    %vm4812 = vweird.f32 %v4802
    %vm4813 = vweird.f32 %v4806
    %vm4814 = vmor %vm4812, %vm4813
    %v4815 = vsel %vm4814, %v4806, %v4811
    %v4816 = vrsqrt.pop %v4803
    %v4817 = vmul.f32 %v4816, %v4803
    %v4818 = vmul.f32 %v4817, %v4816
    %v4819 = vmul.f32 0.5, %v4818
    %v4820 = vsub.f32 1.5, %v4819
    %v4821 = vmul.f32 %v4816, %v4820
    %vm4822 = vweird.f32 %v4803
    %vm4823 = vweird.f32 %v4816
    %vm4824 = vmor %vm4822, %vm4823
    %v4825 = vsel %vm4824, %v4816, %v4821
    %v4826 = vrsqrt.pop %v4804
    %v4827 = vmul.f32 %v4826, %v4804
    %v4828 = vmul.f32 %v4827, %v4826
    %v4829 = vmul.f32 0.5, %v4828
    %v4830 = vsub.f32 1.5, %v4829
    %v4831 = vmul.f32 %v4826, %v4830
    %vm4832 = vweird.f32 %v4804
    %vm4833 = vweird.f32 %v4826
    %vm4834 = vmor %vm4832, %vm4833
    %v4835 = vsel %vm4834, %v4826, %v4831
    %v4836 = vrsqrt.pop %v4805
    %v4837 = vmul.f32 %v4836, %v4805
    %v4838 = vmul.f32 %v4837, %v4836
    %v4839 = vmul.f32 0.5, %v4838
    %v4840 = vsub.f32 1.5, %v4839
    %v4841 = vmul.f32 %v4836, %v4840
    %vm4842 = vweird.f32 %v4805
    %vm4843 = vweird.f32 %v4836
    %vm4844 = vmor %vm4842, %vm4843
    %v4845 = vsel %vm4844, %v4836, %v4841
    %v4846 = vmul.f32 %v4205, %v4815
    %v4847 = vmul.f32 %v4206, %v4825
    %v4848 = vmul.f32 %v4207, %v4835
    %v4849 = vmul.f32 %v4208, %v4845
    %v4850 = vmul.f32 %v4782, %v4846
    %v4851 = vmul.f32 %v4783, %v4847
    %v4852 = vmul.f32 %v4784, %v4848
    %v4853 = vmul.f32 %v4785, %v4849
    %v4854 = vsub.f32 %v4209, %v4850
    %v4855 = vsub.f32 %v4210, %v4851
    %v4856 = vsub.f32 %v4211, %v4852
    %v4857 = vsub.f32 %v4212, %v4853
    %4859 = vset.pattern.permute.xlu0 0
    %4860 = vperm.xlu0 %4859, %v4846
    %v4861 = vpop.permute.xlu0 %4860
    %4864 = vset.pattern.permute.xlu0 0
    %4865 = vperm.xlu0 %4864, %v4847
    %v4866 = vpop.permute.xlu0 %4865
    %4869 = vset.pattern.permute.xlu0 0
    %4870 = vperm.xlu0 %4869, %v4848
    %v4871 = vpop.permute.xlu0 %4870
    %4874 = vset.pattern.permute.xlu0 0
    %4875 = vperm.xlu0 %4874, %v4849
    %v4876 = vpop.permute.xlu0 %4875
    %v4878 = vmul.f32 %v4213, %v4861
    %v4879 = vmul.f32 %v4214, %v4861
    %v4880 = vmul.f32 %v4215, %v4861
    %v4881 = vmul.f32 %v4216, %v4861
    %v4882 = vmul.f32 %v4217, %v4861
    %v4883 = vmul.f32 %v4218, %v4861
    %v4884 = vmul.f32 %v4219, %v4861
    %v4885 = vmul.f32 %v4220, %v4861
    %v4886 = vmul.f32 %v4221, %v4861
    %v4887 = vmul.f32 %v4222, %v4861
    %v4888 = vmul.f32 %v4223, %v4861
    %v4889 = vmul.f32 %v4224, %v4861
    %v4890 = vmul.f32 %v4225, %v4861
    %v4891 = vmul.f32 %v4226, %v4861
    %v4892 = vmul.f32 %v4227, %v4861
    %v4893 = vmul.f32 %v4228, %v4861
    %v4894 = vmul.f32 %v4229, %v4866
    %v4895 = vmul.f32 %v4230, %v4866
    %v4896 = vmul.f32 %v4231, %v4866
    %v4897 = vmul.f32 %v4232, %v4866
    %v4898 = vmul.f32 %v4233, %v4866
    %v4899 = vmul.f32 %v4234, %v4866
    %v4900 = vmul.f32 %v4235, %v4866
    %v4901 = vmul.f32 %v4236, %v4866
    %v4902 = vmul.f32 %v4237, %v4866
    %v4903 = vmul.f32 %v4238, %v4866
    %v4904 = vmul.f32 %v4239, %v4866
    %v4905 = vmul.f32 %v4240, %v4866
    %v4906 = vmul.f32 %v4241, %v4866
    %v4907 = vmul.f32 %v4242, %v4866
    %v4908 = vmul.f32 %v4243, %v4866
    %v4909 = vmul.f32 %v4244, %v4866
    %v4910 = vmul.f32 %v4245, %v4871
    %v4911 = vmul.f32 %v4246, %v4871
    %v4912 = vmul.f32 %v4247, %v4871
    %v4913 = vmul.f32 %v4248, %v4871
    %v4914 = vmul.f32 %v4249, %v4871
    %v4915 = vmul.f32 %v4250, %v4871
    %v4916 = vmul.f32 %v4251, %v4871
    %v4917 = vmul.f32 %v4252, %v4871
    %v4918 = vmul.f32 %v4253, %v4871
    %v4919 = vmul.f32 %v4254, %v4871
    %v4920 = vmul.f32 %v4255, %v4871
    %v4921 = vmul.f32 %v4256, %v4871
    %v4922 = vmul.f32 %v4257, %v4871
    %v4923 = vmul.f32 %v4258, %v4871
    %v4924 = vmul.f32 %v4259, %v4871
    %v4925 = vmul.f32 %v4260, %v4871
    %v4926 = vmul.f32 %v4261, %v4876
    %v4927 = vmul.f32 %v4262, %v4876
    %v4928 = vmul.f32 %v4263, %v4876
    %v4929 = vmul.f32 %v4264, %v4876
    %v4930 = vmul.f32 %v4265, %v4876
    %v4931 = vmul.f32 %v4266, %v4876
    %v4932 = vmul.f32 %v4267, %v4876
    %v4933 = vmul.f32 %v4268, %v4876
    %v4934 = vmul.f32 %v4269, %v4876
    %v4935 = vmul.f32 %v4270, %v4876
    %v4936 = vmul.f32 %v4271, %v4876
    %v4937 = vmul.f32 %v4272, %v4876
    %v4938 = vmul.f32 %v4273, %v4876
    %v4939 = vmul.f32 %v4274, %v4876
    %v4940 = vmul.f32 %v4275, %v4876
    %v4941 = vmul.f32 %v4276, %v4876
    %v4942 = vadd.f32 %v4878, %v4894
    %v4943 = vadd.f32 %v4942, %v4910
    %v4944 = vadd.f32 %v4943, %v4926
    %v4945 = vrot.slane %v4944, 4
    %v4946 = vadd.f32 %v4944, %v4945
    %v4947 = vrot.slane %v4946, 2
    %v4948 = vadd.f32 %v4946, %v4947
    %v4949 = vrot.slane %v4948, 1
    %v4950 = vadd.f32 %v4948, %v4949
    %v4951 = vadd.f32 %v4879, %v4895
    %v4952 = vadd.f32 %v4951, %v4911
    %v4953 = vadd.f32 %v4952, %v4927
    %v4954 = vrot.slane %v4953, 4
    %v4955 = vadd.f32 %v4953, %v4954
    %v4956 = vrot.slane %v4955, 2
    %v4957 = vadd.f32 %v4955, %v4956
    %v4958 = vrot.slane %v4957, 1
    %v4959 = vadd.f32 %v4957, %v4958
    %v4960 = vadd.f32 %v4880, %v4896
    %v4961 = vadd.f32 %v4960, %v4912
    %v4962 = vadd.f32 %v4961, %v4928
    %v4963 = vrot.slane %v4962, 4
    %v4964 = vadd.f32 %v4962, %v4963
    %v4965 = vrot.slane %v4964, 2
    %v4966 = vadd.f32 %v4964, %v4965
    %v4967 = vrot.slane %v4966, 1
    %v4968 = vadd.f32 %v4966, %v4967
    %v4969 = vadd.f32 %v4881, %v4897
    %v4970 = vadd.f32 %v4969, %v4913
    %v4971 = vadd.f32 %v4970, %v4929
    %v4972 = vrot.slane %v4971, 4
    %v4973 = vadd.f32 %v4971, %v4972
    %v4974 = vrot.slane %v4973, 2
    %v4975 = vadd.f32 %v4973, %v4974
    %v4976 = vrot.slane %v4975, 1
    %v4977 = vadd.f32 %v4975, %v4976
    %v4978 = vadd.f32 %v4882, %v4898
    %v4979 = vadd.f32 %v4978, %v4914
    %v4980 = vadd.f32 %v4979, %v4930
    %v4981 = vrot.slane %v4980, 4
    %v4982 = vadd.f32 %v4980, %v4981
    %v4983 = vrot.slane %v4982, 2
    %v4984 = vadd.f32 %v4982, %v4983
    %v4985 = vrot.slane %v4984, 1
    %v4986 = vadd.f32 %v4984, %v4985
    %v4987 = vadd.f32 %v4883, %v4899
    %v4988 = vadd.f32 %v4987, %v4915
    %v4989 = vadd.f32 %v4988, %v4931
    %v4990 = vrot.slane %v4989, 4
    %v4991 = vadd.f32 %v4989, %v4990
    %v4992 = vrot.slane %v4991, 2
    %v4993 = vadd.f32 %v4991, %v4992
    %v4994 = vrot.slane %v4993, 1
    %v4995 = vadd.f32 %v4993, %v4994
    %v4996 = vadd.f32 %v4884, %v4900
    %v4997 = vadd.f32 %v4996, %v4916
    %v4998 = vadd.f32 %v4997, %v4932
    %v4999 = vrot.slane %v4998, 4
    %v5000 = vadd.f32 %v4998, %v4999
    %v5001 = vrot.slane %v5000, 2
    %v5002 = vadd.f32 %v5000, %v5001
    %v5003 = vrot.slane %v5002, 1
    %v5004 = vadd.f32 %v5002, %v5003
    %v5005 = vadd.f32 %v4885, %v4901
    %v5006 = vadd.f32 %v5005, %v4917
    %v5007 = vadd.f32 %v5006, %v4933
    %v5008 = vrot.slane %v5007, 4
    %v5009 = vadd.f32 %v5007, %v5008
    %v5010 = vrot.slane %v5009, 2
    %v5011 = vadd.f32 %v5009, %v5010
    %v5012 = vrot.slane %v5011, 1
    %v5013 = vadd.f32 %v5011, %v5012
    %v5014 = vadd.f32 %v4886, %v4902
    %v5015 = vadd.f32 %v5014, %v4918
    %v5016 = vadd.f32 %v5015, %v4934
    %v5017 = vrot.slane %v5016, 4
    %v5018 = vadd.f32 %v5016, %v5017
    %v5019 = vrot.slane %v5018, 2
    %v5020 = vadd.f32 %v5018, %v5019
    %v5021 = vrot.slane %v5020, 1
    %v5022 = vadd.f32 %v5020, %v5021
    %v5023 = vadd.f32 %v4887, %v4903
    %v5024 = vadd.f32 %v5023, %v4919
    %v5025 = vadd.f32 %v5024, %v4935
    %v5026 = vrot.slane %v5025, 4
    %v5027 = vadd.f32 %v5025, %v5026
    %v5028 = vrot.slane %v5027, 2
    %v5029 = vadd.f32 %v5027, %v5028
    %v5030 = vrot.slane %v5029, 1
    %v5031 = vadd.f32 %v5029, %v5030
    %v5032 = vadd.f32 %v4888, %v4904
    %v5033 = vadd.f32 %v5032, %v4920
    %v5034 = vadd.f32 %v5033, %v4936
    %v5035 = vrot.slane %v5034, 4
    %v5036 = vadd.f32 %v5034, %v5035
    %v5037 = vrot.slane %v5036, 2
    %v5038 = vadd.f32 %v5036, %v5037
    %v5039 = vrot.slane %v5038, 1
    %v5040 = vadd.f32 %v5038, %v5039
    %v5041 = vadd.f32 %v4889, %v4905
    %v5042 = vadd.f32 %v5041, %v4921
    %v5043 = vadd.f32 %v5042, %v4937
    %v5044 = vrot.slane %v5043, 4
    %v5045 = vadd.f32 %v5043, %v5044
    %v5046 = vrot.slane %v5045, 2
    %v5047 = vadd.f32 %v5045, %v5046
    %v5048 = vrot.slane %v5047, 1
    %v5049 = vadd.f32 %v5047, %v5048
    %v5050 = vadd.f32 %v4890, %v4906
    %v5051 = vadd.f32 %v5050, %v4922
    %v5052 = vadd.f32 %v5051, %v4938
    %v5053 = vrot.slane %v5052, 4
    %v5054 = vadd.f32 %v5052, %v5053
    %v5055 = vrot.slane %v5054, 2
    %v5056 = vadd.f32 %v5054, %v5055
    %v5057 = vrot.slane %v5056, 1
    %v5058 = vadd.f32 %v5056, %v5057
    %v5059 = vadd.f32 %v4891, %v4907
    %v5060 = vadd.f32 %v5059, %v4923
    %v5061 = vadd.f32 %v5060, %v4939
    %v5062 = vrot.slane %v5061, 4
    %v5063 = vadd.f32 %v5061, %v5062
    %v5064 = vrot.slane %v5063, 2
    %v5065 = vadd.f32 %v5063, %v5064
    %v5066 = vrot.slane %v5065, 1
    %v5067 = vadd.f32 %v5065, %v5066
    %v5068 = vadd.f32 %v4892, %v4908
    %v5069 = vadd.f32 %v5068, %v4924
    %v5070 = vadd.f32 %v5069, %v4940
    %v5071 = vrot.slane %v5070, 4
    %v5072 = vadd.f32 %v5070, %v5071
    %v5073 = vrot.slane %v5072, 2
    %v5074 = vadd.f32 %v5072, %v5073
    %v5075 = vrot.slane %v5074, 1
    %v5076 = vadd.f32 %v5074, %v5075
    %v5077 = vadd.f32 %v4893, %v4909
    %v5078 = vadd.f32 %v5077, %v4925
    %v5079 = vadd.f32 %v5078, %v4941
    %v5080 = vrot.slane %v5079, 4
    %v5081 = vadd.f32 %v5079, %v5080
    %v5082 = vrot.slane %v5081, 2
    %v5083 = vadd.f32 %v5081, %v5082
    %v5084 = vrot.slane %v5083, 1
    %v5085 = vadd.f32 %v5083, %v5084
    %5087 = vset.pattern.permute.xlu0 0
    %5088 = vperm.xlu0 %5087, %v4854
    %v5089 = vpop.permute.xlu0 %5088
    %5092 = vset.pattern.permute.xlu0 0
    %5093 = vperm.xlu0 %5092, %v4855
    %v5094 = vpop.permute.xlu0 %5093
    %5097 = vset.pattern.permute.xlu0 0
    %5098 = vperm.xlu0 %5097, %v4856
    %v5099 = vpop.permute.xlu0 %5098
    %5102 = vset.pattern.permute.xlu0 0
    %5103 = vperm.xlu0 %5102, %v4857
    %v5104 = vpop.permute.xlu0 %5103
    %v5106 = vmul.f32 %v4213, %v5089
    %v5107 = vmul.f32 %v4214, %v5089
    %v5108 = vmul.f32 %v4215, %v5089
    %v5109 = vmul.f32 %v4216, %v5089
    %v5110 = vmul.f32 %v4217, %v5089
    %v5111 = vmul.f32 %v4218, %v5089
    %v5112 = vmul.f32 %v4219, %v5089
    %v5113 = vmul.f32 %v4220, %v5089
    %v5114 = vmul.f32 %v4221, %v5089
    %v5115 = vmul.f32 %v4222, %v5089
    %v5116 = vmul.f32 %v4223, %v5089
    %v5117 = vmul.f32 %v4224, %v5089
    %v5118 = vmul.f32 %v4225, %v5089
    %v5119 = vmul.f32 %v4226, %v5089
    %v5120 = vmul.f32 %v4227, %v5089
    %v5121 = vmul.f32 %v4228, %v5089
    %v5122 = vmul.f32 %v4229, %v5094
    %v5123 = vmul.f32 %v4230, %v5094
    %v5124 = vmul.f32 %v4231, %v5094
    %v5125 = vmul.f32 %v4232, %v5094
    %v5126 = vmul.f32 %v4233, %v5094
    %v5127 = vmul.f32 %v4234, %v5094
    %v5128 = vmul.f32 %v4235, %v5094
    %v5129 = vmul.f32 %v4236, %v5094
    %v5130 = vmul.f32 %v4237, %v5094
    %v5131 = vmul.f32 %v4238, %v5094
    %v5132 = vmul.f32 %v4239, %v5094
    %v5133 = vmul.f32 %v4240, %v5094
    %v5134 = vmul.f32 %v4241, %v5094
    %v5135 = vmul.f32 %v4242, %v5094
    %v5136 = vmul.f32 %v4243, %v5094
    %v5137 = vmul.f32 %v4244, %v5094
    %v5138 = vmul.f32 %v4245, %v5099
    %v5139 = vmul.f32 %v4246, %v5099
    %v5140 = vmul.f32 %v4247, %v5099
    %v5141 = vmul.f32 %v4248, %v5099
    %v5142 = vmul.f32 %v4249, %v5099
    %v5143 = vmul.f32 %v4250, %v5099
    %v5144 = vmul.f32 %v4251, %v5099
    %v5145 = vmul.f32 %v4252, %v5099
    %v5146 = vmul.f32 %v4253, %v5099
    %v5147 = vmul.f32 %v4254, %v5099
    %v5148 = vmul.f32 %v4255, %v5099
    %v5149 = vmul.f32 %v4256, %v5099
    %v5150 = vmul.f32 %v4257, %v5099
    %v5151 = vmul.f32 %v4258, %v5099
    %v5152 = vmul.f32 %v4259, %v5099
    %v5153 = vmul.f32 %v4260, %v5099
    %v5154 = vmul.f32 %v4261, %v5104
    %v5155 = vmul.f32 %v4262, %v5104
    %v5156 = vmul.f32 %v4263, %v5104
    %v5157 = vmul.f32 %v4264, %v5104
    %v5158 = vmul.f32 %v4265, %v5104
    %v5159 = vmul.f32 %v4266, %v5104
    %v5160 = vmul.f32 %v4267, %v5104
    %v5161 = vmul.f32 %v4268, %v5104
    %v5162 = vmul.f32 %v4269, %v5104
    %v5163 = vmul.f32 %v4270, %v5104
    %v5164 = vmul.f32 %v4271, %v5104
    %v5165 = vmul.f32 %v4272, %v5104
    %v5166 = vmul.f32 %v4273, %v5104
    %v5167 = vmul.f32 %v4274, %v5104
    %v5168 = vmul.f32 %v4275, %v5104
    %v5169 = vmul.f32 %v4276, %v5104
    %v5170 = vadd.f32 %v5106, %v5122
    %v5171 = vadd.f32 %v5170, %v5138
    %v5172 = vadd.f32 %v5171, %v5154
    %v5173 = vrot.slane %v5172, 4
    %v5174 = vadd.f32 %v5172, %v5173
    %v5175 = vrot.slane %v5174, 2
    %v5176 = vadd.f32 %v5174, %v5175
    %v5177 = vrot.slane %v5176, 1
    %v5178 = vadd.f32 %v5176, %v5177
    %v5179 = vadd.f32 %v5107, %v5123
    %v5180 = vadd.f32 %v5179, %v5139
    %v5181 = vadd.f32 %v5180, %v5155
    %v5182 = vrot.slane %v5181, 4
    %v5183 = vadd.f32 %v5181, %v5182
    %v5184 = vrot.slane %v5183, 2
    %v5185 = vadd.f32 %v5183, %v5184
    %v5186 = vrot.slane %v5185, 1
    %v5187 = vadd.f32 %v5185, %v5186
    %v5188 = vadd.f32 %v5108, %v5124
    %v5189 = vadd.f32 %v5188, %v5140
    %v5190 = vadd.f32 %v5189, %v5156
    %v5191 = vrot.slane %v5190, 4
    %v5192 = vadd.f32 %v5190, %v5191
    %v5193 = vrot.slane %v5192, 2
    %v5194 = vadd.f32 %v5192, %v5193
    %v5195 = vrot.slane %v5194, 1
    %v5196 = vadd.f32 %v5194, %v5195
    %v5197 = vadd.f32 %v5109, %v5125
    %v5198 = vadd.f32 %v5197, %v5141
    %v5199 = vadd.f32 %v5198, %v5157
    %v5200 = vrot.slane %v5199, 4
    %v5201 = vadd.f32 %v5199, %v5200
    %v5202 = vrot.slane %v5201, 2
    %v5203 = vadd.f32 %v5201, %v5202
    %v5204 = vrot.slane %v5203, 1
    %v5205 = vadd.f32 %v5203, %v5204
    %v5206 = vadd.f32 %v5110, %v5126
    %v5207 = vadd.f32 %v5206, %v5142
    %v5208 = vadd.f32 %v5207, %v5158
    %v5209 = vrot.slane %v5208, 4
    %v5210 = vadd.f32 %v5208, %v5209
    %v5211 = vrot.slane %v5210, 2
    %v5212 = vadd.f32 %v5210, %v5211
    %v5213 = vrot.slane %v5212, 1
    %v5214 = vadd.f32 %v5212, %v5213
    %v5215 = vadd.f32 %v5111, %v5127
    %v5216 = vadd.f32 %v5215, %v5143
    %v5217 = vadd.f32 %v5216, %v5159
    %v5218 = vrot.slane %v5217, 4
    %v5219 = vadd.f32 %v5217, %v5218
    %v5220 = vrot.slane %v5219, 2
    %v5221 = vadd.f32 %v5219, %v5220
    %v5222 = vrot.slane %v5221, 1
    %v5223 = vadd.f32 %v5221, %v5222
    %v5224 = vadd.f32 %v5112, %v5128
    %v5225 = vadd.f32 %v5224, %v5144
    %v5226 = vadd.f32 %v5225, %v5160
    %v5227 = vrot.slane %v5226, 4
    %v5228 = vadd.f32 %v5226, %v5227
    %v5229 = vrot.slane %v5228, 2
    %v5230 = vadd.f32 %v5228, %v5229
    %v5231 = vrot.slane %v5230, 1
    %v5232 = vadd.f32 %v5230, %v5231
    %v5233 = vadd.f32 %v5113, %v5129
    %v5234 = vadd.f32 %v5233, %v5145
    %v5235 = vadd.f32 %v5234, %v5161
    %v5236 = vrot.slane %v5235, 4
    %v5237 = vadd.f32 %v5235, %v5236
    %v5238 = vrot.slane %v5237, 2
    %v5239 = vadd.f32 %v5237, %v5238
    %v5240 = vrot.slane %v5239, 1
    %v5241 = vadd.f32 %v5239, %v5240
    %v5242 = vadd.f32 %v5114, %v5130
    %v5243 = vadd.f32 %v5242, %v5146
    %v5244 = vadd.f32 %v5243, %v5162
    %v5245 = vrot.slane %v5244, 4
    %v5246 = vadd.f32 %v5244, %v5245
    %v5247 = vrot.slane %v5246, 2
    %v5248 = vadd.f32 %v5246, %v5247
    %v5249 = vrot.slane %v5248, 1
    %v5250 = vadd.f32 %v5248, %v5249
    %v5251 = vadd.f32 %v5115, %v5131
    %v5252 = vadd.f32 %v5251, %v5147
    %v5253 = vadd.f32 %v5252, %v5163
    %v5254 = vrot.slane %v5253, 4
    %v5255 = vadd.f32 %v5253, %v5254
    %v5256 = vrot.slane %v5255, 2
    %v5257 = vadd.f32 %v5255, %v5256
    %v5258 = vrot.slane %v5257, 1
    %v5259 = vadd.f32 %v5257, %v5258
    %v5260 = vadd.f32 %v5116, %v5132
    %v5261 = vadd.f32 %v5260, %v5148
    %v5262 = vadd.f32 %v5261, %v5164
    %v5263 = vrot.slane %v5262, 4
    %v5264 = vadd.f32 %v5262, %v5263
    %v5265 = vrot.slane %v5264, 2
    %v5266 = vadd.f32 %v5264, %v5265
    %v5267 = vrot.slane %v5266, 1
    %v5268 = vadd.f32 %v5266, %v5267
    %v5269 = vadd.f32 %v5117, %v5133
    %v5270 = vadd.f32 %v5269, %v5149
    %v5271 = vadd.f32 %v5270, %v5165
    %v5272 = vrot.slane %v5271, 4
    %v5273 = vadd.f32 %v5271, %v5272
    %v5274 = vrot.slane %v5273, 2
    %v5275 = vadd.f32 %v5273, %v5274
    %v5276 = vrot.slane %v5275, 1
    %v5277 = vadd.f32 %v5275, %v5276
    %v5278 = vadd.f32 %v5118, %v5134
    %v5279 = vadd.f32 %v5278, %v5150
    %v5280 = vadd.f32 %v5279, %v5166
    %v5281 = vrot.slane %v5280, 4
    %v5282 = vadd.f32 %v5280, %v5281
    %v5283 = vrot.slane %v5282, 2
    %v5284 = vadd.f32 %v5282, %v5283
    %v5285 = vrot.slane %v5284, 1
    %v5286 = vadd.f32 %v5284, %v5285
    %v5287 = vadd.f32 %v5119, %v5135
    %v5288 = vadd.f32 %v5287, %v5151
    %v5289 = vadd.f32 %v5288, %v5167
    %v5290 = vrot.slane %v5289, 4
    %v5291 = vadd.f32 %v5289, %v5290
    %v5292 = vrot.slane %v5291, 2
    %v5293 = vadd.f32 %v5291, %v5292
    %v5294 = vrot.slane %v5293, 1
    %v5295 = vadd.f32 %v5293, %v5294
    %v5296 = vadd.f32 %v5120, %v5136
    %v5297 = vadd.f32 %v5296, %v5152
    %v5298 = vadd.f32 %v5297, %v5168
    %v5299 = vrot.slane %v5298, 4
    %v5300 = vadd.f32 %v5298, %v5299
    %v5301 = vrot.slane %v5300, 2
    %v5302 = vadd.f32 %v5300, %v5301
    %v5303 = vrot.slane %v5302, 1
    %v5304 = vadd.f32 %v5302, %v5303
    %v5305 = vadd.f32 %v5121, %v5137
    %v5306 = vadd.f32 %v5305, %v5153
    %v5307 = vadd.f32 %v5306, %v5169
    %v5308 = vrot.slane %v5307, 4
    %v5309 = vadd.f32 %v5307, %v5308
    %v5310 = vrot.slane %v5309, 2
    %v5311 = vadd.f32 %v5309, %v5310
    %v5312 = vrot.slane %v5311, 1
    %v5313 = vadd.f32 %v5311, %v5312
    %v5314 = vmul.f32 %v4189, %v4950
    %v5315 = vmul.f32 %v4190, %v4959
    %v5316 = vmul.f32 %v4191, %v4968
    %v5317 = vmul.f32 %v4192, %v4977
    %v5318 = vmul.f32 %v4193, %v4986
    %v5319 = vmul.f32 %v4194, %v4995
    %v5320 = vmul.f32 %v4195, %v5004
    %v5321 = vmul.f32 %v4196, %v5013
    %v5322 = vmul.f32 %v4197, %v5022
    %v5323 = vmul.f32 %v4198, %v5031
    %v5324 = vmul.f32 %v4199, %v5040
    %v5325 = vmul.f32 %v4200, %v5049
    %v5326 = vmul.f32 %v4201, %v5058
    %v5327 = vmul.f32 %v4202, %v5067
    %v5328 = vmul.f32 %v4203, %v5076
    %v5329 = vmul.f32 %v4204, %v5085
    %v5330 = vadd.f32 %v5314, %v5178
    %v5331 = vadd.f32 %v5315, %v5187
    %v5332 = vadd.f32 %v5316, %v5196
    %v5333 = vadd.f32 %v5317, %v5205
    %v5334 = vadd.f32 %v5318, %v5214
    %v5335 = vadd.f32 %v5319, %v5223
    %v5336 = vadd.f32 %v5320, %v5232
    %v5337 = vadd.f32 %v5321, %v5241
    %v5338 = vadd.f32 %v5322, %v5250
    %v5339 = vadd.f32 %v5323, %v5259
    %v5340 = vadd.f32 %v5324, %v5268
    %v5341 = vadd.f32 %v5325, %v5277
    %v5342 = vadd.f32 %v5326, %v5286
    %v5343 = vadd.f32 %v5327, %v5295
    %v5344 = vadd.f32 %v5328, %v5304
    %v5345 = vadd.f32 %v5329, %v5313
    %v5346 = vld [vmem:[#allocation13] sm:$0xff]
    %v5347 = vld [vmem:[#allocation13 + $0x8] sm:$0xff]
    %v5348 = vld [vmem:[#allocation13 + $0x10] sm:$0xff]
    %v5349 = vld [vmem:[#allocation13 + $0x18] sm:$0xff]
    %v5350 = vld [vmem:[#allocation13 + $0x20] sm:$0xff]
    %v5351 = vld [vmem:[#allocation13 + $0x28] sm:$0xff]
    %v5352 = vld [vmem:[#allocation13 + $0x30] sm:$0xff]
    %v5353 = vld [vmem:[#allocation13 + $0x38] sm:$0xff]
    %v5354 = vld [vmem:[#allocation13 + $0x40] sm:$0xff]
    %v5355 = vld [vmem:[#allocation13 + $0x48] sm:$0xff]
    %v5356 = vld [vmem:[#allocation13 + $0x50] sm:$0xff]
    %v5357 = vld [vmem:[#allocation13 + $0x58] sm:$0xff]
    %v5358 = vld [vmem:[#allocation13 + $0x60] sm:$0xff]
    %v5359 = vld [vmem:[#allocation13 + $0x68] sm:$0xff]
    %v5360 = vld [vmem:[#allocation13 + $0x70] sm:$0xff]
    %v5361 = vld [vmem:[#allocation13 + $0x78] sm:$0xff]
    %v5362 = vld [vmem:[#allocation13 + $0x80] sm:$0xff]
    %v5363 = vld [vmem:[#allocation13 + $0x88] sm:$0xff]
    %v5364 = vld [vmem:[#allocation13 + $0x90] sm:$0xff]
    %v5365 = vld [vmem:[#allocation13 + $0x98] sm:$0xff]
    %v5366 = vld [vmem:[#allocation13 + $0xa0] sm:$0xff]
    %v5367 = vld [vmem:[#allocation13 + $0xa8] sm:$0xff]
    %v5368 = vld [vmem:[#allocation13 + $0xb0] sm:$0xff]
    %v5369 = vld [vmem:[#allocation13 + $0xb8] sm:$0xff]
    %v5370 = vld [vmem:[#allocation13 + $0xc0] sm:$0xff]
    %v5371 = vld [vmem:[#allocation13 + $0xc8] sm:$0xff]
    %v5372 = vld [vmem:[#allocation13 + $0xd0] sm:$0xff]
    %v5373 = vld [vmem:[#allocation13 + $0xd8] sm:$0xff]
    %v5374 = vld [vmem:[#allocation13 + $0xe0] sm:$0xff]
    %v5375 = vld [vmem:[#allocation13 + $0xe8] sm:$0xff]
    %v5376 = vld [vmem:[#allocation13 + $0xf0] sm:$0xff]
    %v5377 = vld [vmem:[#allocation13 + $0xf8] sm:$0xff]
    %v5378 = vld [vmem:[#allocation13 + $0x100] sm:$0xff]
    %v5379 = vld [vmem:[#allocation13 + $0x108] sm:$0xff]
    %v5380 = vld [vmem:[#allocation13 + $0x110] sm:$0xff]
    %v5381 = vld [vmem:[#allocation13 + $0x118] sm:$0xff]
    %v5382 = vld [vmem:[#allocation13 + $0x120] sm:$0xff]
    %v5383 = vld [vmem:[#allocation13 + $0x128] sm:$0xff]
    %v5384 = vld [vmem:[#allocation13 + $0x130] sm:$0xff]
    %v5385 = vld [vmem:[#allocation13 + $0x138] sm:$0xff]
    %v5386 = vld [vmem:[#allocation13 + $0x140] sm:$0xff]
    %v5387 = vld [vmem:[#allocation13 + $0x148] sm:$0xff]
    %v5388 = vld [vmem:[#allocation13 + $0x150] sm:$0xff]
    %v5389 = vld [vmem:[#allocation13 + $0x158] sm:$0xff]
    %v5390 = vld [vmem:[#allocation13 + $0x160] sm:$0xff]
    %v5391 = vld [vmem:[#allocation13 + $0x168] sm:$0xff]
    %v5392 = vld [vmem:[#allocation13 + $0x170] sm:$0xff]
    %v5393 = vld [vmem:[#allocation13 + $0x178] sm:$0xff]
    %v5394 = vld [vmem:[#allocation13 + $0x180] sm:$0xff]
    %v5395 = vld [vmem:[#allocation13 + $0x188] sm:$0xff]
    %v5396 = vld [vmem:[#allocation13 + $0x190] sm:$0xff]
    %v5397 = vld [vmem:[#allocation13 + $0x198] sm:$0xff]
    %v5398 = vld [vmem:[#allocation13 + $0x1a0] sm:$0xff]
    %v5399 = vld [vmem:[#allocation13 + $0x1a8] sm:$0xff]
    %v5400 = vld [vmem:[#allocation13 + $0x1b0] sm:$0xff]
    %v5401 = vld [vmem:[#allocation13 + $0x1b8] sm:$0xff]
    %v5402 = vld [vmem:[#allocation13 + $0x1c0] sm:$0xff]
    %v5403 = vld [vmem:[#allocation13 + $0x1c8] sm:$0xff]
    %v5404 = vld [vmem:[#allocation13 + $0x1d0] sm:$0xff]
    %v5405 = vld [vmem:[#allocation13 + $0x1d8] sm:$0xff]
    %v5406 = vld [vmem:[#allocation13 + $0x1e0] sm:$0xff]
    %v5407 = vld [vmem:[#allocation13 + $0x1e8] sm:$0xff]
    %v5408 = vld [vmem:[#allocation13 + $0x1f0] sm:$0xff]
    %v5409 = vld [vmem:[#allocation13 + $0x1f8] sm:$0xff]
    %v5410 = vld [vmem:[#allocation13 + $0x200] sm:$0xff]
    %v5411 = vld [vmem:[#allocation13 + $0x208] sm:$0xff]
    %v5412 = vld [vmem:[#allocation13 + $0x210] sm:$0xff]
    %v5413 = vld [vmem:[#allocation13 + $0x218] sm:$0xff]
    %v5414 = vld [vmem:[#allocation13 + $0x220] sm:$0xff]
    %v5415 = vld [vmem:[#allocation13 + $0x228] sm:$0xff]
    %v5416 = vld [vmem:[#allocation13 + $0x230] sm:$0xff]
    %v5417 = vld [vmem:[#allocation13 + $0x238] sm:$0xff]
    %v5418 = vld [vmem:[#allocation13 + $0x240] sm:$0xff]
    %v5419 = vld [vmem:[#allocation13 + $0x248] sm:$0xff]
    %v5420 = vld [vmem:[#allocation13 + $0x250] sm:$0xff]
    %v5421 = vld [vmem:[#allocation13 + $0x258] sm:$0xff]
    %v5422 = vld [vmem:[#allocation13 + $0x260] sm:$0xff]
    %v5423 = vld [vmem:[#allocation13 + $0x268] sm:$0xff]
    %v5424 = vld [vmem:[#allocation13 + $0x270] sm:$0xff]
    %v5425 = vld [vmem:[#allocation13 + $0x278] sm:$0xff]
    %v5426 = vld [vmem:[#allocation13 + $0x280] sm:$0xff]
    %v5427 = vld [vmem:[#allocation13 + $0x288] sm:$0xff]
    %v5428 = vld [vmem:[#allocation13 + $0x290] sm:$0xff]
    %v5429 = vld [vmem:[#allocation13 + $0x298] sm:$0xff]
    %v5430 = vld [vmem:[#allocation13 + $0x2a0] sm:$0xff]
    %v5431 = vld [vmem:[#allocation13 + $0x2a8] sm:$0xff]
    %v5432 = vld [vmem:[#allocation13 + $0x2b0] sm:$0xff]
    %v5433 = vld [vmem:[#allocation13 + $0x2b8] sm:$0xff]
    %v5434 = vld [vmem:[#allocation13 + $0x2c0] sm:$0xff]
    %v5435 = vld [vmem:[#allocation13 + $0x2c8] sm:$0xff]
    %v5436 = vld [vmem:[#allocation13 + $0x2d0] sm:$0xff]
    %v5437 = vld [vmem:[#allocation13 + $0x2d8] sm:$0xff]
    %v5438 = vld [vmem:[#allocation13 + $0x2e0] sm:$0xff]
    %v5439 = vld [vmem:[#allocation13 + $0x2e8] sm:$0xff]
    %v5440 = vld [vmem:[#allocation13 + $0x2f0] sm:$0xff]
    %v5441 = vld [vmem:[#allocation13 + $0x2f8] sm:$0xff]
    %v5442 = vld [vmem:[#allocation13 + $0x300] sm:$0xff]
    %v5443 = vld [vmem:[#allocation13 + $0x308] sm:$0xff]
    %v5444 = vld [vmem:[#allocation13 + $0x310] sm:$0xff]
    %v5445 = vld [vmem:[#allocation13 + $0x318] sm:$0xff]
    %v5446 = vld [vmem:[#allocation13 + $0x320] sm:$0xff]
    %v5447 = vld [vmem:[#allocation13 + $0x328] sm:$0xff]
    %v5448 = vld [vmem:[#allocation13 + $0x330] sm:$0xff]
    %v5449 = vld [vmem:[#allocation13 + $0x338] sm:$0xff]
    %v5450 = vld [vmem:[#allocation13 + $0x340] sm:$0xff]
    %v5451 = vld [vmem:[#allocation13 + $0x348] sm:$0xff]
    %v5452 = vld [vmem:[#allocation13 + $0x350] sm:$0xff]
    %v5453 = vld [vmem:[#allocation13 + $0x358] sm:$0xff]
    %v5454 = vld [vmem:[#allocation13 + $0x360] sm:$0xff]
    %v5455 = vld [vmem:[#allocation13 + $0x368] sm:$0xff]
    %v5456 = vld [vmem:[#allocation13 + $0x370] sm:$0xff]
    %v5457 = vld [vmem:[#allocation13 + $0x378] sm:$0xff]
    %v5458 = vld [vmem:[#allocation13 + $0x380] sm:$0xff]
    %v5459 = vld [vmem:[#allocation13 + $0x388] sm:$0xff]
    %v5460 = vld [vmem:[#allocation13 + $0x390] sm:$0xff]
    %v5461 = vld [vmem:[#allocation13 + $0x398] sm:$0xff]
    %v5462 = vld [vmem:[#allocation13 + $0x3a0] sm:$0xff]
    %v5463 = vld [vmem:[#allocation13 + $0x3a8] sm:$0xff]
    %v5464 = vld [vmem:[#allocation13 + $0x3b0] sm:$0xff]
    %v5465 = vld [vmem:[#allocation13 + $0x3b8] sm:$0xff]
    %v5466 = vld [vmem:[#allocation13 + $0x3c0] sm:$0xff]
    %v5467 = vld [vmem:[#allocation13 + $0x3c8] sm:$0xff]
    %v5468 = vld [vmem:[#allocation13 + $0x3d0] sm:$0xff]
    %v5469 = vld [vmem:[#allocation13 + $0x3d8] sm:$0xff]
    %v5470 = vld [vmem:[#allocation13 + $0x3e0] sm:$0xff]
    %v5471 = vld [vmem:[#allocation13 + $0x3e8] sm:$0xff]
    %v5472 = vld [vmem:[#allocation13 + $0x3f0] sm:$0xff]
    %v5473 = vld [vmem:[#allocation13 + $0x3f8] sm:$0xff]
    %v5474 = vld [vmem:[#allocation13 + $0x400] sm:$0xff]
    %v5475 = vld [vmem:[#allocation13 + $0x408] sm:$0xff]
    %v5476 = vld [vmem:[#allocation13 + $0x410] sm:$0xff]
    %v5477 = vld [vmem:[#allocation13 + $0x418] sm:$0xff]
    %v5478 = vld [vmem:[#allocation13 + $0x420] sm:$0xff]
    %v5479 = vld [vmem:[#allocation13 + $0x428] sm:$0xff]
    %v5480 = vld [vmem:[#allocation13 + $0x430] sm:$0xff]
    %v5481 = vld [vmem:[#allocation13 + $0x438] sm:$0xff]
    %v5482 = vld [vmem:[#allocation13 + $0x440] sm:$0xff]
    %v5483 = vld [vmem:[#allocation13 + $0x448] sm:$0xff]
    %v5484 = vld [vmem:[#allocation13 + $0x450] sm:$0xff]
    %v5485 = vld [vmem:[#allocation13 + $0x458] sm:$0xff]
    %v5486 = vld [vmem:[#allocation13 + $0x460] sm:$0xff]
    %v5487 = vld [vmem:[#allocation13 + $0x468] sm:$0xff]
    %v5488 = vld [vmem:[#allocation13 + $0x470] sm:$0xff]
    %v5489 = vld [vmem:[#allocation13 + $0x478] sm:$0xff]
    %v5490 = vld [vmem:[#allocation13 + $0x480] sm:$0xff]
    %v5491 = vld [vmem:[#allocation13 + $0x488] sm:$0xff]
    %v5492 = vld [vmem:[#allocation13 + $0x490] sm:$0xff]
    %v5493 = vld [vmem:[#allocation13 + $0x498] sm:$0xff]
    %v5494 = vld [vmem:[#allocation13 + $0x4a0] sm:$0xff]
    %v5495 = vld [vmem:[#allocation13 + $0x4a8] sm:$0xff]
    %v5496 = vld [vmem:[#allocation13 + $0x4b0] sm:$0xff]
    %v5497 = vld [vmem:[#allocation13 + $0x4b8] sm:$0xff]
    %v5498 = vld [vmem:[#allocation13 + $0x4c0] sm:$0xff]
    %v5499 = vld [vmem:[#allocation13 + $0x4c8] sm:$0xff]
    %v5500 = vld [vmem:[#allocation13 + $0x4d0] sm:$0xff]
    %v5501 = vld [vmem:[#allocation13 + $0x4d8] sm:$0xff]
    %v5502 = vld [vmem:[#allocation13 + $0x4e0] sm:$0xff]
    %v5503 = vld [vmem:[#allocation13 + $0x4e8] sm:$0xff]
    %v5504 = vld [vmem:[#allocation13 + $0x4f0] sm:$0xff]
    %v5505 = vld [vmem:[#allocation13 + $0x4f8] sm:$0xff]
    %v5506 = vld [vmem:[#allocation13 + $0x500] sm:$0xff]
    %v5507 = vld [vmem:[#allocation13 + $0x508] sm:$0xff]
    %v5508 = vld [vmem:[#allocation13 + $0x510] sm:$0xff]
    %v5509 = vld [vmem:[#allocation13 + $0x518] sm:$0xff]
    %v5510 = vld [vmem:[#allocation13 + $0x520] sm:$0xff]
    %v5511 = vld [vmem:[#allocation13 + $0x528] sm:$0xff]
    %v5512 = vld [vmem:[#allocation13 + $0x530] sm:$0xff]
    %v5513 = vld [vmem:[#allocation13 + $0x538] sm:$0xff]
    %v5514 = vld [vmem:[#allocation13 + $0x540] sm:$0xff]
    %v5515 = vld [vmem:[#allocation13 + $0x548] sm:$0xff]
    %v5516 = vld [vmem:[#allocation13 + $0x550] sm:$0xff]
    %v5517 = vld [vmem:[#allocation13 + $0x558] sm:$0xff]
    %v5518 = vld [vmem:[#allocation13 + $0x560] sm:$0xff]
    %v5519 = vld [vmem:[#allocation13 + $0x568] sm:$0xff]
    %v5520 = vld [vmem:[#allocation13 + $0x570] sm:$0xff]
    %v5521 = vld [vmem:[#allocation13 + $0x578] sm:$0xff]
    %v5522 = vld [vmem:[#allocation13 + $0x580] sm:$0xff]
    %v5523 = vld [vmem:[#allocation13 + $0x588] sm:$0xff]
    %v5524 = vld [vmem:[#allocation13 + $0x590] sm:$0xff]
    %v5525 = vld [vmem:[#allocation13 + $0x598] sm:$0xff]
    %v5526 = vld [vmem:[#allocation13 + $0x5a0] sm:$0xff]
    %v5527 = vld [vmem:[#allocation13 + $0x5a8] sm:$0xff]
    %v5528 = vld [vmem:[#allocation13 + $0x5b0] sm:$0xff]
    %v5529 = vld [vmem:[#allocation13 + $0x5b8] sm:$0xff]
    %v5530 = vld [vmem:[#allocation13 + $0x5c0] sm:$0xff]
    %v5531 = vld [vmem:[#allocation13 + $0x5c8] sm:$0xff]
    %v5532 = vld [vmem:[#allocation13 + $0x5d0] sm:$0xff]
    %v5533 = vld [vmem:[#allocation13 + $0x5d8] sm:$0xff]
    %v5534 = vld [vmem:[#allocation13 + $0x5e0] sm:$0xff]
    %v5535 = vld [vmem:[#allocation13 + $0x5e8] sm:$0xff]
    %v5536 = vld [vmem:[#allocation13 + $0x5f0] sm:$0xff]
    %v5537 = vld [vmem:[#allocation13 + $0x5f8] sm:$0xff]
    %v5538 = vld [vmem:[#allocation13 + $0x600] sm:$0xff]
    %v5539 = vld [vmem:[#allocation13 + $0x608] sm:$0xff]
    %v5540 = vld [vmem:[#allocation13 + $0x610] sm:$0xff]
    %v5541 = vld [vmem:[#allocation13 + $0x618] sm:$0xff]
    %v5542 = vld [vmem:[#allocation13 + $0x620] sm:$0xff]
    %v5543 = vld [vmem:[#allocation13 + $0x628] sm:$0xff]
    %v5544 = vld [vmem:[#allocation13 + $0x630] sm:$0xff]
    %v5545 = vld [vmem:[#allocation13 + $0x638] sm:$0xff]
    %v5546 = vld [vmem:[#allocation13 + $0x640] sm:$0xff]
    %v5547 = vld [vmem:[#allocation13 + $0x648] sm:$0xff]
    %v5548 = vld [vmem:[#allocation13 + $0x650] sm:$0xff]
    %v5549 = vld [vmem:[#allocation13 + $0x658] sm:$0xff]
    %v5550 = vld [vmem:[#allocation13 + $0x660] sm:$0xff]
    %v5551 = vld [vmem:[#allocation13 + $0x668] sm:$0xff]
    %v5552 = vld [vmem:[#allocation13 + $0x670] sm:$0xff]
    %v5553 = vld [vmem:[#allocation13 + $0x678] sm:$0xff]
    %v5554 = vld [vmem:[#allocation13 + $0x680] sm:$0xff]
    %v5555 = vld [vmem:[#allocation13 + $0x688] sm:$0xff]
    %v5556 = vld [vmem:[#allocation13 + $0x690] sm:$0xff]
    %v5557 = vld [vmem:[#allocation13 + $0x698] sm:$0xff]
    %v5558 = vld [vmem:[#allocation13 + $0x6a0] sm:$0xff]
    %v5559 = vld [vmem:[#allocation13 + $0x6a8] sm:$0xff]
    %v5560 = vld [vmem:[#allocation13 + $0x6b0] sm:$0xff]
    %v5561 = vld [vmem:[#allocation13 + $0x6b8] sm:$0xff]
    %v5562 = vld [vmem:[#allocation13 + $0x6c0] sm:$0xff]
    %v5563 = vld [vmem:[#allocation13 + $0x6c8] sm:$0xff]
    %v5564 = vld [vmem:[#allocation13 + $0x6d0] sm:$0xff]
    %v5565 = vld [vmem:[#allocation13 + $0x6d8] sm:$0xff]
    %v5566 = vld [vmem:[#allocation13 + $0x6e0] sm:$0xff]
    %v5567 = vld [vmem:[#allocation13 + $0x6e8] sm:$0xff]
    %v5568 = vld [vmem:[#allocation13 + $0x6f0] sm:$0xff]
    %v5569 = vld [vmem:[#allocation13 + $0x6f8] sm:$0xff]
    %v5570 = vld [vmem:[#allocation13 + $0x700] sm:$0xff]
    %v5571 = vld [vmem:[#allocation13 + $0x708] sm:$0xff]
    %v5572 = vld [vmem:[#allocation13 + $0x710] sm:$0xff]
    %v5573 = vld [vmem:[#allocation13 + $0x718] sm:$0xff]
    %v5574 = vld [vmem:[#allocation13 + $0x720] sm:$0xff]
    %v5575 = vld [vmem:[#allocation13 + $0x728] sm:$0xff]
    %v5576 = vld [vmem:[#allocation13 + $0x730] sm:$0xff]
    %v5577 = vld [vmem:[#allocation13 + $0x738] sm:$0xff]
    %v5578 = vld [vmem:[#allocation13 + $0x740] sm:$0xff]
    %v5579 = vld [vmem:[#allocation13 + $0x748] sm:$0xff]
    %v5580 = vld [vmem:[#allocation13 + $0x750] sm:$0xff]
    %v5581 = vld [vmem:[#allocation13 + $0x758] sm:$0xff]
    %v5582 = vld [vmem:[#allocation13 + $0x760] sm:$0xff]
    %v5583 = vld [vmem:[#allocation13 + $0x768] sm:$0xff]
    %v5584 = vld [vmem:[#allocation13 + $0x770] sm:$0xff]
    %v5585 = vld [vmem:[#allocation13 + $0x778] sm:$0xff]
    %v5586 = vld [vmem:[#allocation13 + $0x780] sm:$0xff]
    %v5587 = vld [vmem:[#allocation13 + $0x788] sm:$0xff]
    %v5588 = vld [vmem:[#allocation13 + $0x790] sm:$0xff]
    %v5589 = vld [vmem:[#allocation13 + $0x798] sm:$0xff]
    %v5590 = vld [vmem:[#allocation13 + $0x7a0] sm:$0xff]
    %v5591 = vld [vmem:[#allocation13 + $0x7a8] sm:$0xff]
    %v5592 = vld [vmem:[#allocation13 + $0x7b0] sm:$0xff]
    %v5593 = vld [vmem:[#allocation13 + $0x7b8] sm:$0xff]
    %v5594 = vld [vmem:[#allocation13 + $0x7c0] sm:$0xff]
    %v5595 = vld [vmem:[#allocation13 + $0x7c8] sm:$0xff]
    %v5596 = vld [vmem:[#allocation13 + $0x7d0] sm:$0xff]
    %v5597 = vld [vmem:[#allocation13 + $0x7d8] sm:$0xff]
    %v5598 = vld [vmem:[#allocation13 + $0x7e0] sm:$0xff]
    %v5599 = vld [vmem:[#allocation13 + $0x7e8] sm:$0xff]
    %v5600 = vld [vmem:[#allocation13 + $0x7f0] sm:$0xff]
    %v5601 = vld [vmem:[#allocation13 + $0x7f8] sm:$0xff]
    %v5602 = vld [vmem:[#allocation13 + $0x800] sm:$0xff]
    %v5603 = vld [vmem:[#allocation13 + $0x808] sm:$0xff]
    %v5604 = vld [vmem:[#allocation13 + $0x810] sm:$0xff]
    %v5605 = vld [vmem:[#allocation13 + $0x818] sm:$0xff]
    %v5606 = vld [vmem:[#allocation13 + $0x820] sm:$0xff]
    %v5607 = vld [vmem:[#allocation13 + $0x828] sm:$0xff]
    %v5608 = vld [vmem:[#allocation13 + $0x830] sm:$0xff]
    %v5609 = vld [vmem:[#allocation13 + $0x838] sm:$0xff]
    %v5610 = vld [vmem:[#allocation13 + $0x840] sm:$0xff]
    %v5611 = vld [vmem:[#allocation13 + $0x848] sm:$0xff]
    %v5612 = vld [vmem:[#allocation13 + $0x850] sm:$0xff]
    %v5613 = vld [vmem:[#allocation13 + $0x858] sm:$0xff]
    %v5614 = vld [vmem:[#allocation13 + $0x860] sm:$0xff]
    %v5615 = vld [vmem:[#allocation13 + $0x868] sm:$0xff]
    %v5616 = vld [vmem:[#allocation13 + $0x870] sm:$0xff]
    %v5617 = vld [vmem:[#allocation13 + $0x878] sm:$0xff]
    %v5618 = vld [vmem:[#allocation13 + $0x880] sm:$0xff]
    %v5619 = vld [vmem:[#allocation13 + $0x888] sm:$0xff]
    %v5620 = vld [vmem:[#allocation13 + $0x890] sm:$0xff]
    %v5621 = vld [vmem:[#allocation13 + $0x898] sm:$0xff]
    %v5622 = vld [vmem:[#allocation13 + $0x8a0] sm:$0xff]
    %v5623 = vld [vmem:[#allocation13 + $0x8a8] sm:$0xff]
    %v5624 = vld [vmem:[#allocation13 + $0x8b0] sm:$0xff]
    %v5625 = vld [vmem:[#allocation13 + $0x8b8] sm:$0xff]
    %v5626 = vld [vmem:[#allocation13 + $0x8c0] sm:$0xff]
    %v5627 = vld [vmem:[#allocation13 + $0x8c8] sm:$0xff]
    %v5628 = vld [vmem:[#allocation13 + $0x8d0] sm:$0xff]
    %v5629 = vld [vmem:[#allocation13 + $0x8d8] sm:$0xff]
    %v5630 = vld [vmem:[#allocation13 + $0x8e0] sm:$0xff]
    %v5631 = vld [vmem:[#allocation13 + $0x8e8] sm:$0xff]
    %v5632 = vld [vmem:[#allocation13 + $0x8f0] sm:$0xff]
    %v5633 = vld [vmem:[#allocation13 + $0x8f8] sm:$0xff]
    %v5634 = vld [vmem:[#allocation13 + $0x900] sm:$0xff]
    %v5635 = vld [vmem:[#allocation13 + $0x908] sm:$0xff]
    %v5636 = vld [vmem:[#allocation13 + $0x910] sm:$0xff]
    %v5637 = vld [vmem:[#allocation13 + $0x918] sm:$0xff]
    %v5638 = vld [vmem:[#allocation13 + $0x920] sm:$0xff]
    %v5639 = vld [vmem:[#allocation13 + $0x928] sm:$0xff]
    %v5640 = vld [vmem:[#allocation13 + $0x930] sm:$0xff]
    %v5641 = vld [vmem:[#allocation13 + $0x938] sm:$0xff]
    %v5642 = vld [vmem:[#allocation13 + $0x940] sm:$0xff]
    %v5643 = vld [vmem:[#allocation13 + $0x948] sm:$0xff]
    %v5644 = vld [vmem:[#allocation13 + $0x950] sm:$0xff]
    %v5645 = vld [vmem:[#allocation13 + $0x958] sm:$0xff]
    %v5646 = vld [vmem:[#allocation13 + $0x960] sm:$0xff]
    %v5647 = vld [vmem:[#allocation13 + $0x968] sm:$0xff]
    %v5648 = vld [vmem:[#allocation13 + $0x970] sm:$0xff]
    %v5649 = vld [vmem:[#allocation13 + $0x978] sm:$0xff]
    %v5650 = vld [vmem:[#allocation13 + $0x980] sm:$0xff]
    %v5651 = vld [vmem:[#allocation13 + $0x988] sm:$0xff]
    %v5652 = vld [vmem:[#allocation13 + $0x990] sm:$0xff]
    %v5653 = vld [vmem:[#allocation13 + $0x998] sm:$0xff]
    %v5654 = vld [vmem:[#allocation13 + $0x9a0] sm:$0xff]
    %v5655 = vld [vmem:[#allocation13 + $0x9a8] sm:$0xff]
    %v5656 = vld [vmem:[#allocation13 + $0x9b0] sm:$0xff]
    %v5657 = vld [vmem:[#allocation13 + $0x9b8] sm:$0xff]
    %v5658 = vld [vmem:[#allocation13 + $0x9c0] sm:$0xff]
    %v5659 = vld [vmem:[#allocation13 + $0x9c8] sm:$0xff]
    %v5660 = vld [vmem:[#allocation13 + $0x9d0] sm:$0xff]
    %v5661 = vld [vmem:[#allocation13 + $0x9d8] sm:$0xff]
    %v5662 = vld [vmem:[#allocation13 + $0x9e0] sm:$0xff]
    %v5663 = vld [vmem:[#allocation13 + $0x9e8] sm:$0xff]
    %v5664 = vld [vmem:[#allocation13 + $0x9f0] sm:$0xff]
    %v5665 = vld [vmem:[#allocation13 + $0x9f8] sm:$0xff]
    %v5666 = vld [vmem:[#allocation13 + $0xa00] sm:$0xff]
    %v5667 = vld [vmem:[#allocation13 + $0xa08] sm:$0xff]
    %v5668 = vld [vmem:[#allocation13 + $0xa10] sm:$0xff]
    %v5669 = vld [vmem:[#allocation13 + $0xa18] sm:$0xff]
    %v5670 = vld [vmem:[#allocation13 + $0xa20] sm:$0xff]
    %v5671 = vld [vmem:[#allocation13 + $0xa28] sm:$0xff]
    %v5672 = vld [vmem:[#allocation13 + $0xa30] sm:$0xff]
    %v5673 = vld [vmem:[#allocation13 + $0xa38] sm:$0xff]
    %v5674 = vld [vmem:[#allocation13 + $0xa40] sm:$0xff]
    %v5675 = vld [vmem:[#allocation13 + $0xa48] sm:$0xff]
    %v5676 = vld [vmem:[#allocation13 + $0xa50] sm:$0xff]
    %v5677 = vld [vmem:[#allocation13 + $0xa58] sm:$0xff]
    %v5678 = vld [vmem:[#allocation13 + $0xa60] sm:$0xff]
    %v5679 = vld [vmem:[#allocation13 + $0xa68] sm:$0xff]
    %v5680 = vld [vmem:[#allocation13 + $0xa70] sm:$0xff]
    %v5681 = vld [vmem:[#allocation13 + $0xa78] sm:$0xff]
    %v5682 = vld [vmem:[#allocation13 + $0xa80] sm:$0xff]
    %v5683 = vld [vmem:[#allocation13 + $0xa88] sm:$0xff]
    %v5684 = vld [vmem:[#allocation13 + $0xa90] sm:$0xff]
    %v5685 = vld [vmem:[#allocation13 + $0xa98] sm:$0xff]
    %v5686 = vld [vmem:[#allocation13 + $0xaa0] sm:$0xff]
    %v5687 = vld [vmem:[#allocation13 + $0xaa8] sm:$0xff]
    %v5688 = vld [vmem:[#allocation13 + $0xab0] sm:$0xff]
    %v5689 = vld [vmem:[#allocation13 + $0xab8] sm:$0xff]
    %v5690 = vld [vmem:[#allocation13 + $0xac0] sm:$0xff]
    %v5691 = vld [vmem:[#allocation13 + $0xac8] sm:$0xff]
    %v5692 = vld [vmem:[#allocation13 + $0xad0] sm:$0xff]
    %v5693 = vld [vmem:[#allocation13 + $0xad8] sm:$0xff]
    %v5694 = vld [vmem:[#allocation13 + $0xae0] sm:$0xff]
    %v5695 = vld [vmem:[#allocation13 + $0xae8] sm:$0xff]
    %v5696 = vld [vmem:[#allocation13 + $0xaf0] sm:$0xff]
    %v5697 = vld [vmem:[#allocation13 + $0xaf8] sm:$0xff]
    %v5698 = vld [vmem:[#allocation13 + $0xb00] sm:$0xff]
    %v5699 = vld [vmem:[#allocation13 + $0xb08] sm:$0xff]
    %v5700 = vld [vmem:[#allocation13 + $0xb10] sm:$0xff]
    %v5701 = vld [vmem:[#allocation13 + $0xb18] sm:$0xff]
    %v5702 = vld [vmem:[#allocation13 + $0xb20] sm:$0xff]
    %v5703 = vld [vmem:[#allocation13 + $0xb28] sm:$0xff]
    %v5704 = vld [vmem:[#allocation13 + $0xb30] sm:$0xff]
    %v5705 = vld [vmem:[#allocation13 + $0xb38] sm:$0xff]
    %v5706 = vld [vmem:[#allocation13 + $0xb40] sm:$0xff]
    %v5707 = vld [vmem:[#allocation13 + $0xb48] sm:$0xff]
    %v5708 = vld [vmem:[#allocation13 + $0xb50] sm:$0xff]
    %v5709 = vld [vmem:[#allocation13 + $0xb58] sm:$0xff]
    %v5710 = vld [vmem:[#allocation13 + $0xb60] sm:$0xff]
    %v5711 = vld [vmem:[#allocation13 + $0xb68] sm:$0xff]
    %v5712 = vld [vmem:[#allocation13 + $0xb70] sm:$0xff]
    %v5713 = vld [vmem:[#allocation13 + $0xb78] sm:$0xff]
    %v5714 = vld [vmem:[#allocation13 + $0xb80] sm:$0xff]
    %v5715 = vld [vmem:[#allocation13 + $0xb88] sm:$0xff]
    %v5716 = vld [vmem:[#allocation13 + $0xb90] sm:$0xff]
    %v5717 = vld [vmem:[#allocation13 + $0xb98] sm:$0xff]
    %v5718 = vld [vmem:[#allocation13 + $0xba0] sm:$0xff]
    %v5719 = vld [vmem:[#allocation13 + $0xba8] sm:$0xff]
    %v5720 = vld [vmem:[#allocation13 + $0xbb0] sm:$0xff]
    %v5721 = vld [vmem:[#allocation13 + $0xbb8] sm:$0xff]
    %v5722 = vld [vmem:[#allocation13 + $0xbc0] sm:$0xff]
    %v5723 = vld [vmem:[#allocation13 + $0xbc8] sm:$0xff]
    %v5724 = vld [vmem:[#allocation13 + $0xbd0] sm:$0xff]
    %v5725 = vld [vmem:[#allocation13 + $0xbd8] sm:$0xff]
    %v5726 = vld [vmem:[#allocation13 + $0xbe0] sm:$0xff]
    %v5727 = vld [vmem:[#allocation13 + $0xbe8] sm:$0xff]
    %v5728 = vld [vmem:[#allocation13 + $0xbf0] sm:$0xff]
    %v5729 = vld [vmem:[#allocation13 + $0xbf8] sm:$0xff]
    %v5730 = vld [vmem:[#allocation13 + $0xc00] sm:$0xff]
    %v5731 = vld [vmem:[#allocation13 + $0xc08] sm:$0xff]
    %v5732 = vld [vmem:[#allocation13 + $0xc10] sm:$0xff]
    %v5733 = vld [vmem:[#allocation13 + $0xc18] sm:$0xff]
    %v5734 = vld [vmem:[#allocation13 + $0xc20] sm:$0xff]
    %v5735 = vld [vmem:[#allocation13 + $0xc28] sm:$0xff]
    %v5736 = vld [vmem:[#allocation13 + $0xc30] sm:$0xff]
    %v5737 = vld [vmem:[#allocation13 + $0xc38] sm:$0xff]
    %v5738 = vld [vmem:[#allocation13 + $0xc40] sm:$0xff]
    %v5739 = vld [vmem:[#allocation13 + $0xc48] sm:$0xff]
    %v5740 = vld [vmem:[#allocation13 + $0xc50] sm:$0xff]
    %v5741 = vld [vmem:[#allocation13 + $0xc58] sm:$0xff]
    %v5742 = vld [vmem:[#allocation13 + $0xc60] sm:$0xff]
    %v5743 = vld [vmem:[#allocation13 + $0xc68] sm:$0xff]
    %v5744 = vld [vmem:[#allocation13 + $0xc70] sm:$0xff]
    %v5745 = vld [vmem:[#allocation13 + $0xc78] sm:$0xff]
    %v5746 = vld [vmem:[#allocation13 + $0xc80] sm:$0xff]
    %v5747 = vld [vmem:[#allocation13 + $0xc88] sm:$0xff]
    %v5748 = vld [vmem:[#allocation13 + $0xc90] sm:$0xff]
    %v5749 = vld [vmem:[#allocation13 + $0xc98] sm:$0xff]
    %v5750 = vld [vmem:[#allocation13 + $0xca0] sm:$0xff]
    %v5751 = vld [vmem:[#allocation13 + $0xca8] sm:$0xff]
    %v5752 = vld [vmem:[#allocation13 + $0xcb0] sm:$0xff]
    %v5753 = vld [vmem:[#allocation13 + $0xcb8] sm:$0xff]
    %v5754 = vld [vmem:[#allocation13 + $0xcc0] sm:$0xff]
    %v5755 = vld [vmem:[#allocation13 + $0xcc8] sm:$0xff]
    %v5756 = vld [vmem:[#allocation13 + $0xcd0] sm:$0xff]
    %v5757 = vld [vmem:[#allocation13 + $0xcd8] sm:$0xff]
    %v5758 = vld [vmem:[#allocation13 + $0xce0] sm:$0xff]
    %v5759 = vld [vmem:[#allocation13 + $0xce8] sm:$0xff]
    %v5760 = vld [vmem:[#allocation13 + $0xcf0] sm:$0xff]
    %v5761 = vld [vmem:[#allocation13 + $0xcf8] sm:$0xff]
    %v5762 = vld [vmem:[#allocation13 + $0xd00] sm:$0xff]
    %v5763 = vld [vmem:[#allocation13 + $0xd08] sm:$0xff]
    %v5764 = vld [vmem:[#allocation13 + $0xd10] sm:$0xff]
    %v5765 = vld [vmem:[#allocation13 + $0xd18] sm:$0xff]
    %v5766 = vld [vmem:[#allocation13 + $0xd20] sm:$0xff]
    %v5767 = vld [vmem:[#allocation13 + $0xd28] sm:$0xff]
    %v5768 = vld [vmem:[#allocation13 + $0xd30] sm:$0xff]
    %v5769 = vld [vmem:[#allocation13 + $0xd38] sm:$0xff]
    %v5770 = vld [vmem:[#allocation13 + $0xd40] sm:$0xff]
    %v5771 = vld [vmem:[#allocation13 + $0xd48] sm:$0xff]
    %v5772 = vld [vmem:[#allocation13 + $0xd50] sm:$0xff]
    %v5773 = vld [vmem:[#allocation13 + $0xd58] sm:$0xff]
    %v5774 = vld [vmem:[#allocation13 + $0xd60] sm:$0xff]
    %v5775 = vld [vmem:[#allocation13 + $0xd68] sm:$0xff]
    %v5776 = vld [vmem:[#allocation13 + $0xd70] sm:$0xff]
    %v5777 = vld [vmem:[#allocation13 + $0xd78] sm:$0xff]
    %v5778 = vld [vmem:[#allocation13 + $0xd80] sm:$0xff]
    %v5779 = vld [vmem:[#allocation13 + $0xd88] sm:$0xff]
    %v5780 = vld [vmem:[#allocation13 + $0xd90] sm:$0xff]
    %v5781 = vld [vmem:[#allocation13 + $0xd98] sm:$0xff]
    %v5782 = vld [vmem:[#allocation13 + $0xda0] sm:$0xff]
    %v5783 = vld [vmem:[#allocation13 + $0xda8] sm:$0xff]
    %v5784 = vld [vmem:[#allocation13 + $0xdb0] sm:$0xff]
    %v5785 = vld [vmem:[#allocation13 + $0xdb8] sm:$0xff]
    %v5786 = vld [vmem:[#allocation13 + $0xdc0] sm:$0xff]
    %v5787 = vld [vmem:[#allocation13 + $0xdc8] sm:$0xff]
    %v5788 = vld [vmem:[#allocation13 + $0xdd0] sm:$0xff]
    %v5789 = vld [vmem:[#allocation13 + $0xdd8] sm:$0xff]
    %v5790 = vld [vmem:[#allocation13 + $0xde0] sm:$0xff]
    %v5791 = vld [vmem:[#allocation13 + $0xde8] sm:$0xff]
    %v5792 = vld [vmem:[#allocation13 + $0xdf0] sm:$0xff]
    %v5793 = vld [vmem:[#allocation13 + $0xdf8] sm:$0xff]
    %v5794 = vld [vmem:[#allocation13 + $0xe00] sm:$0xff]
    %v5795 = vld [vmem:[#allocation13 + $0xe08] sm:$0xff]
    %v5796 = vld [vmem:[#allocation13 + $0xe10] sm:$0xff]
    %v5797 = vld [vmem:[#allocation13 + $0xe18] sm:$0xff]
    %v5798 = vld [vmem:[#allocation13 + $0xe20] sm:$0xff]
    %v5799 = vld [vmem:[#allocation13 + $0xe28] sm:$0xff]
    %v5800 = vld [vmem:[#allocation13 + $0xe30] sm:$0xff]
    %v5801 = vld [vmem:[#allocation13 + $0xe38] sm:$0xff]
    %v5802 = vld [vmem:[#allocation13 + $0xe40] sm:$0xff]
    %v5803 = vld [vmem:[#allocation13 + $0xe48] sm:$0xff]
    %v5804 = vld [vmem:[#allocation13 + $0xe50] sm:$0xff]
    %v5805 = vld [vmem:[#allocation13 + $0xe58] sm:$0xff]
    %v5806 = vld [vmem:[#allocation13 + $0xe60] sm:$0xff]
    %v5807 = vld [vmem:[#allocation13 + $0xe68] sm:$0xff]
    %v5808 = vld [vmem:[#allocation13 + $0xe70] sm:$0xff]
    %v5809 = vld [vmem:[#allocation13 + $0xe78] sm:$0xff]
    %v5810 = vld [vmem:[#allocation13 + $0xe80] sm:$0xff]
    %v5811 = vld [vmem:[#allocation13 + $0xe88] sm:$0xff]
    %v5812 = vld [vmem:[#allocation13 + $0xe90] sm:$0xff]
    %v5813 = vld [vmem:[#allocation13 + $0xe98] sm:$0xff]
    %v5814 = vld [vmem:[#allocation13 + $0xea0] sm:$0xff]
    %v5815 = vld [vmem:[#allocation13 + $0xea8] sm:$0xff]
    %v5816 = vld [vmem:[#allocation13 + $0xeb0] sm:$0xff]
    %v5817 = vld [vmem:[#allocation13 + $0xeb8] sm:$0xff]
    %v5818 = vld [vmem:[#allocation13 + $0xec0] sm:$0xff]
    %v5819 = vld [vmem:[#allocation13 + $0xec8] sm:$0xff]
    %v5820 = vld [vmem:[#allocation13 + $0xed0] sm:$0xff]
    %v5821 = vld [vmem:[#allocation13 + $0xed8] sm:$0xff]
    %v5822 = vld [vmem:[#allocation13 + $0xee0] sm:$0xff]
    %v5823 = vld [vmem:[#allocation13 + $0xee8] sm:$0xff]
    %v5824 = vld [vmem:[#allocation13 + $0xef0] sm:$0xff]
    %v5825 = vld [vmem:[#allocation13 + $0xef8] sm:$0xff]
    %v5826 = vld [vmem:[#allocation13 + $0xf00] sm:$0xff]
    %v5827 = vld [vmem:[#allocation13 + $0xf08] sm:$0xff]
    %v5828 = vld [vmem:[#allocation13 + $0xf10] sm:$0xff]
    %v5829 = vld [vmem:[#allocation13 + $0xf18] sm:$0xff]
    %v5830 = vld [vmem:[#allocation13 + $0xf20] sm:$0xff]
    %v5831 = vld [vmem:[#allocation13 + $0xf28] sm:$0xff]
    %v5832 = vld [vmem:[#allocation13 + $0xf30] sm:$0xff]
    %v5833 = vld [vmem:[#allocation13 + $0xf38] sm:$0xff]
    %v5834 = vld [vmem:[#allocation13 + $0xf40] sm:$0xff]
    %v5835 = vld [vmem:[#allocation13 + $0xf48] sm:$0xff]
    %v5836 = vld [vmem:[#allocation13 + $0xf50] sm:$0xff]
    %v5837 = vld [vmem:[#allocation13 + $0xf58] sm:$0xff]
    %v5838 = vld [vmem:[#allocation13 + $0xf60] sm:$0xff]
    %v5839 = vld [vmem:[#allocation13 + $0xf68] sm:$0xff]
    %v5840 = vld [vmem:[#allocation13 + $0xf70] sm:$0xff]
    %v5841 = vld [vmem:[#allocation13 + $0xf78] sm:$0xff]
    %v5842 = vld [vmem:[#allocation13 + $0xf80] sm:$0xff]
    %v5843 = vld [vmem:[#allocation13 + $0xf88] sm:$0xff]
    %v5844 = vld [vmem:[#allocation13 + $0xf90] sm:$0xff]
    %v5845 = vld [vmem:[#allocation13 + $0xf98] sm:$0xff]
    %v5846 = vld [vmem:[#allocation13 + $0xfa0] sm:$0xff]
    %v5847 = vld [vmem:[#allocation13 + $0xfa8] sm:$0xff]
    %v5848 = vld [vmem:[#allocation13 + $0xfb0] sm:$0xff]
    %v5849 = vld [vmem:[#allocation13 + $0xfb8] sm:$0xff]
    %v5850 = vld [vmem:[#allocation13 + $0xfc0] sm:$0xff]
    %v5851 = vld [vmem:[#allocation13 + $0xfc8] sm:$0xff]
    %v5852 = vld [vmem:[#allocation13 + $0xfd0] sm:$0xff]
    %v5853 = vld [vmem:[#allocation13 + $0xfd8] sm:$0xff]
    %v5854 = vld [vmem:[#allocation13 + $0xfe0] sm:$0xff]
    %v5855 = vld [vmem:[#allocation13 + $0xfe8] sm:$0xff]
    %v5856 = vld [vmem:[#allocation13 + $0xff0] sm:$0xff]
    %v5857 = vld [vmem:[#allocation13 + $0xff8] sm:$0xff]
    %v5858 = vld [vmem:[#allocation13 + $0x1000] sm:$0xff]
    %v5859 = vld [vmem:[#allocation13 + $0x1008] sm:$0xff]
    %v5860 = vld [vmem:[#allocation13 + $0x1010] sm:$0xff]
    %v5861 = vld [vmem:[#allocation13 + $0x1018] sm:$0xff]
    %v5862 = vld [vmem:[#allocation13 + $0x1020] sm:$0xff]
    %v5863 = vld [vmem:[#allocation13 + $0x1028] sm:$0xff]
    %v5864 = vld [vmem:[#allocation13 + $0x1030] sm:$0xff]
    %v5865 = vld [vmem:[#allocation13 + $0x1038] sm:$0xff]
    %v5866 = vld [vmem:[#allocation13 + $0x1040] sm:$0xff]
    %v5867 = vld [vmem:[#allocation13 + $0x1048] sm:$0xff]
    %v5868 = vld [vmem:[#allocation13 + $0x1050] sm:$0xff]
    %v5869 = vld [vmem:[#allocation13 + $0x1058] sm:$0xff]
    %v5870 = vld [vmem:[#allocation13 + $0x1060] sm:$0xff]
    %v5871 = vld [vmem:[#allocation13 + $0x1068] sm:$0xff]
    %v5872 = vld [vmem:[#allocation13 + $0x1070] sm:$0xff]
    %v5873 = vld [vmem:[#allocation13 + $0x1078] sm:$0xff]
    %v5874 = vld [vmem:[#allocation13 + $0x1080] sm:$0xff]
    %v5875 = vld [vmem:[#allocation13 + $0x1088] sm:$0xff]
    %v5876 = vld [vmem:[#allocation13 + $0x1090] sm:$0xff]
    %v5877 = vld [vmem:[#allocation13 + $0x1098] sm:$0xff]
    %v5878 = vld [vmem:[#allocation13 + $0x10a0] sm:$0xff]
    %v5879 = vld [vmem:[#allocation13 + $0x10a8] sm:$0xff]
    %v5880 = vld [vmem:[#allocation13 + $0x10b0] sm:$0xff]
    %v5881 = vld [vmem:[#allocation13 + $0x10b8] sm:$0xff]
    %v5882 = vld [vmem:[#allocation13 + $0x10c0] sm:$0xff]
    %v5883 = vld [vmem:[#allocation13 + $0x10c8] sm:$0xff]
    %v5884 = vld [vmem:[#allocation13 + $0x10d0] sm:$0xff]
    %v5885 = vld [vmem:[#allocation13 + $0x10d8] sm:$0xff]
    %v5886 = vld [vmem:[#allocation13 + $0x10e0] sm:$0xff]
    %v5887 = vld [vmem:[#allocation13 + $0x10e8] sm:$0xff]
    %v5888 = vld [vmem:[#allocation13 + $0x10f0] sm:$0xff]
    %v5889 = vld [vmem:[#allocation13 + $0x10f8] sm:$0xff]
    %v5890 = vld [vmem:[#allocation13 + $0x1100] sm:$0xff]
    %v5891 = vld [vmem:[#allocation13 + $0x1108] sm:$0xff]
    %v5892 = vld [vmem:[#allocation13 + $0x1110] sm:$0xff]
    %v5893 = vld [vmem:[#allocation13 + $0x1118] sm:$0xff]
    %v5894 = vld [vmem:[#allocation13 + $0x1120] sm:$0xff]
    %v5895 = vld [vmem:[#allocation13 + $0x1128] sm:$0xff]
    %v5896 = vld [vmem:[#allocation13 + $0x1130] sm:$0xff]
    %v5897 = vld [vmem:[#allocation13 + $0x1138] sm:$0xff]
    %v5898 = vld [vmem:[#allocation13 + $0x1140] sm:$0xff]
    %v5899 = vld [vmem:[#allocation13 + $0x1148] sm:$0xff]
    %v5900 = vld [vmem:[#allocation13 + $0x1150] sm:$0xff]
    %v5901 = vld [vmem:[#allocation13 + $0x1158] sm:$0xff]
    %v5902 = vld [vmem:[#allocation13 + $0x1160] sm:$0xff]
    %v5903 = vld [vmem:[#allocation13 + $0x1168] sm:$0xff]
    %v5904 = vld [vmem:[#allocation13 + $0x1170] sm:$0xff]
    %v5905 = vld [vmem:[#allocation13 + $0x1178] sm:$0xff]
    %v5906 = vld [vmem:[#allocation13 + $0x1180] sm:$0xff]
    %v5907 = vld [vmem:[#allocation13 + $0x1188] sm:$0xff]
    %v5908 = vld [vmem:[#allocation13 + $0x1190] sm:$0xff]
    %v5909 = vld [vmem:[#allocation13 + $0x1198] sm:$0xff]
    %v5910 = vld [vmem:[#allocation13 + $0x11a0] sm:$0xff]
    %v5911 = vld [vmem:[#allocation13 + $0x11a8] sm:$0xff]
    %v5912 = vld [vmem:[#allocation13 + $0x11b0] sm:$0xff]
    %v5913 = vld [vmem:[#allocation13 + $0x11b8] sm:$0xff]
    %v5914 = vld [vmem:[#allocation13 + $0x11c0] sm:$0xff]
    %v5915 = vld [vmem:[#allocation13 + $0x11c8] sm:$0xff]
    %v5916 = vld [vmem:[#allocation13 + $0x11d0] sm:$0xff]
    %v5917 = vld [vmem:[#allocation13 + $0x11d8] sm:$0xff]
    %v5918 = vld [vmem:[#allocation13 + $0x11e0] sm:$0xff]
    %v5919 = vld [vmem:[#allocation13 + $0x11e8] sm:$0xff]
    %v5920 = vld [vmem:[#allocation13 + $0x11f0] sm:$0xff]
    %v5921 = vld [vmem:[#allocation13 + $0x11f8] sm:$0xff]
    %v5922 = vld [vmem:[#allocation13 + $0x1200] sm:$0xff]
    %v5923 = vld [vmem:[#allocation13 + $0x1208] sm:$0xff]
    %v5924 = vld [vmem:[#allocation13 + $0x1210] sm:$0xff]
    %v5925 = vld [vmem:[#allocation13 + $0x1218] sm:$0xff]
    %v5926 = vld [vmem:[#allocation13 + $0x1220] sm:$0xff]
    %v5927 = vld [vmem:[#allocation13 + $0x1228] sm:$0xff]
    %v5928 = vld [vmem:[#allocation13 + $0x1230] sm:$0xff]
    %v5929 = vld [vmem:[#allocation13 + $0x1238] sm:$0xff]
    %v5930 = vld [vmem:[#allocation13 + $0x1240] sm:$0xff]
    %v5931 = vld [vmem:[#allocation13 + $0x1248] sm:$0xff]
    %v5932 = vld [vmem:[#allocation13 + $0x1250] sm:$0xff]
    %v5933 = vld [vmem:[#allocation13 + $0x1258] sm:$0xff]
    %v5934 = vld [vmem:[#allocation13 + $0x1260] sm:$0xff]
    %v5935 = vld [vmem:[#allocation13 + $0x1268] sm:$0xff]
    %v5936 = vld [vmem:[#allocation13 + $0x1270] sm:$0xff]
    %v5937 = vld [vmem:[#allocation13 + $0x1278] sm:$0xff]
    %v5938 = vld [vmem:[#allocation13 + $0x1280] sm:$0xff]
    %v5939 = vld [vmem:[#allocation13 + $0x1288] sm:$0xff]
    %v5940 = vld [vmem:[#allocation13 + $0x1290] sm:$0xff]
    %v5941 = vld [vmem:[#allocation13 + $0x1298] sm:$0xff]
    %v5942 = vld [vmem:[#allocation13 + $0x12a0] sm:$0xff]
    %v5943 = vld [vmem:[#allocation13 + $0x12a8] sm:$0xff]
    %v5944 = vld [vmem:[#allocation13 + $0x12b0] sm:$0xff]
    %v5945 = vld [vmem:[#allocation13 + $0x12b8] sm:$0xff]
    %v5946 = vld [vmem:[#allocation13 + $0x12c0] sm:$0xff]
    %v5947 = vld [vmem:[#allocation13 + $0x12c8] sm:$0xff]
    %v5948 = vld [vmem:[#allocation13 + $0x12d0] sm:$0xff]
    %v5949 = vld [vmem:[#allocation13 + $0x12d8] sm:$0xff]
    %v5950 = vld [vmem:[#allocation13 + $0x12e0] sm:$0xff]
    %v5951 = vld [vmem:[#allocation13 + $0x12e8] sm:$0xff]
    %v5952 = vld [vmem:[#allocation13 + $0x12f0] sm:$0xff]
    %v5953 = vld [vmem:[#allocation13 + $0x12f8] sm:$0xff]
    %v5954 = vld [vmem:[#allocation13 + $0x1300] sm:$0xff]
    %v5955 = vld [vmem:[#allocation13 + $0x1308] sm:$0xff]
    %v5956 = vld [vmem:[#allocation13 + $0x1310] sm:$0xff]
    %v5957 = vld [vmem:[#allocation13 + $0x1318] sm:$0xff]
    %v5958 = vld [vmem:[#allocation13 + $0x1320] sm:$0xff]
    %v5959 = vld [vmem:[#allocation13 + $0x1328] sm:$0xff]
    %v5960 = vld [vmem:[#allocation13 + $0x1330] sm:$0xff]
    %v5961 = vld [vmem:[#allocation13 + $0x1338] sm:$0xff]
    %v5962 = vld [vmem:[#allocation13 + $0x1340] sm:$0xff]
    %v5963 = vld [vmem:[#allocation13 + $0x1348] sm:$0xff]
    %v5964 = vld [vmem:[#allocation13 + $0x1350] sm:$0xff]
    %v5965 = vld [vmem:[#allocation13 + $0x1358] sm:$0xff]
    %v5966 = vld [vmem:[#allocation13 + $0x1360] sm:$0xff]
    %v5967 = vld [vmem:[#allocation13 + $0x1368] sm:$0xff]
    %v5968 = vld [vmem:[#allocation13 + $0x1370] sm:$0xff]
    %v5969 = vld [vmem:[#allocation13 + $0x1378] sm:$0xff]
    %v5970 = vld [vmem:[#allocation13 + $0x1380] sm:$0xff]
    %v5971 = vld [vmem:[#allocation13 + $0x1388] sm:$0xff]
    %v5972 = vld [vmem:[#allocation13 + $0x1390] sm:$0xff]
    %v5973 = vld [vmem:[#allocation13 + $0x1398] sm:$0xff]
    %v5974 = vld [vmem:[#allocation13 + $0x13a0] sm:$0xff]
    %v5975 = vld [vmem:[#allocation13 + $0x13a8] sm:$0xff]
    %v5976 = vld [vmem:[#allocation13 + $0x13b0] sm:$0xff]
    %v5977 = vld [vmem:[#allocation13 + $0x13b8] sm:$0xff]
    %v5978 = vld [vmem:[#allocation13 + $0x13c0] sm:$0xff]
    %v5979 = vld [vmem:[#allocation13 + $0x13c8] sm:$0xff]
    %v5980 = vld [vmem:[#allocation13 + $0x13d0] sm:$0xff]
    %v5981 = vld [vmem:[#allocation13 + $0x13d8] sm:$0xff]
    %v5982 = vld [vmem:[#allocation13 + $0x13e0] sm:$0xff]
    %v5983 = vld [vmem:[#allocation13 + $0x13e8] sm:$0xff]
    %v5984 = vld [vmem:[#allocation13 + $0x13f0] sm:$0xff]
    %v5985 = vld [vmem:[#allocation13 + $0x13f8] sm:$0xff]
    %v5986 = vld [vmem:[#allocation13 + $0x1400] sm:$0xff]
    %v5987 = vld [vmem:[#allocation13 + $0x1408] sm:$0xff]
    %v5988 = vld [vmem:[#allocation13 + $0x1410] sm:$0xff]
    %v5989 = vld [vmem:[#allocation13 + $0x1418] sm:$0xff]
    %v5990 = vld [vmem:[#allocation13 + $0x1420] sm:$0xff]
    %v5991 = vld [vmem:[#allocation13 + $0x1428] sm:$0xff]
    %v5992 = vld [vmem:[#allocation13 + $0x1430] sm:$0xff]
    %v5993 = vld [vmem:[#allocation13 + $0x1438] sm:$0xff]
    %v5994 = vld [vmem:[#allocation13 + $0x1440] sm:$0xff]
    %v5995 = vld [vmem:[#allocation13 + $0x1448] sm:$0xff]
    %v5996 = vld [vmem:[#allocation13 + $0x1450] sm:$0xff]
    %v5997 = vld [vmem:[#allocation13 + $0x1458] sm:$0xff]
    %v5998 = vld [vmem:[#allocation13 + $0x1460] sm:$0xff]
    %v5999 = vld [vmem:[#allocation13 + $0x1468] sm:$0xff]
    %v6000 = vld [vmem:[#allocation13 + $0x1470] sm:$0xff]
    %v6001 = vld [vmem:[#allocation13 + $0x1478] sm:$0xff]
    %v6002 = vld [vmem:[#allocation13 + $0x1480] sm:$0xff]
    %v6003 = vld [vmem:[#allocation13 + $0x1488] sm:$0xff]
    %v6004 = vld [vmem:[#allocation13 + $0x1490] sm:$0xff]
    %v6005 = vld [vmem:[#allocation13 + $0x1498] sm:$0xff]
    %v6006 = vld [vmem:[#allocation13 + $0x14a0] sm:$0xff]
    %v6007 = vld [vmem:[#allocation13 + $0x14a8] sm:$0xff]
    %v6008 = vld [vmem:[#allocation13 + $0x14b0] sm:$0xff]
    %v6009 = vld [vmem:[#allocation13 + $0x14b8] sm:$0xff]
    %v6010 = vld [vmem:[#allocation13 + $0x14c0] sm:$0xff]
    %v6011 = vld [vmem:[#allocation13 + $0x14c8] sm:$0xff]
    %v6012 = vld [vmem:[#allocation13 + $0x14d0] sm:$0xff]
    %v6013 = vld [vmem:[#allocation13 + $0x14d8] sm:$0xff]
    %v6014 = vld [vmem:[#allocation13 + $0x14e0] sm:$0xff]
    %v6015 = vld [vmem:[#allocation13 + $0x14e8] sm:$0xff]
    %v6016 = vld [vmem:[#allocation13 + $0x14f0] sm:$0xff]
    %v6017 = vld [vmem:[#allocation13 + $0x14f8] sm:$0xff]
    %v6018 = vld [vmem:[#allocation13 + $0x1500] sm:$0xff]
    %v6019 = vld [vmem:[#allocation13 + $0x1508] sm:$0xff]
    %v6020 = vld [vmem:[#allocation13 + $0x1510] sm:$0xff]
    %v6021 = vld [vmem:[#allocation13 + $0x1518] sm:$0xff]
    %v6022 = vld [vmem:[#allocation13 + $0x1520] sm:$0xff]
    %v6023 = vld [vmem:[#allocation13 + $0x1528] sm:$0xff]
    %v6024 = vld [vmem:[#allocation13 + $0x1530] sm:$0xff]
    %v6025 = vld [vmem:[#allocation13 + $0x1538] sm:$0xff]
    %v6026 = vld [vmem:[#allocation13 + $0x1540] sm:$0xff]
    %v6027 = vld [vmem:[#allocation13 + $0x1548] sm:$0xff]
    %v6028 = vld [vmem:[#allocation13 + $0x1550] sm:$0xff]
    %v6029 = vld [vmem:[#allocation13 + $0x1558] sm:$0xff]
    %v6030 = vld [vmem:[#allocation13 + $0x1560] sm:$0xff]
    %v6031 = vld [vmem:[#allocation13 + $0x1568] sm:$0xff]
    %v6032 = vld [vmem:[#allocation13 + $0x1570] sm:$0xff]
    %v6033 = vld [vmem:[#allocation13 + $0x1578] sm:$0xff]
    %v6034 = vld [vmem:[#allocation13 + $0x1580] sm:$0xff]
    %v6035 = vld [vmem:[#allocation13 + $0x1588] sm:$0xff]
    %v6036 = vld [vmem:[#allocation13 + $0x1590] sm:$0xff]
    %v6037 = vld [vmem:[#allocation13 + $0x1598] sm:$0xff]
    %v6038 = vld [vmem:[#allocation13 + $0x15a0] sm:$0xff]
    %v6039 = vld [vmem:[#allocation13 + $0x15a8] sm:$0xff]
    %v6040 = vld [vmem:[#allocation13 + $0x15b0] sm:$0xff]
    %v6041 = vld [vmem:[#allocation13 + $0x15b8] sm:$0xff]
    %v6042 = vld [vmem:[#allocation13 + $0x15c0] sm:$0xff]
    %v6043 = vld [vmem:[#allocation13 + $0x15c8] sm:$0xff]
    %v6044 = vld [vmem:[#allocation13 + $0x15d0] sm:$0xff]
    %v6045 = vld [vmem:[#allocation13 + $0x15d8] sm:$0xff]
    %v6046 = vld [vmem:[#allocation13 + $0x15e0] sm:$0xff]
    %v6047 = vld [vmem:[#allocation13 + $0x15e8] sm:$0xff]
    %v6048 = vld [vmem:[#allocation13 + $0x15f0] sm:$0xff]
    %v6049 = vld [vmem:[#allocation13 + $0x15f8] sm:$0xff]
    %v6050 = vld [vmem:[#allocation13 + $0x1600] sm:$0xff]
    %v6051 = vld [vmem:[#allocation13 + $0x1608] sm:$0xff]
    %v6052 = vld [vmem:[#allocation13 + $0x1610] sm:$0xff]
    %v6053 = vld [vmem:[#allocation13 + $0x1618] sm:$0xff]
    %v6054 = vld [vmem:[#allocation13 + $0x1620] sm:$0xff]
    %v6055 = vld [vmem:[#allocation13 + $0x1628] sm:$0xff]
    %v6056 = vld [vmem:[#allocation13 + $0x1630] sm:$0xff]
    %v6057 = vld [vmem:[#allocation13 + $0x1638] sm:$0xff]
    %v6058 = vld [vmem:[#allocation13 + $0x1640] sm:$0xff]
    %v6059 = vld [vmem:[#allocation13 + $0x1648] sm:$0xff]
    %v6060 = vld [vmem:[#allocation13 + $0x1650] sm:$0xff]
    %v6061 = vld [vmem:[#allocation13 + $0x1658] sm:$0xff]
    %v6062 = vld [vmem:[#allocation13 + $0x1660] sm:$0xff]
    %v6063 = vld [vmem:[#allocation13 + $0x1668] sm:$0xff]
    %v6064 = vld [vmem:[#allocation13 + $0x1670] sm:$0xff]
    %v6065 = vld [vmem:[#allocation13 + $0x1678] sm:$0xff]
    %v6066 = vld [vmem:[#allocation13 + $0x1680] sm:$0xff]
    %v6067 = vld [vmem:[#allocation13 + $0x1688] sm:$0xff]
    %v6068 = vld [vmem:[#allocation13 + $0x1690] sm:$0xff]
    %v6069 = vld [vmem:[#allocation13 + $0x1698] sm:$0xff]
    %v6070 = vld [vmem:[#allocation13 + $0x16a0] sm:$0xff]
    %v6071 = vld [vmem:[#allocation13 + $0x16a8] sm:$0xff]
    %v6072 = vld [vmem:[#allocation13 + $0x16b0] sm:$0xff]
    %v6073 = vld [vmem:[#allocation13 + $0x16b8] sm:$0xff]
    %v6074 = vld [vmem:[#allocation13 + $0x16c0] sm:$0xff]
    %v6075 = vld [vmem:[#allocation13 + $0x16c8] sm:$0xff]
    %v6076 = vld [vmem:[#allocation13 + $0x16d0] sm:$0xff]
    %v6077 = vld [vmem:[#allocation13 + $0x16d8] sm:$0xff]
    %v6078 = vld [vmem:[#allocation13 + $0x16e0] sm:$0xff]
    %v6079 = vld [vmem:[#allocation13 + $0x16e8] sm:$0xff]
    %v6080 = vld [vmem:[#allocation13 + $0x16f0] sm:$0xff]
    %v6081 = vld [vmem:[#allocation13 + $0x16f8] sm:$0xff]
    %v6082 = vld [vmem:[#allocation13 + $0x1700] sm:$0xff]
    %v6083 = vld [vmem:[#allocation13 + $0x1708] sm:$0xff]
    %v6084 = vld [vmem:[#allocation13 + $0x1710] sm:$0xff]
    %v6085 = vld [vmem:[#allocation13 + $0x1718] sm:$0xff]
    %v6086 = vld [vmem:[#allocation13 + $0x1720] sm:$0xff]
    %v6087 = vld [vmem:[#allocation13 + $0x1728] sm:$0xff]
    %v6088 = vld [vmem:[#allocation13 + $0x1730] sm:$0xff]
    %v6089 = vld [vmem:[#allocation13 + $0x1738] sm:$0xff]
    %v6090 = vld [vmem:[#allocation13 + $0x1740] sm:$0xff]
    %v6091 = vld [vmem:[#allocation13 + $0x1748] sm:$0xff]
    %v6092 = vld [vmem:[#allocation13 + $0x1750] sm:$0xff]
    %v6093 = vld [vmem:[#allocation13 + $0x1758] sm:$0xff]
    %v6094 = vld [vmem:[#allocation13 + $0x1760] sm:$0xff]
    %v6095 = vld [vmem:[#allocation13 + $0x1768] sm:$0xff]
    %v6096 = vld [vmem:[#allocation13 + $0x1770] sm:$0xff]
    %v6097 = vld [vmem:[#allocation13 + $0x1778] sm:$0xff]
    %v6098 = vld [vmem:[#allocation13 + $0x1780] sm:$0xff]
    %v6099 = vld [vmem:[#allocation13 + $0x1788] sm:$0xff]
    %v6100 = vld [vmem:[#allocation13 + $0x1790] sm:$0xff]
    %v6101 = vld [vmem:[#allocation13 + $0x1798] sm:$0xff]
    %v6102 = vld [vmem:[#allocation13 + $0x17a0] sm:$0xff]
    %v6103 = vld [vmem:[#allocation13 + $0x17a8] sm:$0xff]
    %v6104 = vld [vmem:[#allocation13 + $0x17b0] sm:$0xff]
    %v6105 = vld [vmem:[#allocation13 + $0x17b8] sm:$0xff]
    %v6106 = vld [vmem:[#allocation13 + $0x17c0] sm:$0xff]
    %v6107 = vld [vmem:[#allocation13 + $0x17c8] sm:$0xff]
    %v6108 = vld [vmem:[#allocation13 + $0x17d0] sm:$0xff]
    %v6109 = vld [vmem:[#allocation13 + $0x17d8] sm:$0xff]
    %v6110 = vld [vmem:[#allocation13 + $0x17e0] sm:$0xff]
    %v6111 = vld [vmem:[#allocation13 + $0x17e8] sm:$0xff]
    %v6112 = vld [vmem:[#allocation13 + $0x17f0] sm:$0xff]
    %v6113 = vld [vmem:[#allocation13 + $0x17f8] sm:$0xff]
    %v6114 = vld [vmem:[#allocation13 + $0x1800] sm:$0xff]
    %v6115 = vld [vmem:[#allocation13 + $0x1808] sm:$0xff]
    %v6116 = vld [vmem:[#allocation13 + $0x1810] sm:$0xff]
    %v6117 = vld [vmem:[#allocation13 + $0x1818] sm:$0xff]
    %v6118 = vld [vmem:[#allocation13 + $0x1820] sm:$0xff]
    %v6119 = vld [vmem:[#allocation13 + $0x1828] sm:$0xff]
    %v6120 = vld [vmem:[#allocation13 + $0x1830] sm:$0xff]
    %v6121 = vld [vmem:[#allocation13 + $0x1838] sm:$0xff]
    %v6122 = vld [vmem:[#allocation13 + $0x1840] sm:$0xff]
    %v6123 = vld [vmem:[#allocation13 + $0x1848] sm:$0xff]
    %v6124 = vld [vmem:[#allocation13 + $0x1850] sm:$0xff]
    %v6125 = vld [vmem:[#allocation13 + $0x1858] sm:$0xff]
    %v6126 = vld [vmem:[#allocation13 + $0x1860] sm:$0xff]
    %v6127 = vld [vmem:[#allocation13 + $0x1868] sm:$0xff]
    %v6128 = vld [vmem:[#allocation13 + $0x1870] sm:$0xff]
    %v6129 = vld [vmem:[#allocation13 + $0x1878] sm:$0xff]
    %v6130 = vld [vmem:[#allocation13 + $0x1880] sm:$0xff]
    %v6131 = vld [vmem:[#allocation13 + $0x1888] sm:$0xff]
    %v6132 = vld [vmem:[#allocation13 + $0x1890] sm:$0xff]
    %v6133 = vld [vmem:[#allocation13 + $0x1898] sm:$0xff]
    %v6134 = vld [vmem:[#allocation13 + $0x18a0] sm:$0xff]
    %v6135 = vld [vmem:[#allocation13 + $0x18a8] sm:$0xff]
    %v6136 = vld [vmem:[#allocation13 + $0x18b0] sm:$0xff]
    %v6137 = vld [vmem:[#allocation13 + $0x18b8] sm:$0xff]
    %v6138 = vld [vmem:[#allocation13 + $0x18c0] sm:$0xff]
    %v6139 = vld [vmem:[#allocation13 + $0x18c8] sm:$0xff]
    %v6140 = vld [vmem:[#allocation13 + $0x18d0] sm:$0xff]
    %v6141 = vld [vmem:[#allocation13 + $0x18d8] sm:$0xff]
    %v6142 = vld [vmem:[#allocation13 + $0x18e0] sm:$0xff]
    %v6143 = vld [vmem:[#allocation13 + $0x18e8] sm:$0xff]
    %v6144 = vld [vmem:[#allocation13 + $0x18f0] sm:$0xff]
    %v6145 = vld [vmem:[#allocation13 + $0x18f8] sm:$0xff]
    %v6146 = vld [vmem:[#allocation13 + $0x1900] sm:$0xff]
    %v6147 = vld [vmem:[#allocation13 + $0x1908] sm:$0xff]
    %v6148 = vld [vmem:[#allocation13 + $0x1910] sm:$0xff]
    %v6149 = vld [vmem:[#allocation13 + $0x1918] sm:$0xff]
    %v6150 = vld [vmem:[#allocation13 + $0x1920] sm:$0xff]
    %v6151 = vld [vmem:[#allocation13 + $0x1928] sm:$0xff]
    %v6152 = vld [vmem:[#allocation13 + $0x1930] sm:$0xff]
    %v6153 = vld [vmem:[#allocation13 + $0x1938] sm:$0xff]
    %v6154 = vld [vmem:[#allocation13 + $0x1940] sm:$0xff]
    %v6155 = vld [vmem:[#allocation13 + $0x1948] sm:$0xff]
    %v6156 = vld [vmem:[#allocation13 + $0x1950] sm:$0xff]
    %v6157 = vld [vmem:[#allocation13 + $0x1958] sm:$0xff]
    %v6158 = vld [vmem:[#allocation13 + $0x1960] sm:$0xff]
    %v6159 = vld [vmem:[#allocation13 + $0x1968] sm:$0xff]
    %v6160 = vld [vmem:[#allocation13 + $0x1970] sm:$0xff]
    %v6161 = vld [vmem:[#allocation13 + $0x1978] sm:$0xff]
    %v6162 = vld [vmem:[#allocation13 + $0x1980] sm:$0xff]
    %v6163 = vld [vmem:[#allocation13 + $0x1988] sm:$0xff]
    %v6164 = vld [vmem:[#allocation13 + $0x1990] sm:$0xff]
    %v6165 = vld [vmem:[#allocation13 + $0x1998] sm:$0xff]
    %v6166 = vld [vmem:[#allocation13 + $0x19a0] sm:$0xff]
    %v6167 = vld [vmem:[#allocation13 + $0x19a8] sm:$0xff]
    %v6168 = vld [vmem:[#allocation13 + $0x19b0] sm:$0xff]
    %v6169 = vld [vmem:[#allocation13 + $0x19b8] sm:$0xff]
    %v6170 = vld [vmem:[#allocation13 + $0x19c0] sm:$0xff]
    %v6171 = vld [vmem:[#allocation13 + $0x19c8] sm:$0xff]
    %v6172 = vld [vmem:[#allocation13 + $0x19d0] sm:$0xff]
    %v6173 = vld [vmem:[#allocation13 + $0x19d8] sm:$0xff]
    %v6174 = vld [vmem:[#allocation13 + $0x19e0] sm:$0xff]
    %v6175 = vld [vmem:[#allocation13 + $0x19e8] sm:$0xff]
    %v6176 = vld [vmem:[#allocation13 + $0x19f0] sm:$0xff]
    %v6177 = vld [vmem:[#allocation13 + $0x19f8] sm:$0xff]
    %v6178 = vld [vmem:[#allocation13 + $0x1a00] sm:$0xff]
    %v6179 = vld [vmem:[#allocation13 + $0x1a08] sm:$0xff]
    %v6180 = vld [vmem:[#allocation13 + $0x1a10] sm:$0xff]
    %v6181 = vld [vmem:[#allocation13 + $0x1a18] sm:$0xff]
    %v6182 = vld [vmem:[#allocation13 + $0x1a20] sm:$0xff]
    %v6183 = vld [vmem:[#allocation13 + $0x1a28] sm:$0xff]
    %v6184 = vld [vmem:[#allocation13 + $0x1a30] sm:$0xff]
    %v6185 = vld [vmem:[#allocation13 + $0x1a38] sm:$0xff]
    %v6186 = vld [vmem:[#allocation13 + $0x1a40] sm:$0xff]
    %v6187 = vld [vmem:[#allocation13 + $0x1a48] sm:$0xff]
    %v6188 = vld [vmem:[#allocation13 + $0x1a50] sm:$0xff]
    %v6189 = vld [vmem:[#allocation13 + $0x1a58] sm:$0xff]
    %v6190 = vld [vmem:[#allocation13 + $0x1a60] sm:$0xff]
    %v6191 = vld [vmem:[#allocation13 + $0x1a68] sm:$0xff]
    %v6192 = vld [vmem:[#allocation13 + $0x1a70] sm:$0xff]
    %v6193 = vld [vmem:[#allocation13 + $0x1a78] sm:$0xff]
    %v6194 = vld [vmem:[#allocation13 + $0x1a80] sm:$0xff]
    %v6195 = vld [vmem:[#allocation13 + $0x1a88] sm:$0xff]
    %v6196 = vld [vmem:[#allocation13 + $0x1a90] sm:$0xff]
    %v6197 = vld [vmem:[#allocation13 + $0x1a98] sm:$0xff]
    %v6198 = vld [vmem:[#allocation13 + $0x1aa0] sm:$0xff]
    %v6199 = vld [vmem:[#allocation13 + $0x1aa8] sm:$0xff]
    %v6200 = vld [vmem:[#allocation13 + $0x1ab0] sm:$0xff]
    %v6201 = vld [vmem:[#allocation13 + $0x1ab8] sm:$0xff]
    %v6202 = vld [vmem:[#allocation13 + $0x1ac0] sm:$0xff]
    %v6203 = vld [vmem:[#allocation13 + $0x1ac8] sm:$0xff]
    %v6204 = vld [vmem:[#allocation13 + $0x1ad0] sm:$0xff]
    %v6205 = vld [vmem:[#allocation13 + $0x1ad8] sm:$0xff]
    %v6206 = vld [vmem:[#allocation13 + $0x1ae0] sm:$0xff]
    %v6207 = vld [vmem:[#allocation13 + $0x1ae8] sm:$0xff]
    %v6208 = vld [vmem:[#allocation13 + $0x1af0] sm:$0xff]
    %v6209 = vld [vmem:[#allocation13 + $0x1af8] sm:$0xff]
    %v6210 = vld [vmem:[#allocation13 + $0x1b00] sm:$0xff]
    %v6211 = vld [vmem:[#allocation13 + $0x1b08] sm:$0xff]
    %v6212 = vld [vmem:[#allocation13 + $0x1b10] sm:$0xff]
    %v6213 = vld [vmem:[#allocation13 + $0x1b18] sm:$0xff]
    %v6214 = vld [vmem:[#allocation13 + $0x1b20] sm:$0xff]
    %v6215 = vld [vmem:[#allocation13 + $0x1b28] sm:$0xff]
    %v6216 = vld [vmem:[#allocation13 + $0x1b30] sm:$0xff]
    %v6217 = vld [vmem:[#allocation13 + $0x1b38] sm:$0xff]
    %v6218 = vld [vmem:[#allocation13 + $0x1b40] sm:$0xff]
    %v6219 = vld [vmem:[#allocation13 + $0x1b48] sm:$0xff]
    %v6220 = vld [vmem:[#allocation13 + $0x1b50] sm:$0xff]
    %v6221 = vld [vmem:[#allocation13 + $0x1b58] sm:$0xff]
    %v6222 = vld [vmem:[#allocation13 + $0x1b60] sm:$0xff]
    %v6223 = vld [vmem:[#allocation13 + $0x1b68] sm:$0xff]
    %v6224 = vld [vmem:[#allocation13 + $0x1b70] sm:$0xff]
    %v6225 = vld [vmem:[#allocation13 + $0x1b78] sm:$0xff]
    %v6226 = vld [vmem:[#allocation13 + $0x1b80] sm:$0xff]
    %v6227 = vld [vmem:[#allocation13 + $0x1b88] sm:$0xff]
    %v6228 = vld [vmem:[#allocation13 + $0x1b90] sm:$0xff]
    %v6229 = vld [vmem:[#allocation13 + $0x1b98] sm:$0xff]
    %v6230 = vld [vmem:[#allocation13 + $0x1ba0] sm:$0xff]
    %v6231 = vld [vmem:[#allocation13 + $0x1ba8] sm:$0xff]
    %v6232 = vld [vmem:[#allocation13 + $0x1bb0] sm:$0xff]
    %v6233 = vld [vmem:[#allocation13 + $0x1bb8] sm:$0xff]
    %v6234 = vld [vmem:[#allocation13 + $0x1bc0] sm:$0xff]
    %v6235 = vld [vmem:[#allocation13 + $0x1bc8] sm:$0xff]
    %v6236 = vld [vmem:[#allocation13 + $0x1bd0] sm:$0xff]
    %v6237 = vld [vmem:[#allocation13 + $0x1bd8] sm:$0xff]
    %v6238 = vld [vmem:[#allocation13 + $0x1be0] sm:$0xff]
    %v6239 = vld [vmem:[#allocation13 + $0x1be8] sm:$0xff]
    %v6240 = vld [vmem:[#allocation13 + $0x1bf0] sm:$0xff]
    %v6241 = vld [vmem:[#allocation13 + $0x1bf8] sm:$0xff]
    %v6242 = vld [vmem:[#allocation13 + $0x1c00] sm:$0xff]
    %v6243 = vld [vmem:[#allocation13 + $0x1c08] sm:$0xff]
    %v6244 = vld [vmem:[#allocation13 + $0x1c10] sm:$0xff]
    %v6245 = vld [vmem:[#allocation13 + $0x1c18] sm:$0xff]
    %v6246 = vld [vmem:[#allocation13 + $0x1c20] sm:$0xff]
    %v6247 = vld [vmem:[#allocation13 + $0x1c28] sm:$0xff]
    %v6248 = vld [vmem:[#allocation13 + $0x1c30] sm:$0xff]
    %v6249 = vld [vmem:[#allocation13 + $0x1c38] sm:$0xff]
    %v6250 = vld [vmem:[#allocation13 + $0x1c40] sm:$0xff]
    %v6251 = vld [vmem:[#allocation13 + $0x1c48] sm:$0xff]
    %v6252 = vld [vmem:[#allocation13 + $0x1c50] sm:$0xff]
    %v6253 = vld [vmem:[#allocation13 + $0x1c58] sm:$0xff]
    %v6254 = vld [vmem:[#allocation13 + $0x1c60] sm:$0xff]
    %v6255 = vld [vmem:[#allocation13 + $0x1c68] sm:$0xff]
    %v6256 = vld [vmem:[#allocation13 + $0x1c70] sm:$0xff]
    %v6257 = vld [vmem:[#allocation13 + $0x1c78] sm:$0xff]
    %v6258 = vld [vmem:[#allocation13 + $0x1c80] sm:$0xff]
    %v6259 = vld [vmem:[#allocation13 + $0x1c88] sm:$0xff]
    %v6260 = vld [vmem:[#allocation13 + $0x1c90] sm:$0xff]
    %v6261 = vld [vmem:[#allocation13 + $0x1c98] sm:$0xff]
    %v6262 = vld [vmem:[#allocation13 + $0x1ca0] sm:$0xff]
    %v6263 = vld [vmem:[#allocation13 + $0x1ca8] sm:$0xff]
    %v6264 = vld [vmem:[#allocation13 + $0x1cb0] sm:$0xff]
    %v6265 = vld [vmem:[#allocation13 + $0x1cb8] sm:$0xff]
    %v6266 = vld [vmem:[#allocation13 + $0x1cc0] sm:$0xff]
    %v6267 = vld [vmem:[#allocation13 + $0x1cc8] sm:$0xff]
    %v6268 = vld [vmem:[#allocation13 + $0x1cd0] sm:$0xff]
    %v6269 = vld [vmem:[#allocation13 + $0x1cd8] sm:$0xff]
    %v6270 = vld [vmem:[#allocation13 + $0x1ce0] sm:$0xff]
    %v6271 = vld [vmem:[#allocation13 + $0x1ce8] sm:$0xff]
    %v6272 = vld [vmem:[#allocation13 + $0x1cf0] sm:$0xff]
    %v6273 = vld [vmem:[#allocation13 + $0x1cf8] sm:$0xff]
    %v6274 = vld [vmem:[#allocation13 + $0x1d00] sm:$0xff]
    %v6275 = vld [vmem:[#allocation13 + $0x1d08] sm:$0xff]
    %v6276 = vld [vmem:[#allocation13 + $0x1d10] sm:$0xff]
    %v6277 = vld [vmem:[#allocation13 + $0x1d18] sm:$0xff]
    %v6278 = vld [vmem:[#allocation13 + $0x1d20] sm:$0xff]
    %v6279 = vld [vmem:[#allocation13 + $0x1d28] sm:$0xff]
    %v6280 = vld [vmem:[#allocation13 + $0x1d30] sm:$0xff]
    %v6281 = vld [vmem:[#allocation13 + $0x1d38] sm:$0xff]
    %v6282 = vld [vmem:[#allocation13 + $0x1d40] sm:$0xff]
    %v6283 = vld [vmem:[#allocation13 + $0x1d48] sm:$0xff]
    %v6284 = vld [vmem:[#allocation13 + $0x1d50] sm:$0xff]
    %v6285 = vld [vmem:[#allocation13 + $0x1d58] sm:$0xff]
    %v6286 = vld [vmem:[#allocation13 + $0x1d60] sm:$0xff]
    %v6287 = vld [vmem:[#allocation13 + $0x1d68] sm:$0xff]
    %v6288 = vld [vmem:[#allocation13 + $0x1d70] sm:$0xff]
    %v6289 = vld [vmem:[#allocation13 + $0x1d78] sm:$0xff]
    %v6290 = vld [vmem:[#allocation13 + $0x1d80] sm:$0xff]
    %v6291 = vld [vmem:[#allocation13 + $0x1d88] sm:$0xff]
    %v6292 = vld [vmem:[#allocation13 + $0x1d90] sm:$0xff]
    %v6293 = vld [vmem:[#allocation13 + $0x1d98] sm:$0xff]
    %v6294 = vld [vmem:[#allocation13 + $0x1da0] sm:$0xff]
    %v6295 = vld [vmem:[#allocation13 + $0x1da8] sm:$0xff]
    %v6296 = vld [vmem:[#allocation13 + $0x1db0] sm:$0xff]
    %v6297 = vld [vmem:[#allocation13 + $0x1db8] sm:$0xff]
    %v6298 = vld [vmem:[#allocation13 + $0x1dc0] sm:$0xff]
    %v6299 = vld [vmem:[#allocation13 + $0x1dc8] sm:$0xff]
    %v6300 = vld [vmem:[#allocation13 + $0x1dd0] sm:$0xff]
    %v6301 = vld [vmem:[#allocation13 + $0x1dd8] sm:$0xff]
    %v6302 = vld [vmem:[#allocation13 + $0x1de0] sm:$0xff]
    %v6303 = vld [vmem:[#allocation13 + $0x1de8] sm:$0xff]
    %v6304 = vld [vmem:[#allocation13 + $0x1df0] sm:$0xff]
    %v6305 = vld [vmem:[#allocation13 + $0x1df8] sm:$0xff]
    %v6306 = vld [vmem:[#allocation13 + $0x1e00] sm:$0xff]
    %v6307 = vld [vmem:[#allocation13 + $0x1e08] sm:$0xff]
    %v6308 = vld [vmem:[#allocation13 + $0x1e10] sm:$0xff]
    %v6309 = vld [vmem:[#allocation13 + $0x1e18] sm:$0xff]
    %v6310 = vld [vmem:[#allocation13 + $0x1e20] sm:$0xff]
    %v6311 = vld [vmem:[#allocation13 + $0x1e28] sm:$0xff]
    %v6312 = vld [vmem:[#allocation13 + $0x1e30] sm:$0xff]
    %v6313 = vld [vmem:[#allocation13 + $0x1e38] sm:$0xff]
    %v6314 = vld [vmem:[#allocation13 + $0x1e40] sm:$0xff]
    %v6315 = vld [vmem:[#allocation13 + $0x1e48] sm:$0xff]
    %v6316 = vld [vmem:[#allocation13 + $0x1e50] sm:$0xff]
    %v6317 = vld [vmem:[#allocation13 + $0x1e58] sm:$0xff]
    %v6318 = vld [vmem:[#allocation13 + $0x1e60] sm:$0xff]
    %v6319 = vld [vmem:[#allocation13 + $0x1e68] sm:$0xff]
    %v6320 = vld [vmem:[#allocation13 + $0x1e70] sm:$0xff]
    %v6321 = vld [vmem:[#allocation13 + $0x1e78] sm:$0xff]
    %v6322 = vld [vmem:[#allocation13 + $0x1e80] sm:$0xff]
    %v6323 = vld [vmem:[#allocation13 + $0x1e88] sm:$0xff]
    %v6324 = vld [vmem:[#allocation13 + $0x1e90] sm:$0xff]
    %v6325 = vld [vmem:[#allocation13 + $0x1e98] sm:$0xff]
    %v6326 = vld [vmem:[#allocation13 + $0x1ea0] sm:$0xff]
    %v6327 = vld [vmem:[#allocation13 + $0x1ea8] sm:$0xff]
    %v6328 = vld [vmem:[#allocation13 + $0x1eb0] sm:$0xff]
    %v6329 = vld [vmem:[#allocation13 + $0x1eb8] sm:$0xff]
    %v6330 = vld [vmem:[#allocation13 + $0x1ec0] sm:$0xff]
    %v6331 = vld [vmem:[#allocation13 + $0x1ec8] sm:$0xff]
    %v6332 = vld [vmem:[#allocation13 + $0x1ed0] sm:$0xff]
    %v6333 = vld [vmem:[#allocation13 + $0x1ed8] sm:$0xff]
    %v6334 = vld [vmem:[#allocation13 + $0x1ee0] sm:$0xff]
    %v6335 = vld [vmem:[#allocation13 + $0x1ee8] sm:$0xff]
    %v6336 = vld [vmem:[#allocation13 + $0x1ef0] sm:$0xff]
    %v6337 = vld [vmem:[#allocation13 + $0x1ef8] sm:$0xff]
    %v6338 = vld [vmem:[#allocation13 + $0x1f00] sm:$0xff]
    %v6339 = vld [vmem:[#allocation13 + $0x1f08] sm:$0xff]
    %v6340 = vld [vmem:[#allocation13 + $0x1f10] sm:$0xff]
    %v6341 = vld [vmem:[#allocation13 + $0x1f18] sm:$0xff]
    %v6342 = vld [vmem:[#allocation13 + $0x1f20] sm:$0xff]
    %v6343 = vld [vmem:[#allocation13 + $0x1f28] sm:$0xff]
    %v6344 = vld [vmem:[#allocation13 + $0x1f30] sm:$0xff]
    %v6345 = vld [vmem:[#allocation13 + $0x1f38] sm:$0xff]
    %v6346 = vld [vmem:[#allocation13 + $0x1f40] sm:$0xff]
    %v6347 = vld [vmem:[#allocation13 + $0x1f48] sm:$0xff]
    %v6348 = vld [vmem:[#allocation13 + $0x1f50] sm:$0xff]
    %v6349 = vld [vmem:[#allocation13 + $0x1f58] sm:$0xff]
    %v6350 = vld [vmem:[#allocation13 + $0x1f60] sm:$0xff]
    %v6351 = vld [vmem:[#allocation13 + $0x1f68] sm:$0xff]
    %v6352 = vld [vmem:[#allocation13 + $0x1f70] sm:$0xff]
    %v6353 = vld [vmem:[#allocation13 + $0x1f78] sm:$0xff]
    %v6354 = vld [vmem:[#allocation13 + $0x1f80] sm:$0xff]
    %v6355 = vld [vmem:[#allocation13 + $0x1f88] sm:$0xff]
    %v6356 = vld [vmem:[#allocation13 + $0x1f90] sm:$0xff]
    %v6357 = vld [vmem:[#allocation13 + $0x1f98] sm:$0xff]
    %v6358 = vld [vmem:[#allocation13 + $0x1fa0] sm:$0xff]
    %v6359 = vld [vmem:[#allocation13 + $0x1fa8] sm:$0xff]
    %v6360 = vld [vmem:[#allocation13 + $0x1fb0] sm:$0xff]
    %v6361 = vld [vmem:[#allocation13 + $0x1fb8] sm:$0xff]
    %v6362 = vld [vmem:[#allocation13 + $0x1fc0] sm:$0xff]
    %v6363 = vld [vmem:[#allocation13 + $0x1fc8] sm:$0xff]
    %v6364 = vld [vmem:[#allocation13 + $0x1fd0] sm:$0xff]
    %v6365 = vld [vmem:[#allocation13 + $0x1fd8] sm:$0xff]
    %v6366 = vld [vmem:[#allocation13 + $0x1fe0] sm:$0xff]
    %v6367 = vld [vmem:[#allocation13 + $0x1fe8] sm:$0xff]
    %v6368 = vld [vmem:[#allocation13 + $0x1ff0] sm:$0xff]
    %v6369 = vld [vmem:[#allocation13 + $0x1ff8] sm:$0xff]
    %v6370 = vld [vmem:[#allocation14] sm:$0xff]
    %v6371 = vpack.c.bf16 %v5330, %v5330
    %v6372 = vpack.c.bf16 %v5331, %v5331
    %v6373 = vpack.c.bf16 %v5332, %v5332
    %v6374 = vpack.c.bf16 %v5333, %v5333
    %v6375 = vpack.c.bf16 %v5334, %v5334
    %v6376 = vpack.c.bf16 %v5335, %v5335
    %v6377 = vpack.c.bf16 %v5336, %v5336
    %v6378 = vpack.c.bf16 %v5337, %v5337
    %v6379 = vpack.c.bf16 %v5338, %v5338
    %v6380 = vpack.c.bf16 %v5339, %v5339
    %v6381 = vpack.c.bf16 %v5340, %v5340
    %v6382 = vpack.c.bf16 %v5341, %v5341
    %v6383 = vpack.c.bf16 %v5342, %v5342
    %v6384 = vpack.c.bf16 %v5343, %v5343
    %v6385 = vpack.c.bf16 %v5344, %v5344
    %v6386 = vpack.c.bf16 %v5345, %v5345
    %v6388 = vperm.slane %v6370, 0
    %v6389 = vperm.slane %v6370, 1
    %v6390 = vperm.slane %v6370, 2
    %v6391 = vperm.slane %v6370, 3
    %v6392 = vperm.slane %v6370, 4
    %v6393 = vperm.slane %v6370, 5
    %v6394 = vperm.slane %v6370, 6
    %v6395 = vperm.slane %v6370, 7
    %v7428 = vunpack.c.l.b16 %v5346
    %v7429 = vunpack.c.h.b16 %v5346
    %v7430 = vunpack.c.l.b16 %v5347
    %v7431 = vunpack.c.h.b16 %v5347
    %v7432 = vunpack.c.l.b16 %v5348
    %v7433 = vunpack.c.h.b16 %v5348
    %v7434 = vunpack.c.l.b16 %v5349
    %v7435 = vunpack.c.h.b16 %v5349
    %v7436 = vunpack.c.l.b16 %v5350
    %v7437 = vunpack.c.h.b16 %v5350
    %v7438 = vunpack.c.l.b16 %v5351
    %v7439 = vunpack.c.h.b16 %v5351
    %v7440 = vunpack.c.l.b16 %v5352
    %v7441 = vunpack.c.h.b16 %v5352
    %v7442 = vunpack.c.l.b16 %v5353
    %v7443 = vunpack.c.h.b16 %v5353
    %v7444 = vunpack.c.l.b16 %v5354
    %v7445 = vunpack.c.h.b16 %v5354
    %v7446 = vunpack.c.l.b16 %v5355
    %v7447 = vunpack.c.h.b16 %v5355
    %v7448 = vunpack.c.l.b16 %v5356
    %v7449 = vunpack.c.h.b16 %v5356
    %v7450 = vunpack.c.l.b16 %v5357
    %v7451 = vunpack.c.h.b16 %v5357
    %v7452 = vunpack.c.l.b16 %v5358
    %v7453 = vunpack.c.h.b16 %v5358
    %v7454 = vunpack.c.l.b16 %v5359
    %v7455 = vunpack.c.h.b16 %v5359
    %v7456 = vunpack.c.l.b16 %v5360
    %v7457 = vunpack.c.h.b16 %v5360
    %v7458 = vunpack.c.l.b16 %v5361
    %v7459 = vunpack.c.h.b16 %v5361
    %v7460 = vunpack.c.l.b16 %v5362
    %v7461 = vunpack.c.h.b16 %v5362
    %v7462 = vunpack.c.l.b16 %v5363
    %v7463 = vunpack.c.h.b16 %v5363
    %v7464 = vunpack.c.l.b16 %v5364
    %v7465 = vunpack.c.h.b16 %v5364
    %v7466 = vunpack.c.l.b16 %v5365
    %v7467 = vunpack.c.h.b16 %v5365
    %v7468 = vunpack.c.l.b16 %v5366
    %v7469 = vunpack.c.h.b16 %v5366
    %v7470 = vunpack.c.l.b16 %v5367
    %v7471 = vunpack.c.h.b16 %v5367
    %v7472 = vunpack.c.l.b16 %v5368
    %v7473 = vunpack.c.h.b16 %v5368
    %v7474 = vunpack.c.l.b16 %v5369
    %v7475 = vunpack.c.h.b16 %v5369
    %v7476 = vunpack.c.l.b16 %v5370
    %v7477 = vunpack.c.h.b16 %v5370
    %v7478 = vunpack.c.l.b16 %v5371
    %v7479 = vunpack.c.h.b16 %v5371
    %v7480 = vunpack.c.l.b16 %v5372
    %v7481 = vunpack.c.h.b16 %v5372
    %v7482 = vunpack.c.l.b16 %v5373
    %v7483 = vunpack.c.h.b16 %v5373
    %v7484 = vunpack.c.l.b16 %v5374
    %v7485 = vunpack.c.h.b16 %v5374
    %v7486 = vunpack.c.l.b16 %v5375
    %v7487 = vunpack.c.h.b16 %v5375
    %v7488 = vunpack.c.l.b16 %v5376
    %v7489 = vunpack.c.h.b16 %v5376
    %v7490 = vunpack.c.l.b16 %v5377
    %v7491 = vunpack.c.h.b16 %v5377
    %v7492 = vunpack.c.l.b16 %v5378
    %v7493 = vunpack.c.h.b16 %v5378
    %v7494 = vunpack.c.l.b16 %v5379
    %v7495 = vunpack.c.h.b16 %v5379
    %v7496 = vunpack.c.l.b16 %v5380
    %v7497 = vunpack.c.h.b16 %v5380
    %v7498 = vunpack.c.l.b16 %v5381
    %v7499 = vunpack.c.h.b16 %v5381
    %v7500 = vunpack.c.l.b16 %v5382
    %v7501 = vunpack.c.h.b16 %v5382
    %v7502 = vunpack.c.l.b16 %v5383
    %v7503 = vunpack.c.h.b16 %v5383
    %v7504 = vunpack.c.l.b16 %v5384
    %v7505 = vunpack.c.h.b16 %v5384
    %v7506 = vunpack.c.l.b16 %v5385
    %v7507 = vunpack.c.h.b16 %v5385
    %v7508 = vunpack.c.l.b16 %v5386
    %v7509 = vunpack.c.h.b16 %v5386
    %v7510 = vunpack.c.l.b16 %v5387
    %v7511 = vunpack.c.h.b16 %v5387
    %v7512 = vunpack.c.l.b16 %v5388
    %v7513 = vunpack.c.h.b16 %v5388
    %v7514 = vunpack.c.l.b16 %v5389
    %v7515 = vunpack.c.h.b16 %v5389
    %v7516 = vunpack.c.l.b16 %v5390
    %v7517 = vunpack.c.h.b16 %v5390
    %v7518 = vunpack.c.l.b16 %v5391
    %v7519 = vunpack.c.h.b16 %v5391
    %v7520 = vunpack.c.l.b16 %v5392
    %v7521 = vunpack.c.h.b16 %v5392
    %v7522 = vunpack.c.l.b16 %v5393
    %v7523 = vunpack.c.h.b16 %v5393
    %v7524 = vunpack.c.l.b16 %v5394
    %v7525 = vunpack.c.h.b16 %v5394
    %v7526 = vunpack.c.l.b16 %v5395
    %v7527 = vunpack.c.h.b16 %v5395
    %v7528 = vunpack.c.l.b16 %v5396
    %v7529 = vunpack.c.h.b16 %v5396
    %v7530 = vunpack.c.l.b16 %v5397
    %v7531 = vunpack.c.h.b16 %v5397
    %v7532 = vunpack.c.l.b16 %v5398
    %v7533 = vunpack.c.h.b16 %v5398
    %v7534 = vunpack.c.l.b16 %v5399
    %v7535 = vunpack.c.h.b16 %v5399
    %v7536 = vunpack.c.l.b16 %v5400
    %v7537 = vunpack.c.h.b16 %v5400
    %v7538 = vunpack.c.l.b16 %v5401
    %v7539 = vunpack.c.h.b16 %v5401
    %v7540 = vunpack.c.l.b16 %v5402
    %v7541 = vunpack.c.h.b16 %v5402
    %v7542 = vunpack.c.l.b16 %v5403
    %v7543 = vunpack.c.h.b16 %v5403
    %v7544 = vunpack.c.l.b16 %v5404
    %v7545 = vunpack.c.h.b16 %v5404
    %v7546 = vunpack.c.l.b16 %v5405
    %v7547 = vunpack.c.h.b16 %v5405
    %v7548 = vunpack.c.l.b16 %v5406
    %v7549 = vunpack.c.h.b16 %v5406
    %v7550 = vunpack.c.l.b16 %v5407
    %v7551 = vunpack.c.h.b16 %v5407
    %v7552 = vunpack.c.l.b16 %v5408
    %v7553 = vunpack.c.h.b16 %v5408
    %v7554 = vunpack.c.l.b16 %v5409
    %v7555 = vunpack.c.h.b16 %v5409
    %v7556 = vunpack.c.l.b16 %v5410
    %v7557 = vunpack.c.h.b16 %v5410
    %v7558 = vunpack.c.l.b16 %v5411
    %v7559 = vunpack.c.h.b16 %v5411
    %v7560 = vunpack.c.l.b16 %v5412
    %v7561 = vunpack.c.h.b16 %v5412
    %v7562 = vunpack.c.l.b16 %v5413
    %v7563 = vunpack.c.h.b16 %v5413
    %v7564 = vunpack.c.l.b16 %v5414
    %v7565 = vunpack.c.h.b16 %v5414
    %v7566 = vunpack.c.l.b16 %v5415
    %v7567 = vunpack.c.h.b16 %v5415
    %v7568 = vunpack.c.l.b16 %v5416
    %v7569 = vunpack.c.h.b16 %v5416
    %v7570 = vunpack.c.l.b16 %v5417
    %v7571 = vunpack.c.h.b16 %v5417
    %v7572 = vunpack.c.l.b16 %v5418
    %v7573 = vunpack.c.h.b16 %v5418
    %v7574 = vunpack.c.l.b16 %v5419
    %v7575 = vunpack.c.h.b16 %v5419
    %v7576 = vunpack.c.l.b16 %v5420
    %v7577 = vunpack.c.h.b16 %v5420
    %v7578 = vunpack.c.l.b16 %v5421
    %v7579 = vunpack.c.h.b16 %v5421
    %v7580 = vunpack.c.l.b16 %v5422
    %v7581 = vunpack.c.h.b16 %v5422
    %v7582 = vunpack.c.l.b16 %v5423
    %v7583 = vunpack.c.h.b16 %v5423
    %v7584 = vunpack.c.l.b16 %v5424
    %v7585 = vunpack.c.h.b16 %v5424
    %v7586 = vunpack.c.l.b16 %v5425
    %v7587 = vunpack.c.h.b16 %v5425
    %v7588 = vunpack.c.l.b16 %v5426
    %v7589 = vunpack.c.h.b16 %v5426
    %v7590 = vunpack.c.l.b16 %v5427
    %v7591 = vunpack.c.h.b16 %v5427
    %v7592 = vunpack.c.l.b16 %v5428
    %v7593 = vunpack.c.h.b16 %v5428
    %v7594 = vunpack.c.l.b16 %v5429
    %v7595 = vunpack.c.h.b16 %v5429
    %v7596 = vunpack.c.l.b16 %v5430
    %v7597 = vunpack.c.h.b16 %v5430
    %v7598 = vunpack.c.l.b16 %v5431
    %v7599 = vunpack.c.h.b16 %v5431
    %v7600 = vunpack.c.l.b16 %v5432
    %v7601 = vunpack.c.h.b16 %v5432
    %v7602 = vunpack.c.l.b16 %v5433
    %v7603 = vunpack.c.h.b16 %v5433
    %v7604 = vunpack.c.l.b16 %v5434
    %v7605 = vunpack.c.h.b16 %v5434
    %v7606 = vunpack.c.l.b16 %v5435
    %v7607 = vunpack.c.h.b16 %v5435
    %v7608 = vunpack.c.l.b16 %v5436
    %v7609 = vunpack.c.h.b16 %v5436
    %v7610 = vunpack.c.l.b16 %v5437
    %v7611 = vunpack.c.h.b16 %v5437
    %v7612 = vunpack.c.l.b16 %v5438
    %v7613 = vunpack.c.h.b16 %v5438
    %v7614 = vunpack.c.l.b16 %v5439
    %v7615 = vunpack.c.h.b16 %v5439
    %v7616 = vunpack.c.l.b16 %v5440
    %v7617 = vunpack.c.h.b16 %v5440
    %v7618 = vunpack.c.l.b16 %v5441
    %v7619 = vunpack.c.h.b16 %v5441
    %v7620 = vunpack.c.l.b16 %v5442
    %v7621 = vunpack.c.h.b16 %v5442
    %v7622 = vunpack.c.l.b16 %v5443
    %v7623 = vunpack.c.h.b16 %v5443
    %v7624 = vunpack.c.l.b16 %v5444
    %v7625 = vunpack.c.h.b16 %v5444
    %v7626 = vunpack.c.l.b16 %v5445
    %v7627 = vunpack.c.h.b16 %v5445
    %v7628 = vunpack.c.l.b16 %v5446
    %v7629 = vunpack.c.h.b16 %v5446
    %v7630 = vunpack.c.l.b16 %v5447
    %v7631 = vunpack.c.h.b16 %v5447
    %v7632 = vunpack.c.l.b16 %v5448
    %v7633 = vunpack.c.h.b16 %v5448
    %v7634 = vunpack.c.l.b16 %v5449
    %v7635 = vunpack.c.h.b16 %v5449
    %v7636 = vunpack.c.l.b16 %v5450
    %v7637 = vunpack.c.h.b16 %v5450
    %v7638 = vunpack.c.l.b16 %v5451
    %v7639 = vunpack.c.h.b16 %v5451
    %v7640 = vunpack.c.l.b16 %v5452
    %v7641 = vunpack.c.h.b16 %v5452
    %v7642 = vunpack.c.l.b16 %v5453
    %v7643 = vunpack.c.h.b16 %v5453
    %v7644 = vunpack.c.l.b16 %v5454
    %v7645 = vunpack.c.h.b16 %v5454
    %v7646 = vunpack.c.l.b16 %v5455
    %v7647 = vunpack.c.h.b16 %v5455
    %v7648 = vunpack.c.l.b16 %v5456
    %v7649 = vunpack.c.h.b16 %v5456
    %v7650 = vunpack.c.l.b16 %v5457
    %v7651 = vunpack.c.h.b16 %v5457
    %v7652 = vunpack.c.l.b16 %v5458
    %v7653 = vunpack.c.h.b16 %v5458
    %v7654 = vunpack.c.l.b16 %v5459
    %v7655 = vunpack.c.h.b16 %v5459
    %v7656 = vunpack.c.l.b16 %v5460
    %v7657 = vunpack.c.h.b16 %v5460
    %v7658 = vunpack.c.l.b16 %v5461
    %v7659 = vunpack.c.h.b16 %v5461
    %v7660 = vunpack.c.l.b16 %v5462
    %v7661 = vunpack.c.h.b16 %v5462
    %v7662 = vunpack.c.l.b16 %v5463
    %v7663 = vunpack.c.h.b16 %v5463
    %v7664 = vunpack.c.l.b16 %v5464
    %v7665 = vunpack.c.h.b16 %v5464
    %v7666 = vunpack.c.l.b16 %v5465
    %v7667 = vunpack.c.h.b16 %v5465
    %v7668 = vunpack.c.l.b16 %v5466
    %v7669 = vunpack.c.h.b16 %v5466
    %v7670 = vunpack.c.l.b16 %v5467
    %v7671 = vunpack.c.h.b16 %v5467
    %v7672 = vunpack.c.l.b16 %v5468
    %v7673 = vunpack.c.h.b16 %v5468
    %v7674 = vunpack.c.l.b16 %v5469
    %v7675 = vunpack.c.h.b16 %v5469
    %v7676 = vunpack.c.l.b16 %v5470
    %v7677 = vunpack.c.h.b16 %v5470
    %v7678 = vunpack.c.l.b16 %v5471
    %v7679 = vunpack.c.h.b16 %v5471
    %v7680 = vunpack.c.l.b16 %v5472
    %v7681 = vunpack.c.h.b16 %v5472
    %v7682 = vunpack.c.l.b16 %v5473
    %v7683 = vunpack.c.h.b16 %v5473
    %v7684 = vunpack.c.l.b16 %v5474
    %v7685 = vunpack.c.h.b16 %v5474
    %v7686 = vunpack.c.l.b16 %v5475
    %v7687 = vunpack.c.h.b16 %v5475
    %v7688 = vunpack.c.l.b16 %v5476
    %v7689 = vunpack.c.h.b16 %v5476
    %v7690 = vunpack.c.l.b16 %v5477
    %v7691 = vunpack.c.h.b16 %v5477
    %v7692 = vunpack.c.l.b16 %v5478
    %v7693 = vunpack.c.h.b16 %v5478
    %v7694 = vunpack.c.l.b16 %v5479
    %v7695 = vunpack.c.h.b16 %v5479
    %v7696 = vunpack.c.l.b16 %v5480
    %v7697 = vunpack.c.h.b16 %v5480
    %v7698 = vunpack.c.l.b16 %v5481
    %v7699 = vunpack.c.h.b16 %v5481
    %v7700 = vunpack.c.l.b16 %v5482
    %v7701 = vunpack.c.h.b16 %v5482
    %v7702 = vunpack.c.l.b16 %v5483
    %v7703 = vunpack.c.h.b16 %v5483
    %v7704 = vunpack.c.l.b16 %v5484
    %v7705 = vunpack.c.h.b16 %v5484
    %v7706 = vunpack.c.l.b16 %v5485
    %v7707 = vunpack.c.h.b16 %v5485
    %v7708 = vunpack.c.l.b16 %v5486
    %v7709 = vunpack.c.h.b16 %v5486
    %v7710 = vunpack.c.l.b16 %v5487
    %v7711 = vunpack.c.h.b16 %v5487
    %v7712 = vunpack.c.l.b16 %v5488
    %v7713 = vunpack.c.h.b16 %v5488
    %v7714 = vunpack.c.l.b16 %v5489
    %v7715 = vunpack.c.h.b16 %v5489
    %v7716 = vunpack.c.l.b16 %v5490
    %v7717 = vunpack.c.h.b16 %v5490
    %v7718 = vunpack.c.l.b16 %v5491
    %v7719 = vunpack.c.h.b16 %v5491
    %v7720 = vunpack.c.l.b16 %v5492
    %v7721 = vunpack.c.h.b16 %v5492
    %v7722 = vunpack.c.l.b16 %v5493
    %v7723 = vunpack.c.h.b16 %v5493
    %v7724 = vunpack.c.l.b16 %v5494
    %v7725 = vunpack.c.h.b16 %v5494
    %v7726 = vunpack.c.l.b16 %v5495
    %v7727 = vunpack.c.h.b16 %v5495
    %v7728 = vunpack.c.l.b16 %v5496
    %v7729 = vunpack.c.h.b16 %v5496
    %v7730 = vunpack.c.l.b16 %v5497
    %v7731 = vunpack.c.h.b16 %v5497
    %v7732 = vunpack.c.l.b16 %v5498
    %v7733 = vunpack.c.h.b16 %v5498
    %v7734 = vunpack.c.l.b16 %v5499
    %v7735 = vunpack.c.h.b16 %v5499
    %v7736 = vunpack.c.l.b16 %v5500
    %v7737 = vunpack.c.h.b16 %v5500
    %v7738 = vunpack.c.l.b16 %v5501
    %v7739 = vunpack.c.h.b16 %v5501
    %v7740 = vunpack.c.l.b16 %v5502
    %v7741 = vunpack.c.h.b16 %v5502
    %v7742 = vunpack.c.l.b16 %v5503
    %v7743 = vunpack.c.h.b16 %v5503
    %v7744 = vunpack.c.l.b16 %v5504
    %v7745 = vunpack.c.h.b16 %v5504
    %v7746 = vunpack.c.l.b16 %v5505
    %v7747 = vunpack.c.h.b16 %v5505
    %v7748 = vunpack.c.l.b16 %v5506
    %v7749 = vunpack.c.h.b16 %v5506
    %v7750 = vunpack.c.l.b16 %v5507
    %v7751 = vunpack.c.h.b16 %v5507
    %v7752 = vunpack.c.l.b16 %v5508
    %v7753 = vunpack.c.h.b16 %v5508
    %v7754 = vunpack.c.l.b16 %v5509
    %v7755 = vunpack.c.h.b16 %v5509
    %v7756 = vunpack.c.l.b16 %v5510
    %v7757 = vunpack.c.h.b16 %v5510
    %v7758 = vunpack.c.l.b16 %v5511
    %v7759 = vunpack.c.h.b16 %v5511
    %v7760 = vunpack.c.l.b16 %v5512
    %v7761 = vunpack.c.h.b16 %v5512
    %v7762 = vunpack.c.l.b16 %v5513
    %v7763 = vunpack.c.h.b16 %v5513
    %v7764 = vunpack.c.l.b16 %v5514
    %v7765 = vunpack.c.h.b16 %v5514
    %v7766 = vunpack.c.l.b16 %v5515
    %v7767 = vunpack.c.h.b16 %v5515
    %v7768 = vunpack.c.l.b16 %v5516
    %v7769 = vunpack.c.h.b16 %v5516
    %v7770 = vunpack.c.l.b16 %v5517
    %v7771 = vunpack.c.h.b16 %v5517
    %v7772 = vunpack.c.l.b16 %v5518
    %v7773 = vunpack.c.h.b16 %v5518
    %v7774 = vunpack.c.l.b16 %v5519
    %v7775 = vunpack.c.h.b16 %v5519
    %v7776 = vunpack.c.l.b16 %v5520
    %v7777 = vunpack.c.h.b16 %v5520
    %v7778 = vunpack.c.l.b16 %v5521
    %v7779 = vunpack.c.h.b16 %v5521
    %v7780 = vunpack.c.l.b16 %v5522
    %v7781 = vunpack.c.h.b16 %v5522
    %v7782 = vunpack.c.l.b16 %v5523
    %v7783 = vunpack.c.h.b16 %v5523
    %v7784 = vunpack.c.l.b16 %v5524
    %v7785 = vunpack.c.h.b16 %v5524
    %v7786 = vunpack.c.l.b16 %v5525
    %v7787 = vunpack.c.h.b16 %v5525
    %v7788 = vunpack.c.l.b16 %v5526
    %v7789 = vunpack.c.h.b16 %v5526
    %v7790 = vunpack.c.l.b16 %v5527
    %v7791 = vunpack.c.h.b16 %v5527
    %v7792 = vunpack.c.l.b16 %v5528
    %v7793 = vunpack.c.h.b16 %v5528
    %v7794 = vunpack.c.l.b16 %v5529
    %v7795 = vunpack.c.h.b16 %v5529
    %v7796 = vunpack.c.l.b16 %v5530
    %v7797 = vunpack.c.h.b16 %v5530
    %v7798 = vunpack.c.l.b16 %v5531
    %v7799 = vunpack.c.h.b16 %v5531
    %v7800 = vunpack.c.l.b16 %v5532
    %v7801 = vunpack.c.h.b16 %v5532
    %v7802 = vunpack.c.l.b16 %v5533
    %v7803 = vunpack.c.h.b16 %v5533
    %v7804 = vunpack.c.l.b16 %v5534
    %v7805 = vunpack.c.h.b16 %v5534
    %v7806 = vunpack.c.l.b16 %v5535
    %v7807 = vunpack.c.h.b16 %v5535
    %v7808 = vunpack.c.l.b16 %v5536
    %v7809 = vunpack.c.h.b16 %v5536
    %v7810 = vunpack.c.l.b16 %v5537
    %v7811 = vunpack.c.h.b16 %v5537
    %v7812 = vunpack.c.l.b16 %v5538
    %v7813 = vunpack.c.h.b16 %v5538
    %v7814 = vunpack.c.l.b16 %v5539
    %v7815 = vunpack.c.h.b16 %v5539
    %v7816 = vunpack.c.l.b16 %v5540
    %v7817 = vunpack.c.h.b16 %v5540
    %v7818 = vunpack.c.l.b16 %v5541
    %v7819 = vunpack.c.h.b16 %v5541
    %v7820 = vunpack.c.l.b16 %v5542
    %v7821 = vunpack.c.h.b16 %v5542
    %v7822 = vunpack.c.l.b16 %v5543
    %v7823 = vunpack.c.h.b16 %v5543
    %v7824 = vunpack.c.l.b16 %v5544
    %v7825 = vunpack.c.h.b16 %v5544
    %v7826 = vunpack.c.l.b16 %v5545
    %v7827 = vunpack.c.h.b16 %v5545
    %v7828 = vunpack.c.l.b16 %v5546
    %v7829 = vunpack.c.h.b16 %v5546
    %v7830 = vunpack.c.l.b16 %v5547
    %v7831 = vunpack.c.h.b16 %v5547
    %v7832 = vunpack.c.l.b16 %v5548
    %v7833 = vunpack.c.h.b16 %v5548
    %v7834 = vunpack.c.l.b16 %v5549
    %v7835 = vunpack.c.h.b16 %v5549
    %v7836 = vunpack.c.l.b16 %v5550
    %v7837 = vunpack.c.h.b16 %v5550
    %v7838 = vunpack.c.l.b16 %v5551
    %v7839 = vunpack.c.h.b16 %v5551
    %v7840 = vunpack.c.l.b16 %v5552
    %v7841 = vunpack.c.h.b16 %v5552
    %v7842 = vunpack.c.l.b16 %v5553
    %v7843 = vunpack.c.h.b16 %v5553
    %v7844 = vunpack.c.l.b16 %v5554
    %v7845 = vunpack.c.h.b16 %v5554
    %v7846 = vunpack.c.l.b16 %v5555
    %v7847 = vunpack.c.h.b16 %v5555
    %v7848 = vunpack.c.l.b16 %v5556
    %v7849 = vunpack.c.h.b16 %v5556
    %v7850 = vunpack.c.l.b16 %v5557
    %v7851 = vunpack.c.h.b16 %v5557
    %v7852 = vunpack.c.l.b16 %v5558
    %v7853 = vunpack.c.h.b16 %v5558
    %v7854 = vunpack.c.l.b16 %v5559
    %v7855 = vunpack.c.h.b16 %v5559
    %v7856 = vunpack.c.l.b16 %v5560
    %v7857 = vunpack.c.h.b16 %v5560
    %v7858 = vunpack.c.l.b16 %v5561
    %v7859 = vunpack.c.h.b16 %v5561
    %v7860 = vunpack.c.l.b16 %v5562
    %v7861 = vunpack.c.h.b16 %v5562
    %v7862 = vunpack.c.l.b16 %v5563
    %v7863 = vunpack.c.h.b16 %v5563
    %v7864 = vunpack.c.l.b16 %v5564
    %v7865 = vunpack.c.h.b16 %v5564
    %v7866 = vunpack.c.l.b16 %v5565
    %v7867 = vunpack.c.h.b16 %v5565
    %v7868 = vunpack.c.l.b16 %v5566
    %v7869 = vunpack.c.h.b16 %v5566
    %v7870 = vunpack.c.l.b16 %v5567
    %v7871 = vunpack.c.h.b16 %v5567
    %v7872 = vunpack.c.l.b16 %v5568
    %v7873 = vunpack.c.h.b16 %v5568
    %v7874 = vunpack.c.l.b16 %v5569
    %v7875 = vunpack.c.h.b16 %v5569
    %v7876 = vunpack.c.l.b16 %v5570
    %v7877 = vunpack.c.h.b16 %v5570
    %v7878 = vunpack.c.l.b16 %v5571
    %v7879 = vunpack.c.h.b16 %v5571
    %v7880 = vunpack.c.l.b16 %v5572
    %v7881 = vunpack.c.h.b16 %v5572
    %v7882 = vunpack.c.l.b16 %v5573
    %v7883 = vunpack.c.h.b16 %v5573
    %v7884 = vunpack.c.l.b16 %v5574
    %v7885 = vunpack.c.h.b16 %v5574
    %v7886 = vunpack.c.l.b16 %v5575
    %v7887 = vunpack.c.h.b16 %v5575
    %v7888 = vunpack.c.l.b16 %v5576
    %v7889 = vunpack.c.h.b16 %v5576
    %v7890 = vunpack.c.l.b16 %v5577
    %v7891 = vunpack.c.h.b16 %v5577
    %v7892 = vunpack.c.l.b16 %v5578
    %v7893 = vunpack.c.h.b16 %v5578
    %v7894 = vunpack.c.l.b16 %v5579
    %v7895 = vunpack.c.h.b16 %v5579
    %v7896 = vunpack.c.l.b16 %v5580
    %v7897 = vunpack.c.h.b16 %v5580
    %v7898 = vunpack.c.l.b16 %v5581
    %v7899 = vunpack.c.h.b16 %v5581
    %v7900 = vunpack.c.l.b16 %v5582
    %v7901 = vunpack.c.h.b16 %v5582
    %v7902 = vunpack.c.l.b16 %v5583
    %v7903 = vunpack.c.h.b16 %v5583
    %v7904 = vunpack.c.l.b16 %v5584
    %v7905 = vunpack.c.h.b16 %v5584
    %v7906 = vunpack.c.l.b16 %v5585
    %v7907 = vunpack.c.h.b16 %v5585
    %v7908 = vunpack.c.l.b16 %v5586
    %v7909 = vunpack.c.h.b16 %v5586
    %v7910 = vunpack.c.l.b16 %v5587
    %v7911 = vunpack.c.h.b16 %v5587
    %v7912 = vunpack.c.l.b16 %v5588
    %v7913 = vunpack.c.h.b16 %v5588
    %v7914 = vunpack.c.l.b16 %v5589
    %v7915 = vunpack.c.h.b16 %v5589
    %v7916 = vunpack.c.l.b16 %v5590
    %v7917 = vunpack.c.h.b16 %v5590
    %v7918 = vunpack.c.l.b16 %v5591
    %v7919 = vunpack.c.h.b16 %v5591
    %v7920 = vunpack.c.l.b16 %v5592
    %v7921 = vunpack.c.h.b16 %v5592
    %v7922 = vunpack.c.l.b16 %v5593
    %v7923 = vunpack.c.h.b16 %v5593
    %v7924 = vunpack.c.l.b16 %v5594
    %v7925 = vunpack.c.h.b16 %v5594
    %v7926 = vunpack.c.l.b16 %v5595
    %v7927 = vunpack.c.h.b16 %v5595
    %v7928 = vunpack.c.l.b16 %v5596
    %v7929 = vunpack.c.h.b16 %v5596
    %v7930 = vunpack.c.l.b16 %v5597
    %v7931 = vunpack.c.h.b16 %v5597
    %v7932 = vunpack.c.l.b16 %v5598
    %v7933 = vunpack.c.h.b16 %v5598
    %v7934 = vunpack.c.l.b16 %v5599
    %v7935 = vunpack.c.h.b16 %v5599
    %v7936 = vunpack.c.l.b16 %v5600
    %v7937 = vunpack.c.h.b16 %v5600
    %v7938 = vunpack.c.l.b16 %v5601
    %v7939 = vunpack.c.h.b16 %v5601
    %v7940 = vunpack.c.l.b16 %v5602
    %v7941 = vunpack.c.h.b16 %v5602
    %v7942 = vunpack.c.l.b16 %v5603
    %v7943 = vunpack.c.h.b16 %v5603
    %v7944 = vunpack.c.l.b16 %v5604
    %v7945 = vunpack.c.h.b16 %v5604
    %v7946 = vunpack.c.l.b16 %v5605
    %v7947 = vunpack.c.h.b16 %v5605
    %v7948 = vunpack.c.l.b16 %v5606
    %v7949 = vunpack.c.h.b16 %v5606
    %v7950 = vunpack.c.l.b16 %v5607
    %v7951 = vunpack.c.h.b16 %v5607
    %v7952 = vunpack.c.l.b16 %v5608
    %v7953 = vunpack.c.h.b16 %v5608
    %v7954 = vunpack.c.l.b16 %v5609
    %v7955 = vunpack.c.h.b16 %v5609
    %v7956 = vunpack.c.l.b16 %v5610
    %v7957 = vunpack.c.h.b16 %v5610
    %v7958 = vunpack.c.l.b16 %v5611
    %v7959 = vunpack.c.h.b16 %v5611
    %v7960 = vunpack.c.l.b16 %v5612
    %v7961 = vunpack.c.h.b16 %v5612
    %v7962 = vunpack.c.l.b16 %v5613
    %v7963 = vunpack.c.h.b16 %v5613
    %v7964 = vunpack.c.l.b16 %v5614
    %v7965 = vunpack.c.h.b16 %v5614
    %v7966 = vunpack.c.l.b16 %v5615
    %v7967 = vunpack.c.h.b16 %v5615
    %v7968 = vunpack.c.l.b16 %v5616
    %v7969 = vunpack.c.h.b16 %v5616
    %v7970 = vunpack.c.l.b16 %v5617
    %v7971 = vunpack.c.h.b16 %v5617
    %v7972 = vunpack.c.l.b16 %v5618
    %v7973 = vunpack.c.h.b16 %v5618
    %v7974 = vunpack.c.l.b16 %v5619
    %v7975 = vunpack.c.h.b16 %v5619
    %v7976 = vunpack.c.l.b16 %v5620
    %v7977 = vunpack.c.h.b16 %v5620
    %v7978 = vunpack.c.l.b16 %v5621
    %v7979 = vunpack.c.h.b16 %v5621
    %v7980 = vunpack.c.l.b16 %v5622
    %v7981 = vunpack.c.h.b16 %v5622
    %v7982 = vunpack.c.l.b16 %v5623
    %v7983 = vunpack.c.h.b16 %v5623
    %v7984 = vunpack.c.l.b16 %v5624
    %v7985 = vunpack.c.h.b16 %v5624
    %v7986 = vunpack.c.l.b16 %v5625
    %v7987 = vunpack.c.h.b16 %v5625
    %v7988 = vunpack.c.l.b16 %v5626
    %v7989 = vunpack.c.h.b16 %v5626
    %v7990 = vunpack.c.l.b16 %v5627
    %v7991 = vunpack.c.h.b16 %v5627
    %v7992 = vunpack.c.l.b16 %v5628
    %v7993 = vunpack.c.h.b16 %v5628
    %v7994 = vunpack.c.l.b16 %v5629
    %v7995 = vunpack.c.h.b16 %v5629
    %v7996 = vunpack.c.l.b16 %v5630
    %v7997 = vunpack.c.h.b16 %v5630
    %v7998 = vunpack.c.l.b16 %v5631
    %v7999 = vunpack.c.h.b16 %v5631
    %v8000 = vunpack.c.l.b16 %v5632
    %v8001 = vunpack.c.h.b16 %v5632
    %v8002 = vunpack.c.l.b16 %v5633
    %v8003 = vunpack.c.h.b16 %v5633
    %v8004 = vunpack.c.l.b16 %v5634
    %v8005 = vunpack.c.h.b16 %v5634
    %v8006 = vunpack.c.l.b16 %v5635
    %v8007 = vunpack.c.h.b16 %v5635
    %v8008 = vunpack.c.l.b16 %v5636
    %v8009 = vunpack.c.h.b16 %v5636
    %v8010 = vunpack.c.l.b16 %v5637
    %v8011 = vunpack.c.h.b16 %v5637
    %v8012 = vunpack.c.l.b16 %v5638
    %v8013 = vunpack.c.h.b16 %v5638
    %v8014 = vunpack.c.l.b16 %v5639
    %v8015 = vunpack.c.h.b16 %v5639
    %v8016 = vunpack.c.l.b16 %v5640
    %v8017 = vunpack.c.h.b16 %v5640
    %v8018 = vunpack.c.l.b16 %v5641
    %v8019 = vunpack.c.h.b16 %v5641
    %v8020 = vunpack.c.l.b16 %v5642
    %v8021 = vunpack.c.h.b16 %v5642
    %v8022 = vunpack.c.l.b16 %v5643
    %v8023 = vunpack.c.h.b16 %v5643
    %v8024 = vunpack.c.l.b16 %v5644
    %v8025 = vunpack.c.h.b16 %v5644
    %v8026 = vunpack.c.l.b16 %v5645
    %v8027 = vunpack.c.h.b16 %v5645
    %v8028 = vunpack.c.l.b16 %v5646
    %v8029 = vunpack.c.h.b16 %v5646
    %v8030 = vunpack.c.l.b16 %v5647
    %v8031 = vunpack.c.h.b16 %v5647
    %v8032 = vunpack.c.l.b16 %v5648
    %v8033 = vunpack.c.h.b16 %v5648
    %v8034 = vunpack.c.l.b16 %v5649
    %v8035 = vunpack.c.h.b16 %v5649
    %v8036 = vunpack.c.l.b16 %v5650
    %v8037 = vunpack.c.h.b16 %v5650
    %v8038 = vunpack.c.l.b16 %v5651
    %v8039 = vunpack.c.h.b16 %v5651
    %v8040 = vunpack.c.l.b16 %v5652
    %v8041 = vunpack.c.h.b16 %v5652
    %v8042 = vunpack.c.l.b16 %v5653
    %v8043 = vunpack.c.h.b16 %v5653
    %v8044 = vunpack.c.l.b16 %v5654
    %v8045 = vunpack.c.h.b16 %v5654
    %v8046 = vunpack.c.l.b16 %v5655
    %v8047 = vunpack.c.h.b16 %v5655
    %v8048 = vunpack.c.l.b16 %v5656
    %v8049 = vunpack.c.h.b16 %v5656
    %v8050 = vunpack.c.l.b16 %v5657
    %v8051 = vunpack.c.h.b16 %v5657
    %v8052 = vunpack.c.l.b16 %v5658
    %v8053 = vunpack.c.h.b16 %v5658
    %v8054 = vunpack.c.l.b16 %v5659
    %v8055 = vunpack.c.h.b16 %v5659
    %v8056 = vunpack.c.l.b16 %v5660
    %v8057 = vunpack.c.h.b16 %v5660
    %v8058 = vunpack.c.l.b16 %v5661
    %v8059 = vunpack.c.h.b16 %v5661
    %v8060 = vunpack.c.l.b16 %v5662
    %v8061 = vunpack.c.h.b16 %v5662
    %v8062 = vunpack.c.l.b16 %v5663
    %v8063 = vunpack.c.h.b16 %v5663
    %v8064 = vunpack.c.l.b16 %v5664
    %v8065 = vunpack.c.h.b16 %v5664
    %v8066 = vunpack.c.l.b16 %v5665
    %v8067 = vunpack.c.h.b16 %v5665
    %v8068 = vunpack.c.l.b16 %v5666
    %v8069 = vunpack.c.h.b16 %v5666
    %v8070 = vunpack.c.l.b16 %v5667
    %v8071 = vunpack.c.h.b16 %v5667
    %v8072 = vunpack.c.l.b16 %v5668
    %v8073 = vunpack.c.h.b16 %v5668
    %v8074 = vunpack.c.l.b16 %v5669
    %v8075 = vunpack.c.h.b16 %v5669
    %v8076 = vunpack.c.l.b16 %v5670
    %v8077 = vunpack.c.h.b16 %v5670
    %v8078 = vunpack.c.l.b16 %v5671
    %v8079 = vunpack.c.h.b16 %v5671
    %v8080 = vunpack.c.l.b16 %v5672
    %v8081 = vunpack.c.h.b16 %v5672
    %v8082 = vunpack.c.l.b16 %v5673
    %v8083 = vunpack.c.h.b16 %v5673
    %v8084 = vunpack.c.l.b16 %v5674
    %v8085 = vunpack.c.h.b16 %v5674
    %v8086 = vunpack.c.l.b16 %v5675
    %v8087 = vunpack.c.h.b16 %v5675
    %v8088 = vunpack.c.l.b16 %v5676
    %v8089 = vunpack.c.h.b16 %v5676
    %v8090 = vunpack.c.l.b16 %v5677
    %v8091 = vunpack.c.h.b16 %v5677
    %v8092 = vunpack.c.l.b16 %v5678
    %v8093 = vunpack.c.h.b16 %v5678
    %v8094 = vunpack.c.l.b16 %v5679
    %v8095 = vunpack.c.h.b16 %v5679
    %v8096 = vunpack.c.l.b16 %v5680
    %v8097 = vunpack.c.h.b16 %v5680
    %v8098 = vunpack.c.l.b16 %v5681
    %v8099 = vunpack.c.h.b16 %v5681
    %v8100 = vunpack.c.l.b16 %v5682
    %v8101 = vunpack.c.h.b16 %v5682
    %v8102 = vunpack.c.l.b16 %v5683
    %v8103 = vunpack.c.h.b16 %v5683
    %v8104 = vunpack.c.l.b16 %v5684
    %v8105 = vunpack.c.h.b16 %v5684
    %v8106 = vunpack.c.l.b16 %v5685
    %v8107 = vunpack.c.h.b16 %v5685
    %v8108 = vunpack.c.l.b16 %v5686
    %v8109 = vunpack.c.h.b16 %v5686
    %v8110 = vunpack.c.l.b16 %v5687
    %v8111 = vunpack.c.h.b16 %v5687
    %v8112 = vunpack.c.l.b16 %v5688
    %v8113 = vunpack.c.h.b16 %v5688
    %v8114 = vunpack.c.l.b16 %v5689
    %v8115 = vunpack.c.h.b16 %v5689
    %v8116 = vunpack.c.l.b16 %v5690
    %v8117 = vunpack.c.h.b16 %v5690
    %v8118 = vunpack.c.l.b16 %v5691
    %v8119 = vunpack.c.h.b16 %v5691
    %v8120 = vunpack.c.l.b16 %v5692
    %v8121 = vunpack.c.h.b16 %v5692
    %v8122 = vunpack.c.l.b16 %v5693
    %v8123 = vunpack.c.h.b16 %v5693
    %v8124 = vunpack.c.l.b16 %v5694
    %v8125 = vunpack.c.h.b16 %v5694
    %v8126 = vunpack.c.l.b16 %v5695
    %v8127 = vunpack.c.h.b16 %v5695
    %v8128 = vunpack.c.l.b16 %v5696
    %v8129 = vunpack.c.h.b16 %v5696
    %v8130 = vunpack.c.l.b16 %v5697
    %v8131 = vunpack.c.h.b16 %v5697
    %v8132 = vunpack.c.l.b16 %v5698
    %v8133 = vunpack.c.h.b16 %v5698
    %v8134 = vunpack.c.l.b16 %v5699
    %v8135 = vunpack.c.h.b16 %v5699
    %v8136 = vunpack.c.l.b16 %v5700
    %v8137 = vunpack.c.h.b16 %v5700
    %v8138 = vunpack.c.l.b16 %v5701
    %v8139 = vunpack.c.h.b16 %v5701
    %v8140 = vunpack.c.l.b16 %v5702
    %v8141 = vunpack.c.h.b16 %v5702
    %v8142 = vunpack.c.l.b16 %v5703
    %v8143 = vunpack.c.h.b16 %v5703
    %v8144 = vunpack.c.l.b16 %v5704
    %v8145 = vunpack.c.h.b16 %v5704
    %v8146 = vunpack.c.l.b16 %v5705
    %v8147 = vunpack.c.h.b16 %v5705
    %v8148 = vunpack.c.l.b16 %v5706
    %v8149 = vunpack.c.h.b16 %v5706
    %v8150 = vunpack.c.l.b16 %v5707
    %v8151 = vunpack.c.h.b16 %v5707
    %v8152 = vunpack.c.l.b16 %v5708
    %v8153 = vunpack.c.h.b16 %v5708
    %v8154 = vunpack.c.l.b16 %v5709
    %v8155 = vunpack.c.h.b16 %v5709
    %v8156 = vunpack.c.l.b16 %v5710
    %v8157 = vunpack.c.h.b16 %v5710
    %v8158 = vunpack.c.l.b16 %v5711
    %v8159 = vunpack.c.h.b16 %v5711
    %v8160 = vunpack.c.l.b16 %v5712
    %v8161 = vunpack.c.h.b16 %v5712
    %v8162 = vunpack.c.l.b16 %v5713
    %v8163 = vunpack.c.h.b16 %v5713
    %v8164 = vunpack.c.l.b16 %v5714
    %v8165 = vunpack.c.h.b16 %v5714
    %v8166 = vunpack.c.l.b16 %v5715
    %v8167 = vunpack.c.h.b16 %v5715
    %v8168 = vunpack.c.l.b16 %v5716
    %v8169 = vunpack.c.h.b16 %v5716
    %v8170 = vunpack.c.l.b16 %v5717
    %v8171 = vunpack.c.h.b16 %v5717
    %v8172 = vunpack.c.l.b16 %v5718
    %v8173 = vunpack.c.h.b16 %v5718
    %v8174 = vunpack.c.l.b16 %v5719
    %v8175 = vunpack.c.h.b16 %v5719
    %v8176 = vunpack.c.l.b16 %v5720
    %v8177 = vunpack.c.h.b16 %v5720
    %v8178 = vunpack.c.l.b16 %v5721
    %v8179 = vunpack.c.h.b16 %v5721
    %v8180 = vunpack.c.l.b16 %v5722
    %v8181 = vunpack.c.h.b16 %v5722
    %v8182 = vunpack.c.l.b16 %v5723
    %v8183 = vunpack.c.h.b16 %v5723
    %v8184 = vunpack.c.l.b16 %v5724
    %v8185 = vunpack.c.h.b16 %v5724
    %v8186 = vunpack.c.l.b16 %v5725
    %v8187 = vunpack.c.h.b16 %v5725
    %v8188 = vunpack.c.l.b16 %v5726
    %v8189 = vunpack.c.h.b16 %v5726
    %v8190 = vunpack.c.l.b16 %v5727
    %v8191 = vunpack.c.h.b16 %v5727
    %v8192 = vunpack.c.l.b16 %v5728
    %v8193 = vunpack.c.h.b16 %v5728
    %v8194 = vunpack.c.l.b16 %v5729
    %v8195 = vunpack.c.h.b16 %v5729
    %v8196 = vunpack.c.l.b16 %v5730
    %v8197 = vunpack.c.h.b16 %v5730
    %v8198 = vunpack.c.l.b16 %v5731
    %v8199 = vunpack.c.h.b16 %v5731
    %v8200 = vunpack.c.l.b16 %v5732
    %v8201 = vunpack.c.h.b16 %v5732
    %v8202 = vunpack.c.l.b16 %v5733
    %v8203 = vunpack.c.h.b16 %v5733
    %v8204 = vunpack.c.l.b16 %v5734
    %v8205 = vunpack.c.h.b16 %v5734
    %v8206 = vunpack.c.l.b16 %v5735
    %v8207 = vunpack.c.h.b16 %v5735
    %v8208 = vunpack.c.l.b16 %v5736
    %v8209 = vunpack.c.h.b16 %v5736
    %v8210 = vunpack.c.l.b16 %v5737
    %v8211 = vunpack.c.h.b16 %v5737
    %v8212 = vunpack.c.l.b16 %v5738
    %v8213 = vunpack.c.h.b16 %v5738
    %v8214 = vunpack.c.l.b16 %v5739
    %v8215 = vunpack.c.h.b16 %v5739
    %v8216 = vunpack.c.l.b16 %v5740
    %v8217 = vunpack.c.h.b16 %v5740
    %v8218 = vunpack.c.l.b16 %v5741
    %v8219 = vunpack.c.h.b16 %v5741
    %v8220 = vunpack.c.l.b16 %v5742
    %v8221 = vunpack.c.h.b16 %v5742
    %v8222 = vunpack.c.l.b16 %v5743
    %v8223 = vunpack.c.h.b16 %v5743
    %v8224 = vunpack.c.l.b16 %v5744
    %v8225 = vunpack.c.h.b16 %v5744
    %v8226 = vunpack.c.l.b16 %v5745
    %v8227 = vunpack.c.h.b16 %v5745
    %v8228 = vunpack.c.l.b16 %v5746
    %v8229 = vunpack.c.h.b16 %v5746
    %v8230 = vunpack.c.l.b16 %v5747
    %v8231 = vunpack.c.h.b16 %v5747
    %v8232 = vunpack.c.l.b16 %v5748
    %v8233 = vunpack.c.h.b16 %v5748
    %v8234 = vunpack.c.l.b16 %v5749
    %v8235 = vunpack.c.h.b16 %v5749
    %v8236 = vunpack.c.l.b16 %v5750
    %v8237 = vunpack.c.h.b16 %v5750
    %v8238 = vunpack.c.l.b16 %v5751
    %v8239 = vunpack.c.h.b16 %v5751
    %v8240 = vunpack.c.l.b16 %v5752
    %v8241 = vunpack.c.h.b16 %v5752
    %v8242 = vunpack.c.l.b16 %v5753
    %v8243 = vunpack.c.h.b16 %v5753
    %v8244 = vunpack.c.l.b16 %v5754
    %v8245 = vunpack.c.h.b16 %v5754
    %v8246 = vunpack.c.l.b16 %v5755
    %v8247 = vunpack.c.h.b16 %v5755
    %v8248 = vunpack.c.l.b16 %v5756
    %v8249 = vunpack.c.h.b16 %v5756
    %v8250 = vunpack.c.l.b16 %v5757
    %v8251 = vunpack.c.h.b16 %v5757
    %v8252 = vunpack.c.l.b16 %v5758
    %v8253 = vunpack.c.h.b16 %v5758
    %v8254 = vunpack.c.l.b16 %v5759
    %v8255 = vunpack.c.h.b16 %v5759
    %v8256 = vunpack.c.l.b16 %v5760
    %v8257 = vunpack.c.h.b16 %v5760
    %v8258 = vunpack.c.l.b16 %v5761
    %v8259 = vunpack.c.h.b16 %v5761
    %v8260 = vunpack.c.l.b16 %v5762
    %v8261 = vunpack.c.h.b16 %v5762
    %v8262 = vunpack.c.l.b16 %v5763
    %v8263 = vunpack.c.h.b16 %v5763
    %v8264 = vunpack.c.l.b16 %v5764
    %v8265 = vunpack.c.h.b16 %v5764
    %v8266 = vunpack.c.l.b16 %v5765
    %v8267 = vunpack.c.h.b16 %v5765
    %v8268 = vunpack.c.l.b16 %v5766
    %v8269 = vunpack.c.h.b16 %v5766
    %v8270 = vunpack.c.l.b16 %v5767
    %v8271 = vunpack.c.h.b16 %v5767
    %v8272 = vunpack.c.l.b16 %v5768
    %v8273 = vunpack.c.h.b16 %v5768
    %v8274 = vunpack.c.l.b16 %v5769
    %v8275 = vunpack.c.h.b16 %v5769
    %v8276 = vunpack.c.l.b16 %v5770
    %v8277 = vunpack.c.h.b16 %v5770
    %v8278 = vunpack.c.l.b16 %v5771
    %v8279 = vunpack.c.h.b16 %v5771
    %v8280 = vunpack.c.l.b16 %v5772
    %v8281 = vunpack.c.h.b16 %v5772
    %v8282 = vunpack.c.l.b16 %v5773
    %v8283 = vunpack.c.h.b16 %v5773
    %v8284 = vunpack.c.l.b16 %v5774
    %v8285 = vunpack.c.h.b16 %v5774
    %v8286 = vunpack.c.l.b16 %v5775
    %v8287 = vunpack.c.h.b16 %v5775
    %v8288 = vunpack.c.l.b16 %v5776
    %v8289 = vunpack.c.h.b16 %v5776
    %v8290 = vunpack.c.l.b16 %v5777
    %v8291 = vunpack.c.h.b16 %v5777
    %v8292 = vunpack.c.l.b16 %v5778
    %v8293 = vunpack.c.h.b16 %v5778
    %v8294 = vunpack.c.l.b16 %v5779
    %v8295 = vunpack.c.h.b16 %v5779
    %v8296 = vunpack.c.l.b16 %v5780
    %v8297 = vunpack.c.h.b16 %v5780
    %v8298 = vunpack.c.l.b16 %v5781
    %v8299 = vunpack.c.h.b16 %v5781
    %v8300 = vunpack.c.l.b16 %v5782
    %v8301 = vunpack.c.h.b16 %v5782
    %v8302 = vunpack.c.l.b16 %v5783
    %v8303 = vunpack.c.h.b16 %v5783
    %v8304 = vunpack.c.l.b16 %v5784
    %v8305 = vunpack.c.h.b16 %v5784
    %v8306 = vunpack.c.l.b16 %v5785
    %v8307 = vunpack.c.h.b16 %v5785
    %v8308 = vunpack.c.l.b16 %v5786
    %v8309 = vunpack.c.h.b16 %v5786
    %v8310 = vunpack.c.l.b16 %v5787
    %v8311 = vunpack.c.h.b16 %v5787
    %v8312 = vunpack.c.l.b16 %v5788
    %v8313 = vunpack.c.h.b16 %v5788
    %v8314 = vunpack.c.l.b16 %v5789
    %v8315 = vunpack.c.h.b16 %v5789
    %v8316 = vunpack.c.l.b16 %v5790
    %v8317 = vunpack.c.h.b16 %v5790
    %v8318 = vunpack.c.l.b16 %v5791
    %v8319 = vunpack.c.h.b16 %v5791
    %v8320 = vunpack.c.l.b16 %v5792
    %v8321 = vunpack.c.h.b16 %v5792
    %v8322 = vunpack.c.l.b16 %v5793
    %v8323 = vunpack.c.h.b16 %v5793
    %v8324 = vunpack.c.l.b16 %v5794
    %v8325 = vunpack.c.h.b16 %v5794
    %v8326 = vunpack.c.l.b16 %v5795
    %v8327 = vunpack.c.h.b16 %v5795
    %v8328 = vunpack.c.l.b16 %v5796
    %v8329 = vunpack.c.h.b16 %v5796
    %v8330 = vunpack.c.l.b16 %v5797
    %v8331 = vunpack.c.h.b16 %v5797
    %v8332 = vunpack.c.l.b16 %v5798
    %v8333 = vunpack.c.h.b16 %v5798
    %v8334 = vunpack.c.l.b16 %v5799
    %v8335 = vunpack.c.h.b16 %v5799
    %v8336 = vunpack.c.l.b16 %v5800
    %v8337 = vunpack.c.h.b16 %v5800
    %v8338 = vunpack.c.l.b16 %v5801
    %v8339 = vunpack.c.h.b16 %v5801
    %v8340 = vunpack.c.l.b16 %v5802
    %v8341 = vunpack.c.h.b16 %v5802
    %v8342 = vunpack.c.l.b16 %v5803
    %v8343 = vunpack.c.h.b16 %v5803
    %v8344 = vunpack.c.l.b16 %v5804
    %v8345 = vunpack.c.h.b16 %v5804
    %v8346 = vunpack.c.l.b16 %v5805
    %v8347 = vunpack.c.h.b16 %v5805
    %v8348 = vunpack.c.l.b16 %v5806
    %v8349 = vunpack.c.h.b16 %v5806
    %v8350 = vunpack.c.l.b16 %v5807
    %v8351 = vunpack.c.h.b16 %v5807
    %v8352 = vunpack.c.l.b16 %v5808
    %v8353 = vunpack.c.h.b16 %v5808
    %v8354 = vunpack.c.l.b16 %v5809
    %v8355 = vunpack.c.h.b16 %v5809
    %v8356 = vunpack.c.l.b16 %v5810
    %v8357 = vunpack.c.h.b16 %v5810
    %v8358 = vunpack.c.l.b16 %v5811
    %v8359 = vunpack.c.h.b16 %v5811
    %v8360 = vunpack.c.l.b16 %v5812
    %v8361 = vunpack.c.h.b16 %v5812
    %v8362 = vunpack.c.l.b16 %v5813
    %v8363 = vunpack.c.h.b16 %v5813
    %v8364 = vunpack.c.l.b16 %v5814
    %v8365 = vunpack.c.h.b16 %v5814
    %v8366 = vunpack.c.l.b16 %v5815
    %v8367 = vunpack.c.h.b16 %v5815
    %v8368 = vunpack.c.l.b16 %v5816
    %v8369 = vunpack.c.h.b16 %v5816
    %v8370 = vunpack.c.l.b16 %v5817
    %v8371 = vunpack.c.h.b16 %v5817
    %v8372 = vunpack.c.l.b16 %v5818
    %v8373 = vunpack.c.h.b16 %v5818
    %v8374 = vunpack.c.l.b16 %v5819
    %v8375 = vunpack.c.h.b16 %v5819
    %v8376 = vunpack.c.l.b16 %v5820
    %v8377 = vunpack.c.h.b16 %v5820
    %v8378 = vunpack.c.l.b16 %v5821
    %v8379 = vunpack.c.h.b16 %v5821
    %v8380 = vunpack.c.l.b16 %v5822
    %v8381 = vunpack.c.h.b16 %v5822
    %v8382 = vunpack.c.l.b16 %v5823
    %v8383 = vunpack.c.h.b16 %v5823
    %v8384 = vunpack.c.l.b16 %v5824
    %v8385 = vunpack.c.h.b16 %v5824
    %v8386 = vunpack.c.l.b16 %v5825
    %v8387 = vunpack.c.h.b16 %v5825
    %v8388 = vunpack.c.l.b16 %v5826
    %v8389 = vunpack.c.h.b16 %v5826
    %v8390 = vunpack.c.l.b16 %v5827
    %v8391 = vunpack.c.h.b16 %v5827
    %v8392 = vunpack.c.l.b16 %v5828
    %v8393 = vunpack.c.h.b16 %v5828
    %v8394 = vunpack.c.l.b16 %v5829
    %v8395 = vunpack.c.h.b16 %v5829
    %v8396 = vunpack.c.l.b16 %v5830
    %v8397 = vunpack.c.h.b16 %v5830
    %v8398 = vunpack.c.l.b16 %v5831
    %v8399 = vunpack.c.h.b16 %v5831
    %v8400 = vunpack.c.l.b16 %v5832
    %v8401 = vunpack.c.h.b16 %v5832
    %v8402 = vunpack.c.l.b16 %v5833
    %v8403 = vunpack.c.h.b16 %v5833
    %v8404 = vunpack.c.l.b16 %v5834
    %v8405 = vunpack.c.h.b16 %v5834
    %v8406 = vunpack.c.l.b16 %v5835
    %v8407 = vunpack.c.h.b16 %v5835
    %v8408 = vunpack.c.l.b16 %v5836
    %v8409 = vunpack.c.h.b16 %v5836
    %v8410 = vunpack.c.l.b16 %v5837
    %v8411 = vunpack.c.h.b16 %v5837
    %v8412 = vunpack.c.l.b16 %v5838
    %v8413 = vunpack.c.h.b16 %v5838
    %v8414 = vunpack.c.l.b16 %v5839
    %v8415 = vunpack.c.h.b16 %v5839
    %v8416 = vunpack.c.l.b16 %v5840
    %v8417 = vunpack.c.h.b16 %v5840
    %v8418 = vunpack.c.l.b16 %v5841
    %v8419 = vunpack.c.h.b16 %v5841
    %v8420 = vunpack.c.l.b16 %v5842
    %v8421 = vunpack.c.h.b16 %v5842
    %v8422 = vunpack.c.l.b16 %v5843
    %v8423 = vunpack.c.h.b16 %v5843
    %v8424 = vunpack.c.l.b16 %v5844
    %v8425 = vunpack.c.h.b16 %v5844
    %v8426 = vunpack.c.l.b16 %v5845
    %v8427 = vunpack.c.h.b16 %v5845
    %v8428 = vunpack.c.l.b16 %v5846
    %v8429 = vunpack.c.h.b16 %v5846
    %v8430 = vunpack.c.l.b16 %v5847
    %v8431 = vunpack.c.h.b16 %v5847
    %v8432 = vunpack.c.l.b16 %v5848
    %v8433 = vunpack.c.h.b16 %v5848
    %v8434 = vunpack.c.l.b16 %v5849
    %v8435 = vunpack.c.h.b16 %v5849
    %v8436 = vunpack.c.l.b16 %v5850
    %v8437 = vunpack.c.h.b16 %v5850
    %v8438 = vunpack.c.l.b16 %v5851
    %v8439 = vunpack.c.h.b16 %v5851
    %v8440 = vunpack.c.l.b16 %v5852
    %v8441 = vunpack.c.h.b16 %v5852
    %v8442 = vunpack.c.l.b16 %v5853
    %v8443 = vunpack.c.h.b16 %v5853
    %v8444 = vunpack.c.l.b16 %v5854
    %v8445 = vunpack.c.h.b16 %v5854
    %v8446 = vunpack.c.l.b16 %v5855
    %v8447 = vunpack.c.h.b16 %v5855
    %v8448 = vunpack.c.l.b16 %v5856
    %v8449 = vunpack.c.h.b16 %v5856
    %v8450 = vunpack.c.l.b16 %v5857
    %v8451 = vunpack.c.h.b16 %v5857
    %v8452 = vunpack.c.l.b16 %v5858
    %v8453 = vunpack.c.h.b16 %v5858
    %v8454 = vunpack.c.l.b16 %v5859
    %v8455 = vunpack.c.h.b16 %v5859
    %v8456 = vunpack.c.l.b16 %v5860
    %v8457 = vunpack.c.h.b16 %v5860
    %v8458 = vunpack.c.l.b16 %v5861
    %v8459 = vunpack.c.h.b16 %v5861
    %v8460 = vunpack.c.l.b16 %v5862
    %v8461 = vunpack.c.h.b16 %v5862
    %v8462 = vunpack.c.l.b16 %v5863
    %v8463 = vunpack.c.h.b16 %v5863
    %v8464 = vunpack.c.l.b16 %v5864
    %v8465 = vunpack.c.h.b16 %v5864
    %v8466 = vunpack.c.l.b16 %v5865
    %v8467 = vunpack.c.h.b16 %v5865
    %v8468 = vunpack.c.l.b16 %v5866
    %v8469 = vunpack.c.h.b16 %v5866
    %v8470 = vunpack.c.l.b16 %v5867
    %v8471 = vunpack.c.h.b16 %v5867
    %v8472 = vunpack.c.l.b16 %v5868
    %v8473 = vunpack.c.h.b16 %v5868
    %v8474 = vunpack.c.l.b16 %v5869
    %v8475 = vunpack.c.h.b16 %v5869
    %v8476 = vunpack.c.l.b16 %v5870
    %v8477 = vunpack.c.h.b16 %v5870
    %v8478 = vunpack.c.l.b16 %v5871
    %v8479 = vunpack.c.h.b16 %v5871
    %v8480 = vunpack.c.l.b16 %v5872
    %v8481 = vunpack.c.h.b16 %v5872
    %v8482 = vunpack.c.l.b16 %v5873
    %v8483 = vunpack.c.h.b16 %v5873
    %v8484 = vunpack.c.l.b16 %v5874
    %v8485 = vunpack.c.h.b16 %v5874
    %v8486 = vunpack.c.l.b16 %v5875
    %v8487 = vunpack.c.h.b16 %v5875
    %v8488 = vunpack.c.l.b16 %v5876
    %v8489 = vunpack.c.h.b16 %v5876
    %v8490 = vunpack.c.l.b16 %v5877
    %v8491 = vunpack.c.h.b16 %v5877
    %v8492 = vunpack.c.l.b16 %v5878
    %v8493 = vunpack.c.h.b16 %v5878
    %v8494 = vunpack.c.l.b16 %v5879
    %v8495 = vunpack.c.h.b16 %v5879
    %v8496 = vunpack.c.l.b16 %v5880
    %v8497 = vunpack.c.h.b16 %v5880
    %v8498 = vunpack.c.l.b16 %v5881
    %v8499 = vunpack.c.h.b16 %v5881
    %v8500 = vunpack.c.l.b16 %v5882
    %v8501 = vunpack.c.h.b16 %v5882
    %v8502 = vunpack.c.l.b16 %v5883
    %v8503 = vunpack.c.h.b16 %v5883
    %v8504 = vunpack.c.l.b16 %v5884
    %v8505 = vunpack.c.h.b16 %v5884
    %v8506 = vunpack.c.l.b16 %v5885
    %v8507 = vunpack.c.h.b16 %v5885
    %v8508 = vunpack.c.l.b16 %v5886
    %v8509 = vunpack.c.h.b16 %v5886
    %v8510 = vunpack.c.l.b16 %v5887
    %v8511 = vunpack.c.h.b16 %v5887
    %v8512 = vunpack.c.l.b16 %v5888
    %v8513 = vunpack.c.h.b16 %v5888
    %v8514 = vunpack.c.l.b16 %v5889
    %v8515 = vunpack.c.h.b16 %v5889
    %v8516 = vunpack.c.l.b16 %v5890
    %v8517 = vunpack.c.h.b16 %v5890
    %v8518 = vunpack.c.l.b16 %v5891
    %v8519 = vunpack.c.h.b16 %v5891
    %v8520 = vunpack.c.l.b16 %v5892
    %v8521 = vunpack.c.h.b16 %v5892
    %v8522 = vunpack.c.l.b16 %v5893
    %v8523 = vunpack.c.h.b16 %v5893
    %v8524 = vunpack.c.l.b16 %v5894
    %v8525 = vunpack.c.h.b16 %v5894
    %v8526 = vunpack.c.l.b16 %v5895
    %v8527 = vunpack.c.h.b16 %v5895
    %v8528 = vunpack.c.l.b16 %v5896
    %v8529 = vunpack.c.h.b16 %v5896
    %v8530 = vunpack.c.l.b16 %v5897
    %v8531 = vunpack.c.h.b16 %v5897
    %v8532 = vunpack.c.l.b16 %v5898
    %v8533 = vunpack.c.h.b16 %v5898
    %v8534 = vunpack.c.l.b16 %v5899
    %v8535 = vunpack.c.h.b16 %v5899
    %v8536 = vunpack.c.l.b16 %v5900
    %v8537 = vunpack.c.h.b16 %v5900
    %v8538 = vunpack.c.l.b16 %v5901
    %v8539 = vunpack.c.h.b16 %v5901
    %v8540 = vunpack.c.l.b16 %v5902
    %v8541 = vunpack.c.h.b16 %v5902
    %v8542 = vunpack.c.l.b16 %v5903
    %v8543 = vunpack.c.h.b16 %v5903
    %v8544 = vunpack.c.l.b16 %v5904
    %v8545 = vunpack.c.h.b16 %v5904
    %v8546 = vunpack.c.l.b16 %v5905
    %v8547 = vunpack.c.h.b16 %v5905
    %v8548 = vunpack.c.l.b16 %v5906
    %v8549 = vunpack.c.h.b16 %v5906
    %v8550 = vunpack.c.l.b16 %v5907
    %v8551 = vunpack.c.h.b16 %v5907
    %v8552 = vunpack.c.l.b16 %v5908
    %v8553 = vunpack.c.h.b16 %v5908
    %v8554 = vunpack.c.l.b16 %v5909
    %v8555 = vunpack.c.h.b16 %v5909
    %v8556 = vunpack.c.l.b16 %v5910
    %v8557 = vunpack.c.h.b16 %v5910
    %v8558 = vunpack.c.l.b16 %v5911
    %v8559 = vunpack.c.h.b16 %v5911
    %v8560 = vunpack.c.l.b16 %v5912
    %v8561 = vunpack.c.h.b16 %v5912
    %v8562 = vunpack.c.l.b16 %v5913
    %v8563 = vunpack.c.h.b16 %v5913
    %v8564 = vunpack.c.l.b16 %v5914
    %v8565 = vunpack.c.h.b16 %v5914
    %v8566 = vunpack.c.l.b16 %v5915
    %v8567 = vunpack.c.h.b16 %v5915
    %v8568 = vunpack.c.l.b16 %v5916
    %v8569 = vunpack.c.h.b16 %v5916
    %v8570 = vunpack.c.l.b16 %v5917
    %v8571 = vunpack.c.h.b16 %v5917
    %v8572 = vunpack.c.l.b16 %v5918
    %v8573 = vunpack.c.h.b16 %v5918
    %v8574 = vunpack.c.l.b16 %v5919
    %v8575 = vunpack.c.h.b16 %v5919
    %v8576 = vunpack.c.l.b16 %v5920
    %v8577 = vunpack.c.h.b16 %v5920
    %v8578 = vunpack.c.l.b16 %v5921
    %v8579 = vunpack.c.h.b16 %v5921
    %v8580 = vunpack.c.l.b16 %v5922
    %v8581 = vunpack.c.h.b16 %v5922
    %v8582 = vunpack.c.l.b16 %v5923
    %v8583 = vunpack.c.h.b16 %v5923
    %v8584 = vunpack.c.l.b16 %v5924
    %v8585 = vunpack.c.h.b16 %v5924
    %v8586 = vunpack.c.l.b16 %v5925
    %v8587 = vunpack.c.h.b16 %v5925
    %v8588 = vunpack.c.l.b16 %v5926
    %v8589 = vunpack.c.h.b16 %v5926
    %v8590 = vunpack.c.l.b16 %v5927
    %v8591 = vunpack.c.h.b16 %v5927
    %v8592 = vunpack.c.l.b16 %v5928
    %v8593 = vunpack.c.h.b16 %v5928
    %v8594 = vunpack.c.l.b16 %v5929
    %v8595 = vunpack.c.h.b16 %v5929
    %v8596 = vunpack.c.l.b16 %v5930
    %v8597 = vunpack.c.h.b16 %v5930
    %v8598 = vunpack.c.l.b16 %v5931
    %v8599 = vunpack.c.h.b16 %v5931
    %v8600 = vunpack.c.l.b16 %v5932
    %v8601 = vunpack.c.h.b16 %v5932
    %v8602 = vunpack.c.l.b16 %v5933
    %v8603 = vunpack.c.h.b16 %v5933
    %v8604 = vunpack.c.l.b16 %v5934
    %v8605 = vunpack.c.h.b16 %v5934
    %v8606 = vunpack.c.l.b16 %v5935
    %v8607 = vunpack.c.h.b16 %v5935
    %v8608 = vunpack.c.l.b16 %v5936
    %v8609 = vunpack.c.h.b16 %v5936
    %v8610 = vunpack.c.l.b16 %v5937
    %v8611 = vunpack.c.h.b16 %v5937
    %v8612 = vunpack.c.l.b16 %v5938
    %v8613 = vunpack.c.h.b16 %v5938
    %v8614 = vunpack.c.l.b16 %v5939
    %v8615 = vunpack.c.h.b16 %v5939
    %v8616 = vunpack.c.l.b16 %v5940
    %v8617 = vunpack.c.h.b16 %v5940
    %v8618 = vunpack.c.l.b16 %v5941
    %v8619 = vunpack.c.h.b16 %v5941
    %v8620 = vunpack.c.l.b16 %v5942
    %v8621 = vunpack.c.h.b16 %v5942
    %v8622 = vunpack.c.l.b16 %v5943
    %v8623 = vunpack.c.h.b16 %v5943
    %v8624 = vunpack.c.l.b16 %v5944
    %v8625 = vunpack.c.h.b16 %v5944
    %v8626 = vunpack.c.l.b16 %v5945
    %v8627 = vunpack.c.h.b16 %v5945
    %v8628 = vunpack.c.l.b16 %v5946
    %v8629 = vunpack.c.h.b16 %v5946
    %v8630 = vunpack.c.l.b16 %v5947
    %v8631 = vunpack.c.h.b16 %v5947
    %v8632 = vunpack.c.l.b16 %v5948
    %v8633 = vunpack.c.h.b16 %v5948
    %v8634 = vunpack.c.l.b16 %v5949
    %v8635 = vunpack.c.h.b16 %v5949
    %v8636 = vunpack.c.l.b16 %v5950
    %v8637 = vunpack.c.h.b16 %v5950
    %v8638 = vunpack.c.l.b16 %v5951
    %v8639 = vunpack.c.h.b16 %v5951
    %v8640 = vunpack.c.l.b16 %v5952
    %v8641 = vunpack.c.h.b16 %v5952
    %v8642 = vunpack.c.l.b16 %v5953
    %v8643 = vunpack.c.h.b16 %v5953
    %v8644 = vunpack.c.l.b16 %v5954
    %v8645 = vunpack.c.h.b16 %v5954
    %v8646 = vunpack.c.l.b16 %v5955
    %v8647 = vunpack.c.h.b16 %v5955
    %v8648 = vunpack.c.l.b16 %v5956
    %v8649 = vunpack.c.h.b16 %v5956
    %v8650 = vunpack.c.l.b16 %v5957
    %v8651 = vunpack.c.h.b16 %v5957
    %v8652 = vunpack.c.l.b16 %v5958
    %v8653 = vunpack.c.h.b16 %v5958
    %v8654 = vunpack.c.l.b16 %v5959
    %v8655 = vunpack.c.h.b16 %v5959
    %v8656 = vunpack.c.l.b16 %v5960
    %v8657 = vunpack.c.h.b16 %v5960
    %v8658 = vunpack.c.l.b16 %v5961
    %v8659 = vunpack.c.h.b16 %v5961
    %v8660 = vunpack.c.l.b16 %v5962
    %v8661 = vunpack.c.h.b16 %v5962
    %v8662 = vunpack.c.l.b16 %v5963
    %v8663 = vunpack.c.h.b16 %v5963
    %v8664 = vunpack.c.l.b16 %v5964
    %v8665 = vunpack.c.h.b16 %v5964
    %v8666 = vunpack.c.l.b16 %v5965
    %v8667 = vunpack.c.h.b16 %v5965
    %v8668 = vunpack.c.l.b16 %v5966
    %v8669 = vunpack.c.h.b16 %v5966
    %v8670 = vunpack.c.l.b16 %v5967
    %v8671 = vunpack.c.h.b16 %v5967
    %v8672 = vunpack.c.l.b16 %v5968
    %v8673 = vunpack.c.h.b16 %v5968
    %v8674 = vunpack.c.l.b16 %v5969
    %v8675 = vunpack.c.h.b16 %v5969
    %v8676 = vunpack.c.l.b16 %v5970
    %v8677 = vunpack.c.h.b16 %v5970
    %v8678 = vunpack.c.l.b16 %v5971
    %v8679 = vunpack.c.h.b16 %v5971
    %v8680 = vunpack.c.l.b16 %v5972
    %v8681 = vunpack.c.h.b16 %v5972
    %v8682 = vunpack.c.l.b16 %v5973
    %v8683 = vunpack.c.h.b16 %v5973
    %v8684 = vunpack.c.l.b16 %v5974
    %v8685 = vunpack.c.h.b16 %v5974
    %v8686 = vunpack.c.l.b16 %v5975
    %v8687 = vunpack.c.h.b16 %v5975
    %v8688 = vunpack.c.l.b16 %v5976
    %v8689 = vunpack.c.h.b16 %v5976
    %v8690 = vunpack.c.l.b16 %v5977
    %v8691 = vunpack.c.h.b16 %v5977
    %v8692 = vunpack.c.l.b16 %v5978
    %v8693 = vunpack.c.h.b16 %v5978
    %v8694 = vunpack.c.l.b16 %v5979
    %v8695 = vunpack.c.h.b16 %v5979
    %v8696 = vunpack.c.l.b16 %v5980
    %v8697 = vunpack.c.h.b16 %v5980
    %v8698 = vunpack.c.l.b16 %v5981
    %v8699 = vunpack.c.h.b16 %v5981
    %v8700 = vunpack.c.l.b16 %v5982
    %v8701 = vunpack.c.h.b16 %v5982
    %v8702 = vunpack.c.l.b16 %v5983
    %v8703 = vunpack.c.h.b16 %v5983
    %v8704 = vunpack.c.l.b16 %v5984
    %v8705 = vunpack.c.h.b16 %v5984
    %v8706 = vunpack.c.l.b16 %v5985
    %v8707 = vunpack.c.h.b16 %v5985
    %v8708 = vunpack.c.l.b16 %v5986
    %v8709 = vunpack.c.h.b16 %v5986
    %v8710 = vunpack.c.l.b16 %v5987
    %v8711 = vunpack.c.h.b16 %v5987
    %v8712 = vunpack.c.l.b16 %v5988
    %v8713 = vunpack.c.h.b16 %v5988
    %v8714 = vunpack.c.l.b16 %v5989
    %v8715 = vunpack.c.h.b16 %v5989
    %v8716 = vunpack.c.l.b16 %v5990
    %v8717 = vunpack.c.h.b16 %v5990
    %v8718 = vunpack.c.l.b16 %v5991
    %v8719 = vunpack.c.h.b16 %v5991
    %v8720 = vunpack.c.l.b16 %v5992
    %v8721 = vunpack.c.h.b16 %v5992
    %v8722 = vunpack.c.l.b16 %v5993
    %v8723 = vunpack.c.h.b16 %v5993
    %v8724 = vunpack.c.l.b16 %v5994
    %v8725 = vunpack.c.h.b16 %v5994
    %v8726 = vunpack.c.l.b16 %v5995
    %v8727 = vunpack.c.h.b16 %v5995
    %v8728 = vunpack.c.l.b16 %v5996
    %v8729 = vunpack.c.h.b16 %v5996
    %v8730 = vunpack.c.l.b16 %v5997
    %v8731 = vunpack.c.h.b16 %v5997
    %v8732 = vunpack.c.l.b16 %v5998
    %v8733 = vunpack.c.h.b16 %v5998
    %v8734 = vunpack.c.l.b16 %v5999
    %v8735 = vunpack.c.h.b16 %v5999
    %v8736 = vunpack.c.l.b16 %v6000
    %v8737 = vunpack.c.h.b16 %v6000
    %v8738 = vunpack.c.l.b16 %v6001
    %v8739 = vunpack.c.h.b16 %v6001
    %v8740 = vunpack.c.l.b16 %v6002
    %v8741 = vunpack.c.h.b16 %v6002
    %v8742 = vunpack.c.l.b16 %v6003
    %v8743 = vunpack.c.h.b16 %v6003
    %v8744 = vunpack.c.l.b16 %v6004
    %v8745 = vunpack.c.h.b16 %v6004
    %v8746 = vunpack.c.l.b16 %v6005
    %v8747 = vunpack.c.h.b16 %v6005
    %v8748 = vunpack.c.l.b16 %v6006
    %v8749 = vunpack.c.h.b16 %v6006
    %v8750 = vunpack.c.l.b16 %v6007
    %v8751 = vunpack.c.h.b16 %v6007
    %v8752 = vunpack.c.l.b16 %v6008
    %v8753 = vunpack.c.h.b16 %v6008
    %v8754 = vunpack.c.l.b16 %v6009
    %v8755 = vunpack.c.h.b16 %v6009
    %v8756 = vunpack.c.l.b16 %v6010
    %v8757 = vunpack.c.h.b16 %v6010
    %v8758 = vunpack.c.l.b16 %v6011
    %v8759 = vunpack.c.h.b16 %v6011
    %v8760 = vunpack.c.l.b16 %v6012
    %v8761 = vunpack.c.h.b16 %v6012
    %v8762 = vunpack.c.l.b16 %v6013
    %v8763 = vunpack.c.h.b16 %v6013
    %v8764 = vunpack.c.l.b16 %v6014
    %v8765 = vunpack.c.h.b16 %v6014
    %v8766 = vunpack.c.l.b16 %v6015
    %v8767 = vunpack.c.h.b16 %v6015
    %v8768 = vunpack.c.l.b16 %v6016
    %v8769 = vunpack.c.h.b16 %v6016
    %v8770 = vunpack.c.l.b16 %v6017
    %v8771 = vunpack.c.h.b16 %v6017
    %v8772 = vunpack.c.l.b16 %v6018
    %v8773 = vunpack.c.h.b16 %v6018
    %v8774 = vunpack.c.l.b16 %v6019
    %v8775 = vunpack.c.h.b16 %v6019
    %v8776 = vunpack.c.l.b16 %v6020
    %v8777 = vunpack.c.h.b16 %v6020
    %v8778 = vunpack.c.l.b16 %v6021
    %v8779 = vunpack.c.h.b16 %v6021
    %v8780 = vunpack.c.l.b16 %v6022
    %v8781 = vunpack.c.h.b16 %v6022
    %v8782 = vunpack.c.l.b16 %v6023
    %v8783 = vunpack.c.h.b16 %v6023
    %v8784 = vunpack.c.l.b16 %v6024
    %v8785 = vunpack.c.h.b16 %v6024
    %v8786 = vunpack.c.l.b16 %v6025
    %v8787 = vunpack.c.h.b16 %v6025
    %v8788 = vunpack.c.l.b16 %v6026
    %v8789 = vunpack.c.h.b16 %v6026
    %v8790 = vunpack.c.l.b16 %v6027
    %v8791 = vunpack.c.h.b16 %v6027
    %v8792 = vunpack.c.l.b16 %v6028
    %v8793 = vunpack.c.h.b16 %v6028
    %v8794 = vunpack.c.l.b16 %v6029
    %v8795 = vunpack.c.h.b16 %v6029
    %v8796 = vunpack.c.l.b16 %v6030
    %v8797 = vunpack.c.h.b16 %v6030
    %v8798 = vunpack.c.l.b16 %v6031
    %v8799 = vunpack.c.h.b16 %v6031
    %v8800 = vunpack.c.l.b16 %v6032
    %v8801 = vunpack.c.h.b16 %v6032
    %v8802 = vunpack.c.l.b16 %v6033
    %v8803 = vunpack.c.h.b16 %v6033
    %v8804 = vunpack.c.l.b16 %v6034
    %v8805 = vunpack.c.h.b16 %v6034
    %v8806 = vunpack.c.l.b16 %v6035
    %v8807 = vunpack.c.h.b16 %v6035
    %v8808 = vunpack.c.l.b16 %v6036
    %v8809 = vunpack.c.h.b16 %v6036
    %v8810 = vunpack.c.l.b16 %v6037
    %v8811 = vunpack.c.h.b16 %v6037
    %v8812 = vunpack.c.l.b16 %v6038
    %v8813 = vunpack.c.h.b16 %v6038
    %v8814 = vunpack.c.l.b16 %v6039
    %v8815 = vunpack.c.h.b16 %v6039
    %v8816 = vunpack.c.l.b16 %v6040
    %v8817 = vunpack.c.h.b16 %v6040
    %v8818 = vunpack.c.l.b16 %v6041
    %v8819 = vunpack.c.h.b16 %v6041
    %v8820 = vunpack.c.l.b16 %v6042
    %v8821 = vunpack.c.h.b16 %v6042
    %v8822 = vunpack.c.l.b16 %v6043
    %v8823 = vunpack.c.h.b16 %v6043
    %v8824 = vunpack.c.l.b16 %v6044
    %v8825 = vunpack.c.h.b16 %v6044
    %v8826 = vunpack.c.l.b16 %v6045
    %v8827 = vunpack.c.h.b16 %v6045
    %v8828 = vunpack.c.l.b16 %v6046
    %v8829 = vunpack.c.h.b16 %v6046
    %v8830 = vunpack.c.l.b16 %v6047
    %v8831 = vunpack.c.h.b16 %v6047
    %v8832 = vunpack.c.l.b16 %v6048
    %v8833 = vunpack.c.h.b16 %v6048
    %v8834 = vunpack.c.l.b16 %v6049
    %v8835 = vunpack.c.h.b16 %v6049
    %v8836 = vunpack.c.l.b16 %v6050
    %v8837 = vunpack.c.h.b16 %v6050
    %v8838 = vunpack.c.l.b16 %v6051
    %v8839 = vunpack.c.h.b16 %v6051
    %v8840 = vunpack.c.l.b16 %v6052
    %v8841 = vunpack.c.h.b16 %v6052
    %v8842 = vunpack.c.l.b16 %v6053
    %v8843 = vunpack.c.h.b16 %v6053
    %v8844 = vunpack.c.l.b16 %v6054
    %v8845 = vunpack.c.h.b16 %v6054
    %v8846 = vunpack.c.l.b16 %v6055
    %v8847 = vunpack.c.h.b16 %v6055
    %v8848 = vunpack.c.l.b16 %v6056
    %v8849 = vunpack.c.h.b16 %v6056
    %v8850 = vunpack.c.l.b16 %v6057
    %v8851 = vunpack.c.h.b16 %v6057
    %v8852 = vunpack.c.l.b16 %v6058
    %v8853 = vunpack.c.h.b16 %v6058
    %v8854 = vunpack.c.l.b16 %v6059
    %v8855 = vunpack.c.h.b16 %v6059
    %v8856 = vunpack.c.l.b16 %v6060
    %v8857 = vunpack.c.h.b16 %v6060
    %v8858 = vunpack.c.l.b16 %v6061
    %v8859 = vunpack.c.h.b16 %v6061
    %v8860 = vunpack.c.l.b16 %v6062
    %v8861 = vunpack.c.h.b16 %v6062
    %v8862 = vunpack.c.l.b16 %v6063
    %v8863 = vunpack.c.h.b16 %v6063
    %v8864 = vunpack.c.l.b16 %v6064
    %v8865 = vunpack.c.h.b16 %v6064
    %v8866 = vunpack.c.l.b16 %v6065
    %v8867 = vunpack.c.h.b16 %v6065
    %v8868 = vunpack.c.l.b16 %v6066
    %v8869 = vunpack.c.h.b16 %v6066
    %v8870 = vunpack.c.l.b16 %v6067
    %v8871 = vunpack.c.h.b16 %v6067
    %v8872 = vunpack.c.l.b16 %v6068
    %v8873 = vunpack.c.h.b16 %v6068
    %v8874 = vunpack.c.l.b16 %v6069
    %v8875 = vunpack.c.h.b16 %v6069
    %v8876 = vunpack.c.l.b16 %v6070
    %v8877 = vunpack.c.h.b16 %v6070
    %v8878 = vunpack.c.l.b16 %v6071
    %v8879 = vunpack.c.h.b16 %v6071
    %v8880 = vunpack.c.l.b16 %v6072
    %v8881 = vunpack.c.h.b16 %v6072
    %v8882 = vunpack.c.l.b16 %v6073
    %v8883 = vunpack.c.h.b16 %v6073
    %v8884 = vunpack.c.l.b16 %v6074
    %v8885 = vunpack.c.h.b16 %v6074
    %v8886 = vunpack.c.l.b16 %v6075
    %v8887 = vunpack.c.h.b16 %v6075
    %v8888 = vunpack.c.l.b16 %v6076
    %v8889 = vunpack.c.h.b16 %v6076
    %v8890 = vunpack.c.l.b16 %v6077
    %v8891 = vunpack.c.h.b16 %v6077
    %v8892 = vunpack.c.l.b16 %v6078
    %v8893 = vunpack.c.h.b16 %v6078
    %v8894 = vunpack.c.l.b16 %v6079
    %v8895 = vunpack.c.h.b16 %v6079
    %v8896 = vunpack.c.l.b16 %v6080
    %v8897 = vunpack.c.h.b16 %v6080
    %v8898 = vunpack.c.l.b16 %v6081
    %v8899 = vunpack.c.h.b16 %v6081
    %v8900 = vunpack.c.l.b16 %v6082
    %v8901 = vunpack.c.h.b16 %v6082
    %v8902 = vunpack.c.l.b16 %v6083
    %v8903 = vunpack.c.h.b16 %v6083
    %v8904 = vunpack.c.l.b16 %v6084
    %v8905 = vunpack.c.h.b16 %v6084
    %v8906 = vunpack.c.l.b16 %v6085
    %v8907 = vunpack.c.h.b16 %v6085
    %v8908 = vunpack.c.l.b16 %v6086
    %v8909 = vunpack.c.h.b16 %v6086
    %v8910 = vunpack.c.l.b16 %v6087
    %v8911 = vunpack.c.h.b16 %v6087
    %v8912 = vunpack.c.l.b16 %v6088
    %v8913 = vunpack.c.h.b16 %v6088
    %v8914 = vunpack.c.l.b16 %v6089
    %v8915 = vunpack.c.h.b16 %v6089
    %v8916 = vunpack.c.l.b16 %v6090
    %v8917 = vunpack.c.h.b16 %v6090
    %v8918 = vunpack.c.l.b16 %v6091
    %v8919 = vunpack.c.h.b16 %v6091
    %v8920 = vunpack.c.l.b16 %v6092
    %v8921 = vunpack.c.h.b16 %v6092
    %v8922 = vunpack.c.l.b16 %v6093
    %v8923 = vunpack.c.h.b16 %v6093
    %v8924 = vunpack.c.l.b16 %v6094
    %v8925 = vunpack.c.h.b16 %v6094
    %v8926 = vunpack.c.l.b16 %v6095
    %v8927 = vunpack.c.h.b16 %v6095
    %v8928 = vunpack.c.l.b16 %v6096
    %v8929 = vunpack.c.h.b16 %v6096
    %v8930 = vunpack.c.l.b16 %v6097
    %v8931 = vunpack.c.h.b16 %v6097
    %v8932 = vunpack.c.l.b16 %v6098
    %v8933 = vunpack.c.h.b16 %v6098
    %v8934 = vunpack.c.l.b16 %v6099
    %v8935 = vunpack.c.h.b16 %v6099
    %v8936 = vunpack.c.l.b16 %v6100
    %v8937 = vunpack.c.h.b16 %v6100
    %v8938 = vunpack.c.l.b16 %v6101
    %v8939 = vunpack.c.h.b16 %v6101
    %v8940 = vunpack.c.l.b16 %v6102
    %v8941 = vunpack.c.h.b16 %v6102
    %v8942 = vunpack.c.l.b16 %v6103
    %v8943 = vunpack.c.h.b16 %v6103
    %v8944 = vunpack.c.l.b16 %v6104
    %v8945 = vunpack.c.h.b16 %v6104
    %v8946 = vunpack.c.l.b16 %v6105
    %v8947 = vunpack.c.h.b16 %v6105
    %v8948 = vunpack.c.l.b16 %v6106
    %v8949 = vunpack.c.h.b16 %v6106
    %v8950 = vunpack.c.l.b16 %v6107
    %v8951 = vunpack.c.h.b16 %v6107
    %v8952 = vunpack.c.l.b16 %v6108
    %v8953 = vunpack.c.h.b16 %v6108
    %v8954 = vunpack.c.l.b16 %v6109
    %v8955 = vunpack.c.h.b16 %v6109
    %v8956 = vunpack.c.l.b16 %v6110
    %v8957 = vunpack.c.h.b16 %v6110
    %v8958 = vunpack.c.l.b16 %v6111
    %v8959 = vunpack.c.h.b16 %v6111
    %v8960 = vunpack.c.l.b16 %v6112
    %v8961 = vunpack.c.h.b16 %v6112
    %v8962 = vunpack.c.l.b16 %v6113
    %v8963 = vunpack.c.h.b16 %v6113
    %v8964 = vunpack.c.l.b16 %v6114
    %v8965 = vunpack.c.h.b16 %v6114
    %v8966 = vunpack.c.l.b16 %v6115
    %v8967 = vunpack.c.h.b16 %v6115
    %v8968 = vunpack.c.l.b16 %v6116
    %v8969 = vunpack.c.h.b16 %v6116
    %v8970 = vunpack.c.l.b16 %v6117
    %v8971 = vunpack.c.h.b16 %v6117
    %v8972 = vunpack.c.l.b16 %v6118
    %v8973 = vunpack.c.h.b16 %v6118
    %v8974 = vunpack.c.l.b16 %v6119
    %v8975 = vunpack.c.h.b16 %v6119
    %v8976 = vunpack.c.l.b16 %v6120
    %v8977 = vunpack.c.h.b16 %v6120
    %v8978 = vunpack.c.l.b16 %v6121
    %v8979 = vunpack.c.h.b16 %v6121
    %v8980 = vunpack.c.l.b16 %v6122
    %v8981 = vunpack.c.h.b16 %v6122
    %v8982 = vunpack.c.l.b16 %v6123
    %v8983 = vunpack.c.h.b16 %v6123
    %v8984 = vunpack.c.l.b16 %v6124
    %v8985 = vunpack.c.h.b16 %v6124
    %v8986 = vunpack.c.l.b16 %v6125
    %v8987 = vunpack.c.h.b16 %v6125
    %v8988 = vunpack.c.l.b16 %v6126
    %v8989 = vunpack.c.h.b16 %v6126
    %v8990 = vunpack.c.l.b16 %v6127
    %v8991 = vunpack.c.h.b16 %v6127
    %v8992 = vunpack.c.l.b16 %v6128
    %v8993 = vunpack.c.h.b16 %v6128
    %v8994 = vunpack.c.l.b16 %v6129
    %v8995 = vunpack.c.h.b16 %v6129
    %v8996 = vunpack.c.l.b16 %v6130
    %v8997 = vunpack.c.h.b16 %v6130
    %v8998 = vunpack.c.l.b16 %v6131
    %v8999 = vunpack.c.h.b16 %v6131
    %v9000 = vunpack.c.l.b16 %v6132
    %v9001 = vunpack.c.h.b16 %v6132
    %v9002 = vunpack.c.l.b16 %v6133
    %v9003 = vunpack.c.h.b16 %v6133
    %v9004 = vunpack.c.l.b16 %v6134
    %v9005 = vunpack.c.h.b16 %v6134
    %v9006 = vunpack.c.l.b16 %v6135
    %v9007 = vunpack.c.h.b16 %v6135
    %v9008 = vunpack.c.l.b16 %v6136
    %v9009 = vunpack.c.h.b16 %v6136
    %v9010 = vunpack.c.l.b16 %v6137
    %v9011 = vunpack.c.h.b16 %v6137
    %v9012 = vunpack.c.l.b16 %v6138
    %v9013 = vunpack.c.h.b16 %v6138
    %v9014 = vunpack.c.l.b16 %v6139
    %v9015 = vunpack.c.h.b16 %v6139
    %v9016 = vunpack.c.l.b16 %v6140
    %v9017 = vunpack.c.h.b16 %v6140
    %v9018 = vunpack.c.l.b16 %v6141
    %v9019 = vunpack.c.h.b16 %v6141
    %v9020 = vunpack.c.l.b16 %v6142
    %v9021 = vunpack.c.h.b16 %v6142
    %v9022 = vunpack.c.l.b16 %v6143
    %v9023 = vunpack.c.h.b16 %v6143
    %v9024 = vunpack.c.l.b16 %v6144
    %v9025 = vunpack.c.h.b16 %v6144
    %v9026 = vunpack.c.l.b16 %v6145
    %v9027 = vunpack.c.h.b16 %v6145
    %v9028 = vunpack.c.l.b16 %v6146
    %v9029 = vunpack.c.h.b16 %v6146
    %v9030 = vunpack.c.l.b16 %v6147
    %v9031 = vunpack.c.h.b16 %v6147
    %v9032 = vunpack.c.l.b16 %v6148
    %v9033 = vunpack.c.h.b16 %v6148
    %v9034 = vunpack.c.l.b16 %v6149
    %v9035 = vunpack.c.h.b16 %v6149
    %v9036 = vunpack.c.l.b16 %v6150
    %v9037 = vunpack.c.h.b16 %v6150
    %v9038 = vunpack.c.l.b16 %v6151
    %v9039 = vunpack.c.h.b16 %v6151
    %v9040 = vunpack.c.l.b16 %v6152
    %v9041 = vunpack.c.h.b16 %v6152
    %v9042 = vunpack.c.l.b16 %v6153
    %v9043 = vunpack.c.h.b16 %v6153
    %v9044 = vunpack.c.l.b16 %v6154
    %v9045 = vunpack.c.h.b16 %v6154
    %v9046 = vunpack.c.l.b16 %v6155
    %v9047 = vunpack.c.h.b16 %v6155
    %v9048 = vunpack.c.l.b16 %v6156
    %v9049 = vunpack.c.h.b16 %v6156
    %v9050 = vunpack.c.l.b16 %v6157
    %v9051 = vunpack.c.h.b16 %v6157
    %v9052 = vunpack.c.l.b16 %v6158
    %v9053 = vunpack.c.h.b16 %v6158
    %v9054 = vunpack.c.l.b16 %v6159
    %v9055 = vunpack.c.h.b16 %v6159
    %v9056 = vunpack.c.l.b16 %v6160
    %v9057 = vunpack.c.h.b16 %v6160
    %v9058 = vunpack.c.l.b16 %v6161
    %v9059 = vunpack.c.h.b16 %v6161
    %v9060 = vunpack.c.l.b16 %v6162
    %v9061 = vunpack.c.h.b16 %v6162
    %v9062 = vunpack.c.l.b16 %v6163
    %v9063 = vunpack.c.h.b16 %v6163
    %v9064 = vunpack.c.l.b16 %v6164
    %v9065 = vunpack.c.h.b16 %v6164
    %v9066 = vunpack.c.l.b16 %v6165
    %v9067 = vunpack.c.h.b16 %v6165
    %v9068 = vunpack.c.l.b16 %v6166
    %v9069 = vunpack.c.h.b16 %v6166
    %v9070 = vunpack.c.l.b16 %v6167
    %v9071 = vunpack.c.h.b16 %v6167
    %v9072 = vunpack.c.l.b16 %v6168
    %v9073 = vunpack.c.h.b16 %v6168
    %v9074 = vunpack.c.l.b16 %v6169
    %v9075 = vunpack.c.h.b16 %v6169
    %v9076 = vunpack.c.l.b16 %v6170
    %v9077 = vunpack.c.h.b16 %v6170
    %v9078 = vunpack.c.l.b16 %v6171
    %v9079 = vunpack.c.h.b16 %v6171
    %v9080 = vunpack.c.l.b16 %v6172
    %v9081 = vunpack.c.h.b16 %v6172
    %v9082 = vunpack.c.l.b16 %v6173
    %v9083 = vunpack.c.h.b16 %v6173
    %v9084 = vunpack.c.l.b16 %v6174
    %v9085 = vunpack.c.h.b16 %v6174
    %v9086 = vunpack.c.l.b16 %v6175
    %v9087 = vunpack.c.h.b16 %v6175
    %v9088 = vunpack.c.l.b16 %v6176
    %v9089 = vunpack.c.h.b16 %v6176
    %v9090 = vunpack.c.l.b16 %v6177
    %v9091 = vunpack.c.h.b16 %v6177
    %v9092 = vunpack.c.l.b16 %v6178
    %v9093 = vunpack.c.h.b16 %v6178
    %v9094 = vunpack.c.l.b16 %v6179
    %v9095 = vunpack.c.h.b16 %v6179
    %v9096 = vunpack.c.l.b16 %v6180
    %v9097 = vunpack.c.h.b16 %v6180
    %v9098 = vunpack.c.l.b16 %v6181
    %v9099 = vunpack.c.h.b16 %v6181
    %v9100 = vunpack.c.l.b16 %v6182
    %v9101 = vunpack.c.h.b16 %v6182
    %v9102 = vunpack.c.l.b16 %v6183
    %v9103 = vunpack.c.h.b16 %v6183
    %v9104 = vunpack.c.l.b16 %v6184
    %v9105 = vunpack.c.h.b16 %v6184
    %v9106 = vunpack.c.l.b16 %v6185
    %v9107 = vunpack.c.h.b16 %v6185
    %v9108 = vunpack.c.l.b16 %v6186
    %v9109 = vunpack.c.h.b16 %v6186
    %v9110 = vunpack.c.l.b16 %v6187
    %v9111 = vunpack.c.h.b16 %v6187
    %v9112 = vunpack.c.l.b16 %v6188
    %v9113 = vunpack.c.h.b16 %v6188
    %v9114 = vunpack.c.l.b16 %v6189
    %v9115 = vunpack.c.h.b16 %v6189
    %v9116 = vunpack.c.l.b16 %v6190
    %v9117 = vunpack.c.h.b16 %v6190
    %v9118 = vunpack.c.l.b16 %v6191
    %v9119 = vunpack.c.h.b16 %v6191
    %v9120 = vunpack.c.l.b16 %v6192
    %v9121 = vunpack.c.h.b16 %v6192
    %v9122 = vunpack.c.l.b16 %v6193
    %v9123 = vunpack.c.h.b16 %v6193
    %v9124 = vunpack.c.l.b16 %v6194
    %v9125 = vunpack.c.h.b16 %v6194
    %v9126 = vunpack.c.l.b16 %v6195
    %v9127 = vunpack.c.h.b16 %v6195
    %v9128 = vunpack.c.l.b16 %v6196
    %v9129 = vunpack.c.h.b16 %v6196
    %v9130 = vunpack.c.l.b16 %v6197
    %v9131 = vunpack.c.h.b16 %v6197
    %v9132 = vunpack.c.l.b16 %v6198
    %v9133 = vunpack.c.h.b16 %v6198
    %v9134 = vunpack.c.l.b16 %v6199
    %v9135 = vunpack.c.h.b16 %v6199
    %v9136 = vunpack.c.l.b16 %v6200
    %v9137 = vunpack.c.h.b16 %v6200
    %v9138 = vunpack.c.l.b16 %v6201
    %v9139 = vunpack.c.h.b16 %v6201
    %v9140 = vunpack.c.l.b16 %v6202
    %v9141 = vunpack.c.h.b16 %v6202
    %v9142 = vunpack.c.l.b16 %v6203
    %v9143 = vunpack.c.h.b16 %v6203
    %v9144 = vunpack.c.l.b16 %v6204
    %v9145 = vunpack.c.h.b16 %v6204
    %v9146 = vunpack.c.l.b16 %v6205
    %v9147 = vunpack.c.h.b16 %v6205
    %v9148 = vunpack.c.l.b16 %v6206
    %v9149 = vunpack.c.h.b16 %v6206
    %v9150 = vunpack.c.l.b16 %v6207
    %v9151 = vunpack.c.h.b16 %v6207
    %v9152 = vunpack.c.l.b16 %v6208
    %v9153 = vunpack.c.h.b16 %v6208
    %v9154 = vunpack.c.l.b16 %v6209
    %v9155 = vunpack.c.h.b16 %v6209
    %v9156 = vunpack.c.l.b16 %v6210
    %v9157 = vunpack.c.h.b16 %v6210
    %v9158 = vunpack.c.l.b16 %v6211
    %v9159 = vunpack.c.h.b16 %v6211
    %v9160 = vunpack.c.l.b16 %v6212
    %v9161 = vunpack.c.h.b16 %v6212
    %v9162 = vunpack.c.l.b16 %v6213
    %v9163 = vunpack.c.h.b16 %v6213
    %v9164 = vunpack.c.l.b16 %v6214
    %v9165 = vunpack.c.h.b16 %v6214
    %v9166 = vunpack.c.l.b16 %v6215
    %v9167 = vunpack.c.h.b16 %v6215
    %v9168 = vunpack.c.l.b16 %v6216
    %v9169 = vunpack.c.h.b16 %v6216
    %v9170 = vunpack.c.l.b16 %v6217
    %v9171 = vunpack.c.h.b16 %v6217
    %v9172 = vunpack.c.l.b16 %v6218
    %v9173 = vunpack.c.h.b16 %v6218
    %v9174 = vunpack.c.l.b16 %v6219
    %v9175 = vunpack.c.h.b16 %v6219
    %v9176 = vunpack.c.l.b16 %v6220
    %v9177 = vunpack.c.h.b16 %v6220
    %v9178 = vunpack.c.l.b16 %v6221
    %v9179 = vunpack.c.h.b16 %v6221
    %v9180 = vunpack.c.l.b16 %v6222
    %v9181 = vunpack.c.h.b16 %v6222
    %v9182 = vunpack.c.l.b16 %v6223
    %v9183 = vunpack.c.h.b16 %v6223
    %v9184 = vunpack.c.l.b16 %v6224
    %v9185 = vunpack.c.h.b16 %v6224
    %v9186 = vunpack.c.l.b16 %v6225
    %v9187 = vunpack.c.h.b16 %v6225
    %v9188 = vunpack.c.l.b16 %v6226
    %v9189 = vunpack.c.h.b16 %v6226
    %v9190 = vunpack.c.l.b16 %v6227
    %v9191 = vunpack.c.h.b16 %v6227
    %v9192 = vunpack.c.l.b16 %v6228
    %v9193 = vunpack.c.h.b16 %v6228
    %v9194 = vunpack.c.l.b16 %v6229
    %v9195 = vunpack.c.h.b16 %v6229
    %v9196 = vunpack.c.l.b16 %v6230
    %v9197 = vunpack.c.h.b16 %v6230
    %v9198 = vunpack.c.l.b16 %v6231
    %v9199 = vunpack.c.h.b16 %v6231
    %v9200 = vunpack.c.l.b16 %v6232
    %v9201 = vunpack.c.h.b16 %v6232
    %v9202 = vunpack.c.l.b16 %v6233
    %v9203 = vunpack.c.h.b16 %v6233
    %v9204 = vunpack.c.l.b16 %v6234
    %v9205 = vunpack.c.h.b16 %v6234
    %v9206 = vunpack.c.l.b16 %v6235
    %v9207 = vunpack.c.h.b16 %v6235
    %v9208 = vunpack.c.l.b16 %v6236
    %v9209 = vunpack.c.h.b16 %v6236
    %v9210 = vunpack.c.l.b16 %v6237
    %v9211 = vunpack.c.h.b16 %v6237
    %v9212 = vunpack.c.l.b16 %v6238
    %v9213 = vunpack.c.h.b16 %v6238
    %v9214 = vunpack.c.l.b16 %v6239
    %v9215 = vunpack.c.h.b16 %v6239
    %v9216 = vunpack.c.l.b16 %v6240
    %v9217 = vunpack.c.h.b16 %v6240
    %v9218 = vunpack.c.l.b16 %v6241
    %v9219 = vunpack.c.h.b16 %v6241
    %v9220 = vunpack.c.l.b16 %v6242
    %v9221 = vunpack.c.h.b16 %v6242
    %v9222 = vunpack.c.l.b16 %v6243
    %v9223 = vunpack.c.h.b16 %v6243
    %v9224 = vunpack.c.l.b16 %v6244
    %v9225 = vunpack.c.h.b16 %v6244
    %v9226 = vunpack.c.l.b16 %v6245
    %v9227 = vunpack.c.h.b16 %v6245
    %v9228 = vunpack.c.l.b16 %v6246
    %v9229 = vunpack.c.h.b16 %v6246
    %v9230 = vunpack.c.l.b16 %v6247
    %v9231 = vunpack.c.h.b16 %v6247
    %v9232 = vunpack.c.l.b16 %v6248
    %v9233 = vunpack.c.h.b16 %v6248
    %v9234 = vunpack.c.l.b16 %v6249
    %v9235 = vunpack.c.h.b16 %v6249
    %v9236 = vunpack.c.l.b16 %v6250
    %v9237 = vunpack.c.h.b16 %v6250
    %v9238 = vunpack.c.l.b16 %v6251
    %v9239 = vunpack.c.h.b16 %v6251
    %v9240 = vunpack.c.l.b16 %v6252
    %v9241 = vunpack.c.h.b16 %v6252
    %v9242 = vunpack.c.l.b16 %v6253
    %v9243 = vunpack.c.h.b16 %v6253
    %v9244 = vunpack.c.l.b16 %v6254
    %v9245 = vunpack.c.h.b16 %v6254
    %v9246 = vunpack.c.l.b16 %v6255
    %v9247 = vunpack.c.h.b16 %v6255
    %v9248 = vunpack.c.l.b16 %v6256
    %v9249 = vunpack.c.h.b16 %v6256
    %v9250 = vunpack.c.l.b16 %v6257
    %v9251 = vunpack.c.h.b16 %v6257
    %v9252 = vunpack.c.l.b16 %v6258
    %v9253 = vunpack.c.h.b16 %v6258
    %v9254 = vunpack.c.l.b16 %v6259
    %v9255 = vunpack.c.h.b16 %v6259
    %v9256 = vunpack.c.l.b16 %v6260
    %v9257 = vunpack.c.h.b16 %v6260
    %v9258 = vunpack.c.l.b16 %v6261
    %v9259 = vunpack.c.h.b16 %v6261
    %v9260 = vunpack.c.l.b16 %v6262
    %v9261 = vunpack.c.h.b16 %v6262
    %v9262 = vunpack.c.l.b16 %v6263
    %v9263 = vunpack.c.h.b16 %v6263
    %v9264 = vunpack.c.l.b16 %v6264
    %v9265 = vunpack.c.h.b16 %v6264
    %v9266 = vunpack.c.l.b16 %v6265
    %v9267 = vunpack.c.h.b16 %v6265
    %v9268 = vunpack.c.l.b16 %v6266
    %v9269 = vunpack.c.h.b16 %v6266
    %v9270 = vunpack.c.l.b16 %v6267
    %v9271 = vunpack.c.h.b16 %v6267
    %v9272 = vunpack.c.l.b16 %v6268
    %v9273 = vunpack.c.h.b16 %v6268
    %v9274 = vunpack.c.l.b16 %v6269
    %v9275 = vunpack.c.h.b16 %v6269
    %v9276 = vunpack.c.l.b16 %v6270
    %v9277 = vunpack.c.h.b16 %v6270
    %v9278 = vunpack.c.l.b16 %v6271
    %v9279 = vunpack.c.h.b16 %v6271
    %v9280 = vunpack.c.l.b16 %v6272
    %v9281 = vunpack.c.h.b16 %v6272
    %v9282 = vunpack.c.l.b16 %v6273
    %v9283 = vunpack.c.h.b16 %v6273
    %v9284 = vunpack.c.l.b16 %v6274
    %v9285 = vunpack.c.h.b16 %v6274
    %v9286 = vunpack.c.l.b16 %v6275
    %v9287 = vunpack.c.h.b16 %v6275
    %v9288 = vunpack.c.l.b16 %v6276
    %v9289 = vunpack.c.h.b16 %v6276
    %v9290 = vunpack.c.l.b16 %v6277
    %v9291 = vunpack.c.h.b16 %v6277
    %v9292 = vunpack.c.l.b16 %v6278
    %v9293 = vunpack.c.h.b16 %v6278
    %v9294 = vunpack.c.l.b16 %v6279
    %v9295 = vunpack.c.h.b16 %v6279
    %v9296 = vunpack.c.l.b16 %v6280
    %v9297 = vunpack.c.h.b16 %v6280
    %v9298 = vunpack.c.l.b16 %v6281
    %v9299 = vunpack.c.h.b16 %v6281
    %v9300 = vunpack.c.l.b16 %v6282
    %v9301 = vunpack.c.h.b16 %v6282
    %v9302 = vunpack.c.l.b16 %v6283
    %v9303 = vunpack.c.h.b16 %v6283
    %v9304 = vunpack.c.l.b16 %v6284
    %v9305 = vunpack.c.h.b16 %v6284
    %v9306 = vunpack.c.l.b16 %v6285
    %v9307 = vunpack.c.h.b16 %v6285
    %v9308 = vunpack.c.l.b16 %v6286
    %v9309 = vunpack.c.h.b16 %v6286
    %v9310 = vunpack.c.l.b16 %v6287
    %v9311 = vunpack.c.h.b16 %v6287
    %v9312 = vunpack.c.l.b16 %v6288
    %v9313 = vunpack.c.h.b16 %v6288
    %v9314 = vunpack.c.l.b16 %v6289
    %v9315 = vunpack.c.h.b16 %v6289
    %v9316 = vunpack.c.l.b16 %v6290
    %v9317 = vunpack.c.h.b16 %v6290
    %v9318 = vunpack.c.l.b16 %v6291
    %v9319 = vunpack.c.h.b16 %v6291
    %v9320 = vunpack.c.l.b16 %v6292
    %v9321 = vunpack.c.h.b16 %v6292
    %v9322 = vunpack.c.l.b16 %v6293
    %v9323 = vunpack.c.h.b16 %v6293
    %v9324 = vunpack.c.l.b16 %v6294
    %v9325 = vunpack.c.h.b16 %v6294
    %v9326 = vunpack.c.l.b16 %v6295
    %v9327 = vunpack.c.h.b16 %v6295
    %v9328 = vunpack.c.l.b16 %v6296
    %v9329 = vunpack.c.h.b16 %v6296
    %v9330 = vunpack.c.l.b16 %v6297
    %v9331 = vunpack.c.h.b16 %v6297
    %v9332 = vunpack.c.l.b16 %v6298
    %v9333 = vunpack.c.h.b16 %v6298
    %v9334 = vunpack.c.l.b16 %v6299
    %v9335 = vunpack.c.h.b16 %v6299
    %v9336 = vunpack.c.l.b16 %v6300
    %v9337 = vunpack.c.h.b16 %v6300
    %v9338 = vunpack.c.l.b16 %v6301
    %v9339 = vunpack.c.h.b16 %v6301
    %v9340 = vunpack.c.l.b16 %v6302
    %v9341 = vunpack.c.h.b16 %v6302
    %v9342 = vunpack.c.l.b16 %v6303
    %v9343 = vunpack.c.h.b16 %v6303
    %v9344 = vunpack.c.l.b16 %v6304
    %v9345 = vunpack.c.h.b16 %v6304
    %v9346 = vunpack.c.l.b16 %v6305
    %v9347 = vunpack.c.h.b16 %v6305
    %v9348 = vunpack.c.l.b16 %v6306
    %v9349 = vunpack.c.h.b16 %v6306
    %v9350 = vunpack.c.l.b16 %v6307
    %v9351 = vunpack.c.h.b16 %v6307
    %v9352 = vunpack.c.l.b16 %v6308
    %v9353 = vunpack.c.h.b16 %v6308
    %v9354 = vunpack.c.l.b16 %v6309
    %v9355 = vunpack.c.h.b16 %v6309
    %v9356 = vunpack.c.l.b16 %v6310
    %v9357 = vunpack.c.h.b16 %v6310
    %v9358 = vunpack.c.l.b16 %v6311
    %v9359 = vunpack.c.h.b16 %v6311
    %v9360 = vunpack.c.l.b16 %v6312
    %v9361 = vunpack.c.h.b16 %v6312
    %v9362 = vunpack.c.l.b16 %v6313
    %v9363 = vunpack.c.h.b16 %v6313
    %v9364 = vunpack.c.l.b16 %v6314
    %v9365 = vunpack.c.h.b16 %v6314
    %v9366 = vunpack.c.l.b16 %v6315
    %v9367 = vunpack.c.h.b16 %v6315
    %v9368 = vunpack.c.l.b16 %v6316
    %v9369 = vunpack.c.h.b16 %v6316
    %v9370 = vunpack.c.l.b16 %v6317
    %v9371 = vunpack.c.h.b16 %v6317
    %v9372 = vunpack.c.l.b16 %v6318
    %v9373 = vunpack.c.h.b16 %v6318
    %v9374 = vunpack.c.l.b16 %v6319
    %v9375 = vunpack.c.h.b16 %v6319
    %v9376 = vunpack.c.l.b16 %v6320
    %v9377 = vunpack.c.h.b16 %v6320
    %v9378 = vunpack.c.l.b16 %v6321
    %v9379 = vunpack.c.h.b16 %v6321
    %v9380 = vunpack.c.l.b16 %v6322
    %v9381 = vunpack.c.h.b16 %v6322
    %v9382 = vunpack.c.l.b16 %v6323
    %v9383 = vunpack.c.h.b16 %v6323
    %v9384 = vunpack.c.l.b16 %v6324
    %v9385 = vunpack.c.h.b16 %v6324
    %v9386 = vunpack.c.l.b16 %v6325
    %v9387 = vunpack.c.h.b16 %v6325
    %v9388 = vunpack.c.l.b16 %v6326
    %v9389 = vunpack.c.h.b16 %v6326
    %v9390 = vunpack.c.l.b16 %v6327
    %v9391 = vunpack.c.h.b16 %v6327
    %v9392 = vunpack.c.l.b16 %v6328
    %v9393 = vunpack.c.h.b16 %v6328
    %v9394 = vunpack.c.l.b16 %v6329
    %v9395 = vunpack.c.h.b16 %v6329
    %v9396 = vunpack.c.l.b16 %v6330
    %v9397 = vunpack.c.h.b16 %v6330
    %v9398 = vunpack.c.l.b16 %v6331
    %v9399 = vunpack.c.h.b16 %v6331
    %v9400 = vunpack.c.l.b16 %v6332
    %v9401 = vunpack.c.h.b16 %v6332
    %v9402 = vunpack.c.l.b16 %v6333
    %v9403 = vunpack.c.h.b16 %v6333
    %v9404 = vunpack.c.l.b16 %v6334
    %v9405 = vunpack.c.h.b16 %v6334
    %v9406 = vunpack.c.l.b16 %v6335
    %v9407 = vunpack.c.h.b16 %v6335
    %v9408 = vunpack.c.l.b16 %v6336
    %v9409 = vunpack.c.h.b16 %v6336
    %v9410 = vunpack.c.l.b16 %v6337
    %v9411 = vunpack.c.h.b16 %v6337
    %v9412 = vunpack.c.l.b16 %v6338
    %v9413 = vunpack.c.h.b16 %v6338
    %v9414 = vunpack.c.l.b16 %v6339
    %v9415 = vunpack.c.h.b16 %v6339
    %v9416 = vunpack.c.l.b16 %v6340
    %v9417 = vunpack.c.h.b16 %v6340
    %v9418 = vunpack.c.l.b16 %v6341
    %v9419 = vunpack.c.h.b16 %v6341
    %v9420 = vunpack.c.l.b16 %v6342
    %v9421 = vunpack.c.h.b16 %v6342
    %v9422 = vunpack.c.l.b16 %v6343
    %v9423 = vunpack.c.h.b16 %v6343
    %v9424 = vunpack.c.l.b16 %v6344
    %v9425 = vunpack.c.h.b16 %v6344
    %v9426 = vunpack.c.l.b16 %v6345
    %v9427 = vunpack.c.h.b16 %v6345
    %v9428 = vunpack.c.l.b16 %v6346
    %v9429 = vunpack.c.h.b16 %v6346
    %v9430 = vunpack.c.l.b16 %v6347
    %v9431 = vunpack.c.h.b16 %v6347
    %v9432 = vunpack.c.l.b16 %v6348
    %v9433 = vunpack.c.h.b16 %v6348
    %v9434 = vunpack.c.l.b16 %v6349
    %v9435 = vunpack.c.h.b16 %v6349
    %v9436 = vunpack.c.l.b16 %v6350
    %v9437 = vunpack.c.h.b16 %v6350
    %v9438 = vunpack.c.l.b16 %v6351
    %v9439 = vunpack.c.h.b16 %v6351
    %v9440 = vunpack.c.l.b16 %v6352
    %v9441 = vunpack.c.h.b16 %v6352
    %v9442 = vunpack.c.l.b16 %v6353
    %v9443 = vunpack.c.h.b16 %v6353
    %v9444 = vunpack.c.l.b16 %v6354
    %v9445 = vunpack.c.h.b16 %v6354
    %v9446 = vunpack.c.l.b16 %v6355
    %v9447 = vunpack.c.h.b16 %v6355
    %v9448 = vunpack.c.l.b16 %v6356
    %v9449 = vunpack.c.h.b16 %v6356
    %v9450 = vunpack.c.l.b16 %v6357
    %v9451 = vunpack.c.h.b16 %v6357
    %v9452 = vunpack.c.l.b16 %v6358
    %v9453 = vunpack.c.h.b16 %v6358
    %v9454 = vunpack.c.l.b16 %v6359
    %v9455 = vunpack.c.h.b16 %v6359
    %v9456 = vunpack.c.l.b16 %v6360
    %v9457 = vunpack.c.h.b16 %v6360
    %v9458 = vunpack.c.l.b16 %v6361
    %v9459 = vunpack.c.h.b16 %v6361
    %v9460 = vunpack.c.l.b16 %v6362
    %v9461 = vunpack.c.h.b16 %v6362
    %v9462 = vunpack.c.l.b16 %v6363
    %v9463 = vunpack.c.h.b16 %v6363
    %v9464 = vunpack.c.l.b16 %v6364
    %v9465 = vunpack.c.h.b16 %v6364
    %v9466 = vunpack.c.l.b16 %v6365
    %v9467 = vunpack.c.h.b16 %v6365
    %v9468 = vunpack.c.l.b16 %v6366
    %v9469 = vunpack.c.h.b16 %v6366
    %v9470 = vunpack.c.l.b16 %v6367
    %v9471 = vunpack.c.h.b16 %v6367
    %v9472 = vunpack.c.l.b16 %v6368
    %v9473 = vunpack.c.h.b16 %v6368
    %v9474 = vunpack.c.l.b16 %v6369
    %v9475 = vunpack.c.h.b16 %v6369
    %v9476 = vpack.c.b16 %v7436, %v7428
    %v9477 = vpack.c.b16 %v7437, %v7429
    %v9478 = vpack.c.b16 %v7438, %v7430
    %v9479 = vpack.c.b16 %v7439, %v7431
    %v9480 = vpack.c.b16 %v7440, %v7432
    %v9481 = vpack.c.b16 %v7441, %v7433
    %v9482 = vpack.c.b16 %v7442, %v7434
    %v9483 = vpack.c.b16 %v7443, %v7435
    %v9484 = vpack.c.b16 %v7452, %v7444
    %v9485 = vpack.c.b16 %v7453, %v7445
    %v9486 = vpack.c.b16 %v7454, %v7446
    %v9487 = vpack.c.b16 %v7455, %v7447
    %v9488 = vpack.c.b16 %v7456, %v7448
    %v9489 = vpack.c.b16 %v7457, %v7449
    %v9490 = vpack.c.b16 %v7458, %v7450
    %v9491 = vpack.c.b16 %v7459, %v7451
    %v9492 = vpack.c.b16 %v7468, %v7460
    %v9493 = vpack.c.b16 %v7469, %v7461
    %v9494 = vpack.c.b16 %v7470, %v7462
    %v9495 = vpack.c.b16 %v7471, %v7463
    %v9496 = vpack.c.b16 %v7472, %v7464
    %v9497 = vpack.c.b16 %v7473, %v7465
    %v9498 = vpack.c.b16 %v7474, %v7466
    %v9499 = vpack.c.b16 %v7475, %v7467
    %v9500 = vpack.c.b16 %v7484, %v7476
    %v9501 = vpack.c.b16 %v7485, %v7477
    %v9502 = vpack.c.b16 %v7486, %v7478
    %v9503 = vpack.c.b16 %v7487, %v7479
    %v9504 = vpack.c.b16 %v7488, %v7480
    %v9505 = vpack.c.b16 %v7489, %v7481
    %v9506 = vpack.c.b16 %v7490, %v7482
    %v9507 = vpack.c.b16 %v7491, %v7483
    %v9508 = vpack.c.b16 %v7500, %v7492
    %v9509 = vpack.c.b16 %v7501, %v7493
    %v9510 = vpack.c.b16 %v7502, %v7494
    %v9511 = vpack.c.b16 %v7503, %v7495
    %v9512 = vpack.c.b16 %v7504, %v7496
    %v9513 = vpack.c.b16 %v7505, %v7497
    %v9514 = vpack.c.b16 %v7506, %v7498
    %v9515 = vpack.c.b16 %v7507, %v7499
    %v9516 = vpack.c.b16 %v7516, %v7508
    %v9517 = vpack.c.b16 %v7517, %v7509
    %v9518 = vpack.c.b16 %v7518, %v7510
    %v9519 = vpack.c.b16 %v7519, %v7511
    %v9520 = vpack.c.b16 %v7520, %v7512
    %v9521 = vpack.c.b16 %v7521, %v7513
    %v9522 = vpack.c.b16 %v7522, %v7514
    %v9523 = vpack.c.b16 %v7523, %v7515
    %v9524 = vpack.c.b16 %v7532, %v7524
    %v9525 = vpack.c.b16 %v7533, %v7525
    %v9526 = vpack.c.b16 %v7534, %v7526
    %v9527 = vpack.c.b16 %v7535, %v7527
    %v9528 = vpack.c.b16 %v7536, %v7528
    %v9529 = vpack.c.b16 %v7537, %v7529
    %v9530 = vpack.c.b16 %v7538, %v7530
    %v9531 = vpack.c.b16 %v7539, %v7531
    %v9532 = vpack.c.b16 %v7548, %v7540
    %v9533 = vpack.c.b16 %v7549, %v7541
    %v9534 = vpack.c.b16 %v7550, %v7542
    %v9535 = vpack.c.b16 %v7551, %v7543
    %v9536 = vpack.c.b16 %v7552, %v7544
    %v9537 = vpack.c.b16 %v7553, %v7545
    %v9538 = vpack.c.b16 %v7554, %v7546
    %v9539 = vpack.c.b16 %v7555, %v7547
    %v9540 = vpack.c.b16 %v7564, %v7556
    %v9541 = vpack.c.b16 %v7565, %v7557
    %v9542 = vpack.c.b16 %v7566, %v7558
    %v9543 = vpack.c.b16 %v7567, %v7559
    %v9544 = vpack.c.b16 %v7568, %v7560
    %v9545 = vpack.c.b16 %v7569, %v7561
    %v9546 = vpack.c.b16 %v7570, %v7562
    %v9547 = vpack.c.b16 %v7571, %v7563
    %v9548 = vpack.c.b16 %v7580, %v7572
    %v9549 = vpack.c.b16 %v7581, %v7573
    %v9550 = vpack.c.b16 %v7582, %v7574
    %v9551 = vpack.c.b16 %v7583, %v7575
    %v9552 = vpack.c.b16 %v7584, %v7576
    %v9553 = vpack.c.b16 %v7585, %v7577
    %v9554 = vpack.c.b16 %v7586, %v7578
    %v9555 = vpack.c.b16 %v7587, %v7579
    %v9556 = vpack.c.b16 %v7596, %v7588
    %v9557 = vpack.c.b16 %v7597, %v7589
    %v9558 = vpack.c.b16 %v7598, %v7590
    %v9559 = vpack.c.b16 %v7599, %v7591
    %v9560 = vpack.c.b16 %v7600, %v7592
    %v9561 = vpack.c.b16 %v7601, %v7593
    %v9562 = vpack.c.b16 %v7602, %v7594
    %v9563 = vpack.c.b16 %v7603, %v7595
    %v9564 = vpack.c.b16 %v7612, %v7604
    %v9565 = vpack.c.b16 %v7613, %v7605
    %v9566 = vpack.c.b16 %v7614, %v7606
    %v9567 = vpack.c.b16 %v7615, %v7607
    %v9568 = vpack.c.b16 %v7616, %v7608
    %v9569 = vpack.c.b16 %v7617, %v7609
    %v9570 = vpack.c.b16 %v7618, %v7610
    %v9571 = vpack.c.b16 %v7619, %v7611
    %v9572 = vpack.c.b16 %v7628, %v7620
    %v9573 = vpack.c.b16 %v7629, %v7621
    %v9574 = vpack.c.b16 %v7630, %v7622
    %v9575 = vpack.c.b16 %v7631, %v7623
    %v9576 = vpack.c.b16 %v7632, %v7624
    %v9577 = vpack.c.b16 %v7633, %v7625
    %v9578 = vpack.c.b16 %v7634, %v7626
    %v9579 = vpack.c.b16 %v7635, %v7627
    %v9580 = vpack.c.b16 %v7644, %v7636
    %v9581 = vpack.c.b16 %v7645, %v7637
    %v9582 = vpack.c.b16 %v7646, %v7638
    %v9583 = vpack.c.b16 %v7647, %v7639
    %v9584 = vpack.c.b16 %v7648, %v7640
    %v9585 = vpack.c.b16 %v7649, %v7641
    %v9586 = vpack.c.b16 %v7650, %v7642
    %v9587 = vpack.c.b16 %v7651, %v7643
    %v9588 = vpack.c.b16 %v7660, %v7652
    %v9589 = vpack.c.b16 %v7661, %v7653
    %v9590 = vpack.c.b16 %v7662, %v7654
    %v9591 = vpack.c.b16 %v7663, %v7655
    %v9592 = vpack.c.b16 %v7664, %v7656
    %v9593 = vpack.c.b16 %v7665, %v7657
    %v9594 = vpack.c.b16 %v7666, %v7658
    %v9595 = vpack.c.b16 %v7667, %v7659
    %v9596 = vpack.c.b16 %v7676, %v7668
    %v9597 = vpack.c.b16 %v7677, %v7669
    %v9598 = vpack.c.b16 %v7678, %v7670
    %v9599 = vpack.c.b16 %v7679, %v7671
    %v9600 = vpack.c.b16 %v7680, %v7672
    %v9601 = vpack.c.b16 %v7681, %v7673
    %v9602 = vpack.c.b16 %v7682, %v7674
    %v9603 = vpack.c.b16 %v7683, %v7675
    %v9604 = vpack.c.b16 %v7692, %v7684
    %v9605 = vpack.c.b16 %v7693, %v7685
    %v9606 = vpack.c.b16 %v7694, %v7686
    %v9607 = vpack.c.b16 %v7695, %v7687
    %v9608 = vpack.c.b16 %v7696, %v7688
    %v9609 = vpack.c.b16 %v7697, %v7689
    %v9610 = vpack.c.b16 %v7698, %v7690
    %v9611 = vpack.c.b16 %v7699, %v7691
    %v9612 = vpack.c.b16 %v7708, %v7700
    %v9613 = vpack.c.b16 %v7709, %v7701
    %v9614 = vpack.c.b16 %v7710, %v7702
    %v9615 = vpack.c.b16 %v7711, %v7703
    %v9616 = vpack.c.b16 %v7712, %v7704
    %v9617 = vpack.c.b16 %v7713, %v7705
    %v9618 = vpack.c.b16 %v7714, %v7706
    %v9619 = vpack.c.b16 %v7715, %v7707
    %v9620 = vpack.c.b16 %v7724, %v7716
    %v9621 = vpack.c.b16 %v7725, %v7717
    %v9622 = vpack.c.b16 %v7726, %v7718
    %v9623 = vpack.c.b16 %v7727, %v7719
    %v9624 = vpack.c.b16 %v7728, %v7720
    %v9625 = vpack.c.b16 %v7729, %v7721
    %v9626 = vpack.c.b16 %v7730, %v7722
    %v9627 = vpack.c.b16 %v7731, %v7723
    %v9628 = vpack.c.b16 %v7740, %v7732
    %v9629 = vpack.c.b16 %v7741, %v7733
    %v9630 = vpack.c.b16 %v7742, %v7734
    %v9631 = vpack.c.b16 %v7743, %v7735
    %v9632 = vpack.c.b16 %v7744, %v7736
    %v9633 = vpack.c.b16 %v7745, %v7737
    %v9634 = vpack.c.b16 %v7746, %v7738
    %v9635 = vpack.c.b16 %v7747, %v7739
    %v9636 = vpack.c.b16 %v7756, %v7748
    %v9637 = vpack.c.b16 %v7757, %v7749
    %v9638 = vpack.c.b16 %v7758, %v7750
    %v9639 = vpack.c.b16 %v7759, %v7751
    %v9640 = vpack.c.b16 %v7760, %v7752
    %v9641 = vpack.c.b16 %v7761, %v7753
    %v9642 = vpack.c.b16 %v7762, %v7754
    %v9643 = vpack.c.b16 %v7763, %v7755
    %v9644 = vpack.c.b16 %v7772, %v7764
    %v9645 = vpack.c.b16 %v7773, %v7765
    %v9646 = vpack.c.b16 %v7774, %v7766
    %v9647 = vpack.c.b16 %v7775, %v7767
    %v9648 = vpack.c.b16 %v7776, %v7768
    %v9649 = vpack.c.b16 %v7777, %v7769
    %v9650 = vpack.c.b16 %v7778, %v7770
    %v9651 = vpack.c.b16 %v7779, %v7771
    %v9652 = vpack.c.b16 %v7788, %v7780
    %v9653 = vpack.c.b16 %v7789, %v7781
    %v9654 = vpack.c.b16 %v7790, %v7782
    %v9655 = vpack.c.b16 %v7791, %v7783
    %v9656 = vpack.c.b16 %v7792, %v7784
    %v9657 = vpack.c.b16 %v7793, %v7785
    %v9658 = vpack.c.b16 %v7794, %v7786
    %v9659 = vpack.c.b16 %v7795, %v7787
    %v9660 = vpack.c.b16 %v7804, %v7796
    %v9661 = vpack.c.b16 %v7805, %v7797
    %v9662 = vpack.c.b16 %v7806, %v7798
    %v9663 = vpack.c.b16 %v7807, %v7799
    %v9664 = vpack.c.b16 %v7808, %v7800
    %v9665 = vpack.c.b16 %v7809, %v7801
    %v9666 = vpack.c.b16 %v7810, %v7802
    %v9667 = vpack.c.b16 %v7811, %v7803
    %v9668 = vpack.c.b16 %v7820, %v7812
    %v9669 = vpack.c.b16 %v7821, %v7813
    %v9670 = vpack.c.b16 %v7822, %v7814
    %v9671 = vpack.c.b16 %v7823, %v7815
    %v9672 = vpack.c.b16 %v7824, %v7816
    %v9673 = vpack.c.b16 %v7825, %v7817
    %v9674 = vpack.c.b16 %v7826, %v7818
    %v9675 = vpack.c.b16 %v7827, %v7819
    %v9676 = vpack.c.b16 %v7836, %v7828
    %v9677 = vpack.c.b16 %v7837, %v7829
    %v9678 = vpack.c.b16 %v7838, %v7830
    %v9679 = vpack.c.b16 %v7839, %v7831
    %v9680 = vpack.c.b16 %v7840, %v7832
    %v9681 = vpack.c.b16 %v7841, %v7833
    %v9682 = vpack.c.b16 %v7842, %v7834
    %v9683 = vpack.c.b16 %v7843, %v7835
    %v9684 = vpack.c.b16 %v7852, %v7844
    %v9685 = vpack.c.b16 %v7853, %v7845
    %v9686 = vpack.c.b16 %v7854, %v7846
    %v9687 = vpack.c.b16 %v7855, %v7847
    %v9688 = vpack.c.b16 %v7856, %v7848
    %v9689 = vpack.c.b16 %v7857, %v7849
    %v9690 = vpack.c.b16 %v7858, %v7850
    %v9691 = vpack.c.b16 %v7859, %v7851
    %v9692 = vpack.c.b16 %v7868, %v7860
    %v9693 = vpack.c.b16 %v7869, %v7861
    %v9694 = vpack.c.b16 %v7870, %v7862
    %v9695 = vpack.c.b16 %v7871, %v7863
    %v9696 = vpack.c.b16 %v7872, %v7864
    %v9697 = vpack.c.b16 %v7873, %v7865
    %v9698 = vpack.c.b16 %v7874, %v7866
    %v9699 = vpack.c.b16 %v7875, %v7867
    %v9700 = vpack.c.b16 %v7884, %v7876
    %v9701 = vpack.c.b16 %v7885, %v7877
    %v9702 = vpack.c.b16 %v7886, %v7878
    %v9703 = vpack.c.b16 %v7887, %v7879
    %v9704 = vpack.c.b16 %v7888, %v7880
    %v9705 = vpack.c.b16 %v7889, %v7881
    %v9706 = vpack.c.b16 %v7890, %v7882
    %v9707 = vpack.c.b16 %v7891, %v7883
    %v9708 = vpack.c.b16 %v7900, %v7892
    %v9709 = vpack.c.b16 %v7901, %v7893
    %v9710 = vpack.c.b16 %v7902, %v7894
    %v9711 = vpack.c.b16 %v7903, %v7895
    %v9712 = vpack.c.b16 %v7904, %v7896
    %v9713 = vpack.c.b16 %v7905, %v7897
    %v9714 = vpack.c.b16 %v7906, %v7898
    %v9715 = vpack.c.b16 %v7907, %v7899
    %v9716 = vpack.c.b16 %v7916, %v7908
    %v9717 = vpack.c.b16 %v7917, %v7909
    %v9718 = vpack.c.b16 %v7918, %v7910
    %v9719 = vpack.c.b16 %v7919, %v7911
    %v9720 = vpack.c.b16 %v7920, %v7912
    %v9721 = vpack.c.b16 %v7921, %v7913
    %v9722 = vpack.c.b16 %v7922, %v7914
    %v9723 = vpack.c.b16 %v7923, %v7915
    %v9724 = vpack.c.b16 %v7932, %v7924
    %v9725 = vpack.c.b16 %v7933, %v7925
    %v9726 = vpack.c.b16 %v7934, %v7926
    %v9727 = vpack.c.b16 %v7935, %v7927
    %v9728 = vpack.c.b16 %v7936, %v7928
    %v9729 = vpack.c.b16 %v7937, %v7929
    %v9730 = vpack.c.b16 %v7938, %v7930
    %v9731 = vpack.c.b16 %v7939, %v7931
    %v9732 = vpack.c.b16 %v7948, %v7940
    %v9733 = vpack.c.b16 %v7949, %v7941
    %v9734 = vpack.c.b16 %v7950, %v7942
    %v9735 = vpack.c.b16 %v7951, %v7943
    %v9736 = vpack.c.b16 %v7952, %v7944
    %v9737 = vpack.c.b16 %v7953, %v7945
    %v9738 = vpack.c.b16 %v7954, %v7946
    %v9739 = vpack.c.b16 %v7955, %v7947
    %v9740 = vpack.c.b16 %v7964, %v7956
    %v9741 = vpack.c.b16 %v7965, %v7957
    %v9742 = vpack.c.b16 %v7966, %v7958
    %v9743 = vpack.c.b16 %v7967, %v7959
    %v9744 = vpack.c.b16 %v7968, %v7960
    %v9745 = vpack.c.b16 %v7969, %v7961
    %v9746 = vpack.c.b16 %v7970, %v7962
    %v9747 = vpack.c.b16 %v7971, %v7963
    %v9748 = vpack.c.b16 %v7980, %v7972
    %v9749 = vpack.c.b16 %v7981, %v7973
    %v9750 = vpack.c.b16 %v7982, %v7974
    %v9751 = vpack.c.b16 %v7983, %v7975
    %v9752 = vpack.c.b16 %v7984, %v7976
    %v9753 = vpack.c.b16 %v7985, %v7977
    %v9754 = vpack.c.b16 %v7986, %v7978
    %v9755 = vpack.c.b16 %v7987, %v7979
    %v9756 = vpack.c.b16 %v7996, %v7988
    %v9757 = vpack.c.b16 %v7997, %v7989
    %v9758 = vpack.c.b16 %v7998, %v7990
    %v9759 = vpack.c.b16 %v7999, %v7991
    %v9760 = vpack.c.b16 %v8000, %v7992
    %v9761 = vpack.c.b16 %v8001, %v7993
    %v9762 = vpack.c.b16 %v8002, %v7994
    %v9763 = vpack.c.b16 %v8003, %v7995
    %v9764 = vpack.c.b16 %v8012, %v8004
    %v9765 = vpack.c.b16 %v8013, %v8005
    %v9766 = vpack.c.b16 %v8014, %v8006
    %v9767 = vpack.c.b16 %v8015, %v8007
    %v9768 = vpack.c.b16 %v8016, %v8008
    %v9769 = vpack.c.b16 %v8017, %v8009
    %v9770 = vpack.c.b16 %v8018, %v8010
    %v9771 = vpack.c.b16 %v8019, %v8011
    %v9772 = vpack.c.b16 %v8028, %v8020
    %v9773 = vpack.c.b16 %v8029, %v8021
    %v9774 = vpack.c.b16 %v8030, %v8022
    %v9775 = vpack.c.b16 %v8031, %v8023
    %v9776 = vpack.c.b16 %v8032, %v8024
    %v9777 = vpack.c.b16 %v8033, %v8025
    %v9778 = vpack.c.b16 %v8034, %v8026
    %v9779 = vpack.c.b16 %v8035, %v8027
    %v9780 = vpack.c.b16 %v8044, %v8036
    %v9781 = vpack.c.b16 %v8045, %v8037
    %v9782 = vpack.c.b16 %v8046, %v8038
    %v9783 = vpack.c.b16 %v8047, %v8039
    %v9784 = vpack.c.b16 %v8048, %v8040
    %v9785 = vpack.c.b16 %v8049, %v8041
    %v9786 = vpack.c.b16 %v8050, %v8042
    %v9787 = vpack.c.b16 %v8051, %v8043
    %v9788 = vpack.c.b16 %v8060, %v8052
    %v9789 = vpack.c.b16 %v8061, %v8053
    %v9790 = vpack.c.b16 %v8062, %v8054
    %v9791 = vpack.c.b16 %v8063, %v8055
    %v9792 = vpack.c.b16 %v8064, %v8056
    %v9793 = vpack.c.b16 %v8065, %v8057
    %v9794 = vpack.c.b16 %v8066, %v8058
    %v9795 = vpack.c.b16 %v8067, %v8059
    %v9796 = vpack.c.b16 %v8076, %v8068
    %v9797 = vpack.c.b16 %v8077, %v8069
    %v9798 = vpack.c.b16 %v8078, %v8070
    %v9799 = vpack.c.b16 %v8079, %v8071
    %v9800 = vpack.c.b16 %v8080, %v8072
    %v9801 = vpack.c.b16 %v8081, %v8073
    %v9802 = vpack.c.b16 %v8082, %v8074
    %v9803 = vpack.c.b16 %v8083, %v8075
    %v9804 = vpack.c.b16 %v8092, %v8084
    %v9805 = vpack.c.b16 %v8093, %v8085
    %v9806 = vpack.c.b16 %v8094, %v8086
    %v9807 = vpack.c.b16 %v8095, %v8087
    %v9808 = vpack.c.b16 %v8096, %v8088
    %v9809 = vpack.c.b16 %v8097, %v8089
    %v9810 = vpack.c.b16 %v8098, %v8090
    %v9811 = vpack.c.b16 %v8099, %v8091
    %v9812 = vpack.c.b16 %v8108, %v8100
    %v9813 = vpack.c.b16 %v8109, %v8101
    %v9814 = vpack.c.b16 %v8110, %v8102
    %v9815 = vpack.c.b16 %v8111, %v8103
    %v9816 = vpack.c.b16 %v8112, %v8104
    %v9817 = vpack.c.b16 %v8113, %v8105
    %v9818 = vpack.c.b16 %v8114, %v8106
    %v9819 = vpack.c.b16 %v8115, %v8107
    %v9820 = vpack.c.b16 %v8124, %v8116
    %v9821 = vpack.c.b16 %v8125, %v8117
    %v9822 = vpack.c.b16 %v8126, %v8118
    %v9823 = vpack.c.b16 %v8127, %v8119
    %v9824 = vpack.c.b16 %v8128, %v8120
    %v9825 = vpack.c.b16 %v8129, %v8121
    %v9826 = vpack.c.b16 %v8130, %v8122
    %v9827 = vpack.c.b16 %v8131, %v8123
    %v9828 = vpack.c.b16 %v8140, %v8132
    %v9829 = vpack.c.b16 %v8141, %v8133
    %v9830 = vpack.c.b16 %v8142, %v8134
    %v9831 = vpack.c.b16 %v8143, %v8135
    %v9832 = vpack.c.b16 %v8144, %v8136
    %v9833 = vpack.c.b16 %v8145, %v8137
    %v9834 = vpack.c.b16 %v8146, %v8138
    %v9835 = vpack.c.b16 %v8147, %v8139
    %v9836 = vpack.c.b16 %v8156, %v8148
    %v9837 = vpack.c.b16 %v8157, %v8149
    %v9838 = vpack.c.b16 %v8158, %v8150
    %v9839 = vpack.c.b16 %v8159, %v8151
    %v9840 = vpack.c.b16 %v8160, %v8152
    %v9841 = vpack.c.b16 %v8161, %v8153
    %v9842 = vpack.c.b16 %v8162, %v8154
    %v9843 = vpack.c.b16 %v8163, %v8155
    %v9844 = vpack.c.b16 %v8172, %v8164
    %v9845 = vpack.c.b16 %v8173, %v8165
    %v9846 = vpack.c.b16 %v8174, %v8166
    %v9847 = vpack.c.b16 %v8175, %v8167
    %v9848 = vpack.c.b16 %v8176, %v8168
    %v9849 = vpack.c.b16 %v8177, %v8169
    %v9850 = vpack.c.b16 %v8178, %v8170
    %v9851 = vpack.c.b16 %v8179, %v8171
    %v9852 = vpack.c.b16 %v8188, %v8180
    %v9853 = vpack.c.b16 %v8189, %v8181
    %v9854 = vpack.c.b16 %v8190, %v8182
    %v9855 = vpack.c.b16 %v8191, %v8183
    %v9856 = vpack.c.b16 %v8192, %v8184
    %v9857 = vpack.c.b16 %v8193, %v8185
    %v9858 = vpack.c.b16 %v8194, %v8186
    %v9859 = vpack.c.b16 %v8195, %v8187
    %v9860 = vpack.c.b16 %v8204, %v8196
    %v9861 = vpack.c.b16 %v8205, %v8197
    %v9862 = vpack.c.b16 %v8206, %v8198
    %v9863 = vpack.c.b16 %v8207, %v8199
    %v9864 = vpack.c.b16 %v8208, %v8200
    %v9865 = vpack.c.b16 %v8209, %v8201
    %v9866 = vpack.c.b16 %v8210, %v8202
    %v9867 = vpack.c.b16 %v8211, %v8203
    %v9868 = vpack.c.b16 %v8220, %v8212
    %v9869 = vpack.c.b16 %v8221, %v8213
    %v9870 = vpack.c.b16 %v8222, %v8214
    %v9871 = vpack.c.b16 %v8223, %v8215
    %v9872 = vpack.c.b16 %v8224, %v8216
    %v9873 = vpack.c.b16 %v8225, %v8217
    %v9874 = vpack.c.b16 %v8226, %v8218
    %v9875 = vpack.c.b16 %v8227, %v8219
    %v9876 = vpack.c.b16 %v8236, %v8228
    %v9877 = vpack.c.b16 %v8237, %v8229
    %v9878 = vpack.c.b16 %v8238, %v8230
    %v9879 = vpack.c.b16 %v8239, %v8231
    %v9880 = vpack.c.b16 %v8240, %v8232
    %v9881 = vpack.c.b16 %v8241, %v8233
    %v9882 = vpack.c.b16 %v8242, %v8234
    %v9883 = vpack.c.b16 %v8243, %v8235
    %v9884 = vpack.c.b16 %v8252, %v8244
    %v9885 = vpack.c.b16 %v8253, %v8245
    %v9886 = vpack.c.b16 %v8254, %v8246
    %v9887 = vpack.c.b16 %v8255, %v8247
    %v9888 = vpack.c.b16 %v8256, %v8248
    %v9889 = vpack.c.b16 %v8257, %v8249
    %v9890 = vpack.c.b16 %v8258, %v8250
    %v9891 = vpack.c.b16 %v8259, %v8251
    %v9892 = vpack.c.b16 %v8268, %v8260
    %v9893 = vpack.c.b16 %v8269, %v8261
    %v9894 = vpack.c.b16 %v8270, %v8262
    %v9895 = vpack.c.b16 %v8271, %v8263
    %v9896 = vpack.c.b16 %v8272, %v8264
    %v9897 = vpack.c.b16 %v8273, %v8265
    %v9898 = vpack.c.b16 %v8274, %v8266
    %v9899 = vpack.c.b16 %v8275, %v8267
    %v9900 = vpack.c.b16 %v8284, %v8276
    %v9901 = vpack.c.b16 %v8285, %v8277
    %v9902 = vpack.c.b16 %v8286, %v8278
    %v9903 = vpack.c.b16 %v8287, %v8279
    %v9904 = vpack.c.b16 %v8288, %v8280
    %v9905 = vpack.c.b16 %v8289, %v8281
    %v9906 = vpack.c.b16 %v8290, %v8282
    %v9907 = vpack.c.b16 %v8291, %v8283
    %v9908 = vpack.c.b16 %v8300, %v8292
    %v9909 = vpack.c.b16 %v8301, %v8293
    %v9910 = vpack.c.b16 %v8302, %v8294
    %v9911 = vpack.c.b16 %v8303, %v8295
    %v9912 = vpack.c.b16 %v8304, %v8296
    %v9913 = vpack.c.b16 %v8305, %v8297
    %v9914 = vpack.c.b16 %v8306, %v8298
    %v9915 = vpack.c.b16 %v8307, %v8299
    %v9916 = vpack.c.b16 %v8316, %v8308
    %v9917 = vpack.c.b16 %v8317, %v8309
    %v9918 = vpack.c.b16 %v8318, %v8310
    %v9919 = vpack.c.b16 %v8319, %v8311
    %v9920 = vpack.c.b16 %v8320, %v8312
    %v9921 = vpack.c.b16 %v8321, %v8313
    %v9922 = vpack.c.b16 %v8322, %v8314
    %v9923 = vpack.c.b16 %v8323, %v8315
    %v9924 = vpack.c.b16 %v8332, %v8324
    %v9925 = vpack.c.b16 %v8333, %v8325
    %v9926 = vpack.c.b16 %v8334, %v8326
    %v9927 = vpack.c.b16 %v8335, %v8327
    %v9928 = vpack.c.b16 %v8336, %v8328
    %v9929 = vpack.c.b16 %v8337, %v8329
    %v9930 = vpack.c.b16 %v8338, %v8330
    %v9931 = vpack.c.b16 %v8339, %v8331
    %v9932 = vpack.c.b16 %v8348, %v8340
    %v9933 = vpack.c.b16 %v8349, %v8341
    %v9934 = vpack.c.b16 %v8350, %v8342
    %v9935 = vpack.c.b16 %v8351, %v8343
    %v9936 = vpack.c.b16 %v8352, %v8344
    %v9937 = vpack.c.b16 %v8353, %v8345
    %v9938 = vpack.c.b16 %v8354, %v8346
    %v9939 = vpack.c.b16 %v8355, %v8347
    %v9940 = vpack.c.b16 %v8364, %v8356
    %v9941 = vpack.c.b16 %v8365, %v8357
    %v9942 = vpack.c.b16 %v8366, %v8358
    %v9943 = vpack.c.b16 %v8367, %v8359
    %v9944 = vpack.c.b16 %v8368, %v8360
    %v9945 = vpack.c.b16 %v8369, %v8361
    %v9946 = vpack.c.b16 %v8370, %v8362
    %v9947 = vpack.c.b16 %v8371, %v8363
    %v9948 = vpack.c.b16 %v8380, %v8372
    %v9949 = vpack.c.b16 %v8381, %v8373
    %v9950 = vpack.c.b16 %v8382, %v8374
    %v9951 = vpack.c.b16 %v8383, %v8375
    %v9952 = vpack.c.b16 %v8384, %v8376
    %v9953 = vpack.c.b16 %v8385, %v8377
    %v9954 = vpack.c.b16 %v8386, %v8378
    %v9955 = vpack.c.b16 %v8387, %v8379
    %v9956 = vpack.c.b16 %v8396, %v8388
    %v9957 = vpack.c.b16 %v8397, %v8389
    %v9958 = vpack.c.b16 %v8398, %v8390
    %v9959 = vpack.c.b16 %v8399, %v8391
    %v9960 = vpack.c.b16 %v8400, %v8392
    %v9961 = vpack.c.b16 %v8401, %v8393
    %v9962 = vpack.c.b16 %v8402, %v8394
    %v9963 = vpack.c.b16 %v8403, %v8395
    %v9964 = vpack.c.b16 %v8412, %v8404
    %v9965 = vpack.c.b16 %v8413, %v8405
    %v9966 = vpack.c.b16 %v8414, %v8406
    %v9967 = vpack.c.b16 %v8415, %v8407
    %v9968 = vpack.c.b16 %v8416, %v8408
    %v9969 = vpack.c.b16 %v8417, %v8409
    %v9970 = vpack.c.b16 %v8418, %v8410
    %v9971 = vpack.c.b16 %v8419, %v8411
    %v9972 = vpack.c.b16 %v8428, %v8420
    %v9973 = vpack.c.b16 %v8429, %v8421
    %v9974 = vpack.c.b16 %v8430, %v8422
    %v9975 = vpack.c.b16 %v8431, %v8423
    %v9976 = vpack.c.b16 %v8432, %v8424
    %v9977 = vpack.c.b16 %v8433, %v8425
    %v9978 = vpack.c.b16 %v8434, %v8426
    %v9979 = vpack.c.b16 %v8435, %v8427
    %v9980 = vpack.c.b16 %v8444, %v8436
    %v9981 = vpack.c.b16 %v8445, %v8437
    %v9982 = vpack.c.b16 %v8446, %v8438
    %v9983 = vpack.c.b16 %v8447, %v8439
    %v9984 = vpack.c.b16 %v8448, %v8440
    %v9985 = vpack.c.b16 %v8449, %v8441
    %v9986 = vpack.c.b16 %v8450, %v8442
    %v9987 = vpack.c.b16 %v8451, %v8443
    %v9988 = vpack.c.b16 %v8460, %v8452
    %v9989 = vpack.c.b16 %v8461, %v8453
    %v9990 = vpack.c.b16 %v8462, %v8454
    %v9991 = vpack.c.b16 %v8463, %v8455
    %v9992 = vpack.c.b16 %v8464, %v8456
    %v9993 = vpack.c.b16 %v8465, %v8457
    %v9994 = vpack.c.b16 %v8466, %v8458
    %v9995 = vpack.c.b16 %v8467, %v8459
    %v9996 = vpack.c.b16 %v8476, %v8468
    %v9997 = vpack.c.b16 %v8477, %v8469
    %v9998 = vpack.c.b16 %v8478, %v8470
    %v9999 = vpack.c.b16 %v8479, %v8471
    %v10000 = vpack.c.b16 %v8480, %v8472
    %v10001 = vpack.c.b16 %v8481, %v8473
    %v10002 = vpack.c.b16 %v8482, %v8474
    %v10003 = vpack.c.b16 %v8483, %v8475
    %v10004 = vpack.c.b16 %v8492, %v8484
    %v10005 = vpack.c.b16 %v8493, %v8485
    %v10006 = vpack.c.b16 %v8494, %v8486
    %v10007 = vpack.c.b16 %v8495, %v8487
    %v10008 = vpack.c.b16 %v8496, %v8488
    %v10009 = vpack.c.b16 %v8497, %v8489
    %v10010 = vpack.c.b16 %v8498, %v8490
    %v10011 = vpack.c.b16 %v8499, %v8491
    %v10012 = vpack.c.b16 %v8508, %v8500
    %v10013 = vpack.c.b16 %v8509, %v8501
    %v10014 = vpack.c.b16 %v8510, %v8502
    %v10015 = vpack.c.b16 %v8511, %v8503
    %v10016 = vpack.c.b16 %v8512, %v8504
    %v10017 = vpack.c.b16 %v8513, %v8505
    %v10018 = vpack.c.b16 %v8514, %v8506
    %v10019 = vpack.c.b16 %v8515, %v8507
    %v10020 = vpack.c.b16 %v8524, %v8516
    %v10021 = vpack.c.b16 %v8525, %v8517
    %v10022 = vpack.c.b16 %v8526, %v8518
    %v10023 = vpack.c.b16 %v8527, %v8519
    %v10024 = vpack.c.b16 %v8528, %v8520
    %v10025 = vpack.c.b16 %v8529, %v8521
    %v10026 = vpack.c.b16 %v8530, %v8522
    %v10027 = vpack.c.b16 %v8531, %v8523
    %v10028 = vpack.c.b16 %v8540, %v8532
    %v10029 = vpack.c.b16 %v8541, %v8533
    %v10030 = vpack.c.b16 %v8542, %v8534
    %v10031 = vpack.c.b16 %v8543, %v8535
    %v10032 = vpack.c.b16 %v8544, %v8536
    %v10033 = vpack.c.b16 %v8545, %v8537
    %v10034 = vpack.c.b16 %v8546, %v8538
    %v10035 = vpack.c.b16 %v8547, %v8539
    %v10036 = vpack.c.b16 %v8556, %v8548
    %v10037 = vpack.c.b16 %v8557, %v8549
    %v10038 = vpack.c.b16 %v8558, %v8550
    %v10039 = vpack.c.b16 %v8559, %v8551
    %v10040 = vpack.c.b16 %v8560, %v8552
    %v10041 = vpack.c.b16 %v8561, %v8553
    %v10042 = vpack.c.b16 %v8562, %v8554
    %v10043 = vpack.c.b16 %v8563, %v8555
    %v10044 = vpack.c.b16 %v8572, %v8564
    %v10045 = vpack.c.b16 %v8573, %v8565
    %v10046 = vpack.c.b16 %v8574, %v8566
    %v10047 = vpack.c.b16 %v8575, %v8567
    %v10048 = vpack.c.b16 %v8576, %v8568
    %v10049 = vpack.c.b16 %v8577, %v8569
    %v10050 = vpack.c.b16 %v8578, %v8570
    %v10051 = vpack.c.b16 %v8579, %v8571
    %v10052 = vpack.c.b16 %v8588, %v8580
    %v10053 = vpack.c.b16 %v8589, %v8581
    %v10054 = vpack.c.b16 %v8590, %v8582
    %v10055 = vpack.c.b16 %v8591, %v8583
    %v10056 = vpack.c.b16 %v8592, %v8584
    %v10057 = vpack.c.b16 %v8593, %v8585
    %v10058 = vpack.c.b16 %v8594, %v8586
    %v10059 = vpack.c.b16 %v8595, %v8587
    %v10060 = vpack.c.b16 %v8604, %v8596
    %v10061 = vpack.c.b16 %v8605, %v8597
    %v10062 = vpack.c.b16 %v8606, %v8598
    %v10063 = vpack.c.b16 %v8607, %v8599
    %v10064 = vpack.c.b16 %v8608, %v8600
    %v10065 = vpack.c.b16 %v8609, %v8601
    %v10066 = vpack.c.b16 %v8610, %v8602
    %v10067 = vpack.c.b16 %v8611, %v8603
    %v10068 = vpack.c.b16 %v8620, %v8612
    %v10069 = vpack.c.b16 %v8621, %v8613
    %v10070 = vpack.c.b16 %v8622, %v8614
    %v10071 = vpack.c.b16 %v8623, %v8615
    %v10072 = vpack.c.b16 %v8624, %v8616
    %v10073 = vpack.c.b16 %v8625, %v8617
    %v10074 = vpack.c.b16 %v8626, %v8618
    %v10075 = vpack.c.b16 %v8627, %v8619
    %v10076 = vpack.c.b16 %v8636, %v8628
    %v10077 = vpack.c.b16 %v8637, %v8629
    %v10078 = vpack.c.b16 %v8638, %v8630
    %v10079 = vpack.c.b16 %v8639, %v8631
    %v10080 = vpack.c.b16 %v8640, %v8632
    %v10081 = vpack.c.b16 %v8641, %v8633
    %v10082 = vpack.c.b16 %v8642, %v8634
    %v10083 = vpack.c.b16 %v8643, %v8635
    %v10084 = vpack.c.b16 %v8652, %v8644
    %v10085 = vpack.c.b16 %v8653, %v8645
    %v10086 = vpack.c.b16 %v8654, %v8646
    %v10087 = vpack.c.b16 %v8655, %v8647
    %v10088 = vpack.c.b16 %v8656, %v8648
    %v10089 = vpack.c.b16 %v8657, %v8649
    %v10090 = vpack.c.b16 %v8658, %v8650
    %v10091 = vpack.c.b16 %v8659, %v8651
    %v10092 = vpack.c.b16 %v8668, %v8660
    %v10093 = vpack.c.b16 %v8669, %v8661
    %v10094 = vpack.c.b16 %v8670, %v8662
    %v10095 = vpack.c.b16 %v8671, %v8663
    %v10096 = vpack.c.b16 %v8672, %v8664
    %v10097 = vpack.c.b16 %v8673, %v8665
    %v10098 = vpack.c.b16 %v8674, %v8666
    %v10099 = vpack.c.b16 %v8675, %v8667
    %v10100 = vpack.c.b16 %v8684, %v8676
    %v10101 = vpack.c.b16 %v8685, %v8677
    %v10102 = vpack.c.b16 %v8686, %v8678
    %v10103 = vpack.c.b16 %v8687, %v8679
    %v10104 = vpack.c.b16 %v8688, %v8680
    %v10105 = vpack.c.b16 %v8689, %v8681
    %v10106 = vpack.c.b16 %v8690, %v8682
    %v10107 = vpack.c.b16 %v8691, %v8683
    %v10108 = vpack.c.b16 %v8700, %v8692
    %v10109 = vpack.c.b16 %v8701, %v8693
    %v10110 = vpack.c.b16 %v8702, %v8694
    %v10111 = vpack.c.b16 %v8703, %v8695
    %v10112 = vpack.c.b16 %v8704, %v8696
    %v10113 = vpack.c.b16 %v8705, %v8697
    %v10114 = vpack.c.b16 %v8706, %v8698
    %v10115 = vpack.c.b16 %v8707, %v8699
    %v10116 = vpack.c.b16 %v8716, %v8708
    %v10117 = vpack.c.b16 %v8717, %v8709
    %v10118 = vpack.c.b16 %v8718, %v8710
    %v10119 = vpack.c.b16 %v8719, %v8711
    %v10120 = vpack.c.b16 %v8720, %v8712
    %v10121 = vpack.c.b16 %v8721, %v8713
    %v10122 = vpack.c.b16 %v8722, %v8714
    %v10123 = vpack.c.b16 %v8723, %v8715
    %v10124 = vpack.c.b16 %v8732, %v8724
    %v10125 = vpack.c.b16 %v8733, %v8725
    %v10126 = vpack.c.b16 %v8734, %v8726
    %v10127 = vpack.c.b16 %v8735, %v8727
    %v10128 = vpack.c.b16 %v8736, %v8728
    %v10129 = vpack.c.b16 %v8737, %v8729
    %v10130 = vpack.c.b16 %v8738, %v8730
    %v10131 = vpack.c.b16 %v8739, %v8731
    %v10132 = vpack.c.b16 %v8748, %v8740
    %v10133 = vpack.c.b16 %v8749, %v8741
    %v10134 = vpack.c.b16 %v8750, %v8742
    %v10135 = vpack.c.b16 %v8751, %v8743
    %v10136 = vpack.c.b16 %v8752, %v8744
    %v10137 = vpack.c.b16 %v8753, %v8745
    %v10138 = vpack.c.b16 %v8754, %v8746
    %v10139 = vpack.c.b16 %v8755, %v8747
    %v10140 = vpack.c.b16 %v8764, %v8756
    %v10141 = vpack.c.b16 %v8765, %v8757
    %v10142 = vpack.c.b16 %v8766, %v8758
    %v10143 = vpack.c.b16 %v8767, %v8759
    %v10144 = vpack.c.b16 %v8768, %v8760
    %v10145 = vpack.c.b16 %v8769, %v8761
    %v10146 = vpack.c.b16 %v8770, %v8762
    %v10147 = vpack.c.b16 %v8771, %v8763
    %v10148 = vpack.c.b16 %v8780, %v8772
    %v10149 = vpack.c.b16 %v8781, %v8773
    %v10150 = vpack.c.b16 %v8782, %v8774
    %v10151 = vpack.c.b16 %v8783, %v8775
    %v10152 = vpack.c.b16 %v8784, %v8776
    %v10153 = vpack.c.b16 %v8785, %v8777
    %v10154 = vpack.c.b16 %v8786, %v8778
    %v10155 = vpack.c.b16 %v8787, %v8779
    %v10156 = vpack.c.b16 %v8796, %v8788
    %v10157 = vpack.c.b16 %v8797, %v8789
    %v10158 = vpack.c.b16 %v8798, %v8790
    %v10159 = vpack.c.b16 %v8799, %v8791
    %v10160 = vpack.c.b16 %v8800, %v8792
    %v10161 = vpack.c.b16 %v8801, %v8793
    %v10162 = vpack.c.b16 %v8802, %v8794
    %v10163 = vpack.c.b16 %v8803, %v8795
    %v10164 = vpack.c.b16 %v8812, %v8804
    %v10165 = vpack.c.b16 %v8813, %v8805
    %v10166 = vpack.c.b16 %v8814, %v8806
    %v10167 = vpack.c.b16 %v8815, %v8807
    %v10168 = vpack.c.b16 %v8816, %v8808
    %v10169 = vpack.c.b16 %v8817, %v8809
    %v10170 = vpack.c.b16 %v8818, %v8810
    %v10171 = vpack.c.b16 %v8819, %v8811
    %v10172 = vpack.c.b16 %v8828, %v8820
    %v10173 = vpack.c.b16 %v8829, %v8821
    %v10174 = vpack.c.b16 %v8830, %v8822
    %v10175 = vpack.c.b16 %v8831, %v8823
    %v10176 = vpack.c.b16 %v8832, %v8824
    %v10177 = vpack.c.b16 %v8833, %v8825
    %v10178 = vpack.c.b16 %v8834, %v8826
    %v10179 = vpack.c.b16 %v8835, %v8827
    %v10180 = vpack.c.b16 %v8844, %v8836
    %v10181 = vpack.c.b16 %v8845, %v8837
    %v10182 = vpack.c.b16 %v8846, %v8838
    %v10183 = vpack.c.b16 %v8847, %v8839
    %v10184 = vpack.c.b16 %v8848, %v8840
    %v10185 = vpack.c.b16 %v8849, %v8841
    %v10186 = vpack.c.b16 %v8850, %v8842
    %v10187 = vpack.c.b16 %v8851, %v8843
    %v10188 = vpack.c.b16 %v8860, %v8852
    %v10189 = vpack.c.b16 %v8861, %v8853
    %v10190 = vpack.c.b16 %v8862, %v8854
    %v10191 = vpack.c.b16 %v8863, %v8855
    %v10192 = vpack.c.b16 %v8864, %v8856
    %v10193 = vpack.c.b16 %v8865, %v8857
    %v10194 = vpack.c.b16 %v8866, %v8858
    %v10195 = vpack.c.b16 %v8867, %v8859
    %v10196 = vpack.c.b16 %v8876, %v8868
    %v10197 = vpack.c.b16 %v8877, %v8869
    %v10198 = vpack.c.b16 %v8878, %v8870
    %v10199 = vpack.c.b16 %v8879, %v8871
    %v10200 = vpack.c.b16 %v8880, %v8872
    %v10201 = vpack.c.b16 %v8881, %v8873
    %v10202 = vpack.c.b16 %v8882, %v8874
    %v10203 = vpack.c.b16 %v8883, %v8875
    %v10204 = vpack.c.b16 %v8892, %v8884
    %v10205 = vpack.c.b16 %v8893, %v8885
    %v10206 = vpack.c.b16 %v8894, %v8886
    %v10207 = vpack.c.b16 %v8895, %v8887
    %v10208 = vpack.c.b16 %v8896, %v8888
    %v10209 = vpack.c.b16 %v8897, %v8889
    %v10210 = vpack.c.b16 %v8898, %v8890
    %v10211 = vpack.c.b16 %v8899, %v8891
    %v10212 = vpack.c.b16 %v8908, %v8900
    %v10213 = vpack.c.b16 %v8909, %v8901
    %v10214 = vpack.c.b16 %v8910, %v8902
    %v10215 = vpack.c.b16 %v8911, %v8903
    %v10216 = vpack.c.b16 %v8912, %v8904
    %v10217 = vpack.c.b16 %v8913, %v8905
    %v10218 = vpack.c.b16 %v8914, %v8906
    %v10219 = vpack.c.b16 %v8915, %v8907
    %v10220 = vpack.c.b16 %v8924, %v8916
    %v10221 = vpack.c.b16 %v8925, %v8917
    %v10222 = vpack.c.b16 %v8926, %v8918
    %v10223 = vpack.c.b16 %v8927, %v8919
    %v10224 = vpack.c.b16 %v8928, %v8920
    %v10225 = vpack.c.b16 %v8929, %v8921
    %v10226 = vpack.c.b16 %v8930, %v8922
    %v10227 = vpack.c.b16 %v8931, %v8923
    %v10228 = vpack.c.b16 %v8940, %v8932
    %v10229 = vpack.c.b16 %v8941, %v8933
    %v10230 = vpack.c.b16 %v8942, %v8934
    %v10231 = vpack.c.b16 %v8943, %v8935
    %v10232 = vpack.c.b16 %v8944, %v8936
    %v10233 = vpack.c.b16 %v8945, %v8937
    %v10234 = vpack.c.b16 %v8946, %v8938
    %v10235 = vpack.c.b16 %v8947, %v8939
    %v10236 = vpack.c.b16 %v8956, %v8948
    %v10237 = vpack.c.b16 %v8957, %v8949
    %v10238 = vpack.c.b16 %v8958, %v8950
    %v10239 = vpack.c.b16 %v8959, %v8951
    %v10240 = vpack.c.b16 %v8960, %v8952
    %v10241 = vpack.c.b16 %v8961, %v8953
    %v10242 = vpack.c.b16 %v8962, %v8954
    %v10243 = vpack.c.b16 %v8963, %v8955
    %v10244 = vpack.c.b16 %v8972, %v8964
    %v10245 = vpack.c.b16 %v8973, %v8965
    %v10246 = vpack.c.b16 %v8974, %v8966
    %v10247 = vpack.c.b16 %v8975, %v8967
    %v10248 = vpack.c.b16 %v8976, %v8968
    %v10249 = vpack.c.b16 %v8977, %v8969
    %v10250 = vpack.c.b16 %v8978, %v8970
    %v10251 = vpack.c.b16 %v8979, %v8971
    %v10252 = vpack.c.b16 %v8988, %v8980
    %v10253 = vpack.c.b16 %v8989, %v8981
    %v10254 = vpack.c.b16 %v8990, %v8982
    %v10255 = vpack.c.b16 %v8991, %v8983
    %v10256 = vpack.c.b16 %v8992, %v8984
    %v10257 = vpack.c.b16 %v8993, %v8985
    %v10258 = vpack.c.b16 %v8994, %v8986
    %v10259 = vpack.c.b16 %v8995, %v8987
    %v10260 = vpack.c.b16 %v9004, %v8996
    %v10261 = vpack.c.b16 %v9005, %v8997
    %v10262 = vpack.c.b16 %v9006, %v8998
    %v10263 = vpack.c.b16 %v9007, %v8999
    %v10264 = vpack.c.b16 %v9008, %v9000
    %v10265 = vpack.c.b16 %v9009, %v9001
    %v10266 = vpack.c.b16 %v9010, %v9002
    %v10267 = vpack.c.b16 %v9011, %v9003
    %v10268 = vpack.c.b16 %v9020, %v9012
    %v10269 = vpack.c.b16 %v9021, %v9013
    %v10270 = vpack.c.b16 %v9022, %v9014
    %v10271 = vpack.c.b16 %v9023, %v9015
    %v10272 = vpack.c.b16 %v9024, %v9016
    %v10273 = vpack.c.b16 %v9025, %v9017
    %v10274 = vpack.c.b16 %v9026, %v9018
    %v10275 = vpack.c.b16 %v9027, %v9019
    %v10276 = vpack.c.b16 %v9036, %v9028
    %v10277 = vpack.c.b16 %v9037, %v9029
    %v10278 = vpack.c.b16 %v9038, %v9030
    %v10279 = vpack.c.b16 %v9039, %v9031
    %v10280 = vpack.c.b16 %v9040, %v9032
    %v10281 = vpack.c.b16 %v9041, %v9033
    %v10282 = vpack.c.b16 %v9042, %v9034
    %v10283 = vpack.c.b16 %v9043, %v9035
    %v10284 = vpack.c.b16 %v9052, %v9044
    %v10285 = vpack.c.b16 %v9053, %v9045
    %v10286 = vpack.c.b16 %v9054, %v9046
    %v10287 = vpack.c.b16 %v9055, %v9047
    %v10288 = vpack.c.b16 %v9056, %v9048
    %v10289 = vpack.c.b16 %v9057, %v9049
    %v10290 = vpack.c.b16 %v9058, %v9050
    %v10291 = vpack.c.b16 %v9059, %v9051
    %v10292 = vpack.c.b16 %v9068, %v9060
    %v10293 = vpack.c.b16 %v9069, %v9061
    %v10294 = vpack.c.b16 %v9070, %v9062
    %v10295 = vpack.c.b16 %v9071, %v9063
    %v10296 = vpack.c.b16 %v9072, %v9064
    %v10297 = vpack.c.b16 %v9073, %v9065
    %v10298 = vpack.c.b16 %v9074, %v9066
    %v10299 = vpack.c.b16 %v9075, %v9067
    %v10300 = vpack.c.b16 %v9084, %v9076
    %v10301 = vpack.c.b16 %v9085, %v9077
    %v10302 = vpack.c.b16 %v9086, %v9078
    %v10303 = vpack.c.b16 %v9087, %v9079
    %v10304 = vpack.c.b16 %v9088, %v9080
    %v10305 = vpack.c.b16 %v9089, %v9081
    %v10306 = vpack.c.b16 %v9090, %v9082
    %v10307 = vpack.c.b16 %v9091, %v9083
    %v10308 = vpack.c.b16 %v9100, %v9092
    %v10309 = vpack.c.b16 %v9101, %v9093
    %v10310 = vpack.c.b16 %v9102, %v9094
    %v10311 = vpack.c.b16 %v9103, %v9095
    %v10312 = vpack.c.b16 %v9104, %v9096
    %v10313 = vpack.c.b16 %v9105, %v9097
    %v10314 = vpack.c.b16 %v9106, %v9098
    %v10315 = vpack.c.b16 %v9107, %v9099
    %v10316 = vpack.c.b16 %v9116, %v9108
    %v10317 = vpack.c.b16 %v9117, %v9109
    %v10318 = vpack.c.b16 %v9118, %v9110
    %v10319 = vpack.c.b16 %v9119, %v9111
    %v10320 = vpack.c.b16 %v9120, %v9112
    %v10321 = vpack.c.b16 %v9121, %v9113
    %v10322 = vpack.c.b16 %v9122, %v9114
    %v10323 = vpack.c.b16 %v9123, %v9115
    %v10324 = vpack.c.b16 %v9132, %v9124
    %v10325 = vpack.c.b16 %v9133, %v9125
    %v10326 = vpack.c.b16 %v9134, %v9126
    %v10327 = vpack.c.b16 %v9135, %v9127
    %v10328 = vpack.c.b16 %v9136, %v9128
    %v10329 = vpack.c.b16 %v9137, %v9129
    %v10330 = vpack.c.b16 %v9138, %v9130
    %v10331 = vpack.c.b16 %v9139, %v9131
    %v10332 = vpack.c.b16 %v9148, %v9140
    %v10333 = vpack.c.b16 %v9149, %v9141
    %v10334 = vpack.c.b16 %v9150, %v9142
    %v10335 = vpack.c.b16 %v9151, %v9143
    %v10336 = vpack.c.b16 %v9152, %v9144
    %v10337 = vpack.c.b16 %v9153, %v9145
    %v10338 = vpack.c.b16 %v9154, %v9146
    %v10339 = vpack.c.b16 %v9155, %v9147
    %v10340 = vpack.c.b16 %v9164, %v9156
    %v10341 = vpack.c.b16 %v9165, %v9157
    %v10342 = vpack.c.b16 %v9166, %v9158
    %v10343 = vpack.c.b16 %v9167, %v9159
    %v10344 = vpack.c.b16 %v9168, %v9160
    %v10345 = vpack.c.b16 %v9169, %v9161
    %v10346 = vpack.c.b16 %v9170, %v9162
    %v10347 = vpack.c.b16 %v9171, %v9163
    %v10348 = vpack.c.b16 %v9180, %v9172
    %v10349 = vpack.c.b16 %v9181, %v9173
    %v10350 = vpack.c.b16 %v9182, %v9174
    %v10351 = vpack.c.b16 %v9183, %v9175
    %v10352 = vpack.c.b16 %v9184, %v9176
    %v10353 = vpack.c.b16 %v9185, %v9177
    %v10354 = vpack.c.b16 %v9186, %v9178
    %v10355 = vpack.c.b16 %v9187, %v9179
    %v10356 = vpack.c.b16 %v9196, %v9188
    %v10357 = vpack.c.b16 %v9197, %v9189
    %v10358 = vpack.c.b16 %v9198, %v9190
    %v10359 = vpack.c.b16 %v9199, %v9191
    %v10360 = vpack.c.b16 %v9200, %v9192
    %v10361 = vpack.c.b16 %v9201, %v9193
    %v10362 = vpack.c.b16 %v9202, %v9194
    %v10363 = vpack.c.b16 %v9203, %v9195
    %v10364 = vpack.c.b16 %v9212, %v9204
    %v10365 = vpack.c.b16 %v9213, %v9205
    %v10366 = vpack.c.b16 %v9214, %v9206
    %v10367 = vpack.c.b16 %v9215, %v9207
    %v10368 = vpack.c.b16 %v9216, %v9208
    %v10369 = vpack.c.b16 %v9217, %v9209
    %v10370 = vpack.c.b16 %v9218, %v9210
    %v10371 = vpack.c.b16 %v9219, %v9211
    %v10372 = vpack.c.b16 %v9228, %v9220
    %v10373 = vpack.c.b16 %v9229, %v9221
    %v10374 = vpack.c.b16 %v9230, %v9222
    %v10375 = vpack.c.b16 %v9231, %v9223
    %v10376 = vpack.c.b16 %v9232, %v9224
    %v10377 = vpack.c.b16 %v9233, %v9225
    %v10378 = vpack.c.b16 %v9234, %v9226
    %v10379 = vpack.c.b16 %v9235, %v9227
    %v10380 = vpack.c.b16 %v9244, %v9236
    %v10381 = vpack.c.b16 %v9245, %v9237
    %v10382 = vpack.c.b16 %v9246, %v9238
    %v10383 = vpack.c.b16 %v9247, %v9239
    %v10384 = vpack.c.b16 %v9248, %v9240
    %v10385 = vpack.c.b16 %v9249, %v9241
    %v10386 = vpack.c.b16 %v9250, %v9242
    %v10387 = vpack.c.b16 %v9251, %v9243
    %v10388 = vpack.c.b16 %v9260, %v9252
    %v10389 = vpack.c.b16 %v9261, %v9253
    %v10390 = vpack.c.b16 %v9262, %v9254
    %v10391 = vpack.c.b16 %v9263, %v9255
    %v10392 = vpack.c.b16 %v9264, %v9256
    %v10393 = vpack.c.b16 %v9265, %v9257
    %v10394 = vpack.c.b16 %v9266, %v9258
    %v10395 = vpack.c.b16 %v9267, %v9259
    %v10396 = vpack.c.b16 %v9276, %v9268
    %v10397 = vpack.c.b16 %v9277, %v9269
    %v10398 = vpack.c.b16 %v9278, %v9270
    %v10399 = vpack.c.b16 %v9279, %v9271
    %v10400 = vpack.c.b16 %v9280, %v9272
    %v10401 = vpack.c.b16 %v9281, %v9273
    %v10402 = vpack.c.b16 %v9282, %v9274
    %v10403 = vpack.c.b16 %v9283, %v9275
    %v10404 = vpack.c.b16 %v9292, %v9284
    %v10405 = vpack.c.b16 %v9293, %v9285
    %v10406 = vpack.c.b16 %v9294, %v9286
    %v10407 = vpack.c.b16 %v9295, %v9287
    %v10408 = vpack.c.b16 %v9296, %v9288
    %v10409 = vpack.c.b16 %v9297, %v9289
    %v10410 = vpack.c.b16 %v9298, %v9290
    %v10411 = vpack.c.b16 %v9299, %v9291
    %v10412 = vpack.c.b16 %v9308, %v9300
    %v10413 = vpack.c.b16 %v9309, %v9301
    %v10414 = vpack.c.b16 %v9310, %v9302
    %v10415 = vpack.c.b16 %v9311, %v9303
    %v10416 = vpack.c.b16 %v9312, %v9304
    %v10417 = vpack.c.b16 %v9313, %v9305
    %v10418 = vpack.c.b16 %v9314, %v9306
    %v10419 = vpack.c.b16 %v9315, %v9307
    %v10420 = vpack.c.b16 %v9324, %v9316
    %v10421 = vpack.c.b16 %v9325, %v9317
    %v10422 = vpack.c.b16 %v9326, %v9318
    %v10423 = vpack.c.b16 %v9327, %v9319
    %v10424 = vpack.c.b16 %v9328, %v9320
    %v10425 = vpack.c.b16 %v9329, %v9321
    %v10426 = vpack.c.b16 %v9330, %v9322
    %v10427 = vpack.c.b16 %v9331, %v9323
    %v10428 = vpack.c.b16 %v9340, %v9332
    %v10429 = vpack.c.b16 %v9341, %v9333
    %v10430 = vpack.c.b16 %v9342, %v9334
    %v10431 = vpack.c.b16 %v9343, %v9335
    %v10432 = vpack.c.b16 %v9344, %v9336
    %v10433 = vpack.c.b16 %v9345, %v9337
    %v10434 = vpack.c.b16 %v9346, %v9338
    %v10435 = vpack.c.b16 %v9347, %v9339
    %v10436 = vpack.c.b16 %v9356, %v9348
    %v10437 = vpack.c.b16 %v9357, %v9349
    %v10438 = vpack.c.b16 %v9358, %v9350
    %v10439 = vpack.c.b16 %v9359, %v9351
    %v10440 = vpack.c.b16 %v9360, %v9352
    %v10441 = vpack.c.b16 %v9361, %v9353
    %v10442 = vpack.c.b16 %v9362, %v9354
    %v10443 = vpack.c.b16 %v9363, %v9355
    %v10444 = vpack.c.b16 %v9372, %v9364
    %v10445 = vpack.c.b16 %v9373, %v9365
    %v10446 = vpack.c.b16 %v9374, %v9366
    %v10447 = vpack.c.b16 %v9375, %v9367
    %v10448 = vpack.c.b16 %v9376, %v9368
    %v10449 = vpack.c.b16 %v9377, %v9369
    %v10450 = vpack.c.b16 %v9378, %v9370
    %v10451 = vpack.c.b16 %v9379, %v9371
    %v10452 = vpack.c.b16 %v9388, %v9380
    %v10453 = vpack.c.b16 %v9389, %v9381
    %v10454 = vpack.c.b16 %v9390, %v9382
    %v10455 = vpack.c.b16 %v9391, %v9383
    %v10456 = vpack.c.b16 %v9392, %v9384
    %v10457 = vpack.c.b16 %v9393, %v9385
    %v10458 = vpack.c.b16 %v9394, %v9386
    %v10459 = vpack.c.b16 %v9395, %v9387
    %v10460 = vpack.c.b16 %v9404, %v9396
    %v10461 = vpack.c.b16 %v9405, %v9397
    %v10462 = vpack.c.b16 %v9406, %v9398
    %v10463 = vpack.c.b16 %v9407, %v9399
    %v10464 = vpack.c.b16 %v9408, %v9400
    %v10465 = vpack.c.b16 %v9409, %v9401
    %v10466 = vpack.c.b16 %v9410, %v9402
    %v10467 = vpack.c.b16 %v9411, %v9403
    %v10468 = vpack.c.b16 %v9420, %v9412
    %v10469 = vpack.c.b16 %v9421, %v9413
    %v10470 = vpack.c.b16 %v9422, %v9414
    %v10471 = vpack.c.b16 %v9423, %v9415
    %v10472 = vpack.c.b16 %v9424, %v9416
    %v10473 = vpack.c.b16 %v9425, %v9417
    %v10474 = vpack.c.b16 %v9426, %v9418
    %v10475 = vpack.c.b16 %v9427, %v9419
    %v10476 = vpack.c.b16 %v9436, %v9428
    %v10477 = vpack.c.b16 %v9437, %v9429
    %v10478 = vpack.c.b16 %v9438, %v9430
    %v10479 = vpack.c.b16 %v9439, %v9431
    %v10480 = vpack.c.b16 %v9440, %v9432
    %v10481 = vpack.c.b16 %v9441, %v9433
    %v10482 = vpack.c.b16 %v9442, %v9434
    %v10483 = vpack.c.b16 %v9443, %v9435
    %v10484 = vpack.c.b16 %v9452, %v9444
    %v10485 = vpack.c.b16 %v9453, %v9445
    %v10486 = vpack.c.b16 %v9454, %v9446
    %v10487 = vpack.c.b16 %v9455, %v9447
    %v10488 = vpack.c.b16 %v9456, %v9448
    %v10489 = vpack.c.b16 %v9457, %v9449
    %v10490 = vpack.c.b16 %v9458, %v9450
    %v10491 = vpack.c.b16 %v9459, %v9451
    %v10492 = vpack.c.b16 %v9468, %v9460
    %v10493 = vpack.c.b16 %v9469, %v9461
    %v10494 = vpack.c.b16 %v9470, %v9462
    %v10495 = vpack.c.b16 %v9471, %v9463
    %v10496 = vpack.c.b16 %v9472, %v9464
    %v10497 = vpack.c.b16 %v9473, %v9465
    %v10498 = vpack.c.b16 %v9474, %v9466
    %v10499 = vpack.c.b16 %v9475, %v9467
    %11524 = vmatpush.bf16.msra.mxu0 %v9532
    %11525 = vmatpush.bf16.msra.mxu0 %v9524
    %11526 = vmatpush.bf16.msra.mxu0 %v9516
    %11527 = vmatpush.bf16.msra.mxu0 %v9508
    %11528 = vmatpush.bf16.msra.mxu0 %v9500
    %11529 = vmatpush.bf16.msra.mxu0 %v9492
    %11530 = vmatpush.bf16.msra.mxu0 %v9484
    %11531 = vmatpush.bf16.msra.mxu0 %v9476
    %11532 = vmatmul.bf16.gmra.mxu0 %v6371
    %v11533 = vpop.f32.mrf.mxu0
    %v11534 = vadd.f32 %v6388, %v11533
    %v11535 = vpop.f32.mrf.mxu0
    %11536 = vdwg.mxu0
    %11537 = vmatpush.bf16.msra.mxu0 %v9596
    %11538 = vmatpush.bf16.msra.mxu0 %v9588
    %11539 = vmatpush.bf16.msra.mxu0 %v9580
    %11540 = vmatpush.bf16.msra.mxu0 %v9572
    %11541 = vmatpush.bf16.msra.mxu0 %v9564
    %11542 = vmatpush.bf16.msra.mxu0 %v9556
    %11543 = vmatpush.bf16.msra.mxu0 %v9548
    %11544 = vmatpush.bf16.msra.mxu0 %v9540
    %11545 = vmatmul.bf16.gmra.mxu0 %v6372
    %v11546 = vpop.f32.mrf.mxu0
    %v11547 = vadd.f32 %v11534, %v11546
    %v11548 = vpop.f32.mrf.mxu0
    %11549 = vdwg.mxu0
    %11550 = vmatpush.bf16.msra.mxu0 %v9660
    %11551 = vmatpush.bf16.msra.mxu0 %v9652
    %11552 = vmatpush.bf16.msra.mxu0 %v9644
    %11553 = vmatpush.bf16.msra.mxu0 %v9636
    %11554 = vmatpush.bf16.msra.mxu0 %v9628
    %11555 = vmatpush.bf16.msra.mxu0 %v9620
    %11556 = vmatpush.bf16.msra.mxu0 %v9612
    %11557 = vmatpush.bf16.msra.mxu0 %v9604
    %11558 = vmatmul.bf16.gmra.mxu0 %v6373
    %v11559 = vpop.f32.mrf.mxu0
    %v11560 = vadd.f32 %v11547, %v11559
    %v11561 = vpop.f32.mrf.mxu0
    %11562 = vdwg.mxu0
    %11563 = vmatpush.bf16.msra.mxu0 %v9724
    %11564 = vmatpush.bf16.msra.mxu0 %v9716
    %11565 = vmatpush.bf16.msra.mxu0 %v9708
    %11566 = vmatpush.bf16.msra.mxu0 %v9700
    %11567 = vmatpush.bf16.msra.mxu0 %v9692
    %11568 = vmatpush.bf16.msra.mxu0 %v9684
    %11569 = vmatpush.bf16.msra.mxu0 %v9676
    %11570 = vmatpush.bf16.msra.mxu0 %v9668
    %11571 = vmatmul.bf16.gmra.mxu0 %v6374
    %v11572 = vpop.f32.mrf.mxu0
    %v11573 = vadd.f32 %v11560, %v11572
    %v11574 = vpop.f32.mrf.mxu0
    %11575 = vdwg.mxu0
    %11576 = vmatpush.bf16.msra.mxu0 %v9788
    %11577 = vmatpush.bf16.msra.mxu0 %v9780
    %11578 = vmatpush.bf16.msra.mxu0 %v9772
    %11579 = vmatpush.bf16.msra.mxu0 %v9764
    %11580 = vmatpush.bf16.msra.mxu0 %v9756
    %11581 = vmatpush.bf16.msra.mxu0 %v9748
    %11582 = vmatpush.bf16.msra.mxu0 %v9740
    %11583 = vmatpush.bf16.msra.mxu0 %v9732
    %11584 = vmatmul.bf16.gmra.mxu0 %v6375
    %v11585 = vpop.f32.mrf.mxu0
    %v11586 = vadd.f32 %v11573, %v11585
    %v11587 = vpop.f32.mrf.mxu0
    %11588 = vdwg.mxu0
    %11589 = vmatpush.bf16.msra.mxu0 %v9852
    %11590 = vmatpush.bf16.msra.mxu0 %v9844
    %11591 = vmatpush.bf16.msra.mxu0 %v9836
    %11592 = vmatpush.bf16.msra.mxu0 %v9828
    %11593 = vmatpush.bf16.msra.mxu0 %v9820
    %11594 = vmatpush.bf16.msra.mxu0 %v9812
    %11595 = vmatpush.bf16.msra.mxu0 %v9804
    %11596 = vmatpush.bf16.msra.mxu0 %v9796
    %11597 = vmatmul.bf16.gmra.mxu0 %v6376
    %v11598 = vpop.f32.mrf.mxu0
    %v11599 = vadd.f32 %v11586, %v11598
    %v11600 = vpop.f32.mrf.mxu0
    %11601 = vdwg.mxu0
    %11602 = vmatpush.bf16.msra.mxu0 %v9916
    %11603 = vmatpush.bf16.msra.mxu0 %v9908
    %11604 = vmatpush.bf16.msra.mxu0 %v9900
    %11605 = vmatpush.bf16.msra.mxu0 %v9892
    %11606 = vmatpush.bf16.msra.mxu0 %v9884
    %11607 = vmatpush.bf16.msra.mxu0 %v9876
    %11608 = vmatpush.bf16.msra.mxu0 %v9868
    %11609 = vmatpush.bf16.msra.mxu0 %v9860
    %11610 = vmatmul.bf16.gmra.mxu0 %v6377
    %v11611 = vpop.f32.mrf.mxu0
    %v11612 = vadd.f32 %v11599, %v11611
    %v11613 = vpop.f32.mrf.mxu0
    %11614 = vdwg.mxu0
    %11615 = vmatpush.bf16.msra.mxu0 %v9980
    %11616 = vmatpush.bf16.msra.mxu0 %v9972
    %11617 = vmatpush.bf16.msra.mxu0 %v9964
    %11618 = vmatpush.bf16.msra.mxu0 %v9956
    %11619 = vmatpush.bf16.msra.mxu0 %v9948
    %11620 = vmatpush.bf16.msra.mxu0 %v9940
    %11621 = vmatpush.bf16.msra.mxu0 %v9932
    %11622 = vmatpush.bf16.msra.mxu0 %v9924
    %11623 = vmatmul.bf16.gmra.mxu0 %v6378
    %v11624 = vpop.f32.mrf.mxu0
    %v11625 = vadd.f32 %v11612, %v11624
    %v11626 = vpop.f32.mrf.mxu0
    %11627 = vdwg.mxu0
    %11628 = vmatpush.bf16.msra.mxu0 %v10044
    %11629 = vmatpush.bf16.msra.mxu0 %v10036
    %11630 = vmatpush.bf16.msra.mxu0 %v10028
    %11631 = vmatpush.bf16.msra.mxu0 %v10020
    %11632 = vmatpush.bf16.msra.mxu0 %v10012
    %11633 = vmatpush.bf16.msra.mxu0 %v10004
    %11634 = vmatpush.bf16.msra.mxu0 %v9996
    %11635 = vmatpush.bf16.msra.mxu0 %v9988
    %11636 = vmatmul.bf16.gmra.mxu0 %v6379
    %v11637 = vpop.f32.mrf.mxu0
    %v11638 = vadd.f32 %v11625, %v11637
    %v11639 = vpop.f32.mrf.mxu0
    %11640 = vdwg.mxu0
    %11641 = vmatpush.bf16.msra.mxu0 %v10108
    %11642 = vmatpush.bf16.msra.mxu0 %v10100
    %11643 = vmatpush.bf16.msra.mxu0 %v10092
    %11644 = vmatpush.bf16.msra.mxu0 %v10084
    %11645 = vmatpush.bf16.msra.mxu0 %v10076
    %11646 = vmatpush.bf16.msra.mxu0 %v10068
    %11647 = vmatpush.bf16.msra.mxu0 %v10060
    %11648 = vmatpush.bf16.msra.mxu0 %v10052
    %11649 = vmatmul.bf16.gmra.mxu0 %v6380
    %v11650 = vpop.f32.mrf.mxu0
    %v11651 = vadd.f32 %v11638, %v11650
    %v11652 = vpop.f32.mrf.mxu0
    %11653 = vdwg.mxu0
    %11654 = vmatpush.bf16.msra.mxu0 %v10172
    %11655 = vmatpush.bf16.msra.mxu0 %v10164
    %11656 = vmatpush.bf16.msra.mxu0 %v10156
    %11657 = vmatpush.bf16.msra.mxu0 %v10148
    %11658 = vmatpush.bf16.msra.mxu0 %v10140
    %11659 = vmatpush.bf16.msra.mxu0 %v10132
    %11660 = vmatpush.bf16.msra.mxu0 %v10124
    %11661 = vmatpush.bf16.msra.mxu0 %v10116
    %11662 = vmatmul.bf16.gmra.mxu0 %v6381
    %v11663 = vpop.f32.mrf.mxu0
    %v11664 = vadd.f32 %v11651, %v11663
    %v11665 = vpop.f32.mrf.mxu0
    %11666 = vdwg.mxu0
    %11667 = vmatpush.bf16.msra.mxu0 %v10236
    %11668 = vmatpush.bf16.msra.mxu0 %v10228
    %11669 = vmatpush.bf16.msra.mxu0 %v10220
    %11670 = vmatpush.bf16.msra.mxu0 %v10212
    %11671 = vmatpush.bf16.msra.mxu0 %v10204
    %11672 = vmatpush.bf16.msra.mxu0 %v10196
    %11673 = vmatpush.bf16.msra.mxu0 %v10188
    %11674 = vmatpush.bf16.msra.mxu0 %v10180
    %11675 = vmatmul.bf16.gmra.mxu0 %v6382
    %v11676 = vpop.f32.mrf.mxu0
    %v11677 = vadd.f32 %v11664, %v11676
    %v11678 = vpop.f32.mrf.mxu0
    %11679 = vdwg.mxu0
    %11680 = vmatpush.bf16.msra.mxu0 %v10300
    %11681 = vmatpush.bf16.msra.mxu0 %v10292
    %11682 = vmatpush.bf16.msra.mxu0 %v10284
    %11683 = vmatpush.bf16.msra.mxu0 %v10276
    %11684 = vmatpush.bf16.msra.mxu0 %v10268
    %11685 = vmatpush.bf16.msra.mxu0 %v10260
    %11686 = vmatpush.bf16.msra.mxu0 %v10252
    %11687 = vmatpush.bf16.msra.mxu0 %v10244
    %11688 = vmatmul.bf16.gmra.mxu0 %v6383
    %v11689 = vpop.f32.mrf.mxu0
    %v11690 = vadd.f32 %v11677, %v11689
    %v11691 = vpop.f32.mrf.mxu0
    %11692 = vdwg.mxu0
    %11693 = vmatpush.bf16.msra.mxu0 %v10364
    %11694 = vmatpush.bf16.msra.mxu0 %v10356
    %11695 = vmatpush.bf16.msra.mxu0 %v10348
    %11696 = vmatpush.bf16.msra.mxu0 %v10340
    %11697 = vmatpush.bf16.msra.mxu0 %v10332
    %11698 = vmatpush.bf16.msra.mxu0 %v10324
    %11699 = vmatpush.bf16.msra.mxu0 %v10316
    %11700 = vmatpush.bf16.msra.mxu0 %v10308
    %11701 = vmatmul.bf16.gmra.mxu0 %v6384
    %v11702 = vpop.f32.mrf.mxu0
    %v11703 = vadd.f32 %v11690, %v11702
    %v11704 = vpop.f32.mrf.mxu0
    %11705 = vdwg.mxu0
    %11706 = vmatpush.bf16.msra.mxu0 %v10428
    %11707 = vmatpush.bf16.msra.mxu0 %v10420
    %11708 = vmatpush.bf16.msra.mxu0 %v10412
    %11709 = vmatpush.bf16.msra.mxu0 %v10404
    %11710 = vmatpush.bf16.msra.mxu0 %v10396
    %11711 = vmatpush.bf16.msra.mxu0 %v10388
    %11712 = vmatpush.bf16.msra.mxu0 %v10380
    %11713 = vmatpush.bf16.msra.mxu0 %v10372
    %11714 = vmatmul.bf16.gmra.mxu0 %v6385
    %v11715 = vpop.f32.mrf.mxu0
    %v11716 = vadd.f32 %v11703, %v11715
    %v11717 = vpop.f32.mrf.mxu0
    %11718 = vdwg.mxu0
    %11719 = vmatpush.bf16.msra.mxu0 %v10492
    %11720 = vmatpush.bf16.msra.mxu0 %v10484
    %11721 = vmatpush.bf16.msra.mxu0 %v10476
    %11722 = vmatpush.bf16.msra.mxu0 %v10468
    %11723 = vmatpush.bf16.msra.mxu0 %v10460
    %11724 = vmatpush.bf16.msra.mxu0 %v10452
    %11725 = vmatpush.bf16.msra.mxu0 %v10444
    %11726 = vmatpush.bf16.msra.mxu0 %v10436
    %11727 = vmatmul.bf16.gmra.mxu0 %v6386
    %v11728 = vpop.f32.mrf.mxu0
    %v11729 = vadd.f32 %v11716, %v11728
    %v11730 = vpop.f32.mrf.mxu0
    %11731 = vdwg.mxu0
    %11732 = vmatpush.bf16.msra.mxu0 %v9533
    %11733 = vmatpush.bf16.msra.mxu0 %v9525
    %11734 = vmatpush.bf16.msra.mxu0 %v9517
    %11735 = vmatpush.bf16.msra.mxu0 %v9509
    %11736 = vmatpush.bf16.msra.mxu0 %v9501
    %11737 = vmatpush.bf16.msra.mxu0 %v9493
    %11738 = vmatpush.bf16.msra.mxu0 %v9485
    %11739 = vmatpush.bf16.msra.mxu0 %v9477
    %11740 = vmatmul.bf16.gmra.mxu0 %v6371
    %v11741 = vpop.f32.mrf.mxu0
    %v11742 = vadd.f32 %v6389, %v11741
    %v11743 = vpop.f32.mrf.mxu0
    %11744 = vdwg.mxu0
    %11745 = vmatpush.bf16.msra.mxu0 %v9597
    %11746 = vmatpush.bf16.msra.mxu0 %v9589
    %11747 = vmatpush.bf16.msra.mxu0 %v9581
    %11748 = vmatpush.bf16.msra.mxu0 %v9573
    %11749 = vmatpush.bf16.msra.mxu0 %v9565
    %11750 = vmatpush.bf16.msra.mxu0 %v9557
    %11751 = vmatpush.bf16.msra.mxu0 %v9549
    %11752 = vmatpush.bf16.msra.mxu0 %v9541
    %11753 = vmatmul.bf16.gmra.mxu0 %v6372
    %v11754 = vpop.f32.mrf.mxu0
    %v11755 = vadd.f32 %v11742, %v11754
    %v11756 = vpop.f32.mrf.mxu0
    %11757 = vdwg.mxu0
    %11758 = vmatpush.bf16.msra.mxu0 %v9661
    %11759 = vmatpush.bf16.msra.mxu0 %v9653
    %11760 = vmatpush.bf16.msra.mxu0 %v9645
    %11761 = vmatpush.bf16.msra.mxu0 %v9637
    %11762 = vmatpush.bf16.msra.mxu0 %v9629
    %11763 = vmatpush.bf16.msra.mxu0 %v9621
    %11764 = vmatpush.bf16.msra.mxu0 %v9613
    %11765 = vmatpush.bf16.msra.mxu0 %v9605
    %11766 = vmatmul.bf16.gmra.mxu0 %v6373
    %v11767 = vpop.f32.mrf.mxu0
    %v11768 = vadd.f32 %v11755, %v11767
    %v11769 = vpop.f32.mrf.mxu0
    %11770 = vdwg.mxu0
    %11771 = vmatpush.bf16.msra.mxu0 %v9725
    %11772 = vmatpush.bf16.msra.mxu0 %v9717
    %11773 = vmatpush.bf16.msra.mxu0 %v9709
    %11774 = vmatpush.bf16.msra.mxu0 %v9701
    %11775 = vmatpush.bf16.msra.mxu0 %v9693
    %11776 = vmatpush.bf16.msra.mxu0 %v9685
    %11777 = vmatpush.bf16.msra.mxu0 %v9677
    %11778 = vmatpush.bf16.msra.mxu0 %v9669
    %11779 = vmatmul.bf16.gmra.mxu0 %v6374
    %v11780 = vpop.f32.mrf.mxu0
    %v11781 = vadd.f32 %v11768, %v11780
    %v11782 = vpop.f32.mrf.mxu0
    %11783 = vdwg.mxu0
    %11784 = vmatpush.bf16.msra.mxu0 %v9789
    %11785 = vmatpush.bf16.msra.mxu0 %v9781
    %11786 = vmatpush.bf16.msra.mxu0 %v9773
    %11787 = vmatpush.bf16.msra.mxu0 %v9765
    %11788 = vmatpush.bf16.msra.mxu0 %v9757
    %11789 = vmatpush.bf16.msra.mxu0 %v9749
    %11790 = vmatpush.bf16.msra.mxu0 %v9741
    %11791 = vmatpush.bf16.msra.mxu0 %v9733
    %11792 = vmatmul.bf16.gmra.mxu0 %v6375
    %v11793 = vpop.f32.mrf.mxu0
    %v11794 = vadd.f32 %v11781, %v11793
    %v11795 = vpop.f32.mrf.mxu0
    %11796 = vdwg.mxu0
    %11797 = vmatpush.bf16.msra.mxu0 %v9853
    %11798 = vmatpush.bf16.msra.mxu0 %v9845
    %11799 = vmatpush.bf16.msra.mxu0 %v9837
    %11800 = vmatpush.bf16.msra.mxu0 %v9829
    %11801 = vmatpush.bf16.msra.mxu0 %v9821
    %11802 = vmatpush.bf16.msra.mxu0 %v9813
    %11803 = vmatpush.bf16.msra.mxu0 %v9805
    %11804 = vmatpush.bf16.msra.mxu0 %v9797
    %11805 = vmatmul.bf16.gmra.mxu0 %v6376
    %v11806 = vpop.f32.mrf.mxu0
    %v11807 = vadd.f32 %v11794, %v11806
    %v11808 = vpop.f32.mrf.mxu0
    %11809 = vdwg.mxu0
    %11810 = vmatpush.bf16.msra.mxu0 %v9917
    %11811 = vmatpush.bf16.msra.mxu0 %v9909
    %11812 = vmatpush.bf16.msra.mxu0 %v9901
    %11813 = vmatpush.bf16.msra.mxu0 %v9893
    %11814 = vmatpush.bf16.msra.mxu0 %v9885
    %11815 = vmatpush.bf16.msra.mxu0 %v9877
    %11816 = vmatpush.bf16.msra.mxu0 %v9869
    %11817 = vmatpush.bf16.msra.mxu0 %v9861
    %11818 = vmatmul.bf16.gmra.mxu0 %v6377
    %v11819 = vpop.f32.mrf.mxu0
    %v11820 = vadd.f32 %v11807, %v11819
    %v11821 = vpop.f32.mrf.mxu0
    %11822 = vdwg.mxu0
    %11823 = vmatpush.bf16.msra.mxu0 %v9981
    %11824 = vmatpush.bf16.msra.mxu0 %v9973
    %11825 = vmatpush.bf16.msra.mxu0 %v9965
    %11826 = vmatpush.bf16.msra.mxu0 %v9957
    %11827 = vmatpush.bf16.msra.mxu0 %v9949
    %11828 = vmatpush.bf16.msra.mxu0 %v9941
    %11829 = vmatpush.bf16.msra.mxu0 %v9933
    %11830 = vmatpush.bf16.msra.mxu0 %v9925
    %11831 = vmatmul.bf16.gmra.mxu0 %v6378
    %v11832 = vpop.f32.mrf.mxu0
    %v11833 = vadd.f32 %v11820, %v11832
    %v11834 = vpop.f32.mrf.mxu0
    %11835 = vdwg.mxu0
    %11836 = vmatpush.bf16.msra.mxu0 %v10045
    %11837 = vmatpush.bf16.msra.mxu0 %v10037
    %11838 = vmatpush.bf16.msra.mxu0 %v10029
    %11839 = vmatpush.bf16.msra.mxu0 %v10021
    %11840 = vmatpush.bf16.msra.mxu0 %v10013
    %11841 = vmatpush.bf16.msra.mxu0 %v10005
    %11842 = vmatpush.bf16.msra.mxu0 %v9997
    %11843 = vmatpush.bf16.msra.mxu0 %v9989
    %11844 = vmatmul.bf16.gmra.mxu0 %v6379
    %v11845 = vpop.f32.mrf.mxu0
    %v11846 = vadd.f32 %v11833, %v11845
    %v11847 = vpop.f32.mrf.mxu0
    %11848 = vdwg.mxu0
    %11849 = vmatpush.bf16.msra.mxu0 %v10109
    %11850 = vmatpush.bf16.msra.mxu0 %v10101
    %11851 = vmatpush.bf16.msra.mxu0 %v10093
    %11852 = vmatpush.bf16.msra.mxu0 %v10085
    %11853 = vmatpush.bf16.msra.mxu0 %v10077
    %11854 = vmatpush.bf16.msra.mxu0 %v10069
    %11855 = vmatpush.bf16.msra.mxu0 %v10061
    %11856 = vmatpush.bf16.msra.mxu0 %v10053
    %11857 = vmatmul.bf16.gmra.mxu0 %v6380
    %v11858 = vpop.f32.mrf.mxu0
    %v11859 = vadd.f32 %v11846, %v11858
    %v11860 = vpop.f32.mrf.mxu0
    %11861 = vdwg.mxu0
    %11862 = vmatpush.bf16.msra.mxu0 %v10173
    %11863 = vmatpush.bf16.msra.mxu0 %v10165
    %11864 = vmatpush.bf16.msra.mxu0 %v10157
    %11865 = vmatpush.bf16.msra.mxu0 %v10149
    %11866 = vmatpush.bf16.msra.mxu0 %v10141
    %11867 = vmatpush.bf16.msra.mxu0 %v10133
    %11868 = vmatpush.bf16.msra.mxu0 %v10125
    %11869 = vmatpush.bf16.msra.mxu0 %v10117
    %11870 = vmatmul.bf16.gmra.mxu0 %v6381
    %v11871 = vpop.f32.mrf.mxu0
    %v11872 = vadd.f32 %v11859, %v11871
    %v11873 = vpop.f32.mrf.mxu0
    %11874 = vdwg.mxu0
    %11875 = vmatpush.bf16.msra.mxu0 %v10237
    %11876 = vmatpush.bf16.msra.mxu0 %v10229
    %11877 = vmatpush.bf16.msra.mxu0 %v10221
    %11878 = vmatpush.bf16.msra.mxu0 %v10213
    %11879 = vmatpush.bf16.msra.mxu0 %v10205
    %11880 = vmatpush.bf16.msra.mxu0 %v10197
    %11881 = vmatpush.bf16.msra.mxu0 %v10189
    %11882 = vmatpush.bf16.msra.mxu0 %v10181
    %11883 = vmatmul.bf16.gmra.mxu0 %v6382
    %v11884 = vpop.f32.mrf.mxu0
    %v11885 = vadd.f32 %v11872, %v11884
    %v11886 = vpop.f32.mrf.mxu0
    %11887 = vdwg.mxu0
    %11888 = vmatpush.bf16.msra.mxu0 %v10301
    %11889 = vmatpush.bf16.msra.mxu0 %v10293
    %11890 = vmatpush.bf16.msra.mxu0 %v10285
    %11891 = vmatpush.bf16.msra.mxu0 %v10277
    %11892 = vmatpush.bf16.msra.mxu0 %v10269
    %11893 = vmatpush.bf16.msra.mxu0 %v10261
    %11894 = vmatpush.bf16.msra.mxu0 %v10253
    %11895 = vmatpush.bf16.msra.mxu0 %v10245
    %11896 = vmatmul.bf16.gmra.mxu0 %v6383
    %v11897 = vpop.f32.mrf.mxu0
    %v11898 = vadd.f32 %v11885, %v11897
    %v11899 = vpop.f32.mrf.mxu0
    %11900 = vdwg.mxu0
    %11901 = vmatpush.bf16.msra.mxu0 %v10365
    %11902 = vmatpush.bf16.msra.mxu0 %v10357
    %11903 = vmatpush.bf16.msra.mxu0 %v10349
    %11904 = vmatpush.bf16.msra.mxu0 %v10341
    %11905 = vmatpush.bf16.msra.mxu0 %v10333
    %11906 = vmatpush.bf16.msra.mxu0 %v10325
    %11907 = vmatpush.bf16.msra.mxu0 %v10317
    %11908 = vmatpush.bf16.msra.mxu0 %v10309
    %11909 = vmatmul.bf16.gmra.mxu0 %v6384
    %v11910 = vpop.f32.mrf.mxu0
    %v11911 = vadd.f32 %v11898, %v11910
    %v11912 = vpop.f32.mrf.mxu0
    %11913 = vdwg.mxu0
    %11914 = vmatpush.bf16.msra.mxu0 %v10429
    %11915 = vmatpush.bf16.msra.mxu0 %v10421
    %11916 = vmatpush.bf16.msra.mxu0 %v10413
    %11917 = vmatpush.bf16.msra.mxu0 %v10405
    %11918 = vmatpush.bf16.msra.mxu0 %v10397
    %11919 = vmatpush.bf16.msra.mxu0 %v10389
    %11920 = vmatpush.bf16.msra.mxu0 %v10381
    %11921 = vmatpush.bf16.msra.mxu0 %v10373
    %11922 = vmatmul.bf16.gmra.mxu0 %v6385
    %v11923 = vpop.f32.mrf.mxu0
    %v11924 = vadd.f32 %v11911, %v11923
    %v11925 = vpop.f32.mrf.mxu0
    %11926 = vdwg.mxu0
    %11927 = vmatpush.bf16.msra.mxu0 %v10493
    %11928 = vmatpush.bf16.msra.mxu0 %v10485
    %11929 = vmatpush.bf16.msra.mxu0 %v10477
    %11930 = vmatpush.bf16.msra.mxu0 %v10469
    %11931 = vmatpush.bf16.msra.mxu0 %v10461
    %11932 = vmatpush.bf16.msra.mxu0 %v10453
    %11933 = vmatpush.bf16.msra.mxu0 %v10445
    %11934 = vmatpush.bf16.msra.mxu0 %v10437
    %11935 = vmatmul.bf16.gmra.mxu0 %v6386
    %v11936 = vpop.f32.mrf.mxu0
    %v11937 = vadd.f32 %v11924, %v11936
    %v11938 = vpop.f32.mrf.mxu0
    %11939 = vdwg.mxu0
    %11940 = vmatpush.bf16.msra.mxu0 %v9534
    %11941 = vmatpush.bf16.msra.mxu0 %v9526
    %11942 = vmatpush.bf16.msra.mxu0 %v9518
    %11943 = vmatpush.bf16.msra.mxu0 %v9510
    %11944 = vmatpush.bf16.msra.mxu0 %v9502
    %11945 = vmatpush.bf16.msra.mxu0 %v9494
    %11946 = vmatpush.bf16.msra.mxu0 %v9486
    %11947 = vmatpush.bf16.msra.mxu0 %v9478
    %11948 = vmatmul.bf16.gmra.mxu0 %v6371
    %v11949 = vpop.f32.mrf.mxu0
    %v11950 = vadd.f32 %v6390, %v11949
    %v11951 = vpop.f32.mrf.mxu0
    %11952 = vdwg.mxu0
    %11953 = vmatpush.bf16.msra.mxu0 %v9598
    %11954 = vmatpush.bf16.msra.mxu0 %v9590
    %11955 = vmatpush.bf16.msra.mxu0 %v9582
    %11956 = vmatpush.bf16.msra.mxu0 %v9574
    %11957 = vmatpush.bf16.msra.mxu0 %v9566
    %11958 = vmatpush.bf16.msra.mxu0 %v9558
    %11959 = vmatpush.bf16.msra.mxu0 %v9550
    %11960 = vmatpush.bf16.msra.mxu0 %v9542
    %11961 = vmatmul.bf16.gmra.mxu0 %v6372
    %v11962 = vpop.f32.mrf.mxu0
    %v11963 = vadd.f32 %v11950, %v11962
    %v11964 = vpop.f32.mrf.mxu0
    %11965 = vdwg.mxu0
    %11966 = vmatpush.bf16.msra.mxu0 %v9662
    %11967 = vmatpush.bf16.msra.mxu0 %v9654
    %11968 = vmatpush.bf16.msra.mxu0 %v9646
    %11969 = vmatpush.bf16.msra.mxu0 %v9638
    %11970 = vmatpush.bf16.msra.mxu0 %v9630
    %11971 = vmatpush.bf16.msra.mxu0 %v9622
    %11972 = vmatpush.bf16.msra.mxu0 %v9614
    %11973 = vmatpush.bf16.msra.mxu0 %v9606
    %11974 = vmatmul.bf16.gmra.mxu0 %v6373
    %v11975 = vpop.f32.mrf.mxu0
    %v11976 = vadd.f32 %v11963, %v11975
    %v11977 = vpop.f32.mrf.mxu0
    %11978 = vdwg.mxu0
    %11979 = vmatpush.bf16.msra.mxu0 %v9726
    %11980 = vmatpush.bf16.msra.mxu0 %v9718
    %11981 = vmatpush.bf16.msra.mxu0 %v9710
    %11982 = vmatpush.bf16.msra.mxu0 %v9702
    %11983 = vmatpush.bf16.msra.mxu0 %v9694
    %11984 = vmatpush.bf16.msra.mxu0 %v9686
    %11985 = vmatpush.bf16.msra.mxu0 %v9678
    %11986 = vmatpush.bf16.msra.mxu0 %v9670
    %11987 = vmatmul.bf16.gmra.mxu0 %v6374
    %v11988 = vpop.f32.mrf.mxu0
    %v11989 = vadd.f32 %v11976, %v11988
    %v11990 = vpop.f32.mrf.mxu0
    %11991 = vdwg.mxu0
    %11992 = vmatpush.bf16.msra.mxu0 %v9790
    %11993 = vmatpush.bf16.msra.mxu0 %v9782
    %11994 = vmatpush.bf16.msra.mxu0 %v9774
    %11995 = vmatpush.bf16.msra.mxu0 %v9766
    %11996 = vmatpush.bf16.msra.mxu0 %v9758
    %11997 = vmatpush.bf16.msra.mxu0 %v9750
    %11998 = vmatpush.bf16.msra.mxu0 %v9742
    %11999 = vmatpush.bf16.msra.mxu0 %v9734
    %12000 = vmatmul.bf16.gmra.mxu0 %v6375
    %v12001 = vpop.f32.mrf.mxu0
    %v12002 = vadd.f32 %v11989, %v12001
    %v12003 = vpop.f32.mrf.mxu0
    %12004 = vdwg.mxu0
    %12005 = vmatpush.bf16.msra.mxu0 %v9854
    %12006 = vmatpush.bf16.msra.mxu0 %v9846
    %12007 = vmatpush.bf16.msra.mxu0 %v9838
    %12008 = vmatpush.bf16.msra.mxu0 %v9830
    %12009 = vmatpush.bf16.msra.mxu0 %v9822
    %12010 = vmatpush.bf16.msra.mxu0 %v9814
    %12011 = vmatpush.bf16.msra.mxu0 %v9806
    %12012 = vmatpush.bf16.msra.mxu0 %v9798
    %12013 = vmatmul.bf16.gmra.mxu0 %v6376
    %v12014 = vpop.f32.mrf.mxu0
    %v12015 = vadd.f32 %v12002, %v12014
    %v12016 = vpop.f32.mrf.mxu0
    %12017 = vdwg.mxu0
    %12018 = vmatpush.bf16.msra.mxu0 %v9918
    %12019 = vmatpush.bf16.msra.mxu0 %v9910
    %12020 = vmatpush.bf16.msra.mxu0 %v9902
    %12021 = vmatpush.bf16.msra.mxu0 %v9894
    %12022 = vmatpush.bf16.msra.mxu0 %v9886
    %12023 = vmatpush.bf16.msra.mxu0 %v9878
    %12024 = vmatpush.bf16.msra.mxu0 %v9870
    %12025 = vmatpush.bf16.msra.mxu0 %v9862
    %12026 = vmatmul.bf16.gmra.mxu0 %v6377
    %v12027 = vpop.f32.mrf.mxu0
    %v12028 = vadd.f32 %v12015, %v12027
    %v12029 = vpop.f32.mrf.mxu0
    %12030 = vdwg.mxu0
    %12031 = vmatpush.bf16.msra.mxu0 %v9982
    %12032 = vmatpush.bf16.msra.mxu0 %v9974
    %12033 = vmatpush.bf16.msra.mxu0 %v9966
    %12034 = vmatpush.bf16.msra.mxu0 %v9958
    %12035 = vmatpush.bf16.msra.mxu0 %v9950
    %12036 = vmatpush.bf16.msra.mxu0 %v9942
    %12037 = vmatpush.bf16.msra.mxu0 %v9934
    %12038 = vmatpush.bf16.msra.mxu0 %v9926
    %12039 = vmatmul.bf16.gmra.mxu0 %v6378
    %v12040 = vpop.f32.mrf.mxu0
    %v12041 = vadd.f32 %v12028, %v12040
    %v12042 = vpop.f32.mrf.mxu0
    %12043 = vdwg.mxu0
    %12044 = vmatpush.bf16.msra.mxu0 %v10046
    %12045 = vmatpush.bf16.msra.mxu0 %v10038
    %12046 = vmatpush.bf16.msra.mxu0 %v10030
    %12047 = vmatpush.bf16.msra.mxu0 %v10022
    %12048 = vmatpush.bf16.msra.mxu0 %v10014
    %12049 = vmatpush.bf16.msra.mxu0 %v10006
    %12050 = vmatpush.bf16.msra.mxu0 %v9998
    %12051 = vmatpush.bf16.msra.mxu0 %v9990
    %12052 = vmatmul.bf16.gmra.mxu0 %v6379
    %v12053 = vpop.f32.mrf.mxu0
    %v12054 = vadd.f32 %v12041, %v12053
    %v12055 = vpop.f32.mrf.mxu0
    %12056 = vdwg.mxu0
    %12057 = vmatpush.bf16.msra.mxu0 %v10110
    %12058 = vmatpush.bf16.msra.mxu0 %v10102
    %12059 = vmatpush.bf16.msra.mxu0 %v10094
    %12060 = vmatpush.bf16.msra.mxu0 %v10086
    %12061 = vmatpush.bf16.msra.mxu0 %v10078
    %12062 = vmatpush.bf16.msra.mxu0 %v10070
    %12063 = vmatpush.bf16.msra.mxu0 %v10062
    %12064 = vmatpush.bf16.msra.mxu0 %v10054
    %12065 = vmatmul.bf16.gmra.mxu0 %v6380
    %v12066 = vpop.f32.mrf.mxu0
    %v12067 = vadd.f32 %v12054, %v12066
    %v12068 = vpop.f32.mrf.mxu0
    %12069 = vdwg.mxu0
    %12070 = vmatpush.bf16.msra.mxu0 %v10174
    %12071 = vmatpush.bf16.msra.mxu0 %v10166
    %12072 = vmatpush.bf16.msra.mxu0 %v10158
    %12073 = vmatpush.bf16.msra.mxu0 %v10150
    %12074 = vmatpush.bf16.msra.mxu0 %v10142
    %12075 = vmatpush.bf16.msra.mxu0 %v10134
    %12076 = vmatpush.bf16.msra.mxu0 %v10126
    %12077 = vmatpush.bf16.msra.mxu0 %v10118
    %12078 = vmatmul.bf16.gmra.mxu0 %v6381
    %v12079 = vpop.f32.mrf.mxu0
    %v12080 = vadd.f32 %v12067, %v12079
    %v12081 = vpop.f32.mrf.mxu0
    %12082 = vdwg.mxu0
    %12083 = vmatpush.bf16.msra.mxu0 %v10238
    %12084 = vmatpush.bf16.msra.mxu0 %v10230
    %12085 = vmatpush.bf16.msra.mxu0 %v10222
    %12086 = vmatpush.bf16.msra.mxu0 %v10214
    %12087 = vmatpush.bf16.msra.mxu0 %v10206
    %12088 = vmatpush.bf16.msra.mxu0 %v10198
    %12089 = vmatpush.bf16.msra.mxu0 %v10190
    %12090 = vmatpush.bf16.msra.mxu0 %v10182
    %12091 = vmatmul.bf16.gmra.mxu0 %v6382
    %v12092 = vpop.f32.mrf.mxu0
    %v12093 = vadd.f32 %v12080, %v12092
    %v12094 = vpop.f32.mrf.mxu0
    %12095 = vdwg.mxu0
    %12096 = vmatpush.bf16.msra.mxu0 %v10302
    %12097 = vmatpush.bf16.msra.mxu0 %v10294
    %12098 = vmatpush.bf16.msra.mxu0 %v10286
    %12099 = vmatpush.bf16.msra.mxu0 %v10278
    %12100 = vmatpush.bf16.msra.mxu0 %v10270
    %12101 = vmatpush.bf16.msra.mxu0 %v10262
    %12102 = vmatpush.bf16.msra.mxu0 %v10254
    %12103 = vmatpush.bf16.msra.mxu0 %v10246
    %12104 = vmatmul.bf16.gmra.mxu0 %v6383
    %v12105 = vpop.f32.mrf.mxu0
    %v12106 = vadd.f32 %v12093, %v12105
    %v12107 = vpop.f32.mrf.mxu0
    %12108 = vdwg.mxu0
    %12109 = vmatpush.bf16.msra.mxu0 %v10366
    %12110 = vmatpush.bf16.msra.mxu0 %v10358
    %12111 = vmatpush.bf16.msra.mxu0 %v10350
    %12112 = vmatpush.bf16.msra.mxu0 %v10342
    %12113 = vmatpush.bf16.msra.mxu0 %v10334
    %12114 = vmatpush.bf16.msra.mxu0 %v10326
    %12115 = vmatpush.bf16.msra.mxu0 %v10318
    %12116 = vmatpush.bf16.msra.mxu0 %v10310
    %12117 = vmatmul.bf16.gmra.mxu0 %v6384
    %v12118 = vpop.f32.mrf.mxu0
    %v12119 = vadd.f32 %v12106, %v12118
    %v12120 = vpop.f32.mrf.mxu0
    %12121 = vdwg.mxu0
    %12122 = vmatpush.bf16.msra.mxu0 %v10430
    %12123 = vmatpush.bf16.msra.mxu0 %v10422
    %12124 = vmatpush.bf16.msra.mxu0 %v10414
    %12125 = vmatpush.bf16.msra.mxu0 %v10406
    %12126 = vmatpush.bf16.msra.mxu0 %v10398
    %12127 = vmatpush.bf16.msra.mxu0 %v10390
    %12128 = vmatpush.bf16.msra.mxu0 %v10382
    %12129 = vmatpush.bf16.msra.mxu0 %v10374
    %12130 = vmatmul.bf16.gmra.mxu0 %v6385
    %v12131 = vpop.f32.mrf.mxu0
    %v12132 = vadd.f32 %v12119, %v12131
    %v12133 = vpop.f32.mrf.mxu0
    %12134 = vdwg.mxu0
    %12135 = vmatpush.bf16.msra.mxu0 %v10494
    %12136 = vmatpush.bf16.msra.mxu0 %v10486
    %12137 = vmatpush.bf16.msra.mxu0 %v10478
    %12138 = vmatpush.bf16.msra.mxu0 %v10470
    %12139 = vmatpush.bf16.msra.mxu0 %v10462
    %12140 = vmatpush.bf16.msra.mxu0 %v10454
    %12141 = vmatpush.bf16.msra.mxu0 %v10446
    %12142 = vmatpush.bf16.msra.mxu0 %v10438
    %12143 = vmatmul.bf16.gmra.mxu0 %v6386
    %v12144 = vpop.f32.mrf.mxu0
    %v12145 = vadd.f32 %v12132, %v12144
    %v12146 = vpop.f32.mrf.mxu0
    %12147 = vdwg.mxu0
    %12148 = vmatpush.bf16.msra.mxu0 %v9535
    %12149 = vmatpush.bf16.msra.mxu0 %v9527
    %12150 = vmatpush.bf16.msra.mxu0 %v9519
    %12151 = vmatpush.bf16.msra.mxu0 %v9511
    %12152 = vmatpush.bf16.msra.mxu0 %v9503
    %12153 = vmatpush.bf16.msra.mxu0 %v9495
    %12154 = vmatpush.bf16.msra.mxu0 %v9487
    %12155 = vmatpush.bf16.msra.mxu0 %v9479
    %12156 = vmatmul.bf16.gmra.mxu0 %v6371
    %v12157 = vpop.f32.mrf.mxu0
    %v12158 = vadd.f32 %v6391, %v12157
    %v12159 = vpop.f32.mrf.mxu0
    %12160 = vdwg.mxu0
    %12161 = vmatpush.bf16.msra.mxu0 %v9599
    %12162 = vmatpush.bf16.msra.mxu0 %v9591
    %12163 = vmatpush.bf16.msra.mxu0 %v9583
    %12164 = vmatpush.bf16.msra.mxu0 %v9575
    %12165 = vmatpush.bf16.msra.mxu0 %v9567
    %12166 = vmatpush.bf16.msra.mxu0 %v9559
    %12167 = vmatpush.bf16.msra.mxu0 %v9551
    %12168 = vmatpush.bf16.msra.mxu0 %v9543
    %12169 = vmatmul.bf16.gmra.mxu0 %v6372
    %v12170 = vpop.f32.mrf.mxu0
    %v12171 = vadd.f32 %v12158, %v12170
    %v12172 = vpop.f32.mrf.mxu0
    %12173 = vdwg.mxu0
    %12174 = vmatpush.bf16.msra.mxu0 %v9663
    %12175 = vmatpush.bf16.msra.mxu0 %v9655
    %12176 = vmatpush.bf16.msra.mxu0 %v9647
    %12177 = vmatpush.bf16.msra.mxu0 %v9639
    %12178 = vmatpush.bf16.msra.mxu0 %v9631
    %12179 = vmatpush.bf16.msra.mxu0 %v9623
    %12180 = vmatpush.bf16.msra.mxu0 %v9615
    %12181 = vmatpush.bf16.msra.mxu0 %v9607
    %12182 = vmatmul.bf16.gmra.mxu0 %v6373
    %v12183 = vpop.f32.mrf.mxu0
    %v12184 = vadd.f32 %v12171, %v12183
    %v12185 = vpop.f32.mrf.mxu0
    %12186 = vdwg.mxu0
    %12187 = vmatpush.bf16.msra.mxu0 %v9727
    %12188 = vmatpush.bf16.msra.mxu0 %v9719
    %12189 = vmatpush.bf16.msra.mxu0 %v9711
    %12190 = vmatpush.bf16.msra.mxu0 %v9703
    %12191 = vmatpush.bf16.msra.mxu0 %v9695
    %12192 = vmatpush.bf16.msra.mxu0 %v9687
    %12193 = vmatpush.bf16.msra.mxu0 %v9679
    %12194 = vmatpush.bf16.msra.mxu0 %v9671
    %12195 = vmatmul.bf16.gmra.mxu0 %v6374
    %v12196 = vpop.f32.mrf.mxu0
    %v12197 = vadd.f32 %v12184, %v12196
    %v12198 = vpop.f32.mrf.mxu0
    %12199 = vdwg.mxu0
    %12200 = vmatpush.bf16.msra.mxu0 %v9791
    %12201 = vmatpush.bf16.msra.mxu0 %v9783
    %12202 = vmatpush.bf16.msra.mxu0 %v9775
    %12203 = vmatpush.bf16.msra.mxu0 %v9767
    %12204 = vmatpush.bf16.msra.mxu0 %v9759
    %12205 = vmatpush.bf16.msra.mxu0 %v9751
    %12206 = vmatpush.bf16.msra.mxu0 %v9743
    %12207 = vmatpush.bf16.msra.mxu0 %v9735
    %12208 = vmatmul.bf16.gmra.mxu0 %v6375
    %v12209 = vpop.f32.mrf.mxu0
    %v12210 = vadd.f32 %v12197, %v12209
    %v12211 = vpop.f32.mrf.mxu0
    %12212 = vdwg.mxu0
    %12213 = vmatpush.bf16.msra.mxu0 %v9855
    %12214 = vmatpush.bf16.msra.mxu0 %v9847
    %12215 = vmatpush.bf16.msra.mxu0 %v9839
    %12216 = vmatpush.bf16.msra.mxu0 %v9831
    %12217 = vmatpush.bf16.msra.mxu0 %v9823
    %12218 = vmatpush.bf16.msra.mxu0 %v9815
    %12219 = vmatpush.bf16.msra.mxu0 %v9807
    %12220 = vmatpush.bf16.msra.mxu0 %v9799
    %12221 = vmatmul.bf16.gmra.mxu0 %v6376
    %v12222 = vpop.f32.mrf.mxu0
    %v12223 = vadd.f32 %v12210, %v12222
    %v12224 = vpop.f32.mrf.mxu0
    %12225 = vdwg.mxu0
    %12226 = vmatpush.bf16.msra.mxu0 %v9919
    %12227 = vmatpush.bf16.msra.mxu0 %v9911
    %12228 = vmatpush.bf16.msra.mxu0 %v9903
    %12229 = vmatpush.bf16.msra.mxu0 %v9895
    %12230 = vmatpush.bf16.msra.mxu0 %v9887
    %12231 = vmatpush.bf16.msra.mxu0 %v9879
    %12232 = vmatpush.bf16.msra.mxu0 %v9871
    %12233 = vmatpush.bf16.msra.mxu0 %v9863
    %12234 = vmatmul.bf16.gmra.mxu0 %v6377
    %v12235 = vpop.f32.mrf.mxu0
    %v12236 = vadd.f32 %v12223, %v12235
    %v12237 = vpop.f32.mrf.mxu0
    %12238 = vdwg.mxu0
    %12239 = vmatpush.bf16.msra.mxu0 %v9983
    %12240 = vmatpush.bf16.msra.mxu0 %v9975
    %12241 = vmatpush.bf16.msra.mxu0 %v9967
    %12242 = vmatpush.bf16.msra.mxu0 %v9959
    %12243 = vmatpush.bf16.msra.mxu0 %v9951
    %12244 = vmatpush.bf16.msra.mxu0 %v9943
    %12245 = vmatpush.bf16.msra.mxu0 %v9935
    %12246 = vmatpush.bf16.msra.mxu0 %v9927
    %12247 = vmatmul.bf16.gmra.mxu0 %v6378
    %v12248 = vpop.f32.mrf.mxu0
    %v12249 = vadd.f32 %v12236, %v12248
    %v12250 = vpop.f32.mrf.mxu0
    %12251 = vdwg.mxu0
    %12252 = vmatpush.bf16.msra.mxu0 %v10047
    %12253 = vmatpush.bf16.msra.mxu0 %v10039
    %12254 = vmatpush.bf16.msra.mxu0 %v10031
    %12255 = vmatpush.bf16.msra.mxu0 %v10023
    %12256 = vmatpush.bf16.msra.mxu0 %v10015
    %12257 = vmatpush.bf16.msra.mxu0 %v10007
    %12258 = vmatpush.bf16.msra.mxu0 %v9999
    %12259 = vmatpush.bf16.msra.mxu0 %v9991
    %12260 = vmatmul.bf16.gmra.mxu0 %v6379
    %v12261 = vpop.f32.mrf.mxu0
    %v12262 = vadd.f32 %v12249, %v12261
    %v12263 = vpop.f32.mrf.mxu0
    %12264 = vdwg.mxu0
    %12265 = vmatpush.bf16.msra.mxu0 %v10111
    %12266 = vmatpush.bf16.msra.mxu0 %v10103
    %12267 = vmatpush.bf16.msra.mxu0 %v10095
    %12268 = vmatpush.bf16.msra.mxu0 %v10087
    %12269 = vmatpush.bf16.msra.mxu0 %v10079
    %12270 = vmatpush.bf16.msra.mxu0 %v10071
    %12271 = vmatpush.bf16.msra.mxu0 %v10063
    %12272 = vmatpush.bf16.msra.mxu0 %v10055
    %12273 = vmatmul.bf16.gmra.mxu0 %v6380
    %v12274 = vpop.f32.mrf.mxu0
    %v12275 = vadd.f32 %v12262, %v12274
    %v12276 = vpop.f32.mrf.mxu0
    %12277 = vdwg.mxu0
    %12278 = vmatpush.bf16.msra.mxu0 %v10175
    %12279 = vmatpush.bf16.msra.mxu0 %v10167
    %12280 = vmatpush.bf16.msra.mxu0 %v10159
    %12281 = vmatpush.bf16.msra.mxu0 %v10151
    %12282 = vmatpush.bf16.msra.mxu0 %v10143
    %12283 = vmatpush.bf16.msra.mxu0 %v10135
    %12284 = vmatpush.bf16.msra.mxu0 %v10127
    %12285 = vmatpush.bf16.msra.mxu0 %v10119
    %12286 = vmatmul.bf16.gmra.mxu0 %v6381
    %v12287 = vpop.f32.mrf.mxu0
    %v12288 = vadd.f32 %v12275, %v12287
    %v12289 = vpop.f32.mrf.mxu0
    %12290 = vdwg.mxu0
    %12291 = vmatpush.bf16.msra.mxu0 %v10239
    %12292 = vmatpush.bf16.msra.mxu0 %v10231
    %12293 = vmatpush.bf16.msra.mxu0 %v10223
    %12294 = vmatpush.bf16.msra.mxu0 %v10215
    %12295 = vmatpush.bf16.msra.mxu0 %v10207
    %12296 = vmatpush.bf16.msra.mxu0 %v10199
    %12297 = vmatpush.bf16.msra.mxu0 %v10191
    %12298 = vmatpush.bf16.msra.mxu0 %v10183
    %12299 = vmatmul.bf16.gmra.mxu0 %v6382
    %v12300 = vpop.f32.mrf.mxu0
    %v12301 = vadd.f32 %v12288, %v12300
    %v12302 = vpop.f32.mrf.mxu0
    %12303 = vdwg.mxu0
    %12304 = vmatpush.bf16.msra.mxu0 %v10303
    %12305 = vmatpush.bf16.msra.mxu0 %v10295
    %12306 = vmatpush.bf16.msra.mxu0 %v10287
    %12307 = vmatpush.bf16.msra.mxu0 %v10279
    %12308 = vmatpush.bf16.msra.mxu0 %v10271
    %12309 = vmatpush.bf16.msra.mxu0 %v10263
    %12310 = vmatpush.bf16.msra.mxu0 %v10255
    %12311 = vmatpush.bf16.msra.mxu0 %v10247
    %12312 = vmatmul.bf16.gmra.mxu0 %v6383
    %v12313 = vpop.f32.mrf.mxu0
    %v12314 = vadd.f32 %v12301, %v12313
    %v12315 = vpop.f32.mrf.mxu0
    %12316 = vdwg.mxu0
    %12317 = vmatpush.bf16.msra.mxu0 %v10367
    %12318 = vmatpush.bf16.msra.mxu0 %v10359
    %12319 = vmatpush.bf16.msra.mxu0 %v10351
    %12320 = vmatpush.bf16.msra.mxu0 %v10343
    %12321 = vmatpush.bf16.msra.mxu0 %v10335
    %12322 = vmatpush.bf16.msra.mxu0 %v10327
    %12323 = vmatpush.bf16.msra.mxu0 %v10319
    %12324 = vmatpush.bf16.msra.mxu0 %v10311
    %12325 = vmatmul.bf16.gmra.mxu0 %v6384
    %v12326 = vpop.f32.mrf.mxu0
    %v12327 = vadd.f32 %v12314, %v12326
    %v12328 = vpop.f32.mrf.mxu0
    %12329 = vdwg.mxu0
    %12330 = vmatpush.bf16.msra.mxu0 %v10431
    %12331 = vmatpush.bf16.msra.mxu0 %v10423
    %12332 = vmatpush.bf16.msra.mxu0 %v10415
    %12333 = vmatpush.bf16.msra.mxu0 %v10407
    %12334 = vmatpush.bf16.msra.mxu0 %v10399
    %12335 = vmatpush.bf16.msra.mxu0 %v10391
    %12336 = vmatpush.bf16.msra.mxu0 %v10383
    %12337 = vmatpush.bf16.msra.mxu0 %v10375
    %12338 = vmatmul.bf16.gmra.mxu0 %v6385
    %v12339 = vpop.f32.mrf.mxu0
    %v12340 = vadd.f32 %v12327, %v12339
    %v12341 = vpop.f32.mrf.mxu0
    %12342 = vdwg.mxu0
    %12343 = vmatpush.bf16.msra.mxu0 %v10495
    %12344 = vmatpush.bf16.msra.mxu0 %v10487
    %12345 = vmatpush.bf16.msra.mxu0 %v10479
    %12346 = vmatpush.bf16.msra.mxu0 %v10471
    %12347 = vmatpush.bf16.msra.mxu0 %v10463
    %12348 = vmatpush.bf16.msra.mxu0 %v10455
    %12349 = vmatpush.bf16.msra.mxu0 %v10447
    %12350 = vmatpush.bf16.msra.mxu0 %v10439
    %12351 = vmatmul.bf16.gmra.mxu0 %v6386
    %v12352 = vpop.f32.mrf.mxu0
    %v12353 = vadd.f32 %v12340, %v12352
    %v12354 = vpop.f32.mrf.mxu0
    %12355 = vdwg.mxu0
    %12356 = vmatpush.bf16.msra.mxu0 %v9536
    %12357 = vmatpush.bf16.msra.mxu0 %v9528
    %12358 = vmatpush.bf16.msra.mxu0 %v9520
    %12359 = vmatpush.bf16.msra.mxu0 %v9512
    %12360 = vmatpush.bf16.msra.mxu0 %v9504
    %12361 = vmatpush.bf16.msra.mxu0 %v9496
    %12362 = vmatpush.bf16.msra.mxu0 %v9488
    %12363 = vmatpush.bf16.msra.mxu0 %v9480
    %12364 = vmatmul.bf16.gmra.mxu0 %v6371
    %v12365 = vpop.f32.mrf.mxu0
    %v12366 = vadd.f32 %v6392, %v12365
    %v12367 = vpop.f32.mrf.mxu0
    %12368 = vdwg.mxu0
    %12369 = vmatpush.bf16.msra.mxu0 %v9600
    %12370 = vmatpush.bf16.msra.mxu0 %v9592
    %12371 = vmatpush.bf16.msra.mxu0 %v9584
    %12372 = vmatpush.bf16.msra.mxu0 %v9576
    %12373 = vmatpush.bf16.msra.mxu0 %v9568
    %12374 = vmatpush.bf16.msra.mxu0 %v9560
    %12375 = vmatpush.bf16.msra.mxu0 %v9552
    %12376 = vmatpush.bf16.msra.mxu0 %v9544
    %12377 = vmatmul.bf16.gmra.mxu0 %v6372
    %v12378 = vpop.f32.mrf.mxu0
    %v12379 = vadd.f32 %v12366, %v12378
    %v12380 = vpop.f32.mrf.mxu0
    %12381 = vdwg.mxu0
    %12382 = vmatpush.bf16.msra.mxu0 %v9664
    %12383 = vmatpush.bf16.msra.mxu0 %v9656
    %12384 = vmatpush.bf16.msra.mxu0 %v9648
    %12385 = vmatpush.bf16.msra.mxu0 %v9640
    %12386 = vmatpush.bf16.msra.mxu0 %v9632
    %12387 = vmatpush.bf16.msra.mxu0 %v9624
    %12388 = vmatpush.bf16.msra.mxu0 %v9616
    %12389 = vmatpush.bf16.msra.mxu0 %v9608
    %12390 = vmatmul.bf16.gmra.mxu0 %v6373
    %v12391 = vpop.f32.mrf.mxu0
    %v12392 = vadd.f32 %v12379, %v12391
    %v12393 = vpop.f32.mrf.mxu0
    %12394 = vdwg.mxu0
    %12395 = vmatpush.bf16.msra.mxu0 %v9728
    %12396 = vmatpush.bf16.msra.mxu0 %v9720
    %12397 = vmatpush.bf16.msra.mxu0 %v9712
    %12398 = vmatpush.bf16.msra.mxu0 %v9704
    %12399 = vmatpush.bf16.msra.mxu0 %v9696
    %12400 = vmatpush.bf16.msra.mxu0 %v9688
    %12401 = vmatpush.bf16.msra.mxu0 %v9680
    %12402 = vmatpush.bf16.msra.mxu0 %v9672
    %12403 = vmatmul.bf16.gmra.mxu0 %v6374
    %v12404 = vpop.f32.mrf.mxu0
    %v12405 = vadd.f32 %v12392, %v12404
    %v12406 = vpop.f32.mrf.mxu0
    %12407 = vdwg.mxu0
    %12408 = vmatpush.bf16.msra.mxu0 %v9792
    %12409 = vmatpush.bf16.msra.mxu0 %v9784
    %12410 = vmatpush.bf16.msra.mxu0 %v9776
    %12411 = vmatpush.bf16.msra.mxu0 %v9768
    %12412 = vmatpush.bf16.msra.mxu0 %v9760
    %12413 = vmatpush.bf16.msra.mxu0 %v9752
    %12414 = vmatpush.bf16.msra.mxu0 %v9744
    %12415 = vmatpush.bf16.msra.mxu0 %v9736
    %12416 = vmatmul.bf16.gmra.mxu0 %v6375
    %v12417 = vpop.f32.mrf.mxu0
    %v12418 = vadd.f32 %v12405, %v12417
    %v12419 = vpop.f32.mrf.mxu0
    %12420 = vdwg.mxu0
    %12421 = vmatpush.bf16.msra.mxu0 %v9856
    %12422 = vmatpush.bf16.msra.mxu0 %v9848
    %12423 = vmatpush.bf16.msra.mxu0 %v9840
    %12424 = vmatpush.bf16.msra.mxu0 %v9832
    %12425 = vmatpush.bf16.msra.mxu0 %v9824
    %12426 = vmatpush.bf16.msra.mxu0 %v9816
    %12427 = vmatpush.bf16.msra.mxu0 %v9808
    %12428 = vmatpush.bf16.msra.mxu0 %v9800
    %12429 = vmatmul.bf16.gmra.mxu0 %v6376
    %v12430 = vpop.f32.mrf.mxu0
    %v12431 = vadd.f32 %v12418, %v12430
    %v12432 = vpop.f32.mrf.mxu0
    %12433 = vdwg.mxu0
    %12434 = vmatpush.bf16.msra.mxu0 %v9920
    %12435 = vmatpush.bf16.msra.mxu0 %v9912
    %12436 = vmatpush.bf16.msra.mxu0 %v9904
    %12437 = vmatpush.bf16.msra.mxu0 %v9896
    %12438 = vmatpush.bf16.msra.mxu0 %v9888
    %12439 = vmatpush.bf16.msra.mxu0 %v9880
    %12440 = vmatpush.bf16.msra.mxu0 %v9872
    %12441 = vmatpush.bf16.msra.mxu0 %v9864
    %12442 = vmatmul.bf16.gmra.mxu0 %v6377
    %v12443 = vpop.f32.mrf.mxu0
    %v12444 = vadd.f32 %v12431, %v12443
    %v12445 = vpop.f32.mrf.mxu0
    %12446 = vdwg.mxu0
    %12447 = vmatpush.bf16.msra.mxu0 %v9984
    %12448 = vmatpush.bf16.msra.mxu0 %v9976
    %12449 = vmatpush.bf16.msra.mxu0 %v9968
    %12450 = vmatpush.bf16.msra.mxu0 %v9960
    %12451 = vmatpush.bf16.msra.mxu0 %v9952
    %12452 = vmatpush.bf16.msra.mxu0 %v9944
    %12453 = vmatpush.bf16.msra.mxu0 %v9936
    %12454 = vmatpush.bf16.msra.mxu0 %v9928
    %12455 = vmatmul.bf16.gmra.mxu0 %v6378
    %v12456 = vpop.f32.mrf.mxu0
    %v12457 = vadd.f32 %v12444, %v12456
    %v12458 = vpop.f32.mrf.mxu0
    %12459 = vdwg.mxu0
    %12460 = vmatpush.bf16.msra.mxu0 %v10048
    %12461 = vmatpush.bf16.msra.mxu0 %v10040
    %12462 = vmatpush.bf16.msra.mxu0 %v10032
    %12463 = vmatpush.bf16.msra.mxu0 %v10024
    %12464 = vmatpush.bf16.msra.mxu0 %v10016
    %12465 = vmatpush.bf16.msra.mxu0 %v10008
    %12466 = vmatpush.bf16.msra.mxu0 %v10000
    %12467 = vmatpush.bf16.msra.mxu0 %v9992
    %12468 = vmatmul.bf16.gmra.mxu0 %v6379
    %v12469 = vpop.f32.mrf.mxu0
    %v12470 = vadd.f32 %v12457, %v12469
    %v12471 = vpop.f32.mrf.mxu0
    %12472 = vdwg.mxu0
    %12473 = vmatpush.bf16.msra.mxu0 %v10112
    %12474 = vmatpush.bf16.msra.mxu0 %v10104
    %12475 = vmatpush.bf16.msra.mxu0 %v10096
    %12476 = vmatpush.bf16.msra.mxu0 %v10088
    %12477 = vmatpush.bf16.msra.mxu0 %v10080
    %12478 = vmatpush.bf16.msra.mxu0 %v10072
    %12479 = vmatpush.bf16.msra.mxu0 %v10064
    %12480 = vmatpush.bf16.msra.mxu0 %v10056
    %12481 = vmatmul.bf16.gmra.mxu0 %v6380
    %v12482 = vpop.f32.mrf.mxu0
    %v12483 = vadd.f32 %v12470, %v12482
    %v12484 = vpop.f32.mrf.mxu0
    %12485 = vdwg.mxu0
    %12486 = vmatpush.bf16.msra.mxu0 %v10176
    %12487 = vmatpush.bf16.msra.mxu0 %v10168
    %12488 = vmatpush.bf16.msra.mxu0 %v10160
    %12489 = vmatpush.bf16.msra.mxu0 %v10152
    %12490 = vmatpush.bf16.msra.mxu0 %v10144
    %12491 = vmatpush.bf16.msra.mxu0 %v10136
    %12492 = vmatpush.bf16.msra.mxu0 %v10128
    %12493 = vmatpush.bf16.msra.mxu0 %v10120
    %12494 = vmatmul.bf16.gmra.mxu0 %v6381
    %v12495 = vpop.f32.mrf.mxu0
    %v12496 = vadd.f32 %v12483, %v12495
    %v12497 = vpop.f32.mrf.mxu0
    %12498 = vdwg.mxu0
    %12499 = vmatpush.bf16.msra.mxu0 %v10240
    %12500 = vmatpush.bf16.msra.mxu0 %v10232
    %12501 = vmatpush.bf16.msra.mxu0 %v10224
    %12502 = vmatpush.bf16.msra.mxu0 %v10216
    %12503 = vmatpush.bf16.msra.mxu0 %v10208
    %12504 = vmatpush.bf16.msra.mxu0 %v10200
    %12505 = vmatpush.bf16.msra.mxu0 %v10192
    %12506 = vmatpush.bf16.msra.mxu0 %v10184
    %12507 = vmatmul.bf16.gmra.mxu0 %v6382
    %v12508 = vpop.f32.mrf.mxu0
    %v12509 = vadd.f32 %v12496, %v12508
    %v12510 = vpop.f32.mrf.mxu0
    %12511 = vdwg.mxu0
    %12512 = vmatpush.bf16.msra.mxu0 %v10304
    %12513 = vmatpush.bf16.msra.mxu0 %v10296
    %12514 = vmatpush.bf16.msra.mxu0 %v10288
    %12515 = vmatpush.bf16.msra.mxu0 %v10280
    %12516 = vmatpush.bf16.msra.mxu0 %v10272
    %12517 = vmatpush.bf16.msra.mxu0 %v10264
    %12518 = vmatpush.bf16.msra.mxu0 %v10256
    %12519 = vmatpush.bf16.msra.mxu0 %v10248
    %12520 = vmatmul.bf16.gmra.mxu0 %v6383
    %v12521 = vpop.f32.mrf.mxu0
    %v12522 = vadd.f32 %v12509, %v12521
    %v12523 = vpop.f32.mrf.mxu0
    %12524 = vdwg.mxu0
    %12525 = vmatpush.bf16.msra.mxu0 %v10368
    %12526 = vmatpush.bf16.msra.mxu0 %v10360
    %12527 = vmatpush.bf16.msra.mxu0 %v10352
    %12528 = vmatpush.bf16.msra.mxu0 %v10344
    %12529 = vmatpush.bf16.msra.mxu0 %v10336
    %12530 = vmatpush.bf16.msra.mxu0 %v10328
    %12531 = vmatpush.bf16.msra.mxu0 %v10320
    %12532 = vmatpush.bf16.msra.mxu0 %v10312
    %12533 = vmatmul.bf16.gmra.mxu0 %v6384
    %v12534 = vpop.f32.mrf.mxu0
    %v12535 = vadd.f32 %v12522, %v12534
    %v12536 = vpop.f32.mrf.mxu0
    %12537 = vdwg.mxu0
    %12538 = vmatpush.bf16.msra.mxu0 %v10432
    %12539 = vmatpush.bf16.msra.mxu0 %v10424
    %12540 = vmatpush.bf16.msra.mxu0 %v10416
    %12541 = vmatpush.bf16.msra.mxu0 %v10408
    %12542 = vmatpush.bf16.msra.mxu0 %v10400
    %12543 = vmatpush.bf16.msra.mxu0 %v10392
    %12544 = vmatpush.bf16.msra.mxu0 %v10384
    %12545 = vmatpush.bf16.msra.mxu0 %v10376
    %12546 = vmatmul.bf16.gmra.mxu0 %v6385
    %v12547 = vpop.f32.mrf.mxu0
    %v12548 = vadd.f32 %v12535, %v12547
    %v12549 = vpop.f32.mrf.mxu0
    %12550 = vdwg.mxu0
    %12551 = vmatpush.bf16.msra.mxu0 %v10496
    %12552 = vmatpush.bf16.msra.mxu0 %v10488
    %12553 = vmatpush.bf16.msra.mxu0 %v10480
    %12554 = vmatpush.bf16.msra.mxu0 %v10472
    %12555 = vmatpush.bf16.msra.mxu0 %v10464
    %12556 = vmatpush.bf16.msra.mxu0 %v10456
    %12557 = vmatpush.bf16.msra.mxu0 %v10448
    %12558 = vmatpush.bf16.msra.mxu0 %v10440
    %12559 = vmatmul.bf16.gmra.mxu0 %v6386
    %v12560 = vpop.f32.mrf.mxu0
    %v12561 = vadd.f32 %v12548, %v12560
    %v12562 = vpop.f32.mrf.mxu0
    %12563 = vdwg.mxu0
    %12564 = vmatpush.bf16.msra.mxu0 %v9537
    %12565 = vmatpush.bf16.msra.mxu0 %v9529
    %12566 = vmatpush.bf16.msra.mxu0 %v9521
    %12567 = vmatpush.bf16.msra.mxu0 %v9513
    %12568 = vmatpush.bf16.msra.mxu0 %v9505
    %12569 = vmatpush.bf16.msra.mxu0 %v9497
    %12570 = vmatpush.bf16.msra.mxu0 %v9489
    %12571 = vmatpush.bf16.msra.mxu0 %v9481
    %12572 = vmatmul.bf16.gmra.mxu0 %v6371
    %v12573 = vpop.f32.mrf.mxu0
    %v12574 = vadd.f32 %v6393, %v12573
    %v12575 = vpop.f32.mrf.mxu0
    %12576 = vdwg.mxu0
    %12577 = vmatpush.bf16.msra.mxu0 %v9601
    %12578 = vmatpush.bf16.msra.mxu0 %v9593
    %12579 = vmatpush.bf16.msra.mxu0 %v9585
    %12580 = vmatpush.bf16.msra.mxu0 %v9577
    %12581 = vmatpush.bf16.msra.mxu0 %v9569
    %12582 = vmatpush.bf16.msra.mxu0 %v9561
    %12583 = vmatpush.bf16.msra.mxu0 %v9553
    %12584 = vmatpush.bf16.msra.mxu0 %v9545
    %12585 = vmatmul.bf16.gmra.mxu0 %v6372
    %v12586 = vpop.f32.mrf.mxu0
    %v12587 = vadd.f32 %v12574, %v12586
    %v12588 = vpop.f32.mrf.mxu0
    %12589 = vdwg.mxu0
    %12590 = vmatpush.bf16.msra.mxu0 %v9665
    %12591 = vmatpush.bf16.msra.mxu0 %v9657
    %12592 = vmatpush.bf16.msra.mxu0 %v9649
    %12593 = vmatpush.bf16.msra.mxu0 %v9641
    %12594 = vmatpush.bf16.msra.mxu0 %v9633
    %12595 = vmatpush.bf16.msra.mxu0 %v9625
    %12596 = vmatpush.bf16.msra.mxu0 %v9617
    %12597 = vmatpush.bf16.msra.mxu0 %v9609
    %12598 = vmatmul.bf16.gmra.mxu0 %v6373
    %v12599 = vpop.f32.mrf.mxu0
    %v12600 = vadd.f32 %v12587, %v12599
    %v12601 = vpop.f32.mrf.mxu0
    %12602 = vdwg.mxu0
    %12603 = vmatpush.bf16.msra.mxu0 %v9729
    %12604 = vmatpush.bf16.msra.mxu0 %v9721
    %12605 = vmatpush.bf16.msra.mxu0 %v9713
    %12606 = vmatpush.bf16.msra.mxu0 %v9705
    %12607 = vmatpush.bf16.msra.mxu0 %v9697
    %12608 = vmatpush.bf16.msra.mxu0 %v9689
    %12609 = vmatpush.bf16.msra.mxu0 %v9681
    %12610 = vmatpush.bf16.msra.mxu0 %v9673
    %12611 = vmatmul.bf16.gmra.mxu0 %v6374
    %v12612 = vpop.f32.mrf.mxu0
    %v12613 = vadd.f32 %v12600, %v12612
    %v12614 = vpop.f32.mrf.mxu0
    %12615 = vdwg.mxu0
    %12616 = vmatpush.bf16.msra.mxu0 %v9793
    %12617 = vmatpush.bf16.msra.mxu0 %v9785
    %12618 = vmatpush.bf16.msra.mxu0 %v9777
    %12619 = vmatpush.bf16.msra.mxu0 %v9769
    %12620 = vmatpush.bf16.msra.mxu0 %v9761
    %12621 = vmatpush.bf16.msra.mxu0 %v9753
    %12622 = vmatpush.bf16.msra.mxu0 %v9745
    %12623 = vmatpush.bf16.msra.mxu0 %v9737
    %12624 = vmatmul.bf16.gmra.mxu0 %v6375
    %v12625 = vpop.f32.mrf.mxu0
    %v12626 = vadd.f32 %v12613, %v12625
    %v12627 = vpop.f32.mrf.mxu0
    %12628 = vdwg.mxu0
    %12629 = vmatpush.bf16.msra.mxu0 %v9857
    %12630 = vmatpush.bf16.msra.mxu0 %v9849
    %12631 = vmatpush.bf16.msra.mxu0 %v9841
    %12632 = vmatpush.bf16.msra.mxu0 %v9833
    %12633 = vmatpush.bf16.msra.mxu0 %v9825
    %12634 = vmatpush.bf16.msra.mxu0 %v9817
    %12635 = vmatpush.bf16.msra.mxu0 %v9809
    %12636 = vmatpush.bf16.msra.mxu0 %v9801
    %12637 = vmatmul.bf16.gmra.mxu0 %v6376
    %v12638 = vpop.f32.mrf.mxu0
    %v12639 = vadd.f32 %v12626, %v12638
    %v12640 = vpop.f32.mrf.mxu0
    %12641 = vdwg.mxu0
    %12642 = vmatpush.bf16.msra.mxu0 %v9921
    %12643 = vmatpush.bf16.msra.mxu0 %v9913
    %12644 = vmatpush.bf16.msra.mxu0 %v9905
    %12645 = vmatpush.bf16.msra.mxu0 %v9897
    %12646 = vmatpush.bf16.msra.mxu0 %v9889
    %12647 = vmatpush.bf16.msra.mxu0 %v9881
    %12648 = vmatpush.bf16.msra.mxu0 %v9873
    %12649 = vmatpush.bf16.msra.mxu0 %v9865
    %12650 = vmatmul.bf16.gmra.mxu0 %v6377
    %v12651 = vpop.f32.mrf.mxu0
    %v12652 = vadd.f32 %v12639, %v12651
    %v12653 = vpop.f32.mrf.mxu0
    %12654 = vdwg.mxu0
    %12655 = vmatpush.bf16.msra.mxu0 %v9985
    %12656 = vmatpush.bf16.msra.mxu0 %v9977
    %12657 = vmatpush.bf16.msra.mxu0 %v9969
    %12658 = vmatpush.bf16.msra.mxu0 %v9961
    %12659 = vmatpush.bf16.msra.mxu0 %v9953
    %12660 = vmatpush.bf16.msra.mxu0 %v9945
    %12661 = vmatpush.bf16.msra.mxu0 %v9937
    %12662 = vmatpush.bf16.msra.mxu0 %v9929
    %12663 = vmatmul.bf16.gmra.mxu0 %v6378
    %v12664 = vpop.f32.mrf.mxu0
    %v12665 = vadd.f32 %v12652, %v12664
    %v12666 = vpop.f32.mrf.mxu0
    %12667 = vdwg.mxu0
    %12668 = vmatpush.bf16.msra.mxu0 %v10049
    %12669 = vmatpush.bf16.msra.mxu0 %v10041
    %12670 = vmatpush.bf16.msra.mxu0 %v10033
    %12671 = vmatpush.bf16.msra.mxu0 %v10025
    %12672 = vmatpush.bf16.msra.mxu0 %v10017
    %12673 = vmatpush.bf16.msra.mxu0 %v10009
    %12674 = vmatpush.bf16.msra.mxu0 %v10001
    %12675 = vmatpush.bf16.msra.mxu0 %v9993
    %12676 = vmatmul.bf16.gmra.mxu0 %v6379
    %v12677 = vpop.f32.mrf.mxu0
    %v12678 = vadd.f32 %v12665, %v12677
    %v12679 = vpop.f32.mrf.mxu0
    %12680 = vdwg.mxu0
    %12681 = vmatpush.bf16.msra.mxu0 %v10113
    %12682 = vmatpush.bf16.msra.mxu0 %v10105
    %12683 = vmatpush.bf16.msra.mxu0 %v10097
    %12684 = vmatpush.bf16.msra.mxu0 %v10089
    %12685 = vmatpush.bf16.msra.mxu0 %v10081
    %12686 = vmatpush.bf16.msra.mxu0 %v10073
    %12687 = vmatpush.bf16.msra.mxu0 %v10065
    %12688 = vmatpush.bf16.msra.mxu0 %v10057
    %12689 = vmatmul.bf16.gmra.mxu0 %v6380
    %v12690 = vpop.f32.mrf.mxu0
    %v12691 = vadd.f32 %v12678, %v12690
    %v12692 = vpop.f32.mrf.mxu0
    %12693 = vdwg.mxu0
    %12694 = vmatpush.bf16.msra.mxu0 %v10177
    %12695 = vmatpush.bf16.msra.mxu0 %v10169
    %12696 = vmatpush.bf16.msra.mxu0 %v10161
    %12697 = vmatpush.bf16.msra.mxu0 %v10153
    %12698 = vmatpush.bf16.msra.mxu0 %v10145
    %12699 = vmatpush.bf16.msra.mxu0 %v10137
    %12700 = vmatpush.bf16.msra.mxu0 %v10129
    %12701 = vmatpush.bf16.msra.mxu0 %v10121
    %12702 = vmatmul.bf16.gmra.mxu0 %v6381
    %v12703 = vpop.f32.mrf.mxu0
    %v12704 = vadd.f32 %v12691, %v12703
    %v12705 = vpop.f32.mrf.mxu0
    %12706 = vdwg.mxu0
    %12707 = vmatpush.bf16.msra.mxu0 %v10241
    %12708 = vmatpush.bf16.msra.mxu0 %v10233
    %12709 = vmatpush.bf16.msra.mxu0 %v10225
    %12710 = vmatpush.bf16.msra.mxu0 %v10217
    %12711 = vmatpush.bf16.msra.mxu0 %v10209
    %12712 = vmatpush.bf16.msra.mxu0 %v10201
    %12713 = vmatpush.bf16.msra.mxu0 %v10193
    %12714 = vmatpush.bf16.msra.mxu0 %v10185
    %12715 = vmatmul.bf16.gmra.mxu0 %v6382
    %v12716 = vpop.f32.mrf.mxu0
    %v12717 = vadd.f32 %v12704, %v12716
    %v12718 = vpop.f32.mrf.mxu0
    %12719 = vdwg.mxu0
    %12720 = vmatpush.bf16.msra.mxu0 %v10305
    %12721 = vmatpush.bf16.msra.mxu0 %v10297
    %12722 = vmatpush.bf16.msra.mxu0 %v10289
    %12723 = vmatpush.bf16.msra.mxu0 %v10281
    %12724 = vmatpush.bf16.msra.mxu0 %v10273
    %12725 = vmatpush.bf16.msra.mxu0 %v10265
    %12726 = vmatpush.bf16.msra.mxu0 %v10257
    %12727 = vmatpush.bf16.msra.mxu0 %v10249
    %12728 = vmatmul.bf16.gmra.mxu0 %v6383
    %v12729 = vpop.f32.mrf.mxu0
    %v12730 = vadd.f32 %v12717, %v12729
    %v12731 = vpop.f32.mrf.mxu0
    %12732 = vdwg.mxu0
    %12733 = vmatpush.bf16.msra.mxu0 %v10369
    %12734 = vmatpush.bf16.msra.mxu0 %v10361
    %12735 = vmatpush.bf16.msra.mxu0 %v10353
    %12736 = vmatpush.bf16.msra.mxu0 %v10345
    %12737 = vmatpush.bf16.msra.mxu0 %v10337
    %12738 = vmatpush.bf16.msra.mxu0 %v10329
    %12739 = vmatpush.bf16.msra.mxu0 %v10321
    %12740 = vmatpush.bf16.msra.mxu0 %v10313
    %12741 = vmatmul.bf16.gmra.mxu0 %v6384
    %v12742 = vpop.f32.mrf.mxu0
    %v12743 = vadd.f32 %v12730, %v12742
    %v12744 = vpop.f32.mrf.mxu0
    %12745 = vdwg.mxu0
    %12746 = vmatpush.bf16.msra.mxu0 %v10433
    %12747 = vmatpush.bf16.msra.mxu0 %v10425
    %12748 = vmatpush.bf16.msra.mxu0 %v10417
    %12749 = vmatpush.bf16.msra.mxu0 %v10409
    %12750 = vmatpush.bf16.msra.mxu0 %v10401
    %12751 = vmatpush.bf16.msra.mxu0 %v10393
    %12752 = vmatpush.bf16.msra.mxu0 %v10385
    %12753 = vmatpush.bf16.msra.mxu0 %v10377
    %12754 = vmatmul.bf16.gmra.mxu0 %v6385
    %v12755 = vpop.f32.mrf.mxu0
    %v12756 = vadd.f32 %v12743, %v12755
    %v12757 = vpop.f32.mrf.mxu0
    %12758 = vdwg.mxu0
    %12759 = vmatpush.bf16.msra.mxu0 %v10497
    %12760 = vmatpush.bf16.msra.mxu0 %v10489
    %12761 = vmatpush.bf16.msra.mxu0 %v10481
    %12762 = vmatpush.bf16.msra.mxu0 %v10473
    %12763 = vmatpush.bf16.msra.mxu0 %v10465
    %12764 = vmatpush.bf16.msra.mxu0 %v10457
    %12765 = vmatpush.bf16.msra.mxu0 %v10449
    %12766 = vmatpush.bf16.msra.mxu0 %v10441
    %12767 = vmatmul.bf16.gmra.mxu0 %v6386
    %v12768 = vpop.f32.mrf.mxu0
    %v12769 = vadd.f32 %v12756, %v12768
    %v12770 = vpop.f32.mrf.mxu0
    %12771 = vdwg.mxu0
    %12772 = vmatpush.bf16.msra.mxu0 %v9538
    %12773 = vmatpush.bf16.msra.mxu0 %v9530
    %12774 = vmatpush.bf16.msra.mxu0 %v9522
    %12775 = vmatpush.bf16.msra.mxu0 %v9514
    %12776 = vmatpush.bf16.msra.mxu0 %v9506
    %12777 = vmatpush.bf16.msra.mxu0 %v9498
    %12778 = vmatpush.bf16.msra.mxu0 %v9490
    %12779 = vmatpush.bf16.msra.mxu0 %v9482
    %12780 = vmatmul.bf16.gmra.mxu0 %v6371
    %v12781 = vpop.f32.mrf.mxu0
    %v12782 = vadd.f32 %v6394, %v12781
    %v12783 = vpop.f32.mrf.mxu0
    %12784 = vdwg.mxu0
    %12785 = vmatpush.bf16.msra.mxu0 %v9602
    %12786 = vmatpush.bf16.msra.mxu0 %v9594
    %12787 = vmatpush.bf16.msra.mxu0 %v9586
    %12788 = vmatpush.bf16.msra.mxu0 %v9578
    %12789 = vmatpush.bf16.msra.mxu0 %v9570
    %12790 = vmatpush.bf16.msra.mxu0 %v9562
    %12791 = vmatpush.bf16.msra.mxu0 %v9554
    %12792 = vmatpush.bf16.msra.mxu0 %v9546
    %12793 = vmatmul.bf16.gmra.mxu0 %v6372
    %v12794 = vpop.f32.mrf.mxu0
    %v12795 = vadd.f32 %v12782, %v12794
    %v12796 = vpop.f32.mrf.mxu0
    %12797 = vdwg.mxu0
    %12798 = vmatpush.bf16.msra.mxu0 %v9666
    %12799 = vmatpush.bf16.msra.mxu0 %v9658
    %12800 = vmatpush.bf16.msra.mxu0 %v9650
    %12801 = vmatpush.bf16.msra.mxu0 %v9642
    %12802 = vmatpush.bf16.msra.mxu0 %v9634
    %12803 = vmatpush.bf16.msra.mxu0 %v9626
    %12804 = vmatpush.bf16.msra.mxu0 %v9618
    %12805 = vmatpush.bf16.msra.mxu0 %v9610
    %12806 = vmatmul.bf16.gmra.mxu0 %v6373
    %v12807 = vpop.f32.mrf.mxu0
    %v12808 = vadd.f32 %v12795, %v12807
    %v12809 = vpop.f32.mrf.mxu0
    %12810 = vdwg.mxu0
    %12811 = vmatpush.bf16.msra.mxu0 %v9730
    %12812 = vmatpush.bf16.msra.mxu0 %v9722
    %12813 = vmatpush.bf16.msra.mxu0 %v9714
    %12814 = vmatpush.bf16.msra.mxu0 %v9706
    %12815 = vmatpush.bf16.msra.mxu0 %v9698
    %12816 = vmatpush.bf16.msra.mxu0 %v9690
    %12817 = vmatpush.bf16.msra.mxu0 %v9682
    %12818 = vmatpush.bf16.msra.mxu0 %v9674
    %12819 = vmatmul.bf16.gmra.mxu0 %v6374
    %v12820 = vpop.f32.mrf.mxu0
    %v12821 = vadd.f32 %v12808, %v12820
    %v12822 = vpop.f32.mrf.mxu0
    %12823 = vdwg.mxu0
    %12824 = vmatpush.bf16.msra.mxu0 %v9794
    %12825 = vmatpush.bf16.msra.mxu0 %v9786
    %12826 = vmatpush.bf16.msra.mxu0 %v9778
    %12827 = vmatpush.bf16.msra.mxu0 %v9770
    %12828 = vmatpush.bf16.msra.mxu0 %v9762
    %12829 = vmatpush.bf16.msra.mxu0 %v9754
    %12830 = vmatpush.bf16.msra.mxu0 %v9746
    %12831 = vmatpush.bf16.msra.mxu0 %v9738
    %12832 = vmatmul.bf16.gmra.mxu0 %v6375
    %v12833 = vpop.f32.mrf.mxu0
    %v12834 = vadd.f32 %v12821, %v12833
    %v12835 = vpop.f32.mrf.mxu0
    %12836 = vdwg.mxu0
    %12837 = vmatpush.bf16.msra.mxu0 %v9858
    %12838 = vmatpush.bf16.msra.mxu0 %v9850
    %12839 = vmatpush.bf16.msra.mxu0 %v9842
    %12840 = vmatpush.bf16.msra.mxu0 %v9834
    %12841 = vmatpush.bf16.msra.mxu0 %v9826
    %12842 = vmatpush.bf16.msra.mxu0 %v9818
    %12843 = vmatpush.bf16.msra.mxu0 %v9810
    %12844 = vmatpush.bf16.msra.mxu0 %v9802
    %12845 = vmatmul.bf16.gmra.mxu0 %v6376
    %v12846 = vpop.f32.mrf.mxu0
    %v12847 = vadd.f32 %v12834, %v12846
    %v12848 = vpop.f32.mrf.mxu0
    %12849 = vdwg.mxu0
    %12850 = vmatpush.bf16.msra.mxu0 %v9922
    %12851 = vmatpush.bf16.msra.mxu0 %v9914
    %12852 = vmatpush.bf16.msra.mxu0 %v9906
    %12853 = vmatpush.bf16.msra.mxu0 %v9898
    %12854 = vmatpush.bf16.msra.mxu0 %v9890
    %12855 = vmatpush.bf16.msra.mxu0 %v9882
    %12856 = vmatpush.bf16.msra.mxu0 %v9874
    %12857 = vmatpush.bf16.msra.mxu0 %v9866
    %12858 = vmatmul.bf16.gmra.mxu0 %v6377
    %v12859 = vpop.f32.mrf.mxu0
    %v12860 = vadd.f32 %v12847, %v12859
    %v12861 = vpop.f32.mrf.mxu0
    %12862 = vdwg.mxu0
    %12863 = vmatpush.bf16.msra.mxu0 %v9986
    %12864 = vmatpush.bf16.msra.mxu0 %v9978
    %12865 = vmatpush.bf16.msra.mxu0 %v9970
    %12866 = vmatpush.bf16.msra.mxu0 %v9962
    %12867 = vmatpush.bf16.msra.mxu0 %v9954
    %12868 = vmatpush.bf16.msra.mxu0 %v9946
    %12869 = vmatpush.bf16.msra.mxu0 %v9938
    %12870 = vmatpush.bf16.msra.mxu0 %v9930
    %12871 = vmatmul.bf16.gmra.mxu0 %v6378
    %v12872 = vpop.f32.mrf.mxu0
    %v12873 = vadd.f32 %v12860, %v12872
    %v12874 = vpop.f32.mrf.mxu0
    %12875 = vdwg.mxu0
    %12876 = vmatpush.bf16.msra.mxu0 %v10050
    %12877 = vmatpush.bf16.msra.mxu0 %v10042
    %12878 = vmatpush.bf16.msra.mxu0 %v10034
    %12879 = vmatpush.bf16.msra.mxu0 %v10026
    %12880 = vmatpush.bf16.msra.mxu0 %v10018
    %12881 = vmatpush.bf16.msra.mxu0 %v10010
    %12882 = vmatpush.bf16.msra.mxu0 %v10002
    %12883 = vmatpush.bf16.msra.mxu0 %v9994
    %12884 = vmatmul.bf16.gmra.mxu0 %v6379
    %v12885 = vpop.f32.mrf.mxu0
    %v12886 = vadd.f32 %v12873, %v12885
    %v12887 = vpop.f32.mrf.mxu0
    %12888 = vdwg.mxu0
    %12889 = vmatpush.bf16.msra.mxu0 %v10114
    %12890 = vmatpush.bf16.msra.mxu0 %v10106
    %12891 = vmatpush.bf16.msra.mxu0 %v10098
    %12892 = vmatpush.bf16.msra.mxu0 %v10090
    %12893 = vmatpush.bf16.msra.mxu0 %v10082
    %12894 = vmatpush.bf16.msra.mxu0 %v10074
    %12895 = vmatpush.bf16.msra.mxu0 %v10066
    %12896 = vmatpush.bf16.msra.mxu0 %v10058
    %12897 = vmatmul.bf16.gmra.mxu0 %v6380
    %v12898 = vpop.f32.mrf.mxu0
    %v12899 = vadd.f32 %v12886, %v12898
    %v12900 = vpop.f32.mrf.mxu0
    %12901 = vdwg.mxu0
    %12902 = vmatpush.bf16.msra.mxu0 %v10178
    %12903 = vmatpush.bf16.msra.mxu0 %v10170
    %12904 = vmatpush.bf16.msra.mxu0 %v10162
    %12905 = vmatpush.bf16.msra.mxu0 %v10154
    %12906 = vmatpush.bf16.msra.mxu0 %v10146
    %12907 = vmatpush.bf16.msra.mxu0 %v10138
    %12908 = vmatpush.bf16.msra.mxu0 %v10130
    %12909 = vmatpush.bf16.msra.mxu0 %v10122
    %12910 = vmatmul.bf16.gmra.mxu0 %v6381
    %v12911 = vpop.f32.mrf.mxu0
    %v12912 = vadd.f32 %v12899, %v12911
    %v12913 = vpop.f32.mrf.mxu0
    %12914 = vdwg.mxu0
    %12915 = vmatpush.bf16.msra.mxu0 %v10242
    %12916 = vmatpush.bf16.msra.mxu0 %v10234
    %12917 = vmatpush.bf16.msra.mxu0 %v10226
    %12918 = vmatpush.bf16.msra.mxu0 %v10218
    %12919 = vmatpush.bf16.msra.mxu0 %v10210
    %12920 = vmatpush.bf16.msra.mxu0 %v10202
    %12921 = vmatpush.bf16.msra.mxu0 %v10194
    %12922 = vmatpush.bf16.msra.mxu0 %v10186
    %12923 = vmatmul.bf16.gmra.mxu0 %v6382
    %v12924 = vpop.f32.mrf.mxu0
    %v12925 = vadd.f32 %v12912, %v12924
    %v12926 = vpop.f32.mrf.mxu0
    %12927 = vdwg.mxu0
    %12928 = vmatpush.bf16.msra.mxu0 %v10306
    %12929 = vmatpush.bf16.msra.mxu0 %v10298
    %12930 = vmatpush.bf16.msra.mxu0 %v10290
    %12931 = vmatpush.bf16.msra.mxu0 %v10282
    %12932 = vmatpush.bf16.msra.mxu0 %v10274
    %12933 = vmatpush.bf16.msra.mxu0 %v10266
    %12934 = vmatpush.bf16.msra.mxu0 %v10258
    %12935 = vmatpush.bf16.msra.mxu0 %v10250
    %12936 = vmatmul.bf16.gmra.mxu0 %v6383
    %v12937 = vpop.f32.mrf.mxu0
    %v12938 = vadd.f32 %v12925, %v12937
    %v12939 = vpop.f32.mrf.mxu0
    %12940 = vdwg.mxu0
    %12941 = vmatpush.bf16.msra.mxu0 %v10370
    %12942 = vmatpush.bf16.msra.mxu0 %v10362
    %12943 = vmatpush.bf16.msra.mxu0 %v10354
    %12944 = vmatpush.bf16.msra.mxu0 %v10346
    %12945 = vmatpush.bf16.msra.mxu0 %v10338
    %12946 = vmatpush.bf16.msra.mxu0 %v10330
    %12947 = vmatpush.bf16.msra.mxu0 %v10322
    %12948 = vmatpush.bf16.msra.mxu0 %v10314
    %12949 = vmatmul.bf16.gmra.mxu0 %v6384
    %v12950 = vpop.f32.mrf.mxu0
    %v12951 = vadd.f32 %v12938, %v12950
    %v12952 = vpop.f32.mrf.mxu0
    %12953 = vdwg.mxu0
    %12954 = vmatpush.bf16.msra.mxu0 %v10434
    %12955 = vmatpush.bf16.msra.mxu0 %v10426
    %12956 = vmatpush.bf16.msra.mxu0 %v10418
    %12957 = vmatpush.bf16.msra.mxu0 %v10410
    %12958 = vmatpush.bf16.msra.mxu0 %v10402
    %12959 = vmatpush.bf16.msra.mxu0 %v10394
    %12960 = vmatpush.bf16.msra.mxu0 %v10386
    %12961 = vmatpush.bf16.msra.mxu0 %v10378
    %12962 = vmatmul.bf16.gmra.mxu0 %v6385
    %v12963 = vpop.f32.mrf.mxu0
    %v12964 = vadd.f32 %v12951, %v12963
    %v12965 = vpop.f32.mrf.mxu0
    %12966 = vdwg.mxu0
    %12967 = vmatpush.bf16.msra.mxu0 %v10498
    %12968 = vmatpush.bf16.msra.mxu0 %v10490
    %12969 = vmatpush.bf16.msra.mxu0 %v10482
    %12970 = vmatpush.bf16.msra.mxu0 %v10474
    %12971 = vmatpush.bf16.msra.mxu0 %v10466
    %12972 = vmatpush.bf16.msra.mxu0 %v10458
    %12973 = vmatpush.bf16.msra.mxu0 %v10450
    %12974 = vmatpush.bf16.msra.mxu0 %v10442
    %12975 = vmatmul.bf16.gmra.mxu0 %v6386
    %v12976 = vpop.f32.mrf.mxu0
    %v12977 = vadd.f32 %v12964, %v12976
    %v12978 = vpop.f32.mrf.mxu0
    %12979 = vdwg.mxu0
    %12980 = vmatpush.bf16.msra.mxu0 %v9539
    %12981 = vmatpush.bf16.msra.mxu0 %v9531
    %12982 = vmatpush.bf16.msra.mxu0 %v9523
    %12983 = vmatpush.bf16.msra.mxu0 %v9515
    %12984 = vmatpush.bf16.msra.mxu0 %v9507
    %12985 = vmatpush.bf16.msra.mxu0 %v9499
    %12986 = vmatpush.bf16.msra.mxu0 %v9491
    %12987 = vmatpush.bf16.msra.mxu0 %v9483
    %12988 = vmatmul.bf16.gmra.mxu0 %v6371
    %v12989 = vpop.f32.mrf.mxu0
    %v12990 = vadd.f32 %v6395, %v12989
    %v12991 = vpop.f32.mrf.mxu0
    %12992 = vdwg.mxu0
    %12993 = vmatpush.bf16.msra.mxu0 %v9603
    %12994 = vmatpush.bf16.msra.mxu0 %v9595
    %12995 = vmatpush.bf16.msra.mxu0 %v9587
    %12996 = vmatpush.bf16.msra.mxu0 %v9579
    %12997 = vmatpush.bf16.msra.mxu0 %v9571
    %12998 = vmatpush.bf16.msra.mxu0 %v9563
    %12999 = vmatpush.bf16.msra.mxu0 %v9555
    %13000 = vmatpush.bf16.msra.mxu0 %v9547
    %13001 = vmatmul.bf16.gmra.mxu0 %v6372
    %v13002 = vpop.f32.mrf.mxu0
    %v13003 = vadd.f32 %v12990, %v13002
    %v13004 = vpop.f32.mrf.mxu0
    %13005 = vdwg.mxu0
    %13006 = vmatpush.bf16.msra.mxu0 %v9667
    %13007 = vmatpush.bf16.msra.mxu0 %v9659
    %13008 = vmatpush.bf16.msra.mxu0 %v9651
    %13009 = vmatpush.bf16.msra.mxu0 %v9643
    %13010 = vmatpush.bf16.msra.mxu0 %v9635
    %13011 = vmatpush.bf16.msra.mxu0 %v9627
    %13012 = vmatpush.bf16.msra.mxu0 %v9619
    %13013 = vmatpush.bf16.msra.mxu0 %v9611
    %13014 = vmatmul.bf16.gmra.mxu0 %v6373
    %v13015 = vpop.f32.mrf.mxu0
    %v13016 = vadd.f32 %v13003, %v13015
    %v13017 = vpop.f32.mrf.mxu0
    %13018 = vdwg.mxu0
    %13019 = vmatpush.bf16.msra.mxu0 %v9731
    %13020 = vmatpush.bf16.msra.mxu0 %v9723
    %13021 = vmatpush.bf16.msra.mxu0 %v9715
    %13022 = vmatpush.bf16.msra.mxu0 %v9707
    %13023 = vmatpush.bf16.msra.mxu0 %v9699
    %13024 = vmatpush.bf16.msra.mxu0 %v9691
    %13025 = vmatpush.bf16.msra.mxu0 %v9683
    %13026 = vmatpush.bf16.msra.mxu0 %v9675
    %13027 = vmatmul.bf16.gmra.mxu0 %v6374
    %v13028 = vpop.f32.mrf.mxu0
    %v13029 = vadd.f32 %v13016, %v13028
    %v13030 = vpop.f32.mrf.mxu0
    %13031 = vdwg.mxu0
    %13032 = vmatpush.bf16.msra.mxu0 %v9795
    %13033 = vmatpush.bf16.msra.mxu0 %v9787
    %13034 = vmatpush.bf16.msra.mxu0 %v9779
    %13035 = vmatpush.bf16.msra.mxu0 %v9771
    %13036 = vmatpush.bf16.msra.mxu0 %v9763
    %13037 = vmatpush.bf16.msra.mxu0 %v9755
    %13038 = vmatpush.bf16.msra.mxu0 %v9747
    %13039 = vmatpush.bf16.msra.mxu0 %v9739
    %13040 = vmatmul.bf16.gmra.mxu0 %v6375
    %v13041 = vpop.f32.mrf.mxu0
    %v13042 = vadd.f32 %v13029, %v13041
    %v13043 = vpop.f32.mrf.mxu0
    %13044 = vdwg.mxu0
    %13045 = vmatpush.bf16.msra.mxu0 %v9859
    %13046 = vmatpush.bf16.msra.mxu0 %v9851
    %13047 = vmatpush.bf16.msra.mxu0 %v9843
    %13048 = vmatpush.bf16.msra.mxu0 %v9835
    %13049 = vmatpush.bf16.msra.mxu0 %v9827
    %13050 = vmatpush.bf16.msra.mxu0 %v9819
    %13051 = vmatpush.bf16.msra.mxu0 %v9811
    %13052 = vmatpush.bf16.msra.mxu0 %v9803
    %13053 = vmatmul.bf16.gmra.mxu0 %v6376
    %v13054 = vpop.f32.mrf.mxu0
    %v13055 = vadd.f32 %v13042, %v13054
    %v13056 = vpop.f32.mrf.mxu0
    %13057 = vdwg.mxu0
    %13058 = vmatpush.bf16.msra.mxu0 %v9923
    %13059 = vmatpush.bf16.msra.mxu0 %v9915
    %13060 = vmatpush.bf16.msra.mxu0 %v9907
    %13061 = vmatpush.bf16.msra.mxu0 %v9899
    %13062 = vmatpush.bf16.msra.mxu0 %v9891
    %13063 = vmatpush.bf16.msra.mxu0 %v9883
    %13064 = vmatpush.bf16.msra.mxu0 %v9875
    %13065 = vmatpush.bf16.msra.mxu0 %v9867
    %13066 = vmatmul.bf16.gmra.mxu0 %v6377
    %v13067 = vpop.f32.mrf.mxu0
    %v13068 = vadd.f32 %v13055, %v13067
    %v13069 = vpop.f32.mrf.mxu0
    %13070 = vdwg.mxu0
    %13071 = vmatpush.bf16.msra.mxu0 %v9987
    %13072 = vmatpush.bf16.msra.mxu0 %v9979
    %13073 = vmatpush.bf16.msra.mxu0 %v9971
    %13074 = vmatpush.bf16.msra.mxu0 %v9963
    %13075 = vmatpush.bf16.msra.mxu0 %v9955
    %13076 = vmatpush.bf16.msra.mxu0 %v9947
    %13077 = vmatpush.bf16.msra.mxu0 %v9939
    %13078 = vmatpush.bf16.msra.mxu0 %v9931
    %13079 = vmatmul.bf16.gmra.mxu0 %v6378
    %v13080 = vpop.f32.mrf.mxu0
    %v13081 = vadd.f32 %v13068, %v13080
    %v13082 = vpop.f32.mrf.mxu0
    %13083 = vdwg.mxu0
    %13084 = vmatpush.bf16.msra.mxu0 %v10051
    %13085 = vmatpush.bf16.msra.mxu0 %v10043
    %13086 = vmatpush.bf16.msra.mxu0 %v10035
    %13087 = vmatpush.bf16.msra.mxu0 %v10027
    %13088 = vmatpush.bf16.msra.mxu0 %v10019
    %13089 = vmatpush.bf16.msra.mxu0 %v10011
    %13090 = vmatpush.bf16.msra.mxu0 %v10003
    %13091 = vmatpush.bf16.msra.mxu0 %v9995
    %13092 = vmatmul.bf16.gmra.mxu0 %v6379
    %v13093 = vpop.f32.mrf.mxu0
    %v13094 = vadd.f32 %v13081, %v13093
    %v13095 = vpop.f32.mrf.mxu0
    %13096 = vdwg.mxu0
    %13097 = vmatpush.bf16.msra.mxu0 %v10115
    %13098 = vmatpush.bf16.msra.mxu0 %v10107
    %13099 = vmatpush.bf16.msra.mxu0 %v10099
    %13100 = vmatpush.bf16.msra.mxu0 %v10091
    %13101 = vmatpush.bf16.msra.mxu0 %v10083
    %13102 = vmatpush.bf16.msra.mxu0 %v10075
    %13103 = vmatpush.bf16.msra.mxu0 %v10067
    %13104 = vmatpush.bf16.msra.mxu0 %v10059
    %13105 = vmatmul.bf16.gmra.mxu0 %v6380
    %v13106 = vpop.f32.mrf.mxu0
    %v13107 = vadd.f32 %v13094, %v13106
    %v13108 = vpop.f32.mrf.mxu0
    %13109 = vdwg.mxu0
    %13110 = vmatpush.bf16.msra.mxu0 %v10179
    %13111 = vmatpush.bf16.msra.mxu0 %v10171
    %13112 = vmatpush.bf16.msra.mxu0 %v10163
    %13113 = vmatpush.bf16.msra.mxu0 %v10155
    %13114 = vmatpush.bf16.msra.mxu0 %v10147
    %13115 = vmatpush.bf16.msra.mxu0 %v10139
    %13116 = vmatpush.bf16.msra.mxu0 %v10131
    %13117 = vmatpush.bf16.msra.mxu0 %v10123
    %13118 = vmatmul.bf16.gmra.mxu0 %v6381
    %v13119 = vpop.f32.mrf.mxu0
    %v13120 = vadd.f32 %v13107, %v13119
    %v13121 = vpop.f32.mrf.mxu0
    %13122 = vdwg.mxu0
    %13123 = vmatpush.bf16.msra.mxu0 %v10243
    %13124 = vmatpush.bf16.msra.mxu0 %v10235
    %13125 = vmatpush.bf16.msra.mxu0 %v10227
    %13126 = vmatpush.bf16.msra.mxu0 %v10219
    %13127 = vmatpush.bf16.msra.mxu0 %v10211
    %13128 = vmatpush.bf16.msra.mxu0 %v10203
    %13129 = vmatpush.bf16.msra.mxu0 %v10195
    %13130 = vmatpush.bf16.msra.mxu0 %v10187
    %13131 = vmatmul.bf16.gmra.mxu0 %v6382
    %v13132 = vpop.f32.mrf.mxu0
    %v13133 = vadd.f32 %v13120, %v13132
    %v13134 = vpop.f32.mrf.mxu0
    %13135 = vdwg.mxu0
    %13136 = vmatpush.bf16.msra.mxu0 %v10307
    %13137 = vmatpush.bf16.msra.mxu0 %v10299
    %13138 = vmatpush.bf16.msra.mxu0 %v10291
    %13139 = vmatpush.bf16.msra.mxu0 %v10283
    %13140 = vmatpush.bf16.msra.mxu0 %v10275
    %13141 = vmatpush.bf16.msra.mxu0 %v10267
    %13142 = vmatpush.bf16.msra.mxu0 %v10259
    %13143 = vmatpush.bf16.msra.mxu0 %v10251
    %13144 = vmatmul.bf16.gmra.mxu0 %v6383
    %v13145 = vpop.f32.mrf.mxu0
    %v13146 = vadd.f32 %v13133, %v13145
    %v13147 = vpop.f32.mrf.mxu0
    %13148 = vdwg.mxu0
    %13149 = vmatpush.bf16.msra.mxu0 %v10371
    %13150 = vmatpush.bf16.msra.mxu0 %v10363
    %13151 = vmatpush.bf16.msra.mxu0 %v10355
    %13152 = vmatpush.bf16.msra.mxu0 %v10347
    %13153 = vmatpush.bf16.msra.mxu0 %v10339
    %13154 = vmatpush.bf16.msra.mxu0 %v10331
    %13155 = vmatpush.bf16.msra.mxu0 %v10323
    %13156 = vmatpush.bf16.msra.mxu0 %v10315
    %13157 = vmatmul.bf16.gmra.mxu0 %v6384
    %v13158 = vpop.f32.mrf.mxu0
    %v13159 = vadd.f32 %v13146, %v13158
    %v13160 = vpop.f32.mrf.mxu0
    %13161 = vdwg.mxu0
    %13162 = vmatpush.bf16.msra.mxu0 %v10435
    %13163 = vmatpush.bf16.msra.mxu0 %v10427
    %13164 = vmatpush.bf16.msra.mxu0 %v10419
    %13165 = vmatpush.bf16.msra.mxu0 %v10411
    %13166 = vmatpush.bf16.msra.mxu0 %v10403
    %13167 = vmatpush.bf16.msra.mxu0 %v10395
    %13168 = vmatpush.bf16.msra.mxu0 %v10387
    %13169 = vmatpush.bf16.msra.mxu0 %v10379
    %13170 = vmatmul.bf16.gmra.mxu0 %v6385
    %v13171 = vpop.f32.mrf.mxu0
    %v13172 = vadd.f32 %v13159, %v13171
    %v13173 = vpop.f32.mrf.mxu0
    %13174 = vdwg.mxu0
    %13175 = vmatpush.bf16.msra.mxu0 %v10499
    %13176 = vmatpush.bf16.msra.mxu0 %v10491
    %13177 = vmatpush.bf16.msra.mxu0 %v10483
    %13178 = vmatpush.bf16.msra.mxu0 %v10475
    %13179 = vmatpush.bf16.msra.mxu0 %v10467
    %13180 = vmatpush.bf16.msra.mxu0 %v10459
    %13181 = vmatpush.bf16.msra.mxu0 %v10451
    %13182 = vmatpush.bf16.msra.mxu0 %v10443
    %13183 = vmatmul.bf16.gmra.mxu0 %v6386
    %v13184 = vpop.f32.mrf.mxu0
    %v13185 = vadd.f32 %v13172, %v13184
    %v13186 = vpop.f32.mrf.mxu0
    %13187 = vdwg.mxu0
    %v13196 = vrot.slane %v11937, 6
    %v13197 = vrot.slane %v12145, 4
    %v13198 = vrot.slane %v12353, 2
    %v13199 = vrot.slane %v12769, 6
    %v13200 = vrot.slane %v12977, 4
    %v13201 = vrot.slane %v13185, 2
    %v13202 = vsel %vm4277, %v11729, %v13196
    %vm13203 = vcmask 1045508
    %v13204 = vsel %vm13203, %v13197, %v13198
    %v13205 = vsel %vm180, %v13202, %v13204
    %v13206 = vsel %vm4277, %v12561, %v13199
    %v13207 = vsel %vm13203, %v13200, %v13201
    %v13208 = vsel %vm180, %v13206, %v13207
    %13211 = vst [vmem:[#allocation16] sm:$0xff] %v13205
    %13212 = vst [vmem:[#allocation16 + $0x8] sm:$0xff] %v13208
    // Predicated region
    $region74: #{tpu_custom_call.1} parent=1 // pred_check
      _
    $region75: #{tpu_custom_call.1} parent=1 // pred_check_branch
      %13214 = sbr.rel (0) target = $region77
    $region76: #{tpu_custom_call.1} parent=1 // pred_region
      %13216 = vsyncadd [#allocation4], 0
      %s13218 = sshll.u32 [#allocation16], 4
      %s13219 = int_to_ptr.vmem [resolvable:$true] %s13218
      %s13220 = sshll.u32 %s10, 4
      %s13221 = int_to_ptr.hbm [resolvable:$true] %s13220
      %13223 = dma.vmem_to_hbm [thread:$0]  %s13219, 256, %s13221, [#allocation4]
    $region77: #{tpu_custom_call.1} parent=1 // pred_fallthru
      _
    // Predicated region
    $region78: #{tpu_custom_call.1} parent=1 // pred_check
      _
    $region79: #{tpu_custom_call.1} parent=1 // pred_check_branch
      %13225 = sbr.rel (0) target = $region81
    $region80: #{tpu_custom_call.1} parent=1 // pred_region
      %13227 = dma.done [#allocation4], 256
    $region81: #{tpu_custom_call.1} parent=1 // pred_fallthru
      _
    %13228 = vsyncpa [#allocation3], 1
    %13229 = vsyncpa [#allocation6], 1
    %13230 = vsyncpa [#allocation9], 1
    %13231 = vsyncpa [#allocation12], 1
    %13232 = vsyncpa [#allocation15], 1
    %13233 = vsyncpa [#allocation4], 1

</llo_original>
